<compile_context>
chip_gen: v5e
topology: v5e:2x2
jax: 0.10.0
libtpu: 0.0.40
codegen_flags: <defaults>
</compile_context>

<pallas_src>
from functools import partial

import numpy as np
import jax
import jax.numpy as jnp
from jax.experimental import pallas as pl
from jax.experimental.pallas import tpu as pltpu

EPS = 1e-5
LANE = 128


def _round_up(x, m):
    return (x + m - 1) // m * m


def residual_block_kernel(x_ref, w_ref, g_ref, b_ref, out_ref, xpad_ref, *,
                          apply_relu):
    """Fused 3-stage ResidualBlock.

    x_ref    : (B, H, W, Cp)     input, channels lane-padded, conv dtype
    w_ref    : (27, Cp, Cp)      per-(stage, tap) weight matrices, conv dtype
    g_ref    : (3, 1, Cp)        BN gamma (padded channels = 0), f32
    b_ref    : (3, 1, Cp)        BN beta  (padded channels = 0), f32
    out_ref  : (B*H*W, Cp)       lane-dense output slab, f32
    xpad_ref : (B, H+2, Wp, Cp)  VMEM scratch: zero-haloed activation, conv dtype
                                 (Wp = W+2 rounded up to a multiple of 8)
    """
    B, Hp2, Wp, Cp = xpad_ref.shape
    H = Hp2 - 2
    W = x_ref.shape[2]
    n = B * H * W
    cd = xpad_ref.dtype

    # ---- zero ONLY the 1-pixel halo ring (interior is overwritten right after) --
    xpad_ref[:, 0:1, :, :] = jnp.zeros((B, 1, Wp, Cp), cd)           # top row
    xpad_ref[:, H + 1:H + 2, :, :] = jnp.zeros((B, 1, Wp, Cp), cd)   # bottom row
    xpad_ref[:, :, 0:1, :] = jnp.zeros((B, Hp2, 1, Cp), cd)          # left column
    xpad_ref[:, :, W + 1:W + 2, :] = jnp.zeros((B, Hp2, 1, Cp), cd)  # right column
    # columns W+2 .. Wp-1 (sublane-alignment pad) are never read -> left untouched

    # ---- stage-0 activation into the halo interior ------------------------------
    xpad_ref[:, 1:H + 1, 1:W + 1, :] = x_ref[...]

    for s in range(3):                                   # three stages, unrolled
        # ---- conv3x3: 9 per-tap matmuls accumulated on the MXU in f32 ----------
        # (no materialized im2col; window operand feeds the MXU directly)
        acc = None
        center = None                                    # (dy, dx) == (1, 1) window
        for dy in range(3):
            for dx in range(3):
                win = xpad_ref[:, dy:dy + H, dx:dx + W, :].reshape(n, Cp)
                if dy == 1 and dx == 1:
                    center = win                         # reused as the residual
                part = jnp.dot(win, w_ref[s * 9 + dy * 3 + dx],
                               preferred_element_type=jnp.float32)
                acc = part if acc is None else acc + part

        # ---- BatchNorm2d (train-mode batch stats), single pass over acc --------
        mean = jnp.mean(acc, axis=0, keepdims=True)                    # (1, Cp)
        var = jnp.maximum(
            jnp.mean(acc * acc, axis=0, keepdims=True) - mean * mean, 0.0)
        scale = g_ref[s] * jax.lax.rsqrt(var + EPS)                    # gamma/std
        shift = b_ref[s] - mean * scale                                # beta - m*s

        # ---- fused normalize + affine + residual (+ final ReLU) ----------------
        out = acc * scale + shift + center.astype(jnp.float32)
        if s == 2:
            if apply_relu:
                out = jnp.maximum(out, 0.0)
            out_ref[...] = out.astype(out_ref.dtype)
        else:
            # becomes next stage's activation; halo ring stays zero (padding=1)
            xpad_ref[:, 1:H + 1, 1:W + 1, :] = out.reshape(B, H, W, Cp).astype(cd)


def residual_block_forward(x_nchw, params, apply_activation=False,
                           conv_dtype=jnp.float32):
    """Matches ResidualBlock.forward (stride=1, in_channels == out_channels).

    conv_dtype=bfloat16 is a valid fast path on v5e, v6e and v7x (bf16 MXU
    operands, f32 accumulation; BN / residual math remains f32).
    """
    B, C, H, W = x_nchw.shape
    Cp = _round_up(C, LANE)           # lane-pack channels (no-op when C % 128 == 0)
    Wp = _round_up(W + 2, 8)          # sublane-align the haloed scratch
    n = B * H * W

    x = jnp.transpose(x_nchw, (0, 2, 3, 1)).astype(conv_dtype)       # NCHW -> NHWC
    if Cp != C:
        x = jnp.pad(x, ((0, 0), (0, 0), (0, 0), (0, Cp - C)))

    # Pack parameters.  Padded-lane invariants (all three are required together so
    # padded lanes stay exactly 0 through every stage): weights zero-padded in BOTH
    # Cin and Cout, gamma padded with 0 (not 1), beta padded with 0.
    ws, gs, bs = [], [], []
    for i in (1, 2, 3):
        wp = jnp.zeros((3, 3, Cp, Cp), conv_dtype)
        wp = wp.at[:, :, :C, :C].set(params[f"w{i}"].astype(conv_dtype))
        ws.append(wp.reshape(9, Cp, Cp))
        gs.append(jnp.zeros((Cp,), jnp.float32).at[:C].set(params[f"g{i}"]))
        bs.append(jnp.zeros((Cp,), jnp.float32).at[:C].set(params[f"b{i}"]))
    w_all = jnp.concatenate(ws, axis=0)                               # (27, Cp, Cp)
    g_all = jnp.stack(gs).reshape(3, 1, Cp)
    b_all = jnp.stack(bs).reshape(3, 1, Cp)

    # ---- VMEM budget derived from the actual resident buffers -------------------
    csz = np.dtype(conv_dtype).itemsize
    vmem_need = (
        B * H * W * Cp * csz              # x input
        + 27 * Cp * Cp * csz              # weights
        + 2 * 3 * Cp * 4                  # gamma / beta
        + n * Cp * 4                      # output slab (f32)
        + B * (H + 2) * Wp * Cp * csz     # haloed activation scratch
        + 2 * n * Cp * 4                  # f32 accumulator + live window/residual
    )
    try:
        phys_vmem = getattr(pltpu.get_tpu_info(), "vmem_capacity_bytes",
                            128 * 1024 * 1024)
    except Exception:                     # conservative default (v5e/v6e)
        phys_vmem = 128 * 1024 * 1024
    cap = int(phys_vmem * 0.85)           # ~108 MiB on v5e/v6e, ~54 MiB on v7x
    if vmem_need > cap:
        # TODO(synk): row-band grid + two-phase (sum/sumsq -> normalize) BatchNorm
        # reduction for activations exceeding VMEM (required on v7x at large shapes).
        raise ValueError(
            f"activation footprint {vmem_need} B exceeds usable VMEM {cap} B; "
            "a gridded row-band variant is required for this shape")
    vmem_limit = int(min(max(2 * vmem_need + (4 << 20), 16 << 20), cap))

    vmem = pl.BlockSpec(memory_space=pltpu.MemorySpace.VMEM)
    out2d = pl.pallas_call(
        partial(residual_block_kernel, apply_relu=apply_activation),
        out_shape=jax.ShapeDtypeStruct((n, Cp), jnp.float32),         # lane-dense
        in_specs=[vmem] * 4,
        out_specs=vmem,
        scratch_shapes=[
            pltpu.VMEM((B, H + 2, Wp, Cp), conv_dtype),               # haloed act.
        ],
        compiler_params=pltpu.CompilerParams(vmem_limit_bytes=vmem_limit),
    )(x, w_all, g_all, b_all)

    out = out2d.reshape(B, H, W, Cp)[..., :C]
    return jnp.transpose(out, (0, 3, 1, 2))                           # NHWC -> NCHW


# ----------------------------- reference (pure JAX) ---------------------------
def _ref_stage(x, w, gamma, beta, res):
    y = jax.lax.conv_general_dilated(
        x, w, window_strides=(1, 1), padding="SAME",
        dimension_numbers=("NHWC", "HWIO", "NHWC"))
    mean = y.mean(axis=(0, 1, 2))
    var = ((y - mean) ** 2).mean(axis=(0, 1, 2))
    return (y - mean) / jnp.sqrt(var + EPS) * gamma + beta + res


def _reference(x_nchw, params, apply_activation):
    r = jnp.transpose(x_nchw, (0, 2, 3, 1))
    for i in (1, 2, 3):
        r = _ref_stage(r, params[f"w{i}"], params[f"g{i}"], params[f"b{i}"], r)
    if apply_activation:
        r = jnp.maximum(r, 0.0)
    return jnp.transpose(r, (0, 3, 1, 2))


if __name__ == "__main__":
    key = jax.random.PRNGKey(0)
    B, C, H, W = 2, 4, 16, 16                                         # in_ch == out_ch
    k0, k1, k2, k3 = jax.random.split(key, 4)

    x = jax.random.normal(k0, (B, C, H, W), jnp.float32)

    params = {}
    fan_scale = 1.0 / np.sqrt(C * 9)                                  # conv fan-in
    for i, kk in zip((1, 2, 3), (k1, k2, k3)):
        params[f"w{i}"] = fan_scale * jax.random.normal(kk, (3, 3, C, C), jnp.float32)
        params[f"g{i}"] = jnp.ones((C,), jnp.float32)                 # BN weight init
        params[f"b{i}"] = jnp.zeros((C,), jnp.float32)                # BN bias init

    # 1) f32 conv path, no final activation
    out = jax.block_until_ready(residual_block_forward(x, params, False))
    ref = _reference(x, params, False)
    np.testing.assert_allclose(np.asarray(out), np.asarray(ref),
                               rtol=1e-3, atol=1e-3)

    # 2) f32 conv path, apply_activation=True: validates the ReLU branch placement
    out_relu = jax.block_until_ready(residual_block_forward(x, params, True))
    ref_relu = _reference(x, params, True)
    np.testing.assert_allclose(np.asarray(out_relu), np.asarray(ref_relu),
                               rtol=1e-3, atol=1e-3)

    # 3) bf16 MXU-operand path (f32 accumulation, bf16 inter-stage activations):
    #    loose sanity check — quantization compounds over 3 stages.
    out_bf16 = jax.block_until_ready(
        residual_block_forward(x, params, False, conv_dtype=jnp.bfloat16))
    np.testing.assert_allclose(np.asarray(out_bf16), np.asarray(ref),
                               rtol=2e-1, atol=2e-1)

    print("KERNEL_OK")
</pallas_src>

<mosaic_0001>
module attributes {stable_mosaic.version = 11 : i64} {
  func.func @residual_block_kernel(%arg0: memref<2x16x16x128xf32, #tpu.memory_space<vmem>>, %arg1: memref<27x128x128xf32, #tpu.memory_space<vmem>>, %arg2: memref<3x1x128xf32, #tpu.memory_space<vmem>>, %arg3: memref<3x1x128xf32, #tpu.memory_space<vmem>>, %arg4: memref<512x128xf32, #tpu.memory_space<vmem>>, %arg5: memref<2x18x24x128xf32, #tpu.memory_space<vmem>>) attributes {dimension_semantics = [], scalar_prefetch = 0 : i64, scratch_operands = 1 : i64, tpu.core_type = #tpu.core_type<tc>} {
    %cst = arith.constant 0.000000e+00 : f32
    %0 = vector.broadcast %cst : f32 to vector<2x1x24x128xf32>
    %c0 = arith.constant 0 : index
    %c0_0 = arith.constant 0 : index
    %c0_1 = arith.constant 0 : index
    %c0_2 = arith.constant 0 : index
    %1 = vector.load %arg5[%c0, %c0_0, %c0_1, %c0_2] : memref<2x18x24x128xf32, #tpu.memory_space<vmem>>, vector<2x1x24x128xf32>
    tpu.vector_store %arg5[%c0, %c0_0, %c0_1, %c0_2], %0 {strides = array<i32>} : memref<2x18x24x128xf32, #tpu.memory_space<vmem>>, vector<2x1x24x128xf32>,
    %cst_3 = arith.constant 0.000000e+00 : f32
    %2 = vector.broadcast %cst_3 : f32 to vector<2x1x24x128xf32>
    %c0_4 = arith.constant 0 : index
    %c17 = arith.constant 17 : index
    %c0_5 = arith.constant 0 : index
    %c0_6 = arith.constant 0 : index
    %3 = vector.load %arg5[%c0_4, %c17, %c0_5, %c0_6] : memref<2x18x24x128xf32, #tpu.memory_space<vmem>>, vector<2x1x24x128xf32>
    tpu.vector_store %arg5[%c0_4, %c17, %c0_5, %c0_6], %2 {strides = array<i32>} : memref<2x18x24x128xf32, #tpu.memory_space<vmem>>, vector<2x1x24x128xf32>,
    %cst_7 = arith.constant 0.000000e+00 : f32
    %4 = vector.broadcast %cst_7 : f32 to vector<2x18x1x128xf32>
    %c0_8 = arith.constant 0 : index
    %c0_9 = arith.constant 0 : index
    %c0_10 = arith.constant 0 : index
    %c0_11 = arith.constant 0 : index
    %5 = vector.load %arg5[%c0_8, %c0_9, %c0_10, %c0_11] : memref<2x18x24x128xf32, #tpu.memory_space<vmem>>, vector<2x18x1x128xf32>
    tpu.vector_store %arg5[%c0_8, %c0_9, %c0_10, %c0_11], %4 {strides = array<i32>} : memref<2x18x24x128xf32, #tpu.memory_space<vmem>>, vector<2x18x1x128xf32>,
    %cst_12 = arith.constant 0.000000e+00 : f32
    %6 = vector.broadcast %cst_12 : f32 to vector<2x18x1x128xf32>
    %c0_13 = arith.constant 0 : index
    %c0_14 = arith.constant 0 : index
    %c17_15 = arith.constant 17 : index
    %c0_16 = arith.constant 0 : index
    %7 = vector.load %arg5[%c0_13, %c0_14, %c17_15, %c0_16] : memref<2x18x24x128xf32, #tpu.memory_space<vmem>>, vector<2x18x1x128xf32>
    tpu.vector_store %arg5[%c0_13, %c0_14, %c17_15, %c0_16], %6 {strides = array<i32>} : memref<2x18x24x128xf32, #tpu.memory_space<vmem>>, vector<2x18x1x128xf32>,
    %c0_17 = arith.constant 0 : index
    %c0_18 = arith.constant 0 : index
    %c0_19 = arith.constant 0 : index
    %c0_20 = arith.constant 0 : index
    %8 = vector.load %arg0[%c0_17, %c0_18, %c0_19, %c0_20] : memref<2x16x16x128xf32, #tpu.memory_space<vmem>>, vector<2x16x16x128xf32>
    %c0_21 = arith.constant 0 : index
    %c1 = arith.constant 1 : index
    %c1_22 = arith.constant 1 : index
    %c0_23 = arith.constant 0 : index
    %9 = vector.load %arg5[%c0_21, %c1, %c1_22, %c0_23] : memref<2x18x24x128xf32, #tpu.memory_space<vmem>>, vector<2x16x16x128xf32>
    tpu.vector_store %arg5[%c0_21, %c1, %c1_22, %c0_23], %8 {strides = array<i32>} : memref<2x18x24x128xf32, #tpu.memory_space<vmem>>, vector<2x16x16x128xf32>,
    %c0_24 = arith.constant 0 : index
    %c0_25 = arith.constant 0 : index
    %c0_26 = arith.constant 0 : index
    %c0_27 = arith.constant 0 : index
    %10 = vector.load %arg5[%c0_24, %c0_25, %c0_26, %c0_27] : memref<2x18x24x128xf32, #tpu.memory_space<vmem>>, vector<2x16x16x128xf32>
    %11 = vector.shape_cast %10 : vector<2x16x16x128xf32> to vector<512x128xf32>
    %c0_28 = arith.constant 0 : index
    %c0_29 = arith.constant 0 : index
    %c0_30 = arith.constant 0 : index
    %12 = vector.load %arg1[%c0_28, %c0_29, %c0_30] : memref<27x128x128xf32, #tpu.memory_space<vmem>>, vector<1x128x128xf32>
    %13 = vector.shape_cast %12 : vector<1x128x128xf32> to vector<128x128xf32>
    %cst_31 = arith.constant dense<0.000000e+00> : vector<512x128xf32>
    %14 = tpu.matmul %11, %13, %cst_31 {dimension_numbers = #tpu.dot_dimension_numbers<[1], [0], [0], [1], [0, 0, 1, 1], [], []>} : vector<512x128xf32>, vector<128x128xf32>, vector<512x128xf32> -> vector<512x128xf32>
    %c0_32 = arith.constant 0 : index
    %c0_33 = arith.constant 0 : index
    %c1_34 = arith.constant 1 : index
    %c0_35 = arith.constant 0 : index
    %15 = vector.load %arg5[%c0_32, %c0_33, %c1_34, %c0_35] : memref<2x18x24x128xf32, #tpu.memory_space<vmem>>, vector<2x16x16x128xf32>
    %16 = vector.shape_cast %15 : vector<2x16x16x128xf32> to vector<512x128xf32>
    %c1_36 = arith.constant 1 : index
    %c0_37 = arith.constant 0 : index
    %c0_38 = arith.constant 0 : index
    %17 = vector.load %arg1[%c1_36, %c0_37, %c0_38] : memref<27x128x128xf32, #tpu.memory_space<vmem>>, vector<1x128x128xf32>
    %18 = vector.shape_cast %17 : vector<1x128x128xf32> to vector<128x128xf32>
    %cst_39 = arith.constant dense<0.000000e+00> : vector<512x128xf32>
    %19 = tpu.matmul %16, %18, %cst_39 {dimension_numbers = #tpu.dot_dimension_numbers<[1], [0], [0], [1], [0, 0, 1, 1], [], []>} : vector<512x128xf32>, vector<128x128xf32>, vector<512x128xf32> -> vector<512x128xf32>
    %20 = arith.addf %14, %19 : vector<512x128xf32>
    %c0_40 = arith.constant 0 : index
    %c0_41 = arith.constant 0 : index
    %c2 = arith.constant 2 : index
    %c0_42 = arith.constant 0 : index
    %21 = vector.load %arg5[%c0_40, %c0_41, %c2, %c0_42] : memref<2x18x24x128xf32, #tpu.memory_space<vmem>>, vector<2x16x16x128xf32>
    %22 = vector.shape_cast %21 : vector<2x16x16x128xf32> to vector<512x128xf32>
    %c2_43 = arith.constant 2 : index
    %c0_44 = arith.constant 0 : index
    %c0_45 = arith.constant 0 : index
    %23 = vector.load %arg1[%c2_43, %c0_44, %c0_45] : memref<27x128x128xf32, #tpu.memory_space<vmem>>, vector<1x128x128xf32>
    %24 = vector.shape_cast %23 : vector<1x128x128xf32> to vector<128x128xf32>
    %cst_46 = arith.constant dense<0.000000e+00> : vector<512x128xf32>
    %25 = tpu.matmul %22, %24, %cst_46 {dimension_numbers = #tpu.dot_dimension_numbers<[1], [0], [0], [1], [0, 0, 1, 1], [], []>} : vector<512x128xf32>, vector<128x128xf32>, vector<512x128xf32> -> vector<512x128xf32>
    %26 = arith.addf %20, %25 : vector<512x128xf32>
    %c0_47 = arith.constant 0 : index
    %c1_48 = arith.constant 1 : index
    %c0_49 = arith.constant 0 : index
    %c0_50 = arith.constant 0 : index
    %27 = vector.load %arg5[%c0_47, %c1_48, %c0_49, %c0_50] : memref<2x18x24x128xf32, #tpu.memory_space<vmem>>, vector<2x16x16x128xf32>
    %28 = vector.shape_cast %27 : vector<2x16x16x128xf32> to vector<512x128xf32>
    %c3 = arith.constant 3 : index
    %c0_51 = arith.constant 0 : index
    %c0_52 = arith.constant 0 : index
    %29 = vector.load %arg1[%c3, %c0_51, %c0_52] : memref<27x128x128xf32, #tpu.memory_space<vmem>>, vector<1x128x128xf32>
    %30 = vector.shape_cast %29 : vector<1x128x128xf32> to vector<128x128xf32>
    %cst_53 = arith.constant dense<0.000000e+00> : vector<512x128xf32>
    %31 = tpu.matmul %28, %30, %cst_53 {dimension_numbers = #tpu.dot_dimension_numbers<[1], [0], [0], [1], [0, 0, 1, 1], [], []>} : vector<512x128xf32>, vector<128x128xf32>, vector<512x128xf32> -> vector<512x128xf32>
    %32 = arith.addf %26, %31 : vector<512x128xf32>
    %c0_54 = arith.constant 0 : index
    %c1_55 = arith.constant 1 : index
    %c1_56 = arith.constant 1 : index
    %c0_57 = arith.constant 0 : index
    %33 = vector.load %arg5[%c0_54, %c1_55, %c1_56, %c0_57] : memref<2x18x24x128xf32, #tpu.memory_space<vmem>>, vector<2x16x16x128xf32>
    %34 = vector.shape_cast %33 : vector<2x16x16x128xf32> to vector<512x128xf32>
    %c4 = arith.constant 4 : index
    %c0_58 = arith.constant 0 : index
    %c0_59 = arith.constant 0 : index
    %35 = vector.load %arg1[%c4, %c0_58, %c0_59] : memref<27x128x128xf32, #tpu.memory_space<vmem>>, vector<1x128x128xf32>
    %36 = vector.shape_cast %35 : vector<1x128x128xf32> to vector<128x128xf32>
    %cst_60 = arith.constant dense<0.000000e+00> : vector<512x128xf32>
    %37 = tpu.matmul %34, %36, %cst_60 {dimension_numbers = #tpu.dot_dimension_numbers<[1], [0], [0], [1], [0, 0, 1, 1], [], []>} : vector<512x128xf32>, vector<128x128xf32>, vector<512x128xf32> -> vector<512x128xf32>
    %38 = arith.addf %32, %37 : vector<512x128xf32>
    %c0_61 = arith.constant 0 : index
    %c1_62 = arith.constant 1 : index
    %c2_63 = arith.constant 2 : index
    %c0_64 = arith.constant 0 : index
    %39 = vector.load %arg5[%c0_61, %c1_62, %c2_63, %c0_64] : memref<2x18x24x128xf32, #tpu.memory_space<vmem>>, vector<2x16x16x128xf32>
    %40 = vector.shape_cast %39 : vector<2x16x16x128xf32> to vector<512x128xf32>
    %c5 = arith.constant 5 : index
    %c0_65 = arith.constant 0 : index
    %c0_66 = arith.constant 0 : index
    %41 = vector.load %arg1[%c5, %c0_65, %c0_66] : memref<27x128x128xf32, #tpu.memory_space<vmem>>, vector<1x128x128xf32>
    %42 = vector.shape_cast %41 : vector<1x128x128xf32> to vector<128x128xf32>
    %cst_67 = arith.constant dense<0.000000e+00> : vector<512x128xf32>
    %43 = tpu.matmul %40, %42, %cst_67 {dimension_numbers = #tpu.dot_dimension_numbers<[1], [0], [0], [1], [0, 0, 1, 1], [], []>} : vector<512x128xf32>, vector<128x128xf32>, vector<512x128xf32> -> vector<512x128xf32>
    %44 = arith.addf %38, %43 : vector<512x128xf32>
    %c0_68 = arith.constant 0 : index
    %c2_69 = arith.constant 2 : index
    %c0_70 = arith.constant 0 : index
    %c0_71 = arith.constant 0 : index
    %45 = vector.load %arg5[%c0_68, %c2_69, %c0_70, %c0_71] : memref<2x18x24x128xf32, #tpu.memory_space<vmem>>, vector<2x16x16x128xf32>
    %46 = vector.shape_cast %45 : vector<2x16x16x128xf32> to vector<512x128xf32>
    %c6 = arith.constant 6 : index
    %c0_72 = arith.constant 0 : index
    %c0_73 = arith.constant 0 : index
    %47 = vector.load %arg1[%c6, %c0_72, %c0_73] : memref<27x128x128xf32, #tpu.memory_space<vmem>>, vector<1x128x128xf32>
    %48 = vector.shape_cast %47 : vector<1x128x128xf32> to vector<128x128xf32>
    %cst_74 = arith.constant dense<0.000000e+00> : vector<512x128xf32>
    %49 = tpu.matmul %46, %48, %cst_74 {dimension_numbers = #tpu.dot_dimension_numbers<[1], [0], [0], [1], [0, 0, 1, 1], [], []>} : vector<512x128xf32>, vector<128x128xf32>, vector<512x128xf32> -> vector<512x128xf32>
    %50 = arith.addf %44, %49 : vector<512x128xf32>
    %c0_75 = arith.constant 0 : index
    %c2_76 = arith.constant 2 : index
    %c1_77 = arith.constant 1 : index
    %c0_78 = arith.constant 0 : index
    %51 = vector.load %arg5[%c0_75, %c2_76, %c1_77, %c0_78] : memref<2x18x24x128xf32, #tpu.memory_space<vmem>>, vector<2x16x16x128xf32>
    %52 = vector.shape_cast %51 : vector<2x16x16x128xf32> to vector<512x128xf32>
    %c7 = arith.constant 7 : index
    %c0_79 = arith.constant 0 : index
    %c0_80 = arith.constant 0 : index
    %53 = vector.load %arg1[%c7, %c0_79, %c0_80] : memref<27x128x128xf32, #tpu.memory_space<vmem>>, vector<1x128x128xf32>
    %54 = vector.shape_cast %53 : vector<1x128x128xf32> to vector<128x128xf32>
    %cst_81 = arith.constant dense<0.000000e+00> : vector<512x128xf32>
    %55 = tpu.matmul %52, %54, %cst_81 {dimension_numbers = #tpu.dot_dimension_numbers<[1], [0], [0], [1], [0, 0, 1, 1], [], []>} : vector<512x128xf32>, vector<128x128xf32>, vector<512x128xf32> -> vector<512x128xf32>
    %56 = arith.addf %50, %55 : vector<512x128xf32>
    %c0_82 = arith.constant 0 : index
    %c2_83 = arith.constant 2 : index
    %c2_84 = arith.constant 2 : index
    %c0_85 = arith.constant 0 : index
    %57 = vector.load %arg5[%c0_82, %c2_83, %c2_84, %c0_85] : memref<2x18x24x128xf32, #tpu.memory_space<vmem>>, vector<2x16x16x128xf32>
    %58 = vector.shape_cast %57 : vector<2x16x16x128xf32> to vector<512x128xf32>
    %c8 = arith.constant 8 : index
    %c0_86 = arith.constant 0 : index
    %c0_87 = arith.constant 0 : index
    %59 = vector.load %arg1[%c8, %c0_86, %c0_87] : memref<27x128x128xf32, #tpu.memory_space<vmem>>, vector<1x128x128xf32>
    %60 = vector.shape_cast %59 : vector<1x128x128xf32> to vector<128x128xf32>
    %cst_88 = arith.constant dense<0.000000e+00> : vector<512x128xf32>
    %61 = tpu.matmul %58, %60, %cst_88 {dimension_numbers = #tpu.dot_dimension_numbers<[1], [0], [0], [1], [0, 0, 1, 1], [], []>} : vector<512x128xf32>, vector<128x128xf32>, vector<512x128xf32> -> vector<512x128xf32>
    %62 = arith.addf %56, %61 : vector<512x128xf32>
    %cst_89 = arith.constant dense<0.000000e+00> : vector<128xf32>
    %63 = vector.multi_reduction <add>, %62, %cst_89 [0] : vector<512x128xf32> to vector<128xf32>
    %64 = vector.shape_cast %63 : vector<128xf32> to vector<1x128xf32>
    %cst_90 = arith.constant 5.120000e+02 : f32
    %65 = vector.broadcast %cst_90 : f32 to vector<1x128xf32>
    %66 = arith.divf %64, %65 : vector<1x128xf32>
    %67 = arith.mulf %62, %62 : vector<512x128xf32>
    %cst_91 = arith.constant dense<0.000000e+00> : vector<128xf32>
    %68 = vector.multi_reduction <add>, %67, %cst_91 [0] : vector<512x128xf32> to vector<128xf32>
    %69 = vector.shape_cast %68 : vector<128xf32> to vector<1x128xf32>
    %cst_92 = arith.constant 5.120000e+02 : f32
    %70 = vector.broadcast %cst_92 : f32 to vector<1x128xf32>
    %71 = arith.divf %69, %70 : vector<1x128xf32>
    %72 = arith.mulf %66, %66 : vector<1x128xf32>
    %73 = arith.subf %71, %72 : vector<1x128xf32>
    %cst_93 = arith.constant 0.000000e+00 : f32
    %74 = vector.broadcast %cst_93 : f32 to vector<1x128xf32>
    %75 = arith.maximumf %73, %74 : vector<1x128xf32>
    %c0_94 = arith.constant 0 : index
    %c0_95 = arith.constant 0 : index
    %c0_96 = arith.constant 0 : index
    %76 = vector.load %arg2[%c0_94, %c0_95, %c0_96] : memref<3x1x128xf32, #tpu.memory_space<vmem>>, vector<1x1x128xf32>
    %77 = vector.shape_cast %76 : vector<1x1x128xf32> to vector<1x128xf32>
    %cst_97 = arith.constant 9.99999974E-6 : f32
    %78 = vector.broadcast %cst_97 : f32 to vector<1x128xf32>
    %79 = arith.addf %75, %78 : vector<1x128xf32>
    %80 = math.rsqrt %79 : vector<1x128xf32>
    %81 = arith.mulf %77, %80 : vector<1x128xf32>
    %c0_98 = arith.constant 0 : index
    %c0_99 = arith.constant 0 : index
    %c0_100 = arith.constant 0 : index
    %82 = vector.load %arg3[%c0_98, %c0_99, %c0_100] : memref<3x1x128xf32, #tpu.memory_space<vmem>>, vector<1x1x128xf32>
    %83 = vector.shape_cast %82 : vector<1x1x128xf32> to vector<1x128xf32>
    %84 = arith.mulf %66, %81 : vector<1x128xf32>
    %85 = arith.subf %83, %84 : vector<1x128xf32>
    %86 = vector.broadcast %81 : vector<1x128xf32> to vector<512x128xf32>
    %87 = arith.mulf %62, %86 : vector<512x128xf32>
    %88 = vector.broadcast %85 : vector<1x128xf32> to vector<512x128xf32>
    %89 = arith.addf %87, %88 : vector<512x128xf32>
    %90 = arith.addf %89, %34 : vector<512x128xf32>
    %91 = vector.shape_cast %90 : vector<512x128xf32> to vector<2x16x16x128xf32>
    %c0_101 = arith.constant 0 : index
    %c1_102 = arith.constant 1 : index
    %c1_103 = arith.constant 1 : index
    %c0_104 = arith.constant 0 : index
    %92 = vector.load %arg5[%c0_101, %c1_102, %c1_103, %c0_104] : memref<2x18x24x128xf32, #tpu.memory_space<vmem>>, vector<2x16x16x128xf32>
    tpu.vector_store %arg5[%c0_101, %c1_102, %c1_103, %c0_104], %91 {strides = array<i32>} : memref<2x18x24x128xf32, #tpu.memory_space<vmem>>, vector<2x16x16x128xf32>,
    %c0_105 = arith.constant 0 : index
    %c0_106 = arith.constant 0 : index
    %c0_107 = arith.constant 0 : index
    %c0_108 = arith.constant 0 : index
    %93 = vector.load %arg5[%c0_105, %c0_106, %c0_107, %c0_108] : memref<2x18x24x128xf32, #tpu.memory_space<vmem>>, vector<2x16x16x128xf32>
    %94 = vector.shape_cast %93 : vector<2x16x16x128xf32> to vector<512x128xf32>
    %c9 = arith.constant 9 : index
    %c0_109 = arith.constant 0 : index
    %c0_110 = arith.constant 0 : index
    %95 = vector.load %arg1[%c9, %c0_109, %c0_110] : memref<27x128x128xf32, #tpu.memory_space<vmem>>, vector<1x128x128xf32>
    %96 = vector.shape_cast %95 : vector<1x128x128xf32> to vector<128x128xf32>
    %cst_111 = arith.constant dense<0.000000e+00> : vector<512x128xf32>
    %97 = tpu.matmul %94, %96, %cst_111 {dimension_numbers = #tpu.dot_dimension_numbers<[1], [0], [0], [1], [0, 0, 1, 1], [], []>} : vector<512x128xf32>, vector<128x128xf32>, vector<512x128xf32> -> vector<512x128xf32>
    %c0_112 = arith.constant 0 : index
    %c0_113 = arith.constant 0 : index
    %c1_114 = arith.constant 1 : index
    %c0_115 = arith.constant 0 : index
    %98 = vector.load %arg5[%c0_112, %c0_113, %c1_114, %c0_115] : memref<2x18x24x128xf32, #tpu.memory_space<vmem>>, vector<2x16x16x128xf32>
    %99 = vector.shape_cast %98 : vector<2x16x16x128xf32> to vector<512x128xf32>
    %c10 = arith.constant 10 : index
    %c0_116 = arith.constant 0 : index
    %c0_117 = arith.constant 0 : index
    %100 = vector.load %arg1[%c10, %c0_116, %c0_117] : memref<27x128x128xf32, #tpu.memory_space<vmem>>, vector<1x128x128xf32>
    %101 = vector.shape_cast %100 : vector<1x128x128xf32> to vector<128x128xf32>
    %cst_118 = arith.constant dense<0.000000e+00> : vector<512x128xf32>
    %102 = tpu.matmul %99, %101, %cst_118 {dimension_numbers = #tpu.dot_dimension_numbers<[1], [0], [0], [1], [0, 0, 1, 1], [], []>} : vector<512x128xf32>, vector<128x128xf32>, vector<512x128xf32> -> vector<512x128xf32>
    %103 = arith.addf %97, %102 : vector<512x128xf32>
    %c0_119 = arith.constant 0 : index
    %c0_120 = arith.constant 0 : index
    %c2_121 = arith.constant 2 : index
    %c0_122 = arith.constant 0 : index
    %104 = vector.load %arg5[%c0_119, %c0_120, %c2_121, %c0_122] : memref<2x18x24x128xf32, #tpu.memory_space<vmem>>, vector<2x16x16x128xf32>
    %105 = vector.shape_cast %104 : vector<2x16x16x128xf32> to vector<512x128xf32>
    %c11 = arith.constant 11 : index
    %c0_123 = arith.constant 0 : index
    %c0_124 = arith.constant 0 : index
    %106 = vector.load %arg1[%c11, %c0_123, %c0_124] : memref<27x128x128xf32, #tpu.memory_space<vmem>>, vector<1x128x128xf32>
    %107 = vector.shape_cast %106 : vector<1x128x128xf32> to vector<128x128xf32>
    %cst_125 = arith.constant dense<0.000000e+00> : vector<512x128xf32>
    %108 = tpu.matmul %105, %107, %cst_125 {dimension_numbers = #tpu.dot_dimension_numbers<[1], [0], [0], [1], [0, 0, 1, 1], [], []>} : vector<512x128xf32>, vector<128x128xf32>, vector<512x128xf32> -> vector<512x128xf32>
    %109 = arith.addf %103, %108 : vector<512x128xf32>
    %c0_126 = arith.constant 0 : index
    %c1_127 = arith.constant 1 : index
    %c0_128 = arith.constant 0 : index
    %c0_129 = arith.constant 0 : index
    %110 = vector.load %arg5[%c0_126, %c1_127, %c0_128, %c0_129] : memref<2x18x24x128xf32, #tpu.memory_space<vmem>>, vector<2x16x16x128xf32>
    %111 = vector.shape_cast %110 : vector<2x16x16x128xf32> to vector<512x128xf32>
    %c12 = arith.constant 12 : index
    %c0_130 = arith.constant 0 : index
    %c0_131 = arith.constant 0 : index
    %112 = vector.load %arg1[%c12, %c0_130, %c0_131] : memref<27x128x128xf32, #tpu.memory_space<vmem>>, vector<1x128x128xf32>
    %113 = vector.shape_cast %112 : vector<1x128x128xf32> to vector<128x128xf32>
    %cst_132 = arith.constant dense<0.000000e+00> : vector<512x128xf32>
    %114 = tpu.matmul %111, %113, %cst_132 {dimension_numbers = #tpu.dot_dimension_numbers<[1], [0], [0], [1], [0, 0, 1, 1], [], []>} : vector<512x128xf32>, vector<128x128xf32>, vector<512x128xf32> -> vector<512x128xf32>
    %115 = arith.addf %109, %114 : vector<512x128xf32>
    %c0_133 = arith.constant 0 : index
    %c1_134 = arith.constant 1 : index
    %c1_135 = arith.constant 1 : index
    %c0_136 = arith.constant 0 : index
    %116 = vector.load %arg5[%c0_133, %c1_134, %c1_135, %c0_136] : memref<2x18x24x128xf32, #tpu.memory_space<vmem>>, vector<2x16x16x128xf32>
    %117 = vector.shape_cast %116 : vector<2x16x16x128xf32> to vector<512x128xf32>
    %c13 = arith.constant 13 : index
    %c0_137 = arith.constant 0 : index
    %c0_138 = arith.constant 0 : index
    %118 = vector.load %arg1[%c13, %c0_137, %c0_138] : memref<27x128x128xf32, #tpu.memory_space<vmem>>, vector<1x128x128xf32>
    %119 = vector.shape_cast %118 : vector<1x128x128xf32> to vector<128x128xf32>
    %cst_139 = arith.constant dense<0.000000e+00> : vector<512x128xf32>
    %120 = tpu.matmul %117, %119, %cst_139 {dimension_numbers = #tpu.dot_dimension_numbers<[1], [0], [0], [1], [0, 0, 1, 1], [], []>} : vector<512x128xf32>, vector<128x128xf32>, vector<512x128xf32> -> vector<512x128xf32>
    %121 = arith.addf %115, %120 : vector<512x128xf32>
    %c0_140 = arith.constant 0 : index
    %c1_141 = arith.constant 1 : index
    %c2_142 = arith.constant 2 : index
    %c0_143 = arith.constant 0 : index
    %122 = vector.load %arg5[%c0_140, %c1_141, %c2_142, %c0_143] : memref<2x18x24x128xf32, #tpu.memory_space<vmem>>, vector<2x16x16x128xf32>
    %123 = vector.shape_cast %122 : vector<2x16x16x128xf32> to vector<512x128xf32>
    %c14 = arith.constant 14 : index
    %c0_144 = arith.constant 0 : index
    %c0_145 = arith.constant 0 : index
    %124 = vector.load %arg1[%c14, %c0_144, %c0_145] : memref<27x128x128xf32, #tpu.memory_space<vmem>>, vector<1x128x128xf32>
    %125 = vector.shape_cast %124 : vector<1x128x128xf32> to vector<128x128xf32>
    %cst_146 = arith.constant dense<0.000000e+00> : vector<512x128xf32>
    %126 = tpu.matmul %123, %125, %cst_146 {dimension_numbers = #tpu.dot_dimension_numbers<[1], [0], [0], [1], [0, 0, 1, 1], [], []>} : vector<512x128xf32>, vector<128x128xf32>, vector<512x128xf32> -> vector<512x128xf32>
    %127 = arith.addf %121, %126 : vector<512x128xf32>
    %c0_147 = arith.constant 0 : index
    %c2_148 = arith.constant 2 : index
    %c0_149 = arith.constant 0 : index
    %c0_150 = arith.constant 0 : index
    %128 = vector.load %arg5[%c0_147, %c2_148, %c0_149, %c0_150] : memref<2x18x24x128xf32, #tpu.memory_space<vmem>>, vector<2x16x16x128xf32>
    %129 = vector.shape_cast %128 : vector<2x16x16x128xf32> to vector<512x128xf32>
    %c15 = arith.constant 15 : index
    %c0_151 = arith.constant 0 : index
    %c0_152 = arith.constant 0 : index
    %130 = vector.load %arg1[%c15, %c0_151, %c0_152] : memref<27x128x128xf32, #tpu.memory_space<vmem>>, vector<1x128x128xf32>
    %131 = vector.shape_cast %130 : vector<1x128x128xf32> to vector<128x128xf32>
    %cst_153 = arith.constant dense<0.000000e+00> : vector<512x128xf32>
    %132 = tpu.matmul %129, %131, %cst_153 {dimension_numbers = #tpu.dot_dimension_numbers<[1], [0], [0], [1], [0, 0, 1, 1], [], []>} : vector<512x128xf32>, vector<128x128xf32>, vector<512x128xf32> -> vector<512x128xf32>
    %133 = arith.addf %127, %132 : vector<512x128xf32>
    %c0_154 = arith.constant 0 : index
    %c2_155 = arith.constant 2 : index
    %c1_156 = arith.constant 1 : index
    %c0_157 = arith.constant 0 : index
    %134 = vector.load %arg5[%c0_154, %c2_155, %c1_156, %c0_157] : memref<2x18x24x128xf32, #tpu.memory_space<vmem>>, vector<2x16x16x128xf32>
    %135 = vector.shape_cast %134 : vector<2x16x16x128xf32> to vector<512x128xf32>
    %c16 = arith.constant 16 : index
    %c0_158 = arith.constant 0 : index
    %c0_159 = arith.constant 0 : index
    %136 = vector.load %arg1[%c16, %c0_158, %c0_159] : memref<27x128x128xf32, #tpu.memory_space<vmem>>, vector<1x128x128xf32>
    %137 = vector.shape_cast %136 : vector<1x128x128xf32> to vector<128x128xf32>
    %cst_160 = arith.constant dense<0.000000e+00> : vector<512x128xf32>
    %138 = tpu.matmul %135, %137, %cst_160 {dimension_numbers = #tpu.dot_dimension_numbers<[1], [0], [0], [1], [0, 0, 1, 1], [], []>} : vector<512x128xf32>, vector<128x128xf32>, vector<512x128xf32> -> vector<512x128xf32>
    %139 = arith.addf %133, %138 : vector<512x128xf32>
    %c0_161 = arith.constant 0 : index
    %c2_162 = arith.constant 2 : index
    %c2_163 = arith.constant 2 : index
    %c0_164 = arith.constant 0 : index
    %140 = vector.load %arg5[%c0_161, %c2_162, %c2_163, %c0_164] : memref<2x18x24x128xf32, #tpu.memory_space<vmem>>, vector<2x16x16x128xf32>
    %141 = vector.shape_cast %140 : vector<2x16x16x128xf32> to vector<512x128xf32>
    %c17_165 = arith.constant 17 : index
    %c0_166 = arith.constant 0 : index
    %c0_167 = arith.constant 0 : index
    %142 = vector.load %arg1[%c17_165, %c0_166, %c0_167] : memref<27x128x128xf32, #tpu.memory_space<vmem>>, vector<1x128x128xf32>
    %143 = vector.shape_cast %142 : vector<1x128x128xf32> to vector<128x128xf32>
    %cst_168 = arith.constant dense<0.000000e+00> : vector<512x128xf32>
    %144 = tpu.matmul %141, %143, %cst_168 {dimension_numbers = #tpu.dot_dimension_numbers<[1], [0], [0], [1], [0, 0, 1, 1], [], []>} : vector<512x128xf32>, vector<128x128xf32>, vector<512x128xf32> -> vector<512x128xf32>
    %145 = arith.addf %139, %144 : vector<512x128xf32>
    %cst_169 = arith.constant dense<0.000000e+00> : vector<128xf32>
    %146 = vector.multi_reduction <add>, %145, %cst_169 [0] : vector<512x128xf32> to vector<128xf32>
    %147 = vector.shape_cast %146 : vector<128xf32> to vector<1x128xf32>
    %cst_170 = arith.constant 5.120000e+02 : f32
    %148 = vector.broadcast %cst_170 : f32 to vector<1x128xf32>
    %149 = arith.divf %147, %148 : vector<1x128xf32>
    %150 = arith.mulf %145, %145 : vector<512x128xf32>
    %cst_171 = arith.constant dense<0.000000e+00> : vector<128xf32>
    %151 = vector.multi_reduction <add>, %150, %cst_171 [0] : vector<512x128xf32> to vector<128xf32>
    %152 = vector.shape_cast %151 : vector<128xf32> to vector<1x128xf32>
    %cst_172 = arith.constant 5.120000e+02 : f32
    %153 = vector.broadcast %cst_172 : f32 to vector<1x128xf32>
    %154 = arith.divf %152, %153 : vector<1x128xf32>
    %155 = arith.mulf %149, %149 : vector<1x128xf32>
    %156 = arith.subf %154, %155 : vector<1x128xf32>
    %cst_173 = arith.constant 0.000000e+00 : f32
    %157 = vector.broadcast %cst_173 : f32 to vector<1x128xf32>
    %158 = arith.maximumf %156, %157 : vector<1x128xf32>
    %c1_174 = arith.constant 1 : index
    %c0_175 = arith.constant 0 : index
    %c0_176 = arith.constant 0 : index
    %159 = vector.load %arg2[%c1_174, %c0_175, %c0_176] : memref<3x1x128xf32, #tpu.memory_space<vmem>>, vector<1x1x128xf32>
    %160 = vector.shape_cast %159 : vector<1x1x128xf32> to vector<1x128xf32>
    %cst_177 = arith.constant 9.99999974E-6 : f32
    %161 = vector.broadcast %cst_177 : f32 to vector<1x128xf32>
    %162 = arith.addf %158, %161 : vector<1x128xf32>
    %163 = math.rsqrt %162 : vector<1x128xf32>
    %164 = arith.mulf %160, %163 : vector<1x128xf32>
    %c1_178 = arith.constant 1 : index
    %c0_179 = arith.constant 0 : index
    %c0_180 = arith.constant 0 : index
    %165 = vector.load %arg3[%c1_178, %c0_179, %c0_180] : memref<3x1x128xf32, #tpu.memory_space<vmem>>, vector<1x1x128xf32>
    %166 = vector.shape_cast %165 : vector<1x1x128xf32> to vector<1x128xf32>
    %167 = arith.mulf %149, %164 : vector<1x128xf32>
    %168 = arith.subf %166, %167 : vector<1x128xf32>
    %169 = vector.broadcast %164 : vector<1x128xf32> to vector<512x128xf32>
    %170 = arith.mulf %145, %169 : vector<512x128xf32>
    %171 = vector.broadcast %168 : vector<1x128xf32> to vector<512x128xf32>
    %172 = arith.addf %170, %171 : vector<512x128xf32>
    %173 = arith.addf %172, %117 : vector<512x128xf32>
    %174 = vector.shape_cast %173 : vector<512x128xf32> to vector<2x16x16x128xf32>
    %c0_181 = arith.constant 0 : index
    %c1_182 = arith.constant 1 : index
    %c1_183 = arith.constant 1 : index
    %c0_184 = arith.constant 0 : index
    %175 = vector.load %arg5[%c0_181, %c1_182, %c1_183, %c0_184] : memref<2x18x24x128xf32, #tpu.memory_space<vmem>>, vector<2x16x16x128xf32>
    tpu.vector_store %arg5[%c0_181, %c1_182, %c1_183, %c0_184], %174 {strides = array<i32>} : memref<2x18x24x128xf32, #tpu.memory_space<vmem>>, vector<2x16x16x128xf32>,
    %c0_185 = arith.constant 0 : index
    %c0_186 = arith.constant 0 : index
    %c0_187 = arith.constant 0 : index
    %c0_188 = arith.constant 0 : index
    %176 = vector.load %arg5[%c0_185, %c0_186, %c0_187, %c0_188] : memref<2x18x24x128xf32, #tpu.memory_space<vmem>>, vector<2x16x16x128xf32>
    %177 = vector.shape_cast %176 : vector<2x16x16x128xf32> to vector<512x128xf32>
    %c18 = arith.constant 18 : index
    %c0_189 = arith.constant 0 : index
    %c0_190 = arith.constant 0 : index
    %178 = vector.load %arg1[%c18, %c0_189, %c0_190] : memref<27x128x128xf32, #tpu.memory_space<vmem>>, vector<1x128x128xf32>
    %179 = vector.shape_cast %178 : vector<1x128x128xf32> to vector<128x128xf32>
    %cst_191 = arith.constant dense<0.000000e+00> : vector<512x128xf32>
    %180 = tpu.matmul %177, %179, %cst_191 {dimension_numbers = #tpu.dot_dimension_numbers<[1], [0], [0], [1], [0, 0, 1, 1], [], []>} : vector<512x128xf32>, vector<128x128xf32>, vector<512x128xf32> -> vector<512x128xf32>
    %c0_192 = arith.constant 0 : index
    %c0_193 = arith.constant 0 : index
    %c1_194 = arith.constant 1 : index
    %c0_195 = arith.constant 0 : index
    %181 = vector.load %arg5[%c0_192, %c0_193, %c1_194, %c0_195] : memref<2x18x24x128xf32, #tpu.memory_space<vmem>>, vector<2x16x16x128xf32>
    %182 = vector.shape_cast %181 : vector<2x16x16x128xf32> to vector<512x128xf32>
    %c19 = arith.constant 19 : index
    %c0_196 = arith.constant 0 : index
    %c0_197 = arith.constant 0 : index
    %183 = vector.load %arg1[%c19, %c0_196, %c0_197] : memref<27x128x128xf32, #tpu.memory_space<vmem>>, vector<1x128x128xf32>
    %184 = vector.shape_cast %183 : vector<1x128x128xf32> to vector<128x128xf32>
    %cst_198 = arith.constant dense<0.000000e+00> : vector<512x128xf32>
    %185 = tpu.matmul %182, %184, %cst_198 {dimension_numbers = #tpu.dot_dimension_numbers<[1], [0], [0], [1], [0, 0, 1, 1], [], []>} : vector<512x128xf32>, vector<128x128xf32>, vector<512x128xf32> -> vector<512x128xf32>
    %186 = arith.addf %180, %185 : vector<512x128xf32>
    %c0_199 = arith.constant 0 : index
    %c0_200 = arith.constant 0 : index
    %c2_201 = arith.constant 2 : index
    %c0_202 = arith.constant 0 : index
    %187 = vector.load %arg5[%c0_199, %c0_200, %c2_201, %c0_202] : memref<2x18x24x128xf32, #tpu.memory_space<vmem>>, vector<2x16x16x128xf32>
    %188 = vector.shape_cast %187 : vector<2x16x16x128xf32> to vector<512x128xf32>
    %c20 = arith.constant 20 : index
    %c0_203 = arith.constant 0 : index
    %c0_204 = arith.constant 0 : index
    %189 = vector.load %arg1[%c20, %c0_203, %c0_204] : memref<27x128x128xf32, #tpu.memory_space<vmem>>, vector<1x128x128xf32>
    %190 = vector.shape_cast %189 : vector<1x128x128xf32> to vector<128x128xf32>
    %cst_205 = arith.constant dense<0.000000e+00> : vector<512x128xf32>
    %191 = tpu.matmul %188, %190, %cst_205 {dimension_numbers = #tpu.dot_dimension_numbers<[1], [0], [0], [1], [0, 0, 1, 1], [], []>} : vector<512x128xf32>, vector<128x128xf32>, vector<512x128xf32> -> vector<512x128xf32>
    %192 = arith.addf %186, %191 : vector<512x128xf32>
    %c0_206 = arith.constant 0 : index
    %c1_207 = arith.constant 1 : index
    %c0_208 = arith.constant 0 : index
    %c0_209 = arith.constant 0 : index
    %193 = vector.load %arg5[%c0_206, %c1_207, %c0_208, %c0_209] : memref<2x18x24x128xf32, #tpu.memory_space<vmem>>, vector<2x16x16x128xf32>
    %194 = vector.shape_cast %193 : vector<2x16x16x128xf32> to vector<512x128xf32>
    %c21 = arith.constant 21 : index
    %c0_210 = arith.constant 0 : index
    %c0_211 = arith.constant 0 : index
    %195 = vector.load %arg1[%c21, %c0_210, %c0_211] : memref<27x128x128xf32, #tpu.memory_space<vmem>>, vector<1x128x128xf32>
    %196 = vector.shape_cast %195 : vector<1x128x128xf32> to vector<128x128xf32>
    %cst_212 = arith.constant dense<0.000000e+00> : vector<512x128xf32>
    %197 = tpu.matmul %194, %196, %cst_212 {dimension_numbers = #tpu.dot_dimension_numbers<[1], [0], [0], [1], [0, 0, 1, 1], [], []>} : vector<512x128xf32>, vector<128x128xf32>, vector<512x128xf32> -> vector<512x128xf32>
    %198 = arith.addf %192, %197 : vector<512x128xf32>
    %c0_213 = arith.constant 0 : index
    %c1_214 = arith.constant 1 : index
    %c1_215 = arith.constant 1 : index
    %c0_216 = arith.constant 0 : index
    %199 = vector.load %arg5[%c0_213, %c1_214, %c1_215, %c0_216] : memref<2x18x24x128xf32, #tpu.memory_space<vmem>>, vector<2x16x16x128xf32>
    %200 = vector.shape_cast %199 : vector<2x16x16x128xf32> to vector<512x128xf32>
    %c22 = arith.constant 22 : index
    %c0_217 = arith.constant 0 : index
    %c0_218 = arith.constant 0 : index
    %201 = vector.load %arg1[%c22, %c0_217, %c0_218] : memref<27x128x128xf32, #tpu.memory_space<vmem>>, vector<1x128x128xf32>
    %202 = vector.shape_cast %201 : vector<1x128x128xf32> to vector<128x128xf32>
    %cst_219 = arith.constant dense<0.000000e+00> : vector<512x128xf32>
    %203 = tpu.matmul %200, %202, %cst_219 {dimension_numbers = #tpu.dot_dimension_numbers<[1], [0], [0], [1], [0, 0, 1, 1], [], []>} : vector<512x128xf32>, vector<128x128xf32>, vector<512x128xf32> -> vector<512x128xf32>
    %204 = arith.addf %198, %203 : vector<512x128xf32>
    %c0_220 = arith.constant 0 : index
    %c1_221 = arith.constant 1 : index
    %c2_222 = arith.constant 2 : index
    %c0_223 = arith.constant 0 : index
    %205 = vector.load %arg5[%c0_220, %c1_221, %c2_222, %c0_223] : memref<2x18x24x128xf32, #tpu.memory_space<vmem>>, vector<2x16x16x128xf32>
    %206 = vector.shape_cast %205 : vector<2x16x16x128xf32> to vector<512x128xf32>
    %c23 = arith.constant 23 : index
    %c0_224 = arith.constant 0 : index
    %c0_225 = arith.constant 0 : index
    %207 = vector.load %arg1[%c23, %c0_224, %c0_225] : memref<27x128x128xf32, #tpu.memory_space<vmem>>, vector<1x128x128xf32>
    %208 = vector.shape_cast %207 : vector<1x128x128xf32> to vector<128x128xf32>
    %cst_226 = arith.constant dense<0.000000e+00> : vector<512x128xf32>
    %209 = tpu.matmul %206, %208, %cst_226 {dimension_numbers = #tpu.dot_dimension_numbers<[1], [0], [0], [1], [0, 0, 1, 1], [], []>} : vector<512x128xf32>, vector<128x128xf32>, vector<512x128xf32> -> vector<512x128xf32>
    %210 = arith.addf %204, %209 : vector<512x128xf32>
    %c0_227 = arith.constant 0 : index
    %c2_228 = arith.constant 2 : index
    %c0_229 = arith.constant 0 : index
    %c0_230 = arith.constant 0 : index
    %211 = vector.load %arg5[%c0_227, %c2_228, %c0_229, %c0_230] : memref<2x18x24x128xf32, #tpu.memory_space<vmem>>, vector<2x16x16x128xf32>
    %212 = vector.shape_cast %211 : vector<2x16x16x128xf32> to vector<512x128xf32>
    %c24 = arith.constant 24 : index
    %c0_231 = arith.constant 0 : index
    %c0_232 = arith.constant 0 : index
    %213 = vector.load %arg1[%c24, %c0_231, %c0_232] : memref<27x128x128xf32, #tpu.memory_space<vmem>>, vector<1x128x128xf32>
    %214 = vector.shape_cast %213 : vector<1x128x128xf32> to vector<128x128xf32>
    %cst_233 = arith.constant dense<0.000000e+00> : vector<512x128xf32>
    %215 = tpu.matmul %212, %214, %cst_233 {dimension_numbers = #tpu.dot_dimension_numbers<[1], [0], [0], [1], [0, 0, 1, 1], [], []>} : vector<512x128xf32>, vector<128x128xf32>, vector<512x128xf32> -> vector<512x128xf32>
    %216 = arith.addf %210, %215 : vector<512x128xf32>
    %c0_234 = arith.constant 0 : index
    %c2_235 = arith.constant 2 : index
    %c1_236 = arith.constant 1 : index
    %c0_237 = arith.constant 0 : index
    %217 = vector.load %arg5[%c0_234, %c2_235, %c1_236, %c0_237] : memref<2x18x24x128xf32, #tpu.memory_space<vmem>>, vector<2x16x16x128xf32>
    %218 = vector.shape_cast %217 : vector<2x16x16x128xf32> to vector<512x128xf32>
    %c25 = arith.constant 25 : index
    %c0_238 = arith.constant 0 : index
    %c0_239 = arith.constant 0 : index
    %219 = vector.load %arg1[%c25, %c0_238, %c0_239] : memref<27x128x128xf32, #tpu.memory_space<vmem>>, vector<1x128x128xf32>
    %220 = vector.shape_cast %219 : vector<1x128x128xf32> to vector<128x128xf32>
    %cst_240 = arith.constant dense<0.000000e+00> : vector<512x128xf32>
    %221 = tpu.matmul %218, %220, %cst_240 {dimension_numbers = #tpu.dot_dimension_numbers<[1], [0], [0], [1], [0, 0, 1, 1], [], []>} : vector<512x128xf32>, vector<128x128xf32>, vector<512x128xf32> -> vector<512x128xf32>
    %222 = arith.addf %216, %221 : vector<512x128xf32>
    %c0_241 = arith.constant 0 : index
    %c2_242 = arith.constant 2 : index
    %c2_243 = arith.constant 2 : index
    %c0_244 = arith.constant 0 : index
    %223 = vector.load %arg5[%c0_241, %c2_242, %c2_243, %c0_244] : memref<2x18x24x128xf32, #tpu.memory_space<vmem>>, vector<2x16x16x128xf32>
    %224 = vector.shape_cast %223 : vector<2x16x16x128xf32> to vector<512x128xf32>
    %c26 = arith.constant 26 : index
    %c0_245 = arith.constant 0 : index
    %c0_246 = arith.constant 0 : index
    %225 = vector.load %arg1[%c26, %c0_245, %c0_246] : memref<27x128x128xf32, #tpu.memory_space<vmem>>, vector<1x128x128xf32>
    %226 = vector.shape_cast %225 : vector<1x128x128xf32> to vector<128x128xf32>
    %cst_247 = arith.constant dense<0.000000e+00> : vector<512x128xf32>
    %227 = tpu.matmul %224, %226, %cst_247 {dimension_numbers = #tpu.dot_dimension_numbers<[1], [0], [0], [1], [0, 0, 1, 1], [], []>} : vector<512x128xf32>, vector<128x128xf32>, vector<512x128xf32> -> vector<512x128xf32>
    %228 = arith.addf %222, %227 : vector<512x128xf32>
    %cst_248 = arith.constant dense<0.000000e+00> : vector<128xf32>
    %229 = vector.multi_reduction <add>, %228, %cst_248 [0] : vector<512x128xf32> to vector<128xf32>
    %230 = vector.shape_cast %229 : vector<128xf32> to vector<1x128xf32>
    %cst_249 = arith.constant 5.120000e+02 : f32
    %231 = vector.broadcast %cst_249 : f32 to vector<1x128xf32>
    %232 = arith.divf %230, %231 : vector<1x128xf32>
    %233 = arith.mulf %228, %228 : vector<512x128xf32>
    %cst_250 = arith.constant dense<0.000000e+00> : vector<128xf32>
    %234 = vector.multi_reduction <add>, %233, %cst_250 [0] : vector<512x128xf32> to vector<128xf32>
    %235 = vector.shape_cast %234 : vector<128xf32> to vector<1x128xf32>
    %cst_251 = arith.constant 5.120000e+02 : f32
    %236 = vector.broadcast %cst_251 : f32 to vector<1x128xf32>
    %237 = arith.divf %235, %236 : vector<1x128xf32>
    %238 = arith.mulf %232, %232 : vector<1x128xf32>
    %239 = arith.subf %237, %238 : vector<1x128xf32>
    %cst_252 = arith.constant 0.000000e+00 : f32
    %240 = vector.broadcast %cst_252 : f32 to vector<1x128xf32>
    %241 = arith.maximumf %239, %240 : vector<1x128xf32>
    %c2_253 = arith.constant 2 : index
    %c0_254 = arith.constant 0 : index
    %c0_255 = arith.constant 0 : index
    %242 = vector.load %arg2[%c2_253, %c0_254, %c0_255] : memref<3x1x128xf32, #tpu.memory_space<vmem>>, vector<1x1x128xf32>
    %243 = vector.shape_cast %242 : vector<1x1x128xf32> to vector<1x128xf32>
    %cst_256 = arith.constant 9.99999974E-6 : f32
    %244 = vector.broadcast %cst_256 : f32 to vector<1x128xf32>
    %245 = arith.addf %241, %244 : vector<1x128xf32>
    %246 = math.rsqrt %245 : vector<1x128xf32>
    %247 = arith.mulf %243, %246 : vector<1x128xf32>
    %c2_257 = arith.constant 2 : index
    %c0_258 = arith.constant 0 : index
    %c0_259 = arith.constant 0 : index
    %248 = vector.load %arg3[%c2_257, %c0_258, %c0_259] : memref<3x1x128xf32, #tpu.memory_space<vmem>>, vector<1x1x128xf32>
    %249 = vector.shape_cast %248 : vector<1x1x128xf32> to vector<1x128xf32>
    %250 = arith.mulf %232, %247 : vector<1x128xf32>
    %251 = arith.subf %249, %250 : vector<1x128xf32>
    %252 = vector.broadcast %247 : vector<1x128xf32> to vector<512x128xf32>
    %253 = arith.mulf %228, %252 : vector<512x128xf32>
    %254 = vector.broadcast %251 : vector<1x128xf32> to vector<512x128xf32>
    %255 = arith.addf %253, %254 : vector<512x128xf32>
    %256 = arith.addf %255, %200 : vector<512x128xf32>
    %c0_260 = arith.constant 0 : index
    %c0_261 = arith.constant 0 : index
    %257 = vector.load %arg4[%c0_260, %c0_261] : memref<512x128xf32, #tpu.memory_space<vmem>>, vector<512x128xf32>
    tpu.vector_store %arg4[%c0_260, %c0_261], %256 {strides = array<i32>} : memref<512x128xf32, #tpu.memory_space<vmem>>, vector<512x128xf32>,
    return
  }
}

</mosaic_0001>

<llo_original>
// kernel: tpu_custom_call.1
$region0: #{tpu_custom_call.1}
  #allocation0 [shape = 'u32[]', space=smem, size = 0x4, offset = 0x4, fixed_abs, tag = 'smem constant byte address 0x4 - core index']
  #allocation1 [shape = 'u32[72,128]{1,0:T(1,128)}', space=vmem, size = 0x9000, scoped, tag = 'internal scratch']
  #allocation2 [shape = 'f32[2,18,24,128]{3,2,1,0:T(8,128)}', space=vmem, size = 0x6c000, scoped, tag = 'scratch operand']
  %s0 = inlined_call_operand.hbm [shape: f32[2,16,16,128], index: 0, kind: input, shape index: {}]
  %s1 = inlined_call_operand.hbm [shape: f32[27,128,128], index: 1, kind: input, shape index: {}]
  %s2 = inlined_call_operand.hbm [shape: f32[3,1,128], index: 2, kind: input, shape index: {}]
  %s3 = inlined_call_operand.hbm [shape: f32[3,1,128], index: 3, kind: input, shape index: {}]
  %s4 = inlined_call_operand.hbm [shape: f32[512,128], index: 4, kind: output, shape index: {}]
  %s5 = sld [smem:[#allocation0]]
  $region42: #{tpu_custom_call.1} parent=0
    _
  %s7 = ssub.s32 1, %s5
  %s8 = scalar_select 0, %s7, %s5
  $region1: #{tpu_custom_call.1} parent=0
    #allocation3 [shape = 'u8[262144]{0}', space=vmem, size = 0x40000, scoped, tag = 'input window, operand 0, single buffered']
    #allocation4 [shape = 's32[1]{0}', space=sflag, size = 0x4, scoped, tag = 'scoped memory for tpu_custom_call.1']
    #allocation5 [shape = 's32[1]{0}', space=sflag, size = 0x4, scoped, tag = 'scoped memory for tpu_custom_call.1']
    #allocation6 [shape = 'u8[1769472]{0}', space=vmem, size = 0x1b0000, scoped, tag = 'input window, operand 1, single buffered']
    #allocation7 [shape = 's32[1]{0}', space=sflag, size = 0x4, scoped, tag = 'scoped memory for tpu_custom_call.1']
    #allocation8 [shape = 'u8[1536]{0}', space=vmem, size = 0x800, scoped, tag = 'input window, operand 2, single buffered']
    #allocation9 [shape = 'u8[1536]{0}', space=vmem, size = 0x800, scoped, tag = 'input window, operand 3, single buffered']
    #allocation10 [shape = 's32[1]{0}', space=sflag, size = 0x4, scoped, tag = 'scoped memory for tpu_custom_call.1']
    #allocation11 [shape = 'u8[262144]{0}', space=vmem, size = 0x40000, scoped, tag = 'output window, operand 0, single buffered']
    %9 = vsyncpa [#allocation4], 0
    %10 = vsyncpa [#allocation7], 0
    %11 = vsyncpa [#allocation10], 0
    %12 = vsyncpa [#allocation5], 0
    // Predicated region
    $region2: #{tpu_custom_call.1} parent=1 // pred_check
      _
    $region3: #{tpu_custom_call.1} parent=1 // pred_check_branch
      %14 = sbr.rel (0) target = $region5
    $region4: #{tpu_custom_call.1} parent=1 // pred_region
      %16 = vsyncadd [#allocation4], 0
      %s17 = sshll.u32 %s0, 4
      %s18 = int_to_ptr.hbm [resolvable:$true] %s17
      %s19 = sshll.u32 [#allocation3], 4
      %s20 = int_to_ptr.vmem [resolvable:$true] %s19
      %25 = dma.hbm_to_vmem [thread:$0]  %s18, 8192, %s20, [#allocation4], 128, 128, 8
    $region5: #{tpu_custom_call.1} parent=1 // pred_fallthru
      _
    // Predicated region
    $region6: #{tpu_custom_call.1} parent=1 // pred_check
      _
    $region7: #{tpu_custom_call.1} parent=1 // pred_check_branch
      %27 = sbr.rel (0) target = $region9
    $region8: #{tpu_custom_call.1} parent=1 // pred_region
      %29 = vsyncadd [#allocation7], 0
      %s30 = sshll.u32 %s1, 4
      %s31 = int_to_ptr.hbm [resolvable:$true] %s30
      %s32 = sshll.u32 [#allocation6], 4
      %s33 = int_to_ptr.vmem [resolvable:$true] %s32
      %38 = dma.hbm_to_vmem [thread:$0]  %s31, 55296, %s33, [#allocation7], 128, 128, 8
    $region9: #{tpu_custom_call.1} parent=1 // pred_fallthru
      _
    // Predicated region
    $region10: #{tpu_custom_call.1} parent=1 // pred_check
      _
    $region11: #{tpu_custom_call.1} parent=1 // pred_check_branch
      %40 = sbr.rel (0) target = $region13
    $region12: #{tpu_custom_call.1} parent=1 // pred_region
      %42 = vsyncadd [#allocation7], 0
      %s43 = sshll.u32 %s2, 4
      %s44 = int_to_ptr.hbm [resolvable:$true] %s43
      %s45 = sshll.u32 [#allocation8], 4
      %s46 = int_to_ptr.vmem [resolvable:$true] %s45
      %51 = dma.hbm_to_vmem [thread:$0]  %s44, 48, %s46, [#allocation7], 16, 16, 1
    $region13: #{tpu_custom_call.1} parent=1 // pred_fallthru
      _
    // Predicated region
    $region14: #{tpu_custom_call.1} parent=1 // pred_check
      _
    $region15: #{tpu_custom_call.1} parent=1 // pred_check_branch
      %53 = sbr.rel (0) target = $region17
    $region16: #{tpu_custom_call.1} parent=1 // pred_region
      %55 = vsyncadd [#allocation10], 0
      %s56 = sshll.u32 %s3, 4
      %s57 = int_to_ptr.hbm [resolvable:$true] %s56
      %s58 = sshll.u32 [#allocation9], 4
      %s59 = int_to_ptr.vmem [resolvable:$true] %s58
      %64 = dma.hbm_to_vmem [thread:$0]  %s57, 48, %s59, [#allocation10], 16, 16, 1
    $region17: #{tpu_custom_call.1} parent=1 // pred_fallthru
      _
    // Predicated region
    $region18: #{tpu_custom_call.1} parent=1 // pred_check
      _
    $region19: #{tpu_custom_call.1} parent=1 // pred_check_branch
      %66 = sbr.rel (0) target = $region21
    $region20: #{tpu_custom_call.1} parent=1 // pred_region
      %68 = dma.done [#allocation4], 8192
    $region21: #{tpu_custom_call.1} parent=1 // pred_fallthru
      _
    // Predicated region
    $region22: #{tpu_custom_call.1} parent=1 // pred_check
      _
    $region23: #{tpu_custom_call.1} parent=1 // pred_check_branch
      %70 = sbr.rel (0) target = $region25
    $region24: #{tpu_custom_call.1} parent=1 // pred_region
      %72 = dma.done [#allocation7], 55296
    $region25: #{tpu_custom_call.1} parent=1 // pred_fallthru
      _
    // Predicated region
    $region26: #{tpu_custom_call.1} parent=1 // pred_check
      _
    $region27: #{tpu_custom_call.1} parent=1 // pred_check_branch
      %74 = sbr.rel (0) target = $region29
    $region28: #{tpu_custom_call.1} parent=1 // pred_region
      %76 = dma.done [#allocation7], 48
    $region29: #{tpu_custom_call.1} parent=1 // pred_fallthru
      _
    // Predicated region
    $region30: #{tpu_custom_call.1} parent=1 // pred_check
      _
    $region31: #{tpu_custom_call.1} parent=1 // pred_check_branch
      %78 = sbr.rel (0) target = $region33
    $region32: #{tpu_custom_call.1} parent=1 // pred_region
      %80 = dma.done [#allocation10], 48
    $region33: #{tpu_custom_call.1} parent=1 // pred_fallthru
      _
    %81 = vst [vmem:[#allocation2] sm:$0xff] 0.0
    %82 = vst [vmem:[#allocation2 + $0x8] sm:$0xff] 0.0
    %83 = vst [vmem:[#allocation2 + $0x10] sm:$0xff] 0.0
    %84 = vst [vmem:[#allocation2 + $0x1b0] sm:$0xff] 0.0
    %85 = vst [vmem:[#allocation2 + $0x1b8] sm:$0xff] 0.0
    %86 = vst [vmem:[#allocation2 + $0x1c0] sm:$0xff] 0.0
    %s87 = scalar_lea.vmem [#allocation2], 408
    %88 = vst [vmem:[%s87] sm:$0xff] 0.0
    %89 = vst [vmem:[%s87 + $0x8] sm:$0xff] 0.0
    %90 = vst [vmem:[%s87 + $0x10] sm:$0xff] 0.0
    %91 = vst [vmem:[%s87 + $0x1b0] sm:$0xff] 0.0
    %92 = vst [vmem:[%s87 + $0x1b8] sm:$0xff] 0.0
    %93 = vst [vmem:[%s87 + $0x1c0] sm:$0xff] 0.0
    %94 = vst [vmem:[#allocation2] sm:$0x1] 0.0
    %95 = vst [vmem:[#allocation2 + $0x18] sm:$0x1] 0.0
    %96 = vst [vmem:[#allocation2 + $0x30] sm:$0x1] 0.0
    %97 = vst [vmem:[#allocation2 + $0x48] sm:$0x1] 0.0
    %98 = vst [vmem:[#allocation2 + $0x60] sm:$0x1] 0.0
    %99 = vst [vmem:[#allocation2 + $0x78] sm:$0x1] 0.0
    %100 = vst [vmem:[#allocation2 + $0x90] sm:$0x1] 0.0
    %101 = vst [vmem:[#allocation2 + $0xa8] sm:$0x1] 0.0
    %102 = vst [vmem:[#allocation2 + $0xc0] sm:$0x1] 0.0
    %103 = vst [vmem:[#allocation2 + $0xd8] sm:$0x1] 0.0
    %104 = vst [vmem:[#allocation2 + $0xf0] sm:$0x1] 0.0
    %105 = vst [vmem:[#allocation2 + $0x108] sm:$0x1] 0.0
    %106 = vst [vmem:[#allocation2 + $0x120] sm:$0x1] 0.0
    %107 = vst [vmem:[#allocation2 + $0x138] sm:$0x1] 0.0
    %108 = vst [vmem:[#allocation2 + $0x150] sm:$0x1] 0.0
    %109 = vst [vmem:[#allocation2 + $0x168] sm:$0x1] 0.0
    %110 = vst [vmem:[#allocation2 + $0x180] sm:$0x1] 0.0
    %111 = vst [vmem:[#allocation2 + $0x198] sm:$0x1] 0.0
    %112 = vst [vmem:[#allocation2 + $0x1b0] sm:$0x1] 0.0
    %113 = vst [vmem:[#allocation2 + $0x1c8] sm:$0x1] 0.0
    %114 = vst [vmem:[#allocation2 + $0x1e0] sm:$0x1] 0.0
    %115 = vst [vmem:[#allocation2 + $0x1f8] sm:$0x1] 0.0
    %116 = vst [vmem:[#allocation2 + $0x210] sm:$0x1] 0.0
    %117 = vst [vmem:[#allocation2 + $0x228] sm:$0x1] 0.0
    %118 = vst [vmem:[#allocation2 + $0x240] sm:$0x1] 0.0
    %119 = vst [vmem:[#allocation2 + $0x258] sm:$0x1] 0.0
    %120 = vst [vmem:[#allocation2 + $0x270] sm:$0x1] 0.0
    %121 = vst [vmem:[#allocation2 + $0x288] sm:$0x1] 0.0
    %122 = vst [vmem:[#allocation2 + $0x2a0] sm:$0x1] 0.0
    %123 = vst [vmem:[#allocation2 + $0x2b8] sm:$0x1] 0.0
    %124 = vst [vmem:[#allocation2 + $0x2d0] sm:$0x1] 0.0
    %125 = vst [vmem:[#allocation2 + $0x2e8] sm:$0x1] 0.0
    %126 = vst [vmem:[#allocation2 + $0x300] sm:$0x1] 0.0
    %127 = vst [vmem:[#allocation2 + $0x318] sm:$0x1] 0.0
    %128 = vst [vmem:[#allocation2 + $0x330] sm:$0x1] 0.0
    %129 = vst [vmem:[#allocation2 + $0x348] sm:$0x1] 0.0
    %130 = vst [vmem:[#allocation2 + $0x11] sm:$0x1] 0.0
    %131 = vst [vmem:[#allocation2 + $0x29] sm:$0x1] 0.0
    %132 = vst [vmem:[#allocation2 + $0x41] sm:$0x1] 0.0
    %133 = vst [vmem:[#allocation2 + $0x59] sm:$0x1] 0.0
    %134 = vst [vmem:[#allocation2 + $0x71] sm:$0x1] 0.0
    %135 = vst [vmem:[#allocation2 + $0x89] sm:$0x1] 0.0
    %136 = vst [vmem:[#allocation2 + $0xa1] sm:$0x1] 0.0
    %137 = vst [vmem:[#allocation2 + $0xb9] sm:$0x1] 0.0
    %138 = vst [vmem:[#allocation2 + $0xd1] sm:$0x1] 0.0
    %139 = vst [vmem:[#allocation2 + $0xe9] sm:$0x1] 0.0
    %140 = vst [vmem:[#allocation2 + $0x101] sm:$0x1] 0.0
    %141 = vst [vmem:[#allocation2 + $0x119] sm:$0x1] 0.0
    %142 = vst [vmem:[#allocation2 + $0x131] sm:$0x1] 0.0
    %143 = vst [vmem:[#allocation2 + $0x149] sm:$0x1] 0.0
    %144 = vst [vmem:[#allocation2 + $0x161] sm:$0x1] 0.0
    %145 = vst [vmem:[#allocation2 + $0x179] sm:$0x1] 0.0
    %146 = vst [vmem:[#allocation2 + $0x191] sm:$0x1] 0.0
    %147 = vst [vmem:[#allocation2 + $0x1a9] sm:$0x1] 0.0
    %148 = vst [vmem:[#allocation2 + $0x1c1] sm:$0x1] 0.0
    %149 = vst [vmem:[#allocation2 + $0x1d9] sm:$0x1] 0.0
    %150 = vst [vmem:[#allocation2 + $0x1f1] sm:$0x1] 0.0
    %151 = vst [vmem:[#allocation2 + $0x209] sm:$0x1] 0.0
    %152 = vst [vmem:[#allocation2 + $0x221] sm:$0x1] 0.0
    %153 = vst [vmem:[#allocation2 + $0x239] sm:$0x1] 0.0
    %154 = vst [vmem:[#allocation2 + $0x251] sm:$0x1] 0.0
    %155 = vst [vmem:[#allocation2 + $0x269] sm:$0x1] 0.0
    %156 = vst [vmem:[#allocation2 + $0x281] sm:$0x1] 0.0
    %157 = vst [vmem:[#allocation2 + $0x299] sm:$0x1] 0.0
    %158 = vst [vmem:[#allocation2 + $0x2b1] sm:$0x1] 0.0
    %159 = vst [vmem:[#allocation2 + $0x2c9] sm:$0x1] 0.0
    %160 = vst [vmem:[#allocation2 + $0x2e1] sm:$0x1] 0.0
    %161 = vst [vmem:[#allocation2 + $0x2f9] sm:$0x1] 0.0
    %162 = vst [vmem:[#allocation2 + $0x311] sm:$0x1] 0.0
    %163 = vst [vmem:[#allocation2 + $0x329] sm:$0x1] 0.0
    %164 = vst [vmem:[#allocation2 + $0x341] sm:$0x1] 0.0
    %165 = vst [vmem:[#allocation2 + $0x359] sm:$0x1] 0.0
    %v166 = vld [vmem:[#allocation3] sm:$0xff]
    %v167 = vld [vmem:[#allocation3 + $0x8] sm:$0xff]
    %v168 = vld [vmem:[#allocation3 + $0x10] sm:$0xff]
    %v169 = vld [vmem:[#allocation3 + $0x18] sm:$0xff]
    %v170 = vld [vmem:[#allocation3 + $0x20] sm:$0xff]
    %v171 = vld [vmem:[#allocation3 + $0x28] sm:$0xff]
    %v172 = vld [vmem:[#allocation3 + $0x30] sm:$0xff]
    %v173 = vld [vmem:[#allocation3 + $0x38] sm:$0xff]
    %v174 = vld [vmem:[#allocation3 + $0x40] sm:$0xff]
    %v175 = vld [vmem:[#allocation3 + $0x48] sm:$0xff]
    %v176 = vld [vmem:[#allocation3 + $0x50] sm:$0xff]
    %v177 = vld [vmem:[#allocation3 + $0x58] sm:$0xff]
    %v178 = vld [vmem:[#allocation3 + $0x60] sm:$0xff]
    %v179 = vld [vmem:[#allocation3 + $0x68] sm:$0xff]
    %v180 = vld [vmem:[#allocation3 + $0x70] sm:$0xff]
    %v181 = vld [vmem:[#allocation3 + $0x78] sm:$0xff]
    %v182 = vld [vmem:[#allocation3 + $0x80] sm:$0xff]
    %v183 = vld [vmem:[#allocation3 + $0x88] sm:$0xff]
    %v184 = vld [vmem:[#allocation3 + $0x90] sm:$0xff]
    %v185 = vld [vmem:[#allocation3 + $0x98] sm:$0xff]
    %v186 = vld [vmem:[#allocation3 + $0xa0] sm:$0xff]
    %v187 = vld [vmem:[#allocation3 + $0xa8] sm:$0xff]
    %v188 = vld [vmem:[#allocation3 + $0xb0] sm:$0xff]
    %v189 = vld [vmem:[#allocation3 + $0xb8] sm:$0xff]
    %v190 = vld [vmem:[#allocation3 + $0xc0] sm:$0xff]
    %v191 = vld [vmem:[#allocation3 + $0xc8] sm:$0xff]
    %v192 = vld [vmem:[#allocation3 + $0xd0] sm:$0xff]
    %v193 = vld [vmem:[#allocation3 + $0xd8] sm:$0xff]
    %v194 = vld [vmem:[#allocation3 + $0xe0] sm:$0xff]
    %v195 = vld [vmem:[#allocation3 + $0xe8] sm:$0xff]
    %v196 = vld [vmem:[#allocation3 + $0xf0] sm:$0xff]
    %v197 = vld [vmem:[#allocation3 + $0xf8] sm:$0xff]
    %v198 = vld [vmem:[#allocation3 + $0x100] sm:$0xff]
    %v199 = vld [vmem:[#allocation3 + $0x108] sm:$0xff]
    %v200 = vld [vmem:[#allocation3 + $0x110] sm:$0xff]
    %v201 = vld [vmem:[#allocation3 + $0x118] sm:$0xff]
    %v202 = vld [vmem:[#allocation3 + $0x120] sm:$0xff]
    %v203 = vld [vmem:[#allocation3 + $0x128] sm:$0xff]
    %v204 = vld [vmem:[#allocation3 + $0x130] sm:$0xff]
    %v205 = vld [vmem:[#allocation3 + $0x138] sm:$0xff]
    %v206 = vld [vmem:[#allocation3 + $0x140] sm:$0xff]
    %v207 = vld [vmem:[#allocation3 + $0x148] sm:$0xff]
    %v208 = vld [vmem:[#allocation3 + $0x150] sm:$0xff]
    %v209 = vld [vmem:[#allocation3 + $0x158] sm:$0xff]
    %v210 = vld [vmem:[#allocation3 + $0x160] sm:$0xff]
    %v211 = vld [vmem:[#allocation3 + $0x168] sm:$0xff]
    %v212 = vld [vmem:[#allocation3 + $0x170] sm:$0xff]
    %v213 = vld [vmem:[#allocation3 + $0x178] sm:$0xff]
    %v214 = vld [vmem:[#allocation3 + $0x180] sm:$0xff]
    %v215 = vld [vmem:[#allocation3 + $0x188] sm:$0xff]
    %v216 = vld [vmem:[#allocation3 + $0x190] sm:$0xff]
    %v217 = vld [vmem:[#allocation3 + $0x198] sm:$0xff]
    %v218 = vld [vmem:[#allocation3 + $0x1a0] sm:$0xff]
    %v219 = vld [vmem:[#allocation3 + $0x1a8] sm:$0xff]
    %v220 = vld [vmem:[#allocation3 + $0x1b0] sm:$0xff]
    %v221 = vld [vmem:[#allocation3 + $0x1b8] sm:$0xff]
    %v222 = vld [vmem:[#allocation3 + $0x1c0] sm:$0xff]
    %v223 = vld [vmem:[#allocation3 + $0x1c8] sm:$0xff]
    %v224 = vld [vmem:[#allocation3 + $0x1d0] sm:$0xff]
    %v225 = vld [vmem:[#allocation3 + $0x1d8] sm:$0xff]
    %v226 = vld [vmem:[#allocation3 + $0x1e0] sm:$0xff]
    %v227 = vld [vmem:[#allocation3 + $0x1e8] sm:$0xff]
    %v228 = vld [vmem:[#allocation3 + $0x1f0] sm:$0xff]
    %v229 = vld [vmem:[#allocation3 + $0x1f8] sm:$0xff]
    %s230 = scalar_lea.vmem [#allocation2], 24
    %231 = vst [vmem:[%s230 + $0x1] sm:$0xff] %v166
    %232 = vst [vmem:[%s230 + $0x9] sm:$0xff] %v167
    %233 = vst [vmem:[%s230 + $0x19] sm:$0xff] %v168
    %234 = vst [vmem:[%s230 + $0x21] sm:$0xff] %v169
    %235 = vst [vmem:[%s230 + $0x31] sm:$0xff] %v170
    %236 = vst [vmem:[%s230 + $0x39] sm:$0xff] %v171
    %237 = vst [vmem:[%s230 + $0x49] sm:$0xff] %v172
    %238 = vst [vmem:[%s230 + $0x51] sm:$0xff] %v173
    %239 = vst [vmem:[%s230 + $0x61] sm:$0xff] %v174
    %240 = vst [vmem:[%s230 + $0x69] sm:$0xff] %v175
    %241 = vst [vmem:[%s230 + $0x79] sm:$0xff] %v176
    %242 = vst [vmem:[%s230 + $0x81] sm:$0xff] %v177
    %243 = vst [vmem:[%s230 + $0x91] sm:$0xff] %v178
    %244 = vst [vmem:[%s230 + $0x99] sm:$0xff] %v179
    %245 = vst [vmem:[%s230 + $0xa9] sm:$0xff] %v180
    %246 = vst [vmem:[%s230 + $0xb1] sm:$0xff] %v181
    %247 = vst [vmem:[%s230 + $0xc1] sm:$0xff] %v182
    %248 = vst [vmem:[%s230 + $0xc9] sm:$0xff] %v183
    %249 = vst [vmem:[%s230 + $0xd9] sm:$0xff] %v184
    %250 = vst [vmem:[%s230 + $0xe1] sm:$0xff] %v185
    %251 = vst [vmem:[%s230 + $0xf1] sm:$0xff] %v186
    %252 = vst [vmem:[%s230 + $0xf9] sm:$0xff] %v187
    %253 = vst [vmem:[%s230 + $0x109] sm:$0xff] %v188
    %254 = vst [vmem:[%s230 + $0x111] sm:$0xff] %v189
    %255 = vst [vmem:[%s230 + $0x121] sm:$0xff] %v190
    %256 = vst [vmem:[%s230 + $0x129] sm:$0xff] %v191
    %257 = vst [vmem:[%s230 + $0x139] sm:$0xff] %v192
    %258 = vst [vmem:[%s230 + $0x141] sm:$0xff] %v193
    %259 = vst [vmem:[%s230 + $0x151] sm:$0xff] %v194
    %260 = vst [vmem:[%s230 + $0x159] sm:$0xff] %v195
    %261 = vst [vmem:[%s230 + $0x169] sm:$0xff] %v196
    %262 = vst [vmem:[%s230 + $0x171] sm:$0xff] %v197
    %263 = vst [vmem:[%s230 + $0x1b1] sm:$0xff] %v198
    %264 = vst [vmem:[%s230 + $0x1b9] sm:$0xff] %v199
    %265 = vst [vmem:[%s230 + $0x1c9] sm:$0xff] %v200
    %266 = vst [vmem:[%s230 + $0x1d1] sm:$0xff] %v201
    %267 = vst [vmem:[%s230 + $0x1e1] sm:$0xff] %v202
    %268 = vst [vmem:[%s230 + $0x1e9] sm:$0xff] %v203
    %269 = vst [vmem:[%s230 + $0x1f9] sm:$0xff] %v204
    %270 = vst [vmem:[%s230 + $0x201] sm:$0xff] %v205
    %271 = vst [vmem:[%s230 + $0x211] sm:$0xff] %v206
    %272 = vst [vmem:[%s230 + $0x219] sm:$0xff] %v207
    %273 = vst [vmem:[%s230 + $0x229] sm:$0xff] %v208
    %274 = vst [vmem:[%s230 + $0x231] sm:$0xff] %v209
    %275 = vst [vmem:[%s230 + $0x241] sm:$0xff] %v210
    %276 = vst [vmem:[%s230 + $0x249] sm:$0xff] %v211
    %277 = vst [vmem:[%s230 + $0x259] sm:$0xff] %v212
    %278 = vst [vmem:[%s230 + $0x261] sm:$0xff] %v213
    %279 = vst [vmem:[%s230 + $0x271] sm:$0xff] %v214
    %280 = vst [vmem:[%s230 + $0x279] sm:$0xff] %v215
    %281 = vst [vmem:[%s230 + $0x289] sm:$0xff] %v216
    %282 = vst [vmem:[%s230 + $0x291] sm:$0xff] %v217
    %283 = vst [vmem:[%s230 + $0x2a1] sm:$0xff] %v218
    %284 = vst [vmem:[%s230 + $0x2a9] sm:$0xff] %v219
    %285 = vst [vmem:[%s230 + $0x2b9] sm:$0xff] %v220
    %286 = vst [vmem:[%s230 + $0x2c1] sm:$0xff] %v221
    %287 = vst [vmem:[%s230 + $0x2d1] sm:$0xff] %v222
    %288 = vst [vmem:[%s230 + $0x2d9] sm:$0xff] %v223
    %289 = vst [vmem:[%s230 + $0x2e9] sm:$0xff] %v224
    %290 = vst [vmem:[%s230 + $0x2f1] sm:$0xff] %v225
    %291 = vst [vmem:[%s230 + $0x301] sm:$0xff] %v226
    %292 = vst [vmem:[%s230 + $0x309] sm:$0xff] %v227
    %293 = vst [vmem:[%s230 + $0x319] sm:$0xff] %v228
    %294 = vst [vmem:[%s230 + $0x321] sm:$0xff] %v229
    %v295 = vld [vmem:[#allocation2] sm:$0xff]
    %v296 = vld [vmem:[#allocation2 + $0x8] sm:$0xff]
    %v297 = vld [vmem:[#allocation2 + $0x18] sm:$0xff]
    %v298 = vld [vmem:[#allocation2 + $0x20] sm:$0xff]
    %v299 = vld [vmem:[#allocation2 + $0x30] sm:$0xff]
    %v300 = vld [vmem:[#allocation2 + $0x38] sm:$0xff]
    %v301 = vld [vmem:[#allocation2 + $0x48] sm:$0xff]
    %v302 = vld [vmem:[#allocation2 + $0x50] sm:$0xff]
    %v303 = vld [vmem:[#allocation2 + $0x60] sm:$0xff]
    %v304 = vld [vmem:[#allocation2 + $0x68] sm:$0xff]
    %v305 = vld [vmem:[#allocation2 + $0x78] sm:$0xff]
    %v306 = vld [vmem:[#allocation2 + $0x80] sm:$0xff]
    %v307 = vld [vmem:[#allocation2 + $0x90] sm:$0xff]
    %v308 = vld [vmem:[#allocation2 + $0x98] sm:$0xff]
    %v309 = vld [vmem:[#allocation2 + $0xa8] sm:$0xff]
    %v310 = vld [vmem:[#allocation2 + $0xb0] sm:$0xff]
    %v311 = vld [vmem:[#allocation2 + $0xc0] sm:$0xff]
    %v312 = vld [vmem:[#allocation2 + $0xc8] sm:$0xff]
    %v313 = vld [vmem:[#allocation2 + $0xd8] sm:$0xff]
    %v314 = vld [vmem:[#allocation2 + $0xe0] sm:$0xff]
    %v315 = vld [vmem:[#allocation2 + $0xf0] sm:$0xff]
    %v316 = vld [vmem:[#allocation2 + $0xf8] sm:$0xff]
    %v317 = vld [vmem:[#allocation2 + $0x108] sm:$0xff]
    %v318 = vld [vmem:[#allocation2 + $0x110] sm:$0xff]
    %v319 = vld [vmem:[#allocation2 + $0x120] sm:$0xff]
    %v320 = vld [vmem:[#allocation2 + $0x128] sm:$0xff]
    %v321 = vld [vmem:[#allocation2 + $0x138] sm:$0xff]
    %v322 = vld [vmem:[#allocation2 + $0x140] sm:$0xff]
    %v323 = vld [vmem:[#allocation2 + $0x150] sm:$0xff]
    %v324 = vld [vmem:[#allocation2 + $0x158] sm:$0xff]
    %v325 = vld [vmem:[#allocation2 + $0x168] sm:$0xff]
    %v326 = vld [vmem:[#allocation2 + $0x170] sm:$0xff]
    %v327 = vld [vmem:[#allocation2 + $0x1b0] sm:$0xff]
    %v328 = vld [vmem:[#allocation2 + $0x1b8] sm:$0xff]
    %v329 = vld [vmem:[#allocation2 + $0x1c8] sm:$0xff]
    %v330 = vld [vmem:[#allocation2 + $0x1d0] sm:$0xff]
    %v331 = vld [vmem:[#allocation2 + $0x1e0] sm:$0xff]
    %v332 = vld [vmem:[#allocation2 + $0x1e8] sm:$0xff]
    %v333 = vld [vmem:[#allocation2 + $0x1f8] sm:$0xff]
    %v334 = vld [vmem:[#allocation2 + $0x200] sm:$0xff]
    %v335 = vld [vmem:[#allocation2 + $0x210] sm:$0xff]
    %v336 = vld [vmem:[#allocation2 + $0x218] sm:$0xff]
    %v337 = vld [vmem:[#allocation2 + $0x228] sm:$0xff]
    %v338 = vld [vmem:[#allocation2 + $0x230] sm:$0xff]
    %v339 = vld [vmem:[#allocation2 + $0x240] sm:$0xff]
    %v340 = vld [vmem:[#allocation2 + $0x248] sm:$0xff]
    %v341 = vld [vmem:[#allocation2 + $0x258] sm:$0xff]
    %v342 = vld [vmem:[#allocation2 + $0x260] sm:$0xff]
    %v343 = vld [vmem:[#allocation2 + $0x270] sm:$0xff]
    %v344 = vld [vmem:[#allocation2 + $0x278] sm:$0xff]
    %v345 = vld [vmem:[#allocation2 + $0x288] sm:$0xff]
    %v346 = vld [vmem:[#allocation2 + $0x290] sm:$0xff]
    %v347 = vld [vmem:[#allocation2 + $0x2a0] sm:$0xff]
    %v348 = vld [vmem:[#allocation2 + $0x2a8] sm:$0xff]
    %v349 = vld [vmem:[#allocation2 + $0x2b8] sm:$0xff]
    %v350 = vld [vmem:[#allocation2 + $0x2c0] sm:$0xff]
    %v351 = vld [vmem:[#allocation2 + $0x2d0] sm:$0xff]
    %v352 = vld [vmem:[#allocation2 + $0x2d8] sm:$0xff]
    %v353 = vld [vmem:[#allocation2 + $0x2e8] sm:$0xff]
    %v354 = vld [vmem:[#allocation2 + $0x2f0] sm:$0xff]
    %v355 = vld [vmem:[#allocation2 + $0x300] sm:$0xff]
    %v356 = vld [vmem:[#allocation2 + $0x308] sm:$0xff]
    %v357 = vld [vmem:[#allocation2 + $0x318] sm:$0xff]
    %v358 = vld [vmem:[#allocation2 + $0x320] sm:$0xff]
    %v359 = vld [vmem:[#allocation6] sm:$0xff]
    %v360 = vld [vmem:[#allocation6 + $0x8] sm:$0xff]
    %v361 = vld [vmem:[#allocation6 + $0x10] sm:$0xff]
    %v362 = vld [vmem:[#allocation6 + $0x18] sm:$0xff]
    %v363 = vld [vmem:[#allocation6 + $0x20] sm:$0xff]
    %v364 = vld [vmem:[#allocation6 + $0x28] sm:$0xff]
    %v365 = vld [vmem:[#allocation6 + $0x30] sm:$0xff]
    %v366 = vld [vmem:[#allocation6 + $0x38] sm:$0xff]
    %v367 = vld [vmem:[#allocation6 + $0x40] sm:$0xff]
    %v368 = vld [vmem:[#allocation6 + $0x48] sm:$0xff]
    %v369 = vld [vmem:[#allocation6 + $0x50] sm:$0xff]
    %v370 = vld [vmem:[#allocation6 + $0x58] sm:$0xff]
    %v371 = vld [vmem:[#allocation6 + $0x60] sm:$0xff]
    %v372 = vld [vmem:[#allocation6 + $0x68] sm:$0xff]
    %v373 = vld [vmem:[#allocation6 + $0x70] sm:$0xff]
    %v374 = vld [vmem:[#allocation6 + $0x78] sm:$0xff]
    %v375 = vld [vmem:[#allocation2 + $0x1] sm:$0xff]
    %v376 = vld [vmem:[#allocation2 + $0x9] sm:$0xff]
    %v377 = vld [vmem:[#allocation2 + $0x19] sm:$0xff]
    %v378 = vld [vmem:[#allocation2 + $0x21] sm:$0xff]
    %v379 = vld [vmem:[#allocation2 + $0x31] sm:$0xff]
    %v380 = vld [vmem:[#allocation2 + $0x39] sm:$0xff]
    %v381 = vld [vmem:[#allocation2 + $0x49] sm:$0xff]
    %v382 = vld [vmem:[#allocation2 + $0x51] sm:$0xff]
    %v383 = vld [vmem:[#allocation2 + $0x61] sm:$0xff]
    %v384 = vld [vmem:[#allocation2 + $0x69] sm:$0xff]
    %v385 = vld [vmem:[#allocation2 + $0x79] sm:$0xff]
    %v386 = vld [vmem:[#allocation2 + $0x81] sm:$0xff]
    %v387 = vld [vmem:[#allocation2 + $0x91] sm:$0xff]
    %v388 = vld [vmem:[#allocation2 + $0x99] sm:$0xff]
    %v389 = vld [vmem:[#allocation2 + $0xa9] sm:$0xff]
    %v390 = vld [vmem:[#allocation2 + $0xb1] sm:$0xff]
    %v391 = vld [vmem:[#allocation2 + $0xc1] sm:$0xff]
    %v392 = vld [vmem:[#allocation2 + $0xc9] sm:$0xff]
    %v393 = vld [vmem:[#allocation2 + $0xd9] sm:$0xff]
    %v394 = vld [vmem:[#allocation2 + $0xe1] sm:$0xff]
    %v395 = vld [vmem:[#allocation2 + $0xf1] sm:$0xff]
    %v396 = vld [vmem:[#allocation2 + $0xf9] sm:$0xff]
    %v397 = vld [vmem:[#allocation2 + $0x109] sm:$0xff]
    %v398 = vld [vmem:[#allocation2 + $0x111] sm:$0xff]
    %v399 = vld [vmem:[#allocation2 + $0x121] sm:$0xff]
    %v400 = vld [vmem:[#allocation2 + $0x129] sm:$0xff]
    %v401 = vld [vmem:[#allocation2 + $0x139] sm:$0xff]
    %v402 = vld [vmem:[#allocation2 + $0x141] sm:$0xff]
    %v403 = vld [vmem:[#allocation2 + $0x151] sm:$0xff]
    %v404 = vld [vmem:[#allocation2 + $0x159] sm:$0xff]
    %v405 = vld [vmem:[#allocation2 + $0x169] sm:$0xff]
    %v406 = vld [vmem:[#allocation2 + $0x171] sm:$0xff]
    %v407 = vld [vmem:[#allocation2 + $0x1b1] sm:$0xff]
    %v408 = vld [vmem:[#allocation2 + $0x1b9] sm:$0xff]
    %v409 = vld [vmem:[#allocation2 + $0x1c9] sm:$0xff]
    %v410 = vld [vmem:[#allocation2 + $0x1d1] sm:$0xff]
    %v411 = vld [vmem:[#allocation2 + $0x1e1] sm:$0xff]
    %v412 = vld [vmem:[#allocation2 + $0x1e9] sm:$0xff]
    %v413 = vld [vmem:[#allocation2 + $0x1f9] sm:$0xff]
    %v414 = vld [vmem:[#allocation2 + $0x201] sm:$0xff]
    %v415 = vld [vmem:[#allocation2 + $0x211] sm:$0xff]
    %v416 = vld [vmem:[#allocation2 + $0x219] sm:$0xff]
    %v417 = vld [vmem:[#allocation2 + $0x229] sm:$0xff]
    %v418 = vld [vmem:[#allocation2 + $0x231] sm:$0xff]
    %v419 = vld [vmem:[#allocation2 + $0x241] sm:$0xff]
    %v420 = vld [vmem:[#allocation2 + $0x249] sm:$0xff]
    %v421 = vld [vmem:[#allocation2 + $0x259] sm:$0xff]
    %v422 = vld [vmem:[#allocation2 + $0x261] sm:$0xff]
    %v423 = vld [vmem:[#allocation2 + $0x271] sm:$0xff]
    %v424 = vld [vmem:[#allocation2 + $0x279] sm:$0xff]
    %v425 = vld [vmem:[#allocation2 + $0x289] sm:$0xff]
    %v426 = vld [vmem:[#allocation2 + $0x291] sm:$0xff]
    %v427 = vld [vmem:[#allocation2 + $0x2a1] sm:$0xff]
    %v428 = vld [vmem:[#allocation2 + $0x2a9] sm:$0xff]
    %v429 = vld [vmem:[#allocation2 + $0x2b9] sm:$0xff]
    %v430 = vld [vmem:[#allocation2 + $0x2c1] sm:$0xff]
    %v431 = vld [vmem:[#allocation2 + $0x2d1] sm:$0xff]
    %v432 = vld [vmem:[#allocation2 + $0x2d9] sm:$0xff]
    %v433 = vld [vmem:[#allocation2 + $0x2e9] sm:$0xff]
    %v434 = vld [vmem:[#allocation2 + $0x2f1] sm:$0xff]
    %v435 = vld [vmem:[#allocation2 + $0x301] sm:$0xff]
    %v436 = vld [vmem:[#allocation2 + $0x309] sm:$0xff]
    %v437 = vld [vmem:[#allocation2 + $0x319] sm:$0xff]
    %v438 = vld [vmem:[#allocation2 + $0x321] sm:$0xff]
    %s439 = scalar_lea.vmem [#allocation6], 128
    %v440 = vld [vmem:[%s439] sm:$0xff]
    %v441 = vld [vmem:[%s439 + $0x8] sm:$0xff]
    %v442 = vld [vmem:[%s439 + $0x10] sm:$0xff]
    %v443 = vld [vmem:[%s439 + $0x18] sm:$0xff]
    %v444 = vld [vmem:[%s439 + $0x20] sm:$0xff]
    %v445 = vld [vmem:[%s439 + $0x28] sm:$0xff]
    %v446 = vld [vmem:[%s439 + $0x30] sm:$0xff]
    %v447 = vld [vmem:[%s439 + $0x38] sm:$0xff]
    %v448 = vld [vmem:[%s439 + $0x40] sm:$0xff]
    %v449 = vld [vmem:[%s439 + $0x48] sm:$0xff]
    %v450 = vld [vmem:[%s439 + $0x50] sm:$0xff]
    %v451 = vld [vmem:[%s439 + $0x58] sm:$0xff]
    %v452 = vld [vmem:[%s439 + $0x60] sm:$0xff]
    %v453 = vld [vmem:[%s439 + $0x68] sm:$0xff]
    %v454 = vld [vmem:[%s439 + $0x70] sm:$0xff]
    %v455 = vld [vmem:[%s439 + $0x78] sm:$0xff]
    %456 = vmatpush.msra.mxu0 %v455
    %457 = vmatpush.msra.mxu0 %v454
    %458 = vmatpush.msra.mxu0 %v453
    %459 = vmatpush.msra.mxu0 %v452
    %460 = vmatpush.msra.mxu0 %v451
    %461 = vmatpush.msra.mxu0 %v450
    %462 = vmatpush.msra.mxu0 %v449
    %463 = vmatpush.msra.mxu0 %v448
    %464 = vmatpush.msra.mxu0 %v447
    %465 = vmatpush.msra.mxu0 %v446
    %466 = vmatpush.msra.mxu0 %v445
    %467 = vmatpush.msra.mxu0 %v444
    %468 = vmatpush.msra.mxu0 %v443
    %469 = vmatpush.msra.mxu0 %v442
    %470 = vmatpush.msra.mxu0 %v441
    %471 = vmatpush.msra.mxu0 %v440
    %472 = vmatmul.f32.gmra.mxu0 %v375
    %v473 = vpop.f32.mrf.mxu0
    %v474 = vadd.f32 0.0, %v473
    %475 = vmatmul.f32.gmra.mxu0 %v376
    %v476 = vpop.f32.mrf.mxu0
    %v477 = vadd.f32 0.0, %v476
    %478 = vmatmul.f32.gmra.mxu0 %v377
    %v479 = vpop.f32.mrf.mxu0
    %v480 = vadd.f32 0.0, %v479
    %481 = vmatmul.f32.gmra.mxu0 %v378
    %v482 = vpop.f32.mrf.mxu0
    %v483 = vadd.f32 0.0, %v482
    %484 = vmatmul.f32.gmra.mxu0 %v379
    %v485 = vpop.f32.mrf.mxu0
    %v486 = vadd.f32 0.0, %v485
    %487 = vmatmul.f32.gmra.mxu0 %v380
    %v488 = vpop.f32.mrf.mxu0
    %v489 = vadd.f32 0.0, %v488
    %490 = vmatmul.f32.gmra.mxu0 %v381
    %v491 = vpop.f32.mrf.mxu0
    %v492 = vadd.f32 0.0, %v491
    %493 = vmatmul.f32.gmra.mxu0 %v382
    %v494 = vpop.f32.mrf.mxu0
    %v495 = vadd.f32 0.0, %v494
    %496 = vmatmul.f32.gmra.mxu0 %v383
    %v497 = vpop.f32.mrf.mxu0
    %v498 = vadd.f32 0.0, %v497
    %499 = vmatmul.f32.gmra.mxu0 %v384
    %v500 = vpop.f32.mrf.mxu0
    %v501 = vadd.f32 0.0, %v500
    %502 = vmatmul.f32.gmra.mxu0 %v385
    %v503 = vpop.f32.mrf.mxu0
    %v504 = vadd.f32 0.0, %v503
    %505 = vmatmul.f32.gmra.mxu0 %v386
    %v506 = vpop.f32.mrf.mxu0
    %v507 = vadd.f32 0.0, %v506
    %508 = vmatmul.f32.gmra.mxu0 %v387
    %v509 = vpop.f32.mrf.mxu0
    %v510 = vadd.f32 0.0, %v509
    %511 = vmatmul.f32.gmra.mxu0 %v388
    %v512 = vpop.f32.mrf.mxu0
    %v513 = vadd.f32 0.0, %v512
    %514 = vmatmul.f32.gmra.mxu0 %v389
    %v515 = vpop.f32.mrf.mxu0
    %v516 = vadd.f32 0.0, %v515
    %517 = vmatmul.f32.gmra.mxu0 %v390
    %v518 = vpop.f32.mrf.mxu0
    %v519 = vadd.f32 0.0, %v518
    %520 = vmatmul.f32.gmra.mxu0 %v391
    %v521 = vpop.f32.mrf.mxu0
    %v522 = vadd.f32 0.0, %v521
    %523 = vmatmul.f32.gmra.mxu0 %v392
    %v524 = vpop.f32.mrf.mxu0
    %v525 = vadd.f32 0.0, %v524
    %526 = vmatmul.f32.gmra.mxu0 %v393
    %v527 = vpop.f32.mrf.mxu0
    %v528 = vadd.f32 0.0, %v527
    %529 = vmatmul.f32.gmra.mxu0 %v394
    %v530 = vpop.f32.mrf.mxu0
    %v531 = vadd.f32 0.0, %v530
    %532 = vmatmul.f32.gmra.mxu0 %v395
    %v533 = vpop.f32.mrf.mxu0
    %v534 = vadd.f32 0.0, %v533
    %535 = vmatmul.f32.gmra.mxu0 %v396
    %v536 = vpop.f32.mrf.mxu0
    %v537 = vadd.f32 0.0, %v536
    %538 = vmatmul.f32.gmra.mxu0 %v397
    %v539 = vpop.f32.mrf.mxu0
    %v540 = vadd.f32 0.0, %v539
    %541 = vmatmul.f32.gmra.mxu0 %v398
    %v542 = vpop.f32.mrf.mxu0
    %v543 = vadd.f32 0.0, %v542
    %544 = vmatmul.f32.gmra.mxu0 %v399
    %v545 = vpop.f32.mrf.mxu0
    %v546 = vadd.f32 0.0, %v545
    %547 = vmatmul.f32.gmra.mxu0 %v400
    %v548 = vpop.f32.mrf.mxu0
    %v549 = vadd.f32 0.0, %v548
    %550 = vmatmul.f32.gmra.mxu0 %v401
    %v551 = vpop.f32.mrf.mxu0
    %v552 = vadd.f32 0.0, %v551
    %553 = vmatmul.f32.gmra.mxu0 %v402
    %v554 = vpop.f32.mrf.mxu0
    %v555 = vadd.f32 0.0, %v554
    %556 = vmatmul.f32.gmra.mxu0 %v403
    %v557 = vpop.f32.mrf.mxu0
    %v558 = vadd.f32 0.0, %v557
    %559 = vmatmul.f32.gmra.mxu0 %v404
    %v560 = vpop.f32.mrf.mxu0
    %v561 = vadd.f32 0.0, %v560
    %562 = vmatmul.f32.gmra.mxu0 %v405
    %v563 = vpop.f32.mrf.mxu0
    %v564 = vadd.f32 0.0, %v563
    %565 = vmatmul.f32.gmra.mxu0 %v406
    %v566 = vpop.f32.mrf.mxu0
    %v567 = vadd.f32 0.0, %v566
    %568 = vmatmul.f32.gmra.mxu0 %v407
    %v569 = vpop.f32.mrf.mxu0
    %v570 = vadd.f32 0.0, %v569
    %571 = vmatmul.f32.gmra.mxu0 %v408
    %v572 = vpop.f32.mrf.mxu0
    %v573 = vadd.f32 0.0, %v572
    %574 = vmatmul.f32.gmra.mxu0 %v409
    %v575 = vpop.f32.mrf.mxu0
    %v576 = vadd.f32 0.0, %v575
    %577 = vmatmul.f32.gmra.mxu0 %v410
    %v578 = vpop.f32.mrf.mxu0
    %v579 = vadd.f32 0.0, %v578
    %580 = vmatmul.f32.gmra.mxu0 %v411
    %v581 = vpop.f32.mrf.mxu0
    %v582 = vadd.f32 0.0, %v581
    %583 = vmatmul.f32.gmra.mxu0 %v412
    %v584 = vpop.f32.mrf.mxu0
    %v585 = vadd.f32 0.0, %v584
    %586 = vmatmul.f32.gmra.mxu0 %v413
    %v587 = vpop.f32.mrf.mxu0
    %v588 = vadd.f32 0.0, %v587
    %589 = vmatmul.f32.gmra.mxu0 %v414
    %v590 = vpop.f32.mrf.mxu0
    %v591 = vadd.f32 0.0, %v590
    %592 = vmatmul.f32.gmra.mxu0 %v415
    %v593 = vpop.f32.mrf.mxu0
    %v594 = vadd.f32 0.0, %v593
    %595 = vmatmul.f32.gmra.mxu0 %v416
    %v596 = vpop.f32.mrf.mxu0
    %v597 = vadd.f32 0.0, %v596
    %598 = vmatmul.f32.gmra.mxu0 %v417
    %v599 = vpop.f32.mrf.mxu0
    %v600 = vadd.f32 0.0, %v599
    %601 = vmatmul.f32.gmra.mxu0 %v418
    %v602 = vpop.f32.mrf.mxu0
    %v603 = vadd.f32 0.0, %v602
    %604 = vmatmul.f32.gmra.mxu0 %v419
    %v605 = vpop.f32.mrf.mxu0
    %v606 = vadd.f32 0.0, %v605
    %607 = vmatmul.f32.gmra.mxu0 %v420
    %v608 = vpop.f32.mrf.mxu0
    %v609 = vadd.f32 0.0, %v608
    %610 = vmatmul.f32.gmra.mxu0 %v421
    %v611 = vpop.f32.mrf.mxu0
    %v612 = vadd.f32 0.0, %v611
    %613 = vmatmul.f32.gmra.mxu0 %v422
    %v614 = vpop.f32.mrf.mxu0
    %v615 = vadd.f32 0.0, %v614
    %616 = vmatmul.f32.gmra.mxu0 %v423
    %v617 = vpop.f32.mrf.mxu0
    %v618 = vadd.f32 0.0, %v617
    %619 = vmatmul.f32.gmra.mxu0 %v424
    %v620 = vpop.f32.mrf.mxu0
    %v621 = vadd.f32 0.0, %v620
    %622 = vmatmul.f32.gmra.mxu0 %v425
    %v623 = vpop.f32.mrf.mxu0
    %v624 = vadd.f32 0.0, %v623
    %625 = vmatmul.f32.gmra.mxu0 %v426
    %v626 = vpop.f32.mrf.mxu0
    %v627 = vadd.f32 0.0, %v626
    %628 = vmatmul.f32.gmra.mxu0 %v427
    %v629 = vpop.f32.mrf.mxu0
    %v630 = vadd.f32 0.0, %v629
    %631 = vmatmul.f32.gmra.mxu0 %v428
    %v632 = vpop.f32.mrf.mxu0
    %v633 = vadd.f32 0.0, %v632
    %634 = vmatmul.f32.gmra.mxu0 %v429
    %v635 = vpop.f32.mrf.mxu0
    %v636 = vadd.f32 0.0, %v635
    %637 = vmatmul.f32.gmra.mxu0 %v430
    %v638 = vpop.f32.mrf.mxu0
    %v639 = vadd.f32 0.0, %v638
    %640 = vmatmul.f32.gmra.mxu0 %v431
    %v641 = vpop.f32.mrf.mxu0
    %v642 = vadd.f32 0.0, %v641
    %643 = vmatmul.f32.gmra.mxu0 %v432
    %v644 = vpop.f32.mrf.mxu0
    %v645 = vadd.f32 0.0, %v644
    %646 = vmatmul.f32.gmra.mxu0 %v433
    %v647 = vpop.f32.mrf.mxu0
    %v648 = vadd.f32 0.0, %v647
    %649 = vmatmul.f32.gmra.mxu0 %v434
    %v650 = vpop.f32.mrf.mxu0
    %v651 = vadd.f32 0.0, %v650
    %652 = vmatmul.f32.gmra.mxu0 %v435
    %v653 = vpop.f32.mrf.mxu0
    %v654 = vadd.f32 0.0, %v653
    %655 = vmatmul.f32.gmra.mxu0 %v436
    %v656 = vpop.f32.mrf.mxu0
    %v657 = vadd.f32 0.0, %v656
    %658 = vmatmul.f32.gmra.mxu0 %v437
    %v659 = vpop.f32.mrf.mxu0
    %v660 = vadd.f32 0.0, %v659
    %661 = vmatmul.f32.gmra.mxu0 %v438
    %v662 = vpop.f32.mrf.mxu0
    %v663 = vadd.f32 0.0, %v662
    %664 = vdwg.mxu0
    %665 = vmatpush.msra.mxu0 %v374
    %666 = vmatpush.msra.mxu0 %v373
    %667 = vmatpush.msra.mxu0 %v372
    %668 = vmatpush.msra.mxu0 %v371
    %669 = vmatpush.msra.mxu0 %v370
    %670 = vmatpush.msra.mxu0 %v369
    %671 = vmatpush.msra.mxu0 %v368
    %672 = vmatpush.msra.mxu0 %v367
    %673 = vmatpush.msra.mxu0 %v366
    %674 = vmatpush.msra.mxu0 %v365
    %675 = vmatpush.msra.mxu0 %v364
    %676 = vmatpush.msra.mxu0 %v363
    %677 = vmatpush.msra.mxu0 %v362
    %678 = vmatpush.msra.mxu0 %v361
    %679 = vmatpush.msra.mxu0 %v360
    %680 = vmatpush.msra.mxu0 %v359
    %681 = vmatmul.f32.gmra.mxu0 %v295
    %v682 = vpop.f32.mrf.mxu0
    %v683 = vadd.f32 %v474, %v682
    %684 = vmatmul.f32.gmra.mxu0 %v296
    %v685 = vpop.f32.mrf.mxu0
    %v686 = vadd.f32 %v477, %v685
    %687 = vmatmul.f32.gmra.mxu0 %v297
    %v688 = vpop.f32.mrf.mxu0
    %v689 = vadd.f32 %v480, %v688
    %690 = vmatmul.f32.gmra.mxu0 %v298
    %v691 = vpop.f32.mrf.mxu0
    %v692 = vadd.f32 %v483, %v691
    %693 = vmatmul.f32.gmra.mxu0 %v299
    %v694 = vpop.f32.mrf.mxu0
    %v695 = vadd.f32 %v486, %v694
    %696 = vmatmul.f32.gmra.mxu0 %v300
    %v697 = vpop.f32.mrf.mxu0
    %v698 = vadd.f32 %v489, %v697
    %699 = vmatmul.f32.gmra.mxu0 %v301
    %v700 = vpop.f32.mrf.mxu0
    %v701 = vadd.f32 %v492, %v700
    %702 = vmatmul.f32.gmra.mxu0 %v302
    %v703 = vpop.f32.mrf.mxu0
    %v704 = vadd.f32 %v495, %v703
    %705 = vmatmul.f32.gmra.mxu0 %v303
    %v706 = vpop.f32.mrf.mxu0
    %v707 = vadd.f32 %v498, %v706
    %708 = vmatmul.f32.gmra.mxu0 %v304
    %v709 = vpop.f32.mrf.mxu0
    %v710 = vadd.f32 %v501, %v709
    %711 = vmatmul.f32.gmra.mxu0 %v305
    %v712 = vpop.f32.mrf.mxu0
    %v713 = vadd.f32 %v504, %v712
    %714 = vmatmul.f32.gmra.mxu0 %v306
    %v715 = vpop.f32.mrf.mxu0
    %v716 = vadd.f32 %v507, %v715
    %717 = vmatmul.f32.gmra.mxu0 %v307
    %v718 = vpop.f32.mrf.mxu0
    %v719 = vadd.f32 %v510, %v718
    %720 = vmatmul.f32.gmra.mxu0 %v308
    %v721 = vpop.f32.mrf.mxu0
    %v722 = vadd.f32 %v513, %v721
    %723 = vmatmul.f32.gmra.mxu0 %v309
    %v724 = vpop.f32.mrf.mxu0
    %v725 = vadd.f32 %v516, %v724
    %726 = vmatmul.f32.gmra.mxu0 %v310
    %v727 = vpop.f32.mrf.mxu0
    %v728 = vadd.f32 %v519, %v727
    %729 = vmatmul.f32.gmra.mxu0 %v311
    %v730 = vpop.f32.mrf.mxu0
    %v731 = vadd.f32 %v522, %v730
    %732 = vmatmul.f32.gmra.mxu0 %v312
    %v733 = vpop.f32.mrf.mxu0
    %v734 = vadd.f32 %v525, %v733
    %735 = vmatmul.f32.gmra.mxu0 %v313
    %v736 = vpop.f32.mrf.mxu0
    %v737 = vadd.f32 %v528, %v736
    %738 = vmatmul.f32.gmra.mxu0 %v314
    %v739 = vpop.f32.mrf.mxu0
    %v740 = vadd.f32 %v531, %v739
    %741 = vmatmul.f32.gmra.mxu0 %v315
    %v742 = vpop.f32.mrf.mxu0
    %v743 = vadd.f32 %v534, %v742
    %744 = vmatmul.f32.gmra.mxu0 %v316
    %v745 = vpop.f32.mrf.mxu0
    %v746 = vadd.f32 %v537, %v745
    %747 = vmatmul.f32.gmra.mxu0 %v317
    %v748 = vpop.f32.mrf.mxu0
    %v749 = vadd.f32 %v540, %v748
    %750 = vmatmul.f32.gmra.mxu0 %v318
    %v751 = vpop.f32.mrf.mxu0
    %v752 = vadd.f32 %v543, %v751
    %753 = vmatmul.f32.gmra.mxu0 %v319
    %v754 = vpop.f32.mrf.mxu0
    %v755 = vadd.f32 %v546, %v754
    %756 = vmatmul.f32.gmra.mxu0 %v320
    %v757 = vpop.f32.mrf.mxu0
    %v758 = vadd.f32 %v549, %v757
    %759 = vmatmul.f32.gmra.mxu0 %v321
    %v760 = vpop.f32.mrf.mxu0
    %v761 = vadd.f32 %v552, %v760
    %762 = vmatmul.f32.gmra.mxu0 %v322
    %v763 = vpop.f32.mrf.mxu0
    %v764 = vadd.f32 %v555, %v763
    %765 = vmatmul.f32.gmra.mxu0 %v323
    %v766 = vpop.f32.mrf.mxu0
    %v767 = vadd.f32 %v558, %v766
    %768 = vmatmul.f32.gmra.mxu0 %v324
    %v769 = vpop.f32.mrf.mxu0
    %v770 = vadd.f32 %v561, %v769
    %771 = vmatmul.f32.gmra.mxu0 %v325
    %v772 = vpop.f32.mrf.mxu0
    %v773 = vadd.f32 %v564, %v772
    %774 = vmatmul.f32.gmra.mxu0 %v326
    %v775 = vpop.f32.mrf.mxu0
    %v776 = vadd.f32 %v567, %v775
    %777 = vmatmul.f32.gmra.mxu0 %v327
    %v778 = vpop.f32.mrf.mxu0
    %v779 = vadd.f32 %v570, %v778
    %780 = vmatmul.f32.gmra.mxu0 %v328
    %v781 = vpop.f32.mrf.mxu0
    %v782 = vadd.f32 %v573, %v781
    %783 = vmatmul.f32.gmra.mxu0 %v329
    %v784 = vpop.f32.mrf.mxu0
    %v785 = vadd.f32 %v576, %v784
    %786 = vmatmul.f32.gmra.mxu0 %v330
    %v787 = vpop.f32.mrf.mxu0
    %v788 = vadd.f32 %v579, %v787
    %789 = vmatmul.f32.gmra.mxu0 %v331
    %v790 = vpop.f32.mrf.mxu0
    %v791 = vadd.f32 %v582, %v790
    %792 = vmatmul.f32.gmra.mxu0 %v332
    %v793 = vpop.f32.mrf.mxu0
    %v794 = vadd.f32 %v585, %v793
    %795 = vmatmul.f32.gmra.mxu0 %v333
    %v796 = vpop.f32.mrf.mxu0
    %v797 = vadd.f32 %v588, %v796
    %798 = vmatmul.f32.gmra.mxu0 %v334
    %v799 = vpop.f32.mrf.mxu0
    %v800 = vadd.f32 %v591, %v799
    %801 = vmatmul.f32.gmra.mxu0 %v335
    %v802 = vpop.f32.mrf.mxu0
    %v803 = vadd.f32 %v594, %v802
    %804 = vmatmul.f32.gmra.mxu0 %v336
    %v805 = vpop.f32.mrf.mxu0
    %v806 = vadd.f32 %v597, %v805
    %807 = vmatmul.f32.gmra.mxu0 %v337
    %v808 = vpop.f32.mrf.mxu0
    %v809 = vadd.f32 %v600, %v808
    %810 = vmatmul.f32.gmra.mxu0 %v338
    %v811 = vpop.f32.mrf.mxu0
    %v812 = vadd.f32 %v603, %v811
    %813 = vmatmul.f32.gmra.mxu0 %v339
    %v814 = vpop.f32.mrf.mxu0
    %v815 = vadd.f32 %v606, %v814
    %816 = vmatmul.f32.gmra.mxu0 %v340
    %v817 = vpop.f32.mrf.mxu0
    %v818 = vadd.f32 %v609, %v817
    %819 = vmatmul.f32.gmra.mxu0 %v341
    %v820 = vpop.f32.mrf.mxu0
    %v821 = vadd.f32 %v612, %v820
    %822 = vmatmul.f32.gmra.mxu0 %v342
    %v823 = vpop.f32.mrf.mxu0
    %v824 = vadd.f32 %v615, %v823
    %825 = vmatmul.f32.gmra.mxu0 %v343
    %v826 = vpop.f32.mrf.mxu0
    %v827 = vadd.f32 %v618, %v826
    %828 = vmatmul.f32.gmra.mxu0 %v344
    %v829 = vpop.f32.mrf.mxu0
    %v830 = vadd.f32 %v621, %v829
    %831 = vmatmul.f32.gmra.mxu0 %v345
    %v832 = vpop.f32.mrf.mxu0
    %v833 = vadd.f32 %v624, %v832
    %834 = vmatmul.f32.gmra.mxu0 %v346
    %v835 = vpop.f32.mrf.mxu0
    %v836 = vadd.f32 %v627, %v835
    %837 = vmatmul.f32.gmra.mxu0 %v347
    %v838 = vpop.f32.mrf.mxu0
    %v839 = vadd.f32 %v630, %v838
    %840 = vmatmul.f32.gmra.mxu0 %v348
    %v841 = vpop.f32.mrf.mxu0
    %v842 = vadd.f32 %v633, %v841
    %843 = vmatmul.f32.gmra.mxu0 %v349
    %v844 = vpop.f32.mrf.mxu0
    %v845 = vadd.f32 %v636, %v844
    %846 = vmatmul.f32.gmra.mxu0 %v350
    %v847 = vpop.f32.mrf.mxu0
    %v848 = vadd.f32 %v639, %v847
    %849 = vmatmul.f32.gmra.mxu0 %v351
    %v850 = vpop.f32.mrf.mxu0
    %v851 = vadd.f32 %v642, %v850
    %852 = vmatmul.f32.gmra.mxu0 %v352
    %v853 = vpop.f32.mrf.mxu0
    %v854 = vadd.f32 %v645, %v853
    %855 = vmatmul.f32.gmra.mxu0 %v353
    %v856 = vpop.f32.mrf.mxu0
    %v857 = vadd.f32 %v648, %v856
    %858 = vmatmul.f32.gmra.mxu0 %v354
    %v859 = vpop.f32.mrf.mxu0
    %v860 = vadd.f32 %v651, %v859
    %861 = vmatmul.f32.gmra.mxu0 %v355
    %v862 = vpop.f32.mrf.mxu0
    %v863 = vadd.f32 %v654, %v862
    %864 = vmatmul.f32.gmra.mxu0 %v356
    %v865 = vpop.f32.mrf.mxu0
    %v866 = vadd.f32 %v657, %v865
    %867 = vmatmul.f32.gmra.mxu0 %v357
    %v868 = vpop.f32.mrf.mxu0
    %v869 = vadd.f32 %v660, %v868
    %870 = vmatmul.f32.gmra.mxu0 %v358
    %v871 = vpop.f32.mrf.mxu0
    %v872 = vadd.f32 %v663, %v871
    %873 = vdwg.mxu0
    %v874 = vld [vmem:[#allocation2 + $0x2] sm:$0xff]
    %v875 = vld [vmem:[#allocation2 + $0xa] sm:$0xff]
    %v876 = vld [vmem:[#allocation2 + $0x1a] sm:$0xff]
    %v877 = vld [vmem:[#allocation2 + $0x22] sm:$0xff]
    %v878 = vld [vmem:[#allocation2 + $0x32] sm:$0xff]
    %v879 = vld [vmem:[#allocation2 + $0x3a] sm:$0xff]
    %v880 = vld [vmem:[#allocation2 + $0x4a] sm:$0xff]
    %v881 = vld [vmem:[#allocation2 + $0x52] sm:$0xff]
    %v882 = vld [vmem:[#allocation2 + $0x62] sm:$0xff]
    %v883 = vld [vmem:[#allocation2 + $0x6a] sm:$0xff]
    %v884 = vld [vmem:[#allocation2 + $0x7a] sm:$0xff]
    %v885 = vld [vmem:[#allocation2 + $0x82] sm:$0xff]
    %v886 = vld [vmem:[#allocation2 + $0x92] sm:$0xff]
    %v887 = vld [vmem:[#allocation2 + $0x9a] sm:$0xff]
    %v888 = vld [vmem:[#allocation2 + $0xaa] sm:$0xff]
    %v889 = vld [vmem:[#allocation2 + $0xb2] sm:$0xff]
    %v890 = vld [vmem:[#allocation2 + $0xc2] sm:$0xff]
    %v891 = vld [vmem:[#allocation2 + $0xca] sm:$0xff]
    %v892 = vld [vmem:[#allocation2 + $0xda] sm:$0xff]
    %v893 = vld [vmem:[#allocation2 + $0xe2] sm:$0xff]
    %v894 = vld [vmem:[#allocation2 + $0xf2] sm:$0xff]
    %v895 = vld [vmem:[#allocation2 + $0xfa] sm:$0xff]
    %v896 = vld [vmem:[#allocation2 + $0x10a] sm:$0xff]
    %v897 = vld [vmem:[#allocation2 + $0x112] sm:$0xff]
    %v898 = vld [vmem:[#allocation2 + $0x122] sm:$0xff]
    %v899 = vld [vmem:[#allocation2 + $0x12a] sm:$0xff]
    %v900 = vld [vmem:[#allocation2 + $0x13a] sm:$0xff]
    %v901 = vld [vmem:[#allocation2 + $0x142] sm:$0xff]
    %v902 = vld [vmem:[#allocation2 + $0x152] sm:$0xff]
    %v903 = vld [vmem:[#allocation2 + $0x15a] sm:$0xff]
    %v904 = vld [vmem:[#allocation2 + $0x16a] sm:$0xff]
    %v905 = vld [vmem:[#allocation2 + $0x172] sm:$0xff]
    %v906 = vld [vmem:[#allocation2 + $0x1b2] sm:$0xff]
    %v907 = vld [vmem:[#allocation2 + $0x1ba] sm:$0xff]
    %v908 = vld [vmem:[#allocation2 + $0x1ca] sm:$0xff]
    %v909 = vld [vmem:[#allocation2 + $0x1d2] sm:$0xff]
    %v910 = vld [vmem:[#allocation2 + $0x1e2] sm:$0xff]
    %v911 = vld [vmem:[#allocation2 + $0x1ea] sm:$0xff]
    %v912 = vld [vmem:[#allocation2 + $0x1fa] sm:$0xff]
    %v913 = vld [vmem:[#allocation2 + $0x202] sm:$0xff]
    %v914 = vld [vmem:[#allocation2 + $0x212] sm:$0xff]
    %v915 = vld [vmem:[#allocation2 + $0x21a] sm:$0xff]
    %v916 = vld [vmem:[#allocation2 + $0x22a] sm:$0xff]
    %v917 = vld [vmem:[#allocation2 + $0x232] sm:$0xff]
    %v918 = vld [vmem:[#allocation2 + $0x242] sm:$0xff]
    %v919 = vld [vmem:[#allocation2 + $0x24a] sm:$0xff]
    %v920 = vld [vmem:[#allocation2 + $0x25a] sm:$0xff]
    %v921 = vld [vmem:[#allocation2 + $0x262] sm:$0xff]
    %v922 = vld [vmem:[#allocation2 + $0x272] sm:$0xff]
    %v923 = vld [vmem:[#allocation2 + $0x27a] sm:$0xff]
    %v924 = vld [vmem:[#allocation2 + $0x28a] sm:$0xff]
    %v925 = vld [vmem:[#allocation2 + $0x292] sm:$0xff]
    %v926 = vld [vmem:[#allocation2 + $0x2a2] sm:$0xff]
    %v927 = vld [vmem:[#allocation2 + $0x2aa] sm:$0xff]
    %v928 = vld [vmem:[#allocation2 + $0x2ba] sm:$0xff]
    %v929 = vld [vmem:[#allocation2 + $0x2c2] sm:$0xff]
    %v930 = vld [vmem:[#allocation2 + $0x2d2] sm:$0xff]
    %v931 = vld [vmem:[#allocation2 + $0x2da] sm:$0xff]
    %v932 = vld [vmem:[#allocation2 + $0x2ea] sm:$0xff]
    %v933 = vld [vmem:[#allocation2 + $0x2f2] sm:$0xff]
    %v934 = vld [vmem:[#allocation2 + $0x302] sm:$0xff]
    %v935 = vld [vmem:[#allocation2 + $0x30a] sm:$0xff]
    %v936 = vld [vmem:[#allocation2 + $0x31a] sm:$0xff]
    %v937 = vld [vmem:[#allocation2 + $0x322] sm:$0xff]
    %s938 = scalar_lea.vmem [#allocation6], 256
    %v939 = vld [vmem:[%s938] sm:$0xff]
    %v940 = vld [vmem:[%s938 + $0x8] sm:$0xff]
    %v941 = vld [vmem:[%s938 + $0x10] sm:$0xff]
    %v942 = vld [vmem:[%s938 + $0x18] sm:$0xff]
    %v943 = vld [vmem:[%s938 + $0x20] sm:$0xff]
    %v944 = vld [vmem:[%s938 + $0x28] sm:$0xff]
    %v945 = vld [vmem:[%s938 + $0x30] sm:$0xff]
    %v946 = vld [vmem:[%s938 + $0x38] sm:$0xff]
    %v947 = vld [vmem:[%s938 + $0x40] sm:$0xff]
    %v948 = vld [vmem:[%s938 + $0x48] sm:$0xff]
    %v949 = vld [vmem:[%s938 + $0x50] sm:$0xff]
    %v950 = vld [vmem:[%s938 + $0x58] sm:$0xff]
    %v951 = vld [vmem:[%s938 + $0x60] sm:$0xff]
    %v952 = vld [vmem:[%s938 + $0x68] sm:$0xff]
    %v953 = vld [vmem:[%s938 + $0x70] sm:$0xff]
    %v954 = vld [vmem:[%s938 + $0x78] sm:$0xff]
    %955 = vmatpush.msra.mxu0 %v954
    %956 = vmatpush.msra.mxu0 %v953
    %957 = vmatpush.msra.mxu0 %v952
    %958 = vmatpush.msra.mxu0 %v951
    %959 = vmatpush.msra.mxu0 %v950
    %960 = vmatpush.msra.mxu0 %v949
    %961 = vmatpush.msra.mxu0 %v948
    %962 = vmatpush.msra.mxu0 %v947
    %963 = vmatpush.msra.mxu0 %v946
    %964 = vmatpush.msra.mxu0 %v945
    %965 = vmatpush.msra.mxu0 %v944
    %966 = vmatpush.msra.mxu0 %v943
    %967 = vmatpush.msra.mxu0 %v942
    %968 = vmatpush.msra.mxu0 %v941
    %969 = vmatpush.msra.mxu0 %v940
    %970 = vmatpush.msra.mxu0 %v939
    %971 = vmatmul.f32.gmra.mxu0 %v874
    %v972 = vpop.f32.mrf.mxu0
    %v973 = vadd.f32 0.0, %v972
    %974 = vmatmul.f32.gmra.mxu0 %v875
    %v975 = vpop.f32.mrf.mxu0
    %v976 = vadd.f32 0.0, %v975
    %977 = vmatmul.f32.gmra.mxu0 %v876
    %v978 = vpop.f32.mrf.mxu0
    %v979 = vadd.f32 0.0, %v978
    %980 = vmatmul.f32.gmra.mxu0 %v877
    %v981 = vpop.f32.mrf.mxu0
    %v982 = vadd.f32 0.0, %v981
    %983 = vmatmul.f32.gmra.mxu0 %v878
    %v984 = vpop.f32.mrf.mxu0
    %v985 = vadd.f32 0.0, %v984
    %986 = vmatmul.f32.gmra.mxu0 %v879
    %v987 = vpop.f32.mrf.mxu0
    %v988 = vadd.f32 0.0, %v987
    %989 = vmatmul.f32.gmra.mxu0 %v880
    %v990 = vpop.f32.mrf.mxu0
    %v991 = vadd.f32 0.0, %v990
    %992 = vmatmul.f32.gmra.mxu0 %v881
    %v993 = vpop.f32.mrf.mxu0
    %v994 = vadd.f32 0.0, %v993
    %995 = vmatmul.f32.gmra.mxu0 %v882
    %v996 = vpop.f32.mrf.mxu0
    %v997 = vadd.f32 0.0, %v996
    %998 = vmatmul.f32.gmra.mxu0 %v883
    %v999 = vpop.f32.mrf.mxu0
    %v1000 = vadd.f32 0.0, %v999
    %1001 = vmatmul.f32.gmra.mxu0 %v884
    %v1002 = vpop.f32.mrf.mxu0
    %v1003 = vadd.f32 0.0, %v1002
    %1004 = vmatmul.f32.gmra.mxu0 %v885
    %v1005 = vpop.f32.mrf.mxu0
    %v1006 = vadd.f32 0.0, %v1005
    %1007 = vmatmul.f32.gmra.mxu0 %v886
    %v1008 = vpop.f32.mrf.mxu0
    %v1009 = vadd.f32 0.0, %v1008
    %1010 = vmatmul.f32.gmra.mxu0 %v887
    %v1011 = vpop.f32.mrf.mxu0
    %v1012 = vadd.f32 0.0, %v1011
    %1013 = vmatmul.f32.gmra.mxu0 %v888
    %v1014 = vpop.f32.mrf.mxu0
    %v1015 = vadd.f32 0.0, %v1014
    %1016 = vmatmul.f32.gmra.mxu0 %v889
    %v1017 = vpop.f32.mrf.mxu0
    %v1018 = vadd.f32 0.0, %v1017
    %1019 = vmatmul.f32.gmra.mxu0 %v890
    %v1020 = vpop.f32.mrf.mxu0
    %v1021 = vadd.f32 0.0, %v1020
    %1022 = vmatmul.f32.gmra.mxu0 %v891
    %v1023 = vpop.f32.mrf.mxu0
    %v1024 = vadd.f32 0.0, %v1023
    %1025 = vmatmul.f32.gmra.mxu0 %v892
    %v1026 = vpop.f32.mrf.mxu0
    %v1027 = vadd.f32 0.0, %v1026
    %1028 = vmatmul.f32.gmra.mxu0 %v893
    %v1029 = vpop.f32.mrf.mxu0
    %v1030 = vadd.f32 0.0, %v1029
    %1031 = vmatmul.f32.gmra.mxu0 %v894
    %v1032 = vpop.f32.mrf.mxu0
    %v1033 = vadd.f32 0.0, %v1032
    %1034 = vmatmul.f32.gmra.mxu0 %v895
    %v1035 = vpop.f32.mrf.mxu0
    %v1036 = vadd.f32 0.0, %v1035
    %1037 = vmatmul.f32.gmra.mxu0 %v896
    %v1038 = vpop.f32.mrf.mxu0
    %v1039 = vadd.f32 0.0, %v1038
    %1040 = vmatmul.f32.gmra.mxu0 %v897
    %v1041 = vpop.f32.mrf.mxu0
    %v1042 = vadd.f32 0.0, %v1041
    %1043 = vmatmul.f32.gmra.mxu0 %v898
    %v1044 = vpop.f32.mrf.mxu0
    %v1045 = vadd.f32 0.0, %v1044
    %1046 = vmatmul.f32.gmra.mxu0 %v899
    %v1047 = vpop.f32.mrf.mxu0
    %v1048 = vadd.f32 0.0, %v1047
    %1049 = vmatmul.f32.gmra.mxu0 %v900
    %v1050 = vpop.f32.mrf.mxu0
    %v1051 = vadd.f32 0.0, %v1050
    %1052 = vmatmul.f32.gmra.mxu0 %v901
    %v1053 = vpop.f32.mrf.mxu0
    %v1054 = vadd.f32 0.0, %v1053
    %1055 = vmatmul.f32.gmra.mxu0 %v902
    %v1056 = vpop.f32.mrf.mxu0
    %v1057 = vadd.f32 0.0, %v1056
    %1058 = vmatmul.f32.gmra.mxu0 %v903
    %v1059 = vpop.f32.mrf.mxu0
    %v1060 = vadd.f32 0.0, %v1059
    %1061 = vmatmul.f32.gmra.mxu0 %v904
    %v1062 = vpop.f32.mrf.mxu0
    %v1063 = vadd.f32 0.0, %v1062
    %1064 = vmatmul.f32.gmra.mxu0 %v905
    %v1065 = vpop.f32.mrf.mxu0
    %v1066 = vadd.f32 0.0, %v1065
    %1067 = vmatmul.f32.gmra.mxu0 %v906
    %v1068 = vpop.f32.mrf.mxu0
    %v1069 = vadd.f32 0.0, %v1068
    %1070 = vmatmul.f32.gmra.mxu0 %v907
    %v1071 = vpop.f32.mrf.mxu0
    %v1072 = vadd.f32 0.0, %v1071
    %1073 = vmatmul.f32.gmra.mxu0 %v908
    %v1074 = vpop.f32.mrf.mxu0
    %v1075 = vadd.f32 0.0, %v1074
    %1076 = vmatmul.f32.gmra.mxu0 %v909
    %v1077 = vpop.f32.mrf.mxu0
    %v1078 = vadd.f32 0.0, %v1077
    %1079 = vmatmul.f32.gmra.mxu0 %v910
    %v1080 = vpop.f32.mrf.mxu0
    %v1081 = vadd.f32 0.0, %v1080
    %1082 = vmatmul.f32.gmra.mxu0 %v911
    %v1083 = vpop.f32.mrf.mxu0
    %v1084 = vadd.f32 0.0, %v1083
    %1085 = vmatmul.f32.gmra.mxu0 %v912
    %v1086 = vpop.f32.mrf.mxu0
    %v1087 = vadd.f32 0.0, %v1086
    %1088 = vmatmul.f32.gmra.mxu0 %v913
    %v1089 = vpop.f32.mrf.mxu0
    %v1090 = vadd.f32 0.0, %v1089
    %1091 = vmatmul.f32.gmra.mxu0 %v914
    %v1092 = vpop.f32.mrf.mxu0
    %v1093 = vadd.f32 0.0, %v1092
    %1094 = vmatmul.f32.gmra.mxu0 %v915
    %v1095 = vpop.f32.mrf.mxu0
    %v1096 = vadd.f32 0.0, %v1095
    %1097 = vmatmul.f32.gmra.mxu0 %v916
    %v1098 = vpop.f32.mrf.mxu0
    %v1099 = vadd.f32 0.0, %v1098
    %1100 = vmatmul.f32.gmra.mxu0 %v917
    %v1101 = vpop.f32.mrf.mxu0
    %v1102 = vadd.f32 0.0, %v1101
    %1103 = vmatmul.f32.gmra.mxu0 %v918
    %v1104 = vpop.f32.mrf.mxu0
    %v1105 = vadd.f32 0.0, %v1104
    %1106 = vmatmul.f32.gmra.mxu0 %v919
    %v1107 = vpop.f32.mrf.mxu0
    %v1108 = vadd.f32 0.0, %v1107
    %1109 = vmatmul.f32.gmra.mxu0 %v920
    %v1110 = vpop.f32.mrf.mxu0
    %v1111 = vadd.f32 0.0, %v1110
    %1112 = vmatmul.f32.gmra.mxu0 %v921
    %v1113 = vpop.f32.mrf.mxu0
    %v1114 = vadd.f32 0.0, %v1113
    %1115 = vmatmul.f32.gmra.mxu0 %v922
    %v1116 = vpop.f32.mrf.mxu0
    %v1117 = vadd.f32 0.0, %v1116
    %1118 = vmatmul.f32.gmra.mxu0 %v923
    %v1119 = vpop.f32.mrf.mxu0
    %v1120 = vadd.f32 0.0, %v1119
    %1121 = vmatmul.f32.gmra.mxu0 %v924
    %v1122 = vpop.f32.mrf.mxu0
    %v1123 = vadd.f32 0.0, %v1122
    %1124 = vmatmul.f32.gmra.mxu0 %v925
    %v1125 = vpop.f32.mrf.mxu0
    %v1126 = vadd.f32 0.0, %v1125
    %1127 = vmatmul.f32.gmra.mxu0 %v926
    %v1128 = vpop.f32.mrf.mxu0
    %v1129 = vadd.f32 0.0, %v1128
    %1130 = vmatmul.f32.gmra.mxu0 %v927
    %v1131 = vpop.f32.mrf.mxu0
    %v1132 = vadd.f32 0.0, %v1131
    %1133 = vmatmul.f32.gmra.mxu0 %v928
    %v1134 = vpop.f32.mrf.mxu0
    %v1135 = vadd.f32 0.0, %v1134
    %1136 = vmatmul.f32.gmra.mxu0 %v929
    %v1137 = vpop.f32.mrf.mxu0
    %v1138 = vadd.f32 0.0, %v1137
    %1139 = vmatmul.f32.gmra.mxu0 %v930
    %v1140 = vpop.f32.mrf.mxu0
    %v1141 = vadd.f32 0.0, %v1140
    %1142 = vmatmul.f32.gmra.mxu0 %v931
    %v1143 = vpop.f32.mrf.mxu0
    %v1144 = vadd.f32 0.0, %v1143
    %1145 = vmatmul.f32.gmra.mxu0 %v932
    %v1146 = vpop.f32.mrf.mxu0
    %v1147 = vadd.f32 0.0, %v1146
    %1148 = vmatmul.f32.gmra.mxu0 %v933
    %v1149 = vpop.f32.mrf.mxu0
    %v1150 = vadd.f32 0.0, %v1149
    %1151 = vmatmul.f32.gmra.mxu0 %v934
    %v1152 = vpop.f32.mrf.mxu0
    %v1153 = vadd.f32 0.0, %v1152
    %1154 = vmatmul.f32.gmra.mxu0 %v935
    %v1155 = vpop.f32.mrf.mxu0
    %v1156 = vadd.f32 0.0, %v1155
    %1157 = vmatmul.f32.gmra.mxu0 %v936
    %v1158 = vpop.f32.mrf.mxu0
    %v1159 = vadd.f32 0.0, %v1158
    %1160 = vmatmul.f32.gmra.mxu0 %v937
    %v1161 = vpop.f32.mrf.mxu0
    %v1162 = vadd.f32 0.0, %v1161
    %1163 = vdwg.mxu0
    %v1164 = vadd.f32 %v683, %v973
    %v1165 = vadd.f32 %v686, %v976
    %v1166 = vadd.f32 %v689, %v979
    %v1167 = vadd.f32 %v692, %v982
    %v1168 = vadd.f32 %v695, %v985
    %v1169 = vadd.f32 %v698, %v988
    %v1170 = vadd.f32 %v701, %v991
    %v1171 = vadd.f32 %v704, %v994
    %v1172 = vadd.f32 %v707, %v997
    %v1173 = vadd.f32 %v710, %v1000
    %v1174 = vadd.f32 %v713, %v1003
    %v1175 = vadd.f32 %v716, %v1006
    %v1176 = vadd.f32 %v719, %v1009
    %v1177 = vadd.f32 %v722, %v1012
    %v1178 = vadd.f32 %v725, %v1015
    %v1179 = vadd.f32 %v728, %v1018
    %v1180 = vadd.f32 %v731, %v1021
    %v1181 = vadd.f32 %v734, %v1024
    %v1182 = vadd.f32 %v737, %v1027
    %v1183 = vadd.f32 %v740, %v1030
    %v1184 = vadd.f32 %v743, %v1033
    %v1185 = vadd.f32 %v746, %v1036
    %v1186 = vadd.f32 %v749, %v1039
    %v1187 = vadd.f32 %v752, %v1042
    %v1188 = vadd.f32 %v755, %v1045
    %v1189 = vadd.f32 %v758, %v1048
    %v1190 = vadd.f32 %v761, %v1051
    %v1191 = vadd.f32 %v764, %v1054
    %v1192 = vadd.f32 %v767, %v1057
    %v1193 = vadd.f32 %v770, %v1060
    %v1194 = vadd.f32 %v773, %v1063
    %v1195 = vadd.f32 %v776, %v1066
    %v1196 = vadd.f32 %v779, %v1069
    %v1197 = vadd.f32 %v782, %v1072
    %v1198 = vadd.f32 %v785, %v1075
    %v1199 = vadd.f32 %v788, %v1078
    %v1200 = vadd.f32 %v791, %v1081
    %v1201 = vadd.f32 %v794, %v1084
    %v1202 = vadd.f32 %v797, %v1087
    %v1203 = vadd.f32 %v800, %v1090
    %v1204 = vadd.f32 %v803, %v1093
    %v1205 = vadd.f32 %v806, %v1096
    %v1206 = vadd.f32 %v809, %v1099
    %v1207 = vadd.f32 %v812, %v1102
    %v1208 = vadd.f32 %v815, %v1105
    %v1209 = vadd.f32 %v818, %v1108
    %v1210 = vadd.f32 %v821, %v1111
    %v1211 = vadd.f32 %v824, %v1114
    %v1212 = vadd.f32 %v827, %v1117
    %v1213 = vadd.f32 %v830, %v1120
    %v1214 = vadd.f32 %v833, %v1123
    %v1215 = vadd.f32 %v836, %v1126
    %v1216 = vadd.f32 %v839, %v1129
    %v1217 = vadd.f32 %v842, %v1132
    %v1218 = vadd.f32 %v845, %v1135
    %v1219 = vadd.f32 %v848, %v1138
    %v1220 = vadd.f32 %v851, %v1141
    %v1221 = vadd.f32 %v854, %v1144
    %v1222 = vadd.f32 %v857, %v1147
    %v1223 = vadd.f32 %v860, %v1150
    %v1224 = vadd.f32 %v863, %v1153
    %v1225 = vadd.f32 %v866, %v1156
    %v1226 = vadd.f32 %v869, %v1159
    %v1227 = vadd.f32 %v872, %v1162
    %v1228 = vld [vmem:[%s230] sm:$0xff]
    %v1229 = vld [vmem:[%s230 + $0x8] sm:$0xff]
    %v1230 = vld [vmem:[%s230 + $0x18] sm:$0xff]
    %v1231 = vld [vmem:[%s230 + $0x20] sm:$0xff]
    %v1232 = vld [vmem:[%s230 + $0x30] sm:$0xff]
    %v1233 = vld [vmem:[%s230 + $0x38] sm:$0xff]
    %v1234 = vld [vmem:[%s230 + $0x48] sm:$0xff]
    %v1235 = vld [vmem:[%s230 + $0x50] sm:$0xff]
    %v1236 = vld [vmem:[%s230 + $0x60] sm:$0xff]
    %v1237 = vld [vmem:[%s230 + $0x68] sm:$0xff]
    %v1238 = vld [vmem:[%s230 + $0x78] sm:$0xff]
    %v1239 = vld [vmem:[%s230 + $0x80] sm:$0xff]
    %v1240 = vld [vmem:[%s230 + $0x90] sm:$0xff]
    %v1241 = vld [vmem:[%s230 + $0x98] sm:$0xff]
    %v1242 = vld [vmem:[%s230 + $0xa8] sm:$0xff]
    %v1243 = vld [vmem:[%s230 + $0xb0] sm:$0xff]
    %v1244 = vld [vmem:[%s230 + $0xc0] sm:$0xff]
    %v1245 = vld [vmem:[%s230 + $0xc8] sm:$0xff]
    %v1246 = vld [vmem:[%s230 + $0xd8] sm:$0xff]
    %v1247 = vld [vmem:[%s230 + $0xe0] sm:$0xff]
    %v1248 = vld [vmem:[%s230 + $0xf0] sm:$0xff]
    %v1249 = vld [vmem:[%s230 + $0xf8] sm:$0xff]
    %v1250 = vld [vmem:[%s230 + $0x108] sm:$0xff]
    %v1251 = vld [vmem:[%s230 + $0x110] sm:$0xff]
    %v1252 = vld [vmem:[%s230 + $0x120] sm:$0xff]
    %v1253 = vld [vmem:[%s230 + $0x128] sm:$0xff]
    %v1254 = vld [vmem:[%s230 + $0x138] sm:$0xff]
    %v1255 = vld [vmem:[%s230 + $0x140] sm:$0xff]
    %v1256 = vld [vmem:[%s230 + $0x150] sm:$0xff]
    %v1257 = vld [vmem:[%s230 + $0x158] sm:$0xff]
    %v1258 = vld [vmem:[%s230 + $0x168] sm:$0xff]
    %v1259 = vld [vmem:[%s230 + $0x170] sm:$0xff]
    %v1260 = vld [vmem:[%s230 + $0x1b0] sm:$0xff]
    %v1261 = vld [vmem:[%s230 + $0x1b8] sm:$0xff]
    %v1262 = vld [vmem:[%s230 + $0x1c8] sm:$0xff]
    %v1263 = vld [vmem:[%s230 + $0x1d0] sm:$0xff]
    %v1264 = vld [vmem:[%s230 + $0x1e0] sm:$0xff]
    %v1265 = vld [vmem:[%s230 + $0x1e8] sm:$0xff]
    %v1266 = vld [vmem:[%s230 + $0x1f8] sm:$0xff]
    %v1267 = vld [vmem:[%s230 + $0x200] sm:$0xff]
    %v1268 = vld [vmem:[%s230 + $0x210] sm:$0xff]
    %v1269 = vld [vmem:[%s230 + $0x218] sm:$0xff]
    %v1270 = vld [vmem:[%s230 + $0x228] sm:$0xff]
    %v1271 = vld [vmem:[%s230 + $0x230] sm:$0xff]
    %v1272 = vld [vmem:[%s230 + $0x240] sm:$0xff]
    %v1273 = vld [vmem:[%s230 + $0x248] sm:$0xff]
    %v1274 = vld [vmem:[%s230 + $0x258] sm:$0xff]
    %v1275 = vld [vmem:[%s230 + $0x260] sm:$0xff]
    %v1276 = vld [vmem:[%s230 + $0x270] sm:$0xff]
    %v1277 = vld [vmem:[%s230 + $0x278] sm:$0xff]
    %v1278 = vld [vmem:[%s230 + $0x288] sm:$0xff]
    %v1279 = vld [vmem:[%s230 + $0x290] sm:$0xff]
    %v1280 = vld [vmem:[%s230 + $0x2a0] sm:$0xff]
    %v1281 = vld [vmem:[%s230 + $0x2a8] sm:$0xff]
    %v1282 = vld [vmem:[%s230 + $0x2b8] sm:$0xff]
    %v1283 = vld [vmem:[%s230 + $0x2c0] sm:$0xff]
    %v1284 = vld [vmem:[%s230 + $0x2d0] sm:$0xff]
    %v1285 = vld [vmem:[%s230 + $0x2d8] sm:$0xff]
    %v1286 = vld [vmem:[%s230 + $0x2e8] sm:$0xff]
    %v1287 = vld [vmem:[%s230 + $0x2f0] sm:$0xff]
    %v1288 = vld [vmem:[%s230 + $0x300] sm:$0xff]
    %v1289 = vld [vmem:[%s230 + $0x308] sm:$0xff]
    %v1290 = vld [vmem:[%s230 + $0x318] sm:$0xff]
    %v1291 = vld [vmem:[%s230 + $0x320] sm:$0xff]
    %s1292 = scalar_lea.vmem [#allocation6], 384
    %v1293 = vld [vmem:[%s1292] sm:$0xff]
    %v1294 = vld [vmem:[%s1292 + $0x8] sm:$0xff]
    %v1295 = vld [vmem:[%s1292 + $0x10] sm:$0xff]
    %v1296 = vld [vmem:[%s1292 + $0x18] sm:$0xff]
    %v1297 = vld [vmem:[%s1292 + $0x20] sm:$0xff]
    %v1298 = vld [vmem:[%s1292 + $0x28] sm:$0xff]
    %v1299 = vld [vmem:[%s1292 + $0x30] sm:$0xff]
    %v1300 = vld [vmem:[%s1292 + $0x38] sm:$0xff]
    %v1301 = vld [vmem:[%s1292 + $0x40] sm:$0xff]
    %v1302 = vld [vmem:[%s1292 + $0x48] sm:$0xff]
    %v1303 = vld [vmem:[%s1292 + $0x50] sm:$0xff]
    %v1304 = vld [vmem:[%s1292 + $0x58] sm:$0xff]
    %v1305 = vld [vmem:[%s1292 + $0x60] sm:$0xff]
    %v1306 = vld [vmem:[%s1292 + $0x68] sm:$0xff]
    %v1307 = vld [vmem:[%s1292 + $0x70] sm:$0xff]
    %v1308 = vld [vmem:[%s1292 + $0x78] sm:$0xff]
    %1309 = vmatpush.msra.mxu0 %v1308
    %1310 = vmatpush.msra.mxu0 %v1307
    %1311 = vmatpush.msra.mxu0 %v1306
    %1312 = vmatpush.msra.mxu0 %v1305
    %1313 = vmatpush.msra.mxu0 %v1304
    %1314 = vmatpush.msra.mxu0 %v1303
    %1315 = vmatpush.msra.mxu0 %v1302
    %1316 = vmatpush.msra.mxu0 %v1301
    %1317 = vmatpush.msra.mxu0 %v1300
    %1318 = vmatpush.msra.mxu0 %v1299
    %1319 = vmatpush.msra.mxu0 %v1298
    %1320 = vmatpush.msra.mxu0 %v1297
    %1321 = vmatpush.msra.mxu0 %v1296
    %1322 = vmatpush.msra.mxu0 %v1295
    %1323 = vmatpush.msra.mxu0 %v1294
    %1324 = vmatpush.msra.mxu0 %v1293
    %1325 = vmatmul.f32.gmra.mxu0 %v1228
    %v1326 = vpop.f32.mrf.mxu0
    %v1327 = vadd.f32 0.0, %v1326
    %1328 = vmatmul.f32.gmra.mxu0 %v1229
    %v1329 = vpop.f32.mrf.mxu0
    %v1330 = vadd.f32 0.0, %v1329
    %1331 = vmatmul.f32.gmra.mxu0 %v1230
    %v1332 = vpop.f32.mrf.mxu0
    %v1333 = vadd.f32 0.0, %v1332
    %1334 = vmatmul.f32.gmra.mxu0 %v1231
    %v1335 = vpop.f32.mrf.mxu0
    %v1336 = vadd.f32 0.0, %v1335
    %1337 = vmatmul.f32.gmra.mxu0 %v1232
    %v1338 = vpop.f32.mrf.mxu0
    %v1339 = vadd.f32 0.0, %v1338
    %1340 = vmatmul.f32.gmra.mxu0 %v1233
    %v1341 = vpop.f32.mrf.mxu0
    %v1342 = vadd.f32 0.0, %v1341
    %1343 = vmatmul.f32.gmra.mxu0 %v1234
    %v1344 = vpop.f32.mrf.mxu0
    %v1345 = vadd.f32 0.0, %v1344
    %1346 = vmatmul.f32.gmra.mxu0 %v1235
    %v1347 = vpop.f32.mrf.mxu0
    %v1348 = vadd.f32 0.0, %v1347
    %1349 = vmatmul.f32.gmra.mxu0 %v1236
    %v1350 = vpop.f32.mrf.mxu0
    %v1351 = vadd.f32 0.0, %v1350
    %1352 = vmatmul.f32.gmra.mxu0 %v1237
    %v1353 = vpop.f32.mrf.mxu0
    %v1354 = vadd.f32 0.0, %v1353
    %1355 = vmatmul.f32.gmra.mxu0 %v1238
    %v1356 = vpop.f32.mrf.mxu0
    %v1357 = vadd.f32 0.0, %v1356
    %1358 = vmatmul.f32.gmra.mxu0 %v1239
    %v1359 = vpop.f32.mrf.mxu0
    %v1360 = vadd.f32 0.0, %v1359
    %1361 = vmatmul.f32.gmra.mxu0 %v1240
    %v1362 = vpop.f32.mrf.mxu0
    %v1363 = vadd.f32 0.0, %v1362
    %1364 = vmatmul.f32.gmra.mxu0 %v1241
    %v1365 = vpop.f32.mrf.mxu0
    %v1366 = vadd.f32 0.0, %v1365
    %1367 = vmatmul.f32.gmra.mxu0 %v1242
    %v1368 = vpop.f32.mrf.mxu0
    %v1369 = vadd.f32 0.0, %v1368
    %1370 = vmatmul.f32.gmra.mxu0 %v1243
    %v1371 = vpop.f32.mrf.mxu0
    %v1372 = vadd.f32 0.0, %v1371
    %1373 = vmatmul.f32.gmra.mxu0 %v1244
    %v1374 = vpop.f32.mrf.mxu0
    %v1375 = vadd.f32 0.0, %v1374
    %1376 = vmatmul.f32.gmra.mxu0 %v1245
    %v1377 = vpop.f32.mrf.mxu0
    %v1378 = vadd.f32 0.0, %v1377
    %1379 = vmatmul.f32.gmra.mxu0 %v1246
    %v1380 = vpop.f32.mrf.mxu0
    %v1381 = vadd.f32 0.0, %v1380
    %1382 = vmatmul.f32.gmra.mxu0 %v1247
    %v1383 = vpop.f32.mrf.mxu0
    %v1384 = vadd.f32 0.0, %v1383
    %1385 = vmatmul.f32.gmra.mxu0 %v1248
    %v1386 = vpop.f32.mrf.mxu0
    %v1387 = vadd.f32 0.0, %v1386
    %1388 = vmatmul.f32.gmra.mxu0 %v1249
    %v1389 = vpop.f32.mrf.mxu0
    %v1390 = vadd.f32 0.0, %v1389
    %1391 = vmatmul.f32.gmra.mxu0 %v1250
    %v1392 = vpop.f32.mrf.mxu0
    %v1393 = vadd.f32 0.0, %v1392
    %1394 = vmatmul.f32.gmra.mxu0 %v1251
    %v1395 = vpop.f32.mrf.mxu0
    %v1396 = vadd.f32 0.0, %v1395
    %1397 = vmatmul.f32.gmra.mxu0 %v1252
    %v1398 = vpop.f32.mrf.mxu0
    %v1399 = vadd.f32 0.0, %v1398
    %1400 = vmatmul.f32.gmra.mxu0 %v1253
    %v1401 = vpop.f32.mrf.mxu0
    %v1402 = vadd.f32 0.0, %v1401
    %1403 = vmatmul.f32.gmra.mxu0 %v1254
    %v1404 = vpop.f32.mrf.mxu0
    %v1405 = vadd.f32 0.0, %v1404
    %1406 = vmatmul.f32.gmra.mxu0 %v1255
    %v1407 = vpop.f32.mrf.mxu0
    %v1408 = vadd.f32 0.0, %v1407
    %1409 = vmatmul.f32.gmra.mxu0 %v1256
    %v1410 = vpop.f32.mrf.mxu0
    %v1411 = vadd.f32 0.0, %v1410
    %1412 = vmatmul.f32.gmra.mxu0 %v1257
    %v1413 = vpop.f32.mrf.mxu0
    %v1414 = vadd.f32 0.0, %v1413
    %1415 = vmatmul.f32.gmra.mxu0 %v1258
    %v1416 = vpop.f32.mrf.mxu0
    %v1417 = vadd.f32 0.0, %v1416
    %1418 = vmatmul.f32.gmra.mxu0 %v1259
    %v1419 = vpop.f32.mrf.mxu0
    %v1420 = vadd.f32 0.0, %v1419
    %1421 = vmatmul.f32.gmra.mxu0 %v1260
    %v1422 = vpop.f32.mrf.mxu0
    %v1423 = vadd.f32 0.0, %v1422
    %1424 = vmatmul.f32.gmra.mxu0 %v1261
    %v1425 = vpop.f32.mrf.mxu0
    %v1426 = vadd.f32 0.0, %v1425
    %1427 = vmatmul.f32.gmra.mxu0 %v1262
    %v1428 = vpop.f32.mrf.mxu0
    %v1429 = vadd.f32 0.0, %v1428
    %1430 = vmatmul.f32.gmra.mxu0 %v1263
    %v1431 = vpop.f32.mrf.mxu0
    %v1432 = vadd.f32 0.0, %v1431
    %1433 = vmatmul.f32.gmra.mxu0 %v1264
    %v1434 = vpop.f32.mrf.mxu0
    %v1435 = vadd.f32 0.0, %v1434
    %1436 = vmatmul.f32.gmra.mxu0 %v1265
    %v1437 = vpop.f32.mrf.mxu0
    %v1438 = vadd.f32 0.0, %v1437
    %1439 = vmatmul.f32.gmra.mxu0 %v1266
    %v1440 = vpop.f32.mrf.mxu0
    %v1441 = vadd.f32 0.0, %v1440
    %1442 = vmatmul.f32.gmra.mxu0 %v1267
    %v1443 = vpop.f32.mrf.mxu0
    %v1444 = vadd.f32 0.0, %v1443
    %1445 = vmatmul.f32.gmra.mxu0 %v1268
    %v1446 = vpop.f32.mrf.mxu0
    %v1447 = vadd.f32 0.0, %v1446
    %1448 = vmatmul.f32.gmra.mxu0 %v1269
    %v1449 = vpop.f32.mrf.mxu0
    %v1450 = vadd.f32 0.0, %v1449
    %1451 = vmatmul.f32.gmra.mxu0 %v1270
    %v1452 = vpop.f32.mrf.mxu0
    %v1453 = vadd.f32 0.0, %v1452
    %1454 = vmatmul.f32.gmra.mxu0 %v1271
    %v1455 = vpop.f32.mrf.mxu0
    %v1456 = vadd.f32 0.0, %v1455
    %1457 = vmatmul.f32.gmra.mxu0 %v1272
    %v1458 = vpop.f32.mrf.mxu0
    %v1459 = vadd.f32 0.0, %v1458
    %1460 = vmatmul.f32.gmra.mxu0 %v1273
    %v1461 = vpop.f32.mrf.mxu0
    %v1462 = vadd.f32 0.0, %v1461
    %1463 = vmatmul.f32.gmra.mxu0 %v1274
    %v1464 = vpop.f32.mrf.mxu0
    %v1465 = vadd.f32 0.0, %v1464
    %1466 = vmatmul.f32.gmra.mxu0 %v1275
    %v1467 = vpop.f32.mrf.mxu0
    %v1468 = vadd.f32 0.0, %v1467
    %1469 = vmatmul.f32.gmra.mxu0 %v1276
    %v1470 = vpop.f32.mrf.mxu0
    %v1471 = vadd.f32 0.0, %v1470
    %1472 = vmatmul.f32.gmra.mxu0 %v1277
    %v1473 = vpop.f32.mrf.mxu0
    %v1474 = vadd.f32 0.0, %v1473
    %1475 = vmatmul.f32.gmra.mxu0 %v1278
    %v1476 = vpop.f32.mrf.mxu0
    %v1477 = vadd.f32 0.0, %v1476
    %1478 = vmatmul.f32.gmra.mxu0 %v1279
    %v1479 = vpop.f32.mrf.mxu0
    %v1480 = vadd.f32 0.0, %v1479
    %1481 = vmatmul.f32.gmra.mxu0 %v1280
    %v1482 = vpop.f32.mrf.mxu0
    %v1483 = vadd.f32 0.0, %v1482
    %1484 = vmatmul.f32.gmra.mxu0 %v1281
    %v1485 = vpop.f32.mrf.mxu0
    %v1486 = vadd.f32 0.0, %v1485
    %1487 = vmatmul.f32.gmra.mxu0 %v1282
    %v1488 = vpop.f32.mrf.mxu0
    %v1489 = vadd.f32 0.0, %v1488
    %1490 = vmatmul.f32.gmra.mxu0 %v1283
    %v1491 = vpop.f32.mrf.mxu0
    %v1492 = vadd.f32 0.0, %v1491
    %1493 = vmatmul.f32.gmra.mxu0 %v1284
    %v1494 = vpop.f32.mrf.mxu0
    %v1495 = vadd.f32 0.0, %v1494
    %1496 = vmatmul.f32.gmra.mxu0 %v1285
    %v1497 = vpop.f32.mrf.mxu0
    %v1498 = vadd.f32 0.0, %v1497
    %1499 = vmatmul.f32.gmra.mxu0 %v1286
    %v1500 = vpop.f32.mrf.mxu0
    %v1501 = vadd.f32 0.0, %v1500
    %1502 = vmatmul.f32.gmra.mxu0 %v1287
    %v1503 = vpop.f32.mrf.mxu0
    %v1504 = vadd.f32 0.0, %v1503
    %1505 = vmatmul.f32.gmra.mxu0 %v1288
    %v1506 = vpop.f32.mrf.mxu0
    %v1507 = vadd.f32 0.0, %v1506
    %1508 = vmatmul.f32.gmra.mxu0 %v1289
    %v1509 = vpop.f32.mrf.mxu0
    %v1510 = vadd.f32 0.0, %v1509
    %1511 = vmatmul.f32.gmra.mxu0 %v1290
    %v1512 = vpop.f32.mrf.mxu0
    %v1513 = vadd.f32 0.0, %v1512
    %1514 = vmatmul.f32.gmra.mxu0 %v1291
    %v1515 = vpop.f32.mrf.mxu0
    %v1516 = vadd.f32 0.0, %v1515
    %1517 = vdwg.mxu0
    %v1518 = vadd.f32 %v1164, %v1327
    %v1519 = vadd.f32 %v1165, %v1330
    %v1520 = vadd.f32 %v1166, %v1333
    %v1521 = vadd.f32 %v1167, %v1336
    %v1522 = vadd.f32 %v1168, %v1339
    %v1523 = vadd.f32 %v1169, %v1342
    %v1524 = vadd.f32 %v1170, %v1345
    %v1525 = vadd.f32 %v1171, %v1348
    %v1526 = vadd.f32 %v1172, %v1351
    %v1527 = vadd.f32 %v1173, %v1354
    %v1528 = vadd.f32 %v1174, %v1357
    %v1529 = vadd.f32 %v1175, %v1360
    %v1530 = vadd.f32 %v1176, %v1363
    %v1531 = vadd.f32 %v1177, %v1366
    %v1532 = vadd.f32 %v1178, %v1369
    %v1533 = vadd.f32 %v1179, %v1372
    %v1534 = vadd.f32 %v1180, %v1375
    %v1535 = vadd.f32 %v1181, %v1378
    %v1536 = vadd.f32 %v1182, %v1381
    %v1537 = vadd.f32 %v1183, %v1384
    %v1538 = vadd.f32 %v1184, %v1387
    %v1539 = vadd.f32 %v1185, %v1390
    %v1540 = vadd.f32 %v1186, %v1393
    %v1541 = vadd.f32 %v1187, %v1396
    %v1542 = vadd.f32 %v1188, %v1399
    %v1543 = vadd.f32 %v1189, %v1402
    %v1544 = vadd.f32 %v1190, %v1405
    %v1545 = vadd.f32 %v1191, %v1408
    %v1546 = vadd.f32 %v1192, %v1411
    %v1547 = vadd.f32 %v1193, %v1414
    %v1548 = vadd.f32 %v1194, %v1417
    %v1549 = vadd.f32 %v1195, %v1420
    %v1550 = vadd.f32 %v1196, %v1423
    %v1551 = vadd.f32 %v1197, %v1426
    %v1552 = vadd.f32 %v1198, %v1429
    %v1553 = vadd.f32 %v1199, %v1432
    %v1554 = vadd.f32 %v1200, %v1435
    %v1555 = vadd.f32 %v1201, %v1438
    %v1556 = vadd.f32 %v1202, %v1441
    %v1557 = vadd.f32 %v1203, %v1444
    %v1558 = vadd.f32 %v1204, %v1447
    %v1559 = vadd.f32 %v1205, %v1450
    %v1560 = vadd.f32 %v1206, %v1453
    %v1561 = vadd.f32 %v1207, %v1456
    %v1562 = vadd.f32 %v1208, %v1459
    %v1563 = vadd.f32 %v1209, %v1462
    %v1564 = vadd.f32 %v1210, %v1465
    %v1565 = vadd.f32 %v1211, %v1468
    %v1566 = vadd.f32 %v1212, %v1471
    %v1567 = vadd.f32 %v1213, %v1474
    %v1568 = vadd.f32 %v1214, %v1477
    %v1569 = vadd.f32 %v1215, %v1480
    %v1570 = vadd.f32 %v1216, %v1483
    %v1571 = vadd.f32 %v1217, %v1486
    %v1572 = vadd.f32 %v1218, %v1489
    %v1573 = vadd.f32 %v1219, %v1492
    %v1574 = vadd.f32 %v1220, %v1495
    %v1575 = vadd.f32 %v1221, %v1498
    %v1576 = vadd.f32 %v1222, %v1501
    %v1577 = vadd.f32 %v1223, %v1504
    %v1578 = vadd.f32 %v1224, %v1507
    %v1579 = vadd.f32 %v1225, %v1510
    %v1580 = vadd.f32 %v1226, %v1513
    %v1581 = vadd.f32 %v1227, %v1516
    %v1582 = vld [vmem:[%s230 + $0x1] sm:$0xff]
    %v1583 = vld [vmem:[%s230 + $0x9] sm:$0xff]
    %v1584 = vld [vmem:[%s230 + $0x19] sm:$0xff]
    %v1585 = vld [vmem:[%s230 + $0x21] sm:$0xff]
    %v1586 = vld [vmem:[%s230 + $0x31] sm:$0xff]
    %v1587 = vld [vmem:[%s230 + $0x39] sm:$0xff]
    %v1588 = vld [vmem:[%s230 + $0x49] sm:$0xff]
    %v1589 = vld [vmem:[%s230 + $0x51] sm:$0xff]
    %v1590 = vld [vmem:[%s230 + $0x61] sm:$0xff]
    %v1591 = vld [vmem:[%s230 + $0x69] sm:$0xff]
    %v1592 = vld [vmem:[%s230 + $0x79] sm:$0xff]
    %v1593 = vld [vmem:[%s230 + $0x81] sm:$0xff]
    %v1594 = vld [vmem:[%s230 + $0x91] sm:$0xff]
    %v1595 = vld [vmem:[%s230 + $0x99] sm:$0xff]
    %v1596 = vld [vmem:[%s230 + $0xa9] sm:$0xff]
    %v1597 = vld [vmem:[%s230 + $0xb1] sm:$0xff]
    %v1598 = vld [vmem:[%s230 + $0xc1] sm:$0xff]
    %v1599 = vld [vmem:[%s230 + $0xc9] sm:$0xff]
    %v1600 = vld [vmem:[%s230 + $0xd9] sm:$0xff]
    %v1601 = vld [vmem:[%s230 + $0xe1] sm:$0xff]
    %v1602 = vld [vmem:[%s230 + $0xf1] sm:$0xff]
    %v1603 = vld [vmem:[%s230 + $0xf9] sm:$0xff]
    %v1604 = vld [vmem:[%s230 + $0x109] sm:$0xff]
    %v1605 = vld [vmem:[%s230 + $0x111] sm:$0xff]
    %v1606 = vld [vmem:[%s230 + $0x121] sm:$0xff]
    %v1607 = vld [vmem:[%s230 + $0x129] sm:$0xff]
    %v1608 = vld [vmem:[%s230 + $0x139] sm:$0xff]
    %v1609 = vld [vmem:[%s230 + $0x141] sm:$0xff]
    %v1610 = vld [vmem:[%s230 + $0x151] sm:$0xff]
    %v1611 = vld [vmem:[%s230 + $0x159] sm:$0xff]
    %v1612 = vld [vmem:[%s230 + $0x169] sm:$0xff]
    %v1613 = vld [vmem:[%s230 + $0x171] sm:$0xff]
    %v1614 = vld [vmem:[%s230 + $0x1b1] sm:$0xff]
    %v1615 = vld [vmem:[%s230 + $0x1b9] sm:$0xff]
    %v1616 = vld [vmem:[%s230 + $0x1c9] sm:$0xff]
    %v1617 = vld [vmem:[%s230 + $0x1d1] sm:$0xff]
    %v1618 = vld [vmem:[%s230 + $0x1e1] sm:$0xff]
    %v1619 = vld [vmem:[%s230 + $0x1e9] sm:$0xff]
    %v1620 = vld [vmem:[%s230 + $0x1f9] sm:$0xff]
    %v1621 = vld [vmem:[%s230 + $0x201] sm:$0xff]
    %v1622 = vld [vmem:[%s230 + $0x211] sm:$0xff]
    %v1623 = vld [vmem:[%s230 + $0x219] sm:$0xff]
    %v1624 = vld [vmem:[%s230 + $0x229] sm:$0xff]
    %v1625 = vld [vmem:[%s230 + $0x231] sm:$0xff]
    %v1626 = vld [vmem:[%s230 + $0x241] sm:$0xff]
    %v1627 = vld [vmem:[%s230 + $0x249] sm:$0xff]
    %v1628 = vld [vmem:[%s230 + $0x259] sm:$0xff]
    %v1629 = vld [vmem:[%s230 + $0x261] sm:$0xff]
    %v1630 = vld [vmem:[%s230 + $0x271] sm:$0xff]
    %v1631 = vld [vmem:[%s230 + $0x279] sm:$0xff]
    %v1632 = vld [vmem:[%s230 + $0x289] sm:$0xff]
    %v1633 = vld [vmem:[%s230 + $0x291] sm:$0xff]
    %v1634 = vld [vmem:[%s230 + $0x2a1] sm:$0xff]
    %v1635 = vld [vmem:[%s230 + $0x2a9] sm:$0xff]
    %v1636 = vld [vmem:[%s230 + $0x2b9] sm:$0xff]
    %v1637 = vld [vmem:[%s230 + $0x2c1] sm:$0xff]
    %v1638 = vld [vmem:[%s230 + $0x2d1] sm:$0xff]
    %v1639 = vld [vmem:[%s230 + $0x2d9] sm:$0xff]
    %v1640 = vld [vmem:[%s230 + $0x2e9] sm:$0xff]
    %v1641 = vld [vmem:[%s230 + $0x2f1] sm:$0xff]
    %v1642 = vld [vmem:[%s230 + $0x301] sm:$0xff]
    %v1643 = vld [vmem:[%s230 + $0x309] sm:$0xff]
    %v1644 = vld [vmem:[%s230 + $0x319] sm:$0xff]
    %v1645 = vld [vmem:[%s230 + $0x321] sm:$0xff]
    %s1646 = scalar_lea.vmem [#allocation6], 512
    %v1647 = vld [vmem:[%s1646] sm:$0xff]
    %v1648 = vld [vmem:[%s1646 + $0x8] sm:$0xff]
    %v1649 = vld [vmem:[%s1646 + $0x10] sm:$0xff]
    %v1650 = vld [vmem:[%s1646 + $0x18] sm:$0xff]
    %v1651 = vld [vmem:[%s1646 + $0x20] sm:$0xff]
    %v1652 = vld [vmem:[%s1646 + $0x28] sm:$0xff]
    %v1653 = vld [vmem:[%s1646 + $0x30] sm:$0xff]
    %v1654 = vld [vmem:[%s1646 + $0x38] sm:$0xff]
    %v1655 = vld [vmem:[%s1646 + $0x40] sm:$0xff]
    %v1656 = vld [vmem:[%s1646 + $0x48] sm:$0xff]
    %v1657 = vld [vmem:[%s1646 + $0x50] sm:$0xff]
    %v1658 = vld [vmem:[%s1646 + $0x58] sm:$0xff]
    %v1659 = vld [vmem:[%s1646 + $0x60] sm:$0xff]
    %v1660 = vld [vmem:[%s1646 + $0x68] sm:$0xff]
    %v1661 = vld [vmem:[%s1646 + $0x70] sm:$0xff]
    %v1662 = vld [vmem:[%s1646 + $0x78] sm:$0xff]
    %1663 = vmatpush.msra.mxu0 %v1662
    %1664 = vmatpush.msra.mxu0 %v1661
    %1665 = vmatpush.msra.mxu0 %v1660
    %1666 = vmatpush.msra.mxu0 %v1659
    %1667 = vmatpush.msra.mxu0 %v1658
    %1668 = vmatpush.msra.mxu0 %v1657
    %1669 = vmatpush.msra.mxu0 %v1656
    %1670 = vmatpush.msra.mxu0 %v1655
    %1671 = vmatpush.msra.mxu0 %v1654
    %1672 = vmatpush.msra.mxu0 %v1653
    %1673 = vmatpush.msra.mxu0 %v1652
    %1674 = vmatpush.msra.mxu0 %v1651
    %1675 = vmatpush.msra.mxu0 %v1650
    %1676 = vmatpush.msra.mxu0 %v1649
    %1677 = vmatpush.msra.mxu0 %v1648
    %1678 = vmatpush.msra.mxu0 %v1647
    %1679 = vmatmul.f32.gmra.mxu0 %v1582
    %v1680 = vpop.f32.mrf.mxu0
    %v1681 = vadd.f32 0.0, %v1680
    %1682 = vmatmul.f32.gmra.mxu0 %v1583
    %v1683 = vpop.f32.mrf.mxu0
    %v1684 = vadd.f32 0.0, %v1683
    %1685 = vmatmul.f32.gmra.mxu0 %v1584
    %v1686 = vpop.f32.mrf.mxu0
    %v1687 = vadd.f32 0.0, %v1686
    %1688 = vmatmul.f32.gmra.mxu0 %v1585
    %v1689 = vpop.f32.mrf.mxu0
    %v1690 = vadd.f32 0.0, %v1689
    %1691 = vmatmul.f32.gmra.mxu0 %v1586
    %v1692 = vpop.f32.mrf.mxu0
    %v1693 = vadd.f32 0.0, %v1692
    %1694 = vmatmul.f32.gmra.mxu0 %v1587
    %v1695 = vpop.f32.mrf.mxu0
    %v1696 = vadd.f32 0.0, %v1695
    %1697 = vmatmul.f32.gmra.mxu0 %v1588
    %v1698 = vpop.f32.mrf.mxu0
    %v1699 = vadd.f32 0.0, %v1698
    %1700 = vmatmul.f32.gmra.mxu0 %v1589
    %v1701 = vpop.f32.mrf.mxu0
    %v1702 = vadd.f32 0.0, %v1701
    %1703 = vmatmul.f32.gmra.mxu0 %v1590
    %v1704 = vpop.f32.mrf.mxu0
    %v1705 = vadd.f32 0.0, %v1704
    %1706 = vmatmul.f32.gmra.mxu0 %v1591
    %v1707 = vpop.f32.mrf.mxu0
    %v1708 = vadd.f32 0.0, %v1707
    %1709 = vmatmul.f32.gmra.mxu0 %v1592
    %v1710 = vpop.f32.mrf.mxu0
    %v1711 = vadd.f32 0.0, %v1710
    %1712 = vmatmul.f32.gmra.mxu0 %v1593
    %v1713 = vpop.f32.mrf.mxu0
    %v1714 = vadd.f32 0.0, %v1713
    %1715 = vmatmul.f32.gmra.mxu0 %v1594
    %v1716 = vpop.f32.mrf.mxu0
    %v1717 = vadd.f32 0.0, %v1716
    %1718 = vmatmul.f32.gmra.mxu0 %v1595
    %v1719 = vpop.f32.mrf.mxu0
    %v1720 = vadd.f32 0.0, %v1719
    %1721 = vmatmul.f32.gmra.mxu0 %v1596
    %v1722 = vpop.f32.mrf.mxu0
    %v1723 = vadd.f32 0.0, %v1722
    %1724 = vmatmul.f32.gmra.mxu0 %v1597
    %v1725 = vpop.f32.mrf.mxu0
    %v1726 = vadd.f32 0.0, %v1725
    %1727 = vmatmul.f32.gmra.mxu0 %v1598
    %v1728 = vpop.f32.mrf.mxu0
    %v1729 = vadd.f32 0.0, %v1728
    %1730 = vmatmul.f32.gmra.mxu0 %v1599
    %v1731 = vpop.f32.mrf.mxu0
    %v1732 = vadd.f32 0.0, %v1731
    %1733 = vmatmul.f32.gmra.mxu0 %v1600
    %v1734 = vpop.f32.mrf.mxu0
    %v1735 = vadd.f32 0.0, %v1734
    %1736 = vmatmul.f32.gmra.mxu0 %v1601
    %v1737 = vpop.f32.mrf.mxu0
    %v1738 = vadd.f32 0.0, %v1737
    %1739 = vmatmul.f32.gmra.mxu0 %v1602
    %v1740 = vpop.f32.mrf.mxu0
    %v1741 = vadd.f32 0.0, %v1740
    %1742 = vmatmul.f32.gmra.mxu0 %v1603
    %v1743 = vpop.f32.mrf.mxu0
    %v1744 = vadd.f32 0.0, %v1743
    %1745 = vmatmul.f32.gmra.mxu0 %v1604
    %v1746 = vpop.f32.mrf.mxu0
    %v1747 = vadd.f32 0.0, %v1746
    %1748 = vmatmul.f32.gmra.mxu0 %v1605
    %v1749 = vpop.f32.mrf.mxu0
    %v1750 = vadd.f32 0.0, %v1749
    %1751 = vmatmul.f32.gmra.mxu0 %v1606
    %v1752 = vpop.f32.mrf.mxu0
    %v1753 = vadd.f32 0.0, %v1752
    %1754 = vmatmul.f32.gmra.mxu0 %v1607
    %v1755 = vpop.f32.mrf.mxu0
    %v1756 = vadd.f32 0.0, %v1755
    %1757 = vmatmul.f32.gmra.mxu0 %v1608
    %v1758 = vpop.f32.mrf.mxu0
    %v1759 = vadd.f32 0.0, %v1758
    %1760 = vmatmul.f32.gmra.mxu0 %v1609
    %v1761 = vpop.f32.mrf.mxu0
    %v1762 = vadd.f32 0.0, %v1761
    %1763 = vmatmul.f32.gmra.mxu0 %v1610
    %v1764 = vpop.f32.mrf.mxu0
    %v1765 = vadd.f32 0.0, %v1764
    %1766 = vmatmul.f32.gmra.mxu0 %v1611
    %v1767 = vpop.f32.mrf.mxu0
    %v1768 = vadd.f32 0.0, %v1767
    %1769 = vmatmul.f32.gmra.mxu0 %v1612
    %v1770 = vpop.f32.mrf.mxu0
    %v1771 = vadd.f32 0.0, %v1770
    %1772 = vmatmul.f32.gmra.mxu0 %v1613
    %v1773 = vpop.f32.mrf.mxu0
    %v1774 = vadd.f32 0.0, %v1773
    %1775 = vmatmul.f32.gmra.mxu0 %v1614
    %v1776 = vpop.f32.mrf.mxu0
    %v1777 = vadd.f32 0.0, %v1776
    %1778 = vmatmul.f32.gmra.mxu0 %v1615
    %v1779 = vpop.f32.mrf.mxu0
    %v1780 = vadd.f32 0.0, %v1779
    %1781 = vmatmul.f32.gmra.mxu0 %v1616
    %v1782 = vpop.f32.mrf.mxu0
    %v1783 = vadd.f32 0.0, %v1782
    %1784 = vmatmul.f32.gmra.mxu0 %v1617
    %v1785 = vpop.f32.mrf.mxu0
    %v1786 = vadd.f32 0.0, %v1785
    %1787 = vmatmul.f32.gmra.mxu0 %v1618
    %v1788 = vpop.f32.mrf.mxu0
    %v1789 = vadd.f32 0.0, %v1788
    %1790 = vmatmul.f32.gmra.mxu0 %v1619
    %v1791 = vpop.f32.mrf.mxu0
    %v1792 = vadd.f32 0.0, %v1791
    %1793 = vmatmul.f32.gmra.mxu0 %v1620
    %v1794 = vpop.f32.mrf.mxu0
    %v1795 = vadd.f32 0.0, %v1794
    %1796 = vmatmul.f32.gmra.mxu0 %v1621
    %v1797 = vpop.f32.mrf.mxu0
    %v1798 = vadd.f32 0.0, %v1797
    %1799 = vmatmul.f32.gmra.mxu0 %v1622
    %v1800 = vpop.f32.mrf.mxu0
    %v1801 = vadd.f32 0.0, %v1800
    %1802 = vmatmul.f32.gmra.mxu0 %v1623
    %v1803 = vpop.f32.mrf.mxu0
    %v1804 = vadd.f32 0.0, %v1803
    %1805 = vmatmul.f32.gmra.mxu0 %v1624
    %v1806 = vpop.f32.mrf.mxu0
    %v1807 = vadd.f32 0.0, %v1806
    %1808 = vmatmul.f32.gmra.mxu0 %v1625
    %v1809 = vpop.f32.mrf.mxu0
    %v1810 = vadd.f32 0.0, %v1809
    %1811 = vmatmul.f32.gmra.mxu0 %v1626
    %v1812 = vpop.f32.mrf.mxu0
    %v1813 = vadd.f32 0.0, %v1812
    %1814 = vmatmul.f32.gmra.mxu0 %v1627
    %v1815 = vpop.f32.mrf.mxu0
    %v1816 = vadd.f32 0.0, %v1815
    %1817 = vmatmul.f32.gmra.mxu0 %v1628
    %v1818 = vpop.f32.mrf.mxu0
    %v1819 = vadd.f32 0.0, %v1818
    %1820 = vmatmul.f32.gmra.mxu0 %v1629
    %v1821 = vpop.f32.mrf.mxu0
    %v1822 = vadd.f32 0.0, %v1821
    %1823 = vmatmul.f32.gmra.mxu0 %v1630
    %v1824 = vpop.f32.mrf.mxu0
    %v1825 = vadd.f32 0.0, %v1824
    %1826 = vmatmul.f32.gmra.mxu0 %v1631
    %v1827 = vpop.f32.mrf.mxu0
    %v1828 = vadd.f32 0.0, %v1827
    %1829 = vmatmul.f32.gmra.mxu0 %v1632
    %v1830 = vpop.f32.mrf.mxu0
    %v1831 = vadd.f32 0.0, %v1830
    %1832 = vmatmul.f32.gmra.mxu0 %v1633
    %v1833 = vpop.f32.mrf.mxu0
    %v1834 = vadd.f32 0.0, %v1833
    %1835 = vmatmul.f32.gmra.mxu0 %v1634
    %v1836 = vpop.f32.mrf.mxu0
    %v1837 = vadd.f32 0.0, %v1836
    %1838 = vmatmul.f32.gmra.mxu0 %v1635
    %v1839 = vpop.f32.mrf.mxu0
    %v1840 = vadd.f32 0.0, %v1839
    %1841 = vmatmul.f32.gmra.mxu0 %v1636
    %v1842 = vpop.f32.mrf.mxu0
    %v1843 = vadd.f32 0.0, %v1842
    %1844 = vmatmul.f32.gmra.mxu0 %v1637
    %v1845 = vpop.f32.mrf.mxu0
    %v1846 = vadd.f32 0.0, %v1845
    %1847 = vmatmul.f32.gmra.mxu0 %v1638
    %v1848 = vpop.f32.mrf.mxu0
    %v1849 = vadd.f32 0.0, %v1848
    %1850 = vmatmul.f32.gmra.mxu0 %v1639
    %v1851 = vpop.f32.mrf.mxu0
    %v1852 = vadd.f32 0.0, %v1851
    %1853 = vmatmul.f32.gmra.mxu0 %v1640
    %v1854 = vpop.f32.mrf.mxu0
    %v1855 = vadd.f32 0.0, %v1854
    %1856 = vmatmul.f32.gmra.mxu0 %v1641
    %v1857 = vpop.f32.mrf.mxu0
    %v1858 = vadd.f32 0.0, %v1857
    %1859 = vmatmul.f32.gmra.mxu0 %v1642
    %v1860 = vpop.f32.mrf.mxu0
    %v1861 = vadd.f32 0.0, %v1860
    %1862 = vmatmul.f32.gmra.mxu0 %v1643
    %v1863 = vpop.f32.mrf.mxu0
    %v1864 = vadd.f32 0.0, %v1863
    %1865 = vmatmul.f32.gmra.mxu0 %v1644
    %v1866 = vpop.f32.mrf.mxu0
    %v1867 = vadd.f32 0.0, %v1866
    %1868 = vmatmul.f32.gmra.mxu0 %v1645
    %v1869 = vpop.f32.mrf.mxu0
    %v1870 = vadd.f32 0.0, %v1869
    %1871 = vdwg.mxu0
    %v1872 = vadd.f32 %v1518, %v1681
    %v1873 = vadd.f32 %v1519, %v1684
    %v1874 = vadd.f32 %v1520, %v1687
    %v1875 = vadd.f32 %v1521, %v1690
    %v1876 = vadd.f32 %v1522, %v1693
    %v1877 = vadd.f32 %v1523, %v1696
    %v1878 = vadd.f32 %v1524, %v1699
    %v1879 = vadd.f32 %v1525, %v1702
    %v1880 = vadd.f32 %v1526, %v1705
    %v1881 = vadd.f32 %v1527, %v1708
    %v1882 = vadd.f32 %v1528, %v1711
    %v1883 = vadd.f32 %v1529, %v1714
    %v1884 = vadd.f32 %v1530, %v1717
    %v1885 = vadd.f32 %v1531, %v1720
    %v1886 = vadd.f32 %v1532, %v1723
    %v1887 = vadd.f32 %v1533, %v1726
    %v1888 = vadd.f32 %v1534, %v1729
    %v1889 = vadd.f32 %v1535, %v1732
    %v1890 = vadd.f32 %v1536, %v1735
    %v1891 = vadd.f32 %v1537, %v1738
    %v1892 = vadd.f32 %v1538, %v1741
    %v1893 = vadd.f32 %v1539, %v1744
    %v1894 = vadd.f32 %v1540, %v1747
    %v1895 = vadd.f32 %v1541, %v1750
    %v1896 = vadd.f32 %v1542, %v1753
    %v1897 = vadd.f32 %v1543, %v1756
    %v1898 = vadd.f32 %v1544, %v1759
    %v1899 = vadd.f32 %v1545, %v1762
    %v1900 = vadd.f32 %v1546, %v1765
    %v1901 = vadd.f32 %v1547, %v1768
    %v1902 = vadd.f32 %v1548, %v1771
    %v1903 = vadd.f32 %v1549, %v1774
    %v1904 = vadd.f32 %v1550, %v1777
    %v1905 = vadd.f32 %v1551, %v1780
    %v1906 = vadd.f32 %v1552, %v1783
    %v1907 = vadd.f32 %v1553, %v1786
    %v1908 = vadd.f32 %v1554, %v1789
    %v1909 = vadd.f32 %v1555, %v1792
    %v1910 = vadd.f32 %v1556, %v1795
    %v1911 = vadd.f32 %v1557, %v1798
    %v1912 = vadd.f32 %v1558, %v1801
    %v1913 = vadd.f32 %v1559, %v1804
    %v1914 = vadd.f32 %v1560, %v1807
    %v1915 = vadd.f32 %v1561, %v1810
    %v1916 = vadd.f32 %v1562, %v1813
    %v1917 = vadd.f32 %v1563, %v1816
    %v1918 = vadd.f32 %v1564, %v1819
    %v1919 = vadd.f32 %v1565, %v1822
    %v1920 = vadd.f32 %v1566, %v1825
    %v1921 = vadd.f32 %v1567, %v1828
    %v1922 = vadd.f32 %v1568, %v1831
    %v1923 = vadd.f32 %v1569, %v1834
    %v1924 = vadd.f32 %v1570, %v1837
    %v1925 = vadd.f32 %v1571, %v1840
    %v1926 = vadd.f32 %v1572, %v1843
    %v1927 = vadd.f32 %v1573, %v1846
    %v1928 = vadd.f32 %v1574, %v1849
    %v1929 = vadd.f32 %v1575, %v1852
    %v1930 = vadd.f32 %v1576, %v1855
    %v1931 = vadd.f32 %v1577, %v1858
    %v1932 = vadd.f32 %v1578, %v1861
    %v1933 = vadd.f32 %v1579, %v1864
    %v1934 = vadd.f32 %v1580, %v1867
    %v1935 = vadd.f32 %v1581, %v1870
    %v1936 = vld [vmem:[%s230 + $0x2] sm:$0xff]
    %v1937 = vld [vmem:[%s230 + $0xa] sm:$0xff]
    %v1938 = vld [vmem:[%s230 + $0x1a] sm:$0xff]
    %v1939 = vld [vmem:[%s230 + $0x22] sm:$0xff]
    %v1940 = vld [vmem:[%s230 + $0x32] sm:$0xff]
    %v1941 = vld [vmem:[%s230 + $0x3a] sm:$0xff]
    %v1942 = vld [vmem:[%s230 + $0x4a] sm:$0xff]
    %v1943 = vld [vmem:[%s230 + $0x52] sm:$0xff]
    %v1944 = vld [vmem:[%s230 + $0x62] sm:$0xff]
    %v1945 = vld [vmem:[%s230 + $0x6a] sm:$0xff]
    %v1946 = vld [vmem:[%s230 + $0x7a] sm:$0xff]
    %v1947 = vld [vmem:[%s230 + $0x82] sm:$0xff]
    %v1948 = vld [vmem:[%s230 + $0x92] sm:$0xff]
    %v1949 = vld [vmem:[%s230 + $0x9a] sm:$0xff]
    %v1950 = vld [vmem:[%s230 + $0xaa] sm:$0xff]
    %v1951 = vld [vmem:[%s230 + $0xb2] sm:$0xff]
    %v1952 = vld [vmem:[%s230 + $0xc2] sm:$0xff]
    %v1953 = vld [vmem:[%s230 + $0xca] sm:$0xff]
    %v1954 = vld [vmem:[%s230 + $0xda] sm:$0xff]
    %v1955 = vld [vmem:[%s230 + $0xe2] sm:$0xff]
    %v1956 = vld [vmem:[%s230 + $0xf2] sm:$0xff]
    %v1957 = vld [vmem:[%s230 + $0xfa] sm:$0xff]
    %v1958 = vld [vmem:[%s230 + $0x10a] sm:$0xff]
    %v1959 = vld [vmem:[%s230 + $0x112] sm:$0xff]
    %v1960 = vld [vmem:[%s230 + $0x122] sm:$0xff]
    %v1961 = vld [vmem:[%s230 + $0x12a] sm:$0xff]
    %v1962 = vld [vmem:[%s230 + $0x13a] sm:$0xff]
    %v1963 = vld [vmem:[%s230 + $0x142] sm:$0xff]
    %v1964 = vld [vmem:[%s230 + $0x152] sm:$0xff]
    %v1965 = vld [vmem:[%s230 + $0x15a] sm:$0xff]
    %v1966 = vld [vmem:[%s230 + $0x16a] sm:$0xff]
    %v1967 = vld [vmem:[%s230 + $0x172] sm:$0xff]
    %v1968 = vld [vmem:[%s230 + $0x1b2] sm:$0xff]
    %v1969 = vld [vmem:[%s230 + $0x1ba] sm:$0xff]
    %v1970 = vld [vmem:[%s230 + $0x1ca] sm:$0xff]
    %v1971 = vld [vmem:[%s230 + $0x1d2] sm:$0xff]
    %v1972 = vld [vmem:[%s230 + $0x1e2] sm:$0xff]
    %v1973 = vld [vmem:[%s230 + $0x1ea] sm:$0xff]
    %v1974 = vld [vmem:[%s230 + $0x1fa] sm:$0xff]
    %v1975 = vld [vmem:[%s230 + $0x202] sm:$0xff]
    %v1976 = vld [vmem:[%s230 + $0x212] sm:$0xff]
    %v1977 = vld [vmem:[%s230 + $0x21a] sm:$0xff]
    %v1978 = vld [vmem:[%s230 + $0x22a] sm:$0xff]
    %v1979 = vld [vmem:[%s230 + $0x232] sm:$0xff]
    %v1980 = vld [vmem:[%s230 + $0x242] sm:$0xff]
    %v1981 = vld [vmem:[%s230 + $0x24a] sm:$0xff]
    %v1982 = vld [vmem:[%s230 + $0x25a] sm:$0xff]
    %v1983 = vld [vmem:[%s230 + $0x262] sm:$0xff]
    %v1984 = vld [vmem:[%s230 + $0x272] sm:$0xff]
    %v1985 = vld [vmem:[%s230 + $0x27a] sm:$0xff]
    %v1986 = vld [vmem:[%s230 + $0x28a] sm:$0xff]
    %v1987 = vld [vmem:[%s230 + $0x292] sm:$0xff]
    %v1988 = vld [vmem:[%s230 + $0x2a2] sm:$0xff]
    %v1989 = vld [vmem:[%s230 + $0x2aa] sm:$0xff]
    %v1990 = vld [vmem:[%s230 + $0x2ba] sm:$0xff]
    %v1991 = vld [vmem:[%s230 + $0x2c2] sm:$0xff]
    %v1992 = vld [vmem:[%s230 + $0x2d2] sm:$0xff]
    %v1993 = vld [vmem:[%s230 + $0x2da] sm:$0xff]
    %v1994 = vld [vmem:[%s230 + $0x2ea] sm:$0xff]
    %v1995 = vld [vmem:[%s230 + $0x2f2] sm:$0xff]
    %v1996 = vld [vmem:[%s230 + $0x302] sm:$0xff]
    %v1997 = vld [vmem:[%s230 + $0x30a] sm:$0xff]
    %v1998 = vld [vmem:[%s230 + $0x31a] sm:$0xff]
    %v1999 = vld [vmem:[%s230 + $0x322] sm:$0xff]
    %s2000 = scalar_lea.vmem [#allocation6], 640
    %v2001 = vld [vmem:[%s2000] sm:$0xff]
    %v2002 = vld [vmem:[%s2000 + $0x8] sm:$0xff]
    %v2003 = vld [vmem:[%s2000 + $0x10] sm:$0xff]
    %v2004 = vld [vmem:[%s2000 + $0x18] sm:$0xff]
    %v2005 = vld [vmem:[%s2000 + $0x20] sm:$0xff]
    %v2006 = vld [vmem:[%s2000 + $0x28] sm:$0xff]
    %v2007 = vld [vmem:[%s2000 + $0x30] sm:$0xff]
    %v2008 = vld [vmem:[%s2000 + $0x38] sm:$0xff]
    %v2009 = vld [vmem:[%s2000 + $0x40] sm:$0xff]
    %v2010 = vld [vmem:[%s2000 + $0x48] sm:$0xff]
    %v2011 = vld [vmem:[%s2000 + $0x50] sm:$0xff]
    %v2012 = vld [vmem:[%s2000 + $0x58] sm:$0xff]
    %v2013 = vld [vmem:[%s2000 + $0x60] sm:$0xff]
    %v2014 = vld [vmem:[%s2000 + $0x68] sm:$0xff]
    %v2015 = vld [vmem:[%s2000 + $0x70] sm:$0xff]
    %v2016 = vld [vmem:[%s2000 + $0x78] sm:$0xff]
    %2017 = vmatpush.msra.mxu0 %v2016
    %2018 = vmatpush.msra.mxu0 %v2015
    %2019 = vmatpush.msra.mxu0 %v2014
    %2020 = vmatpush.msra.mxu0 %v2013
    %2021 = vmatpush.msra.mxu0 %v2012
    %2022 = vmatpush.msra.mxu0 %v2011
    %2023 = vmatpush.msra.mxu0 %v2010
    %2024 = vmatpush.msra.mxu0 %v2009
    %2025 = vmatpush.msra.mxu0 %v2008
    %2026 = vmatpush.msra.mxu0 %v2007
    %2027 = vmatpush.msra.mxu0 %v2006
    %2028 = vmatpush.msra.mxu0 %v2005
    %2029 = vmatpush.msra.mxu0 %v2004
    %2030 = vmatpush.msra.mxu0 %v2003
    %2031 = vmatpush.msra.mxu0 %v2002
    %2032 = vmatpush.msra.mxu0 %v2001
    %2033 = vmatmul.f32.gmra.mxu0 %v1936
    %v2034 = vpop.f32.mrf.mxu0
    %v2035 = vadd.f32 0.0, %v2034
    %2036 = vmatmul.f32.gmra.mxu0 %v1937
    %v2037 = vpop.f32.mrf.mxu0
    %v2038 = vadd.f32 0.0, %v2037
    %2039 = vmatmul.f32.gmra.mxu0 %v1938
    %v2040 = vpop.f32.mrf.mxu0
    %v2041 = vadd.f32 0.0, %v2040
    %2042 = vmatmul.f32.gmra.mxu0 %v1939
    %v2043 = vpop.f32.mrf.mxu0
    %v2044 = vadd.f32 0.0, %v2043
    %2045 = vmatmul.f32.gmra.mxu0 %v1940
    %v2046 = vpop.f32.mrf.mxu0
    %v2047 = vadd.f32 0.0, %v2046
    %2048 = vmatmul.f32.gmra.mxu0 %v1941
    %v2049 = vpop.f32.mrf.mxu0
    %v2050 = vadd.f32 0.0, %v2049
    %2051 = vmatmul.f32.gmra.mxu0 %v1942
    %v2052 = vpop.f32.mrf.mxu0
    %v2053 = vadd.f32 0.0, %v2052
    %2054 = vmatmul.f32.gmra.mxu0 %v1943
    %v2055 = vpop.f32.mrf.mxu0
    %v2056 = vadd.f32 0.0, %v2055
    %2057 = vmatmul.f32.gmra.mxu0 %v1944
    %v2058 = vpop.f32.mrf.mxu0
    %v2059 = vadd.f32 0.0, %v2058
    %2060 = vmatmul.f32.gmra.mxu0 %v1945
    %v2061 = vpop.f32.mrf.mxu0
    %v2062 = vadd.f32 0.0, %v2061
    %2063 = vmatmul.f32.gmra.mxu0 %v1946
    %v2064 = vpop.f32.mrf.mxu0
    %v2065 = vadd.f32 0.0, %v2064
    %2066 = vmatmul.f32.gmra.mxu0 %v1947
    %v2067 = vpop.f32.mrf.mxu0
    %v2068 = vadd.f32 0.0, %v2067
    %2069 = vmatmul.f32.gmra.mxu0 %v1948
    %v2070 = vpop.f32.mrf.mxu0
    %v2071 = vadd.f32 0.0, %v2070
    %2072 = vmatmul.f32.gmra.mxu0 %v1949
    %v2073 = vpop.f32.mrf.mxu0
    %v2074 = vadd.f32 0.0, %v2073
    %2075 = vmatmul.f32.gmra.mxu0 %v1950
    %v2076 = vpop.f32.mrf.mxu0
    %v2077 = vadd.f32 0.0, %v2076
    %2078 = vmatmul.f32.gmra.mxu0 %v1951
    %v2079 = vpop.f32.mrf.mxu0
    %v2080 = vadd.f32 0.0, %v2079
    %2081 = vmatmul.f32.gmra.mxu0 %v1952
    %v2082 = vpop.f32.mrf.mxu0
    %v2083 = vadd.f32 0.0, %v2082
    %2084 = vmatmul.f32.gmra.mxu0 %v1953
    %v2085 = vpop.f32.mrf.mxu0
    %v2086 = vadd.f32 0.0, %v2085
    %2087 = vmatmul.f32.gmra.mxu0 %v1954
    %v2088 = vpop.f32.mrf.mxu0
    %v2089 = vadd.f32 0.0, %v2088
    %2090 = vmatmul.f32.gmra.mxu0 %v1955
    %v2091 = vpop.f32.mrf.mxu0
    %v2092 = vadd.f32 0.0, %v2091
    %2093 = vmatmul.f32.gmra.mxu0 %v1956
    %v2094 = vpop.f32.mrf.mxu0
    %v2095 = vadd.f32 0.0, %v2094
    %2096 = vmatmul.f32.gmra.mxu0 %v1957
    %v2097 = vpop.f32.mrf.mxu0
    %v2098 = vadd.f32 0.0, %v2097
    %2099 = vmatmul.f32.gmra.mxu0 %v1958
    %v2100 = vpop.f32.mrf.mxu0
    %v2101 = vadd.f32 0.0, %v2100
    %2102 = vmatmul.f32.gmra.mxu0 %v1959
    %v2103 = vpop.f32.mrf.mxu0
    %v2104 = vadd.f32 0.0, %v2103
    %2105 = vmatmul.f32.gmra.mxu0 %v1960
    %v2106 = vpop.f32.mrf.mxu0
    %v2107 = vadd.f32 0.0, %v2106
    %2108 = vmatmul.f32.gmra.mxu0 %v1961
    %v2109 = vpop.f32.mrf.mxu0
    %v2110 = vadd.f32 0.0, %v2109
    %2111 = vmatmul.f32.gmra.mxu0 %v1962
    %v2112 = vpop.f32.mrf.mxu0
    %v2113 = vadd.f32 0.0, %v2112
    %2114 = vmatmul.f32.gmra.mxu0 %v1963
    %v2115 = vpop.f32.mrf.mxu0
    %v2116 = vadd.f32 0.0, %v2115
    %2117 = vmatmul.f32.gmra.mxu0 %v1964
    %v2118 = vpop.f32.mrf.mxu0
    %v2119 = vadd.f32 0.0, %v2118
    %2120 = vmatmul.f32.gmra.mxu0 %v1965
    %v2121 = vpop.f32.mrf.mxu0
    %v2122 = vadd.f32 0.0, %v2121
    %2123 = vmatmul.f32.gmra.mxu0 %v1966
    %v2124 = vpop.f32.mrf.mxu0
    %v2125 = vadd.f32 0.0, %v2124
    %2126 = vmatmul.f32.gmra.mxu0 %v1967
    %v2127 = vpop.f32.mrf.mxu0
    %v2128 = vadd.f32 0.0, %v2127
    %2129 = vmatmul.f32.gmra.mxu0 %v1968
    %v2130 = vpop.f32.mrf.mxu0
    %v2131 = vadd.f32 0.0, %v2130
    %2132 = vmatmul.f32.gmra.mxu0 %v1969
    %v2133 = vpop.f32.mrf.mxu0
    %v2134 = vadd.f32 0.0, %v2133
    %2135 = vmatmul.f32.gmra.mxu0 %v1970
    %v2136 = vpop.f32.mrf.mxu0
    %v2137 = vadd.f32 0.0, %v2136
    %2138 = vmatmul.f32.gmra.mxu0 %v1971
    %v2139 = vpop.f32.mrf.mxu0
    %v2140 = vadd.f32 0.0, %v2139
    %2141 = vmatmul.f32.gmra.mxu0 %v1972
    %v2142 = vpop.f32.mrf.mxu0
    %v2143 = vadd.f32 0.0, %v2142
    %2144 = vmatmul.f32.gmra.mxu0 %v1973
    %v2145 = vpop.f32.mrf.mxu0
    %v2146 = vadd.f32 0.0, %v2145
    %2147 = vmatmul.f32.gmra.mxu0 %v1974
    %v2148 = vpop.f32.mrf.mxu0
    %v2149 = vadd.f32 0.0, %v2148
    %2150 = vmatmul.f32.gmra.mxu0 %v1975
    %v2151 = vpop.f32.mrf.mxu0
    %v2152 = vadd.f32 0.0, %v2151
    %2153 = vmatmul.f32.gmra.mxu0 %v1976
    %v2154 = vpop.f32.mrf.mxu0
    %v2155 = vadd.f32 0.0, %v2154
    %2156 = vmatmul.f32.gmra.mxu0 %v1977
    %v2157 = vpop.f32.mrf.mxu0
    %v2158 = vadd.f32 0.0, %v2157
    %2159 = vmatmul.f32.gmra.mxu0 %v1978
    %v2160 = vpop.f32.mrf.mxu0
    %v2161 = vadd.f32 0.0, %v2160
    %2162 = vmatmul.f32.gmra.mxu0 %v1979
    %v2163 = vpop.f32.mrf.mxu0
    %v2164 = vadd.f32 0.0, %v2163
    %2165 = vmatmul.f32.gmra.mxu0 %v1980
    %v2166 = vpop.f32.mrf.mxu0
    %v2167 = vadd.f32 0.0, %v2166
    %2168 = vmatmul.f32.gmra.mxu0 %v1981
    %v2169 = vpop.f32.mrf.mxu0
    %v2170 = vadd.f32 0.0, %v2169
    %2171 = vmatmul.f32.gmra.mxu0 %v1982
    %v2172 = vpop.f32.mrf.mxu0
    %v2173 = vadd.f32 0.0, %v2172
    %2174 = vmatmul.f32.gmra.mxu0 %v1983
    %v2175 = vpop.f32.mrf.mxu0
    %v2176 = vadd.f32 0.0, %v2175
    %2177 = vmatmul.f32.gmra.mxu0 %v1984
    %v2178 = vpop.f32.mrf.mxu0
    %v2179 = vadd.f32 0.0, %v2178
    %2180 = vmatmul.f32.gmra.mxu0 %v1985
    %v2181 = vpop.f32.mrf.mxu0
    %v2182 = vadd.f32 0.0, %v2181
    %2183 = vmatmul.f32.gmra.mxu0 %v1986
    %v2184 = vpop.f32.mrf.mxu0
    %v2185 = vadd.f32 0.0, %v2184
    %2186 = vmatmul.f32.gmra.mxu0 %v1987
    %v2187 = vpop.f32.mrf.mxu0
    %v2188 = vadd.f32 0.0, %v2187
    %2189 = vmatmul.f32.gmra.mxu0 %v1988
    %v2190 = vpop.f32.mrf.mxu0
    %v2191 = vadd.f32 0.0, %v2190
    %2192 = vmatmul.f32.gmra.mxu0 %v1989
    %v2193 = vpop.f32.mrf.mxu0
    %v2194 = vadd.f32 0.0, %v2193
    %2195 = vmatmul.f32.gmra.mxu0 %v1990
    %v2196 = vpop.f32.mrf.mxu0
    %v2197 = vadd.f32 0.0, %v2196
    %2198 = vmatmul.f32.gmra.mxu0 %v1991
    %v2199 = vpop.f32.mrf.mxu0
    %v2200 = vadd.f32 0.0, %v2199
    %2201 = vmatmul.f32.gmra.mxu0 %v1992
    %v2202 = vpop.f32.mrf.mxu0
    %v2203 = vadd.f32 0.0, %v2202
    %2204 = vmatmul.f32.gmra.mxu0 %v1993
    %v2205 = vpop.f32.mrf.mxu0
    %v2206 = vadd.f32 0.0, %v2205
    %2207 = vmatmul.f32.gmra.mxu0 %v1994
    %v2208 = vpop.f32.mrf.mxu0
    %v2209 = vadd.f32 0.0, %v2208
    %2210 = vmatmul.f32.gmra.mxu0 %v1995
    %v2211 = vpop.f32.mrf.mxu0
    %v2212 = vadd.f32 0.0, %v2211
    %2213 = vmatmul.f32.gmra.mxu0 %v1996
    %v2214 = vpop.f32.mrf.mxu0
    %v2215 = vadd.f32 0.0, %v2214
    %2216 = vmatmul.f32.gmra.mxu0 %v1997
    %v2217 = vpop.f32.mrf.mxu0
    %v2218 = vadd.f32 0.0, %v2217
    %2219 = vmatmul.f32.gmra.mxu0 %v1998
    %v2220 = vpop.f32.mrf.mxu0
    %v2221 = vadd.f32 0.0, %v2220
    %2222 = vmatmul.f32.gmra.mxu0 %v1999
    %v2223 = vpop.f32.mrf.mxu0
    %v2224 = vadd.f32 0.0, %v2223
    %2225 = vdwg.mxu0
    %v2226 = vadd.f32 %v1872, %v2035
    %v2227 = vadd.f32 %v1873, %v2038
    %v2228 = vadd.f32 %v1874, %v2041
    %v2229 = vadd.f32 %v1875, %v2044
    %v2230 = vadd.f32 %v1876, %v2047
    %v2231 = vadd.f32 %v1877, %v2050
    %v2232 = vadd.f32 %v1878, %v2053
    %v2233 = vadd.f32 %v1879, %v2056
    %v2234 = vadd.f32 %v1880, %v2059
    %v2235 = vadd.f32 %v1881, %v2062
    %v2236 = vadd.f32 %v1882, %v2065
    %v2237 = vadd.f32 %v1883, %v2068
    %v2238 = vadd.f32 %v1884, %v2071
    %v2239 = vadd.f32 %v1885, %v2074
    %v2240 = vadd.f32 %v1886, %v2077
    %v2241 = vadd.f32 %v1887, %v2080
    %v2242 = vadd.f32 %v1888, %v2083
    %v2243 = vadd.f32 %v1889, %v2086
    %v2244 = vadd.f32 %v1890, %v2089
    %v2245 = vadd.f32 %v1891, %v2092
    %v2246 = vadd.f32 %v1892, %v2095
    %v2247 = vadd.f32 %v1893, %v2098
    %v2248 = vadd.f32 %v1894, %v2101
    %v2249 = vadd.f32 %v1895, %v2104
    %v2250 = vadd.f32 %v1896, %v2107
    %v2251 = vadd.f32 %v1897, %v2110
    %v2252 = vadd.f32 %v1898, %v2113
    %v2253 = vadd.f32 %v1899, %v2116
    %v2254 = vadd.f32 %v1900, %v2119
    %v2255 = vadd.f32 %v1901, %v2122
    %v2256 = vadd.f32 %v1902, %v2125
    %v2257 = vadd.f32 %v1903, %v2128
    %v2258 = vadd.f32 %v1904, %v2131
    %v2259 = vadd.f32 %v1905, %v2134
    %v2260 = vadd.f32 %v1906, %v2137
    %v2261 = vadd.f32 %v1907, %v2140
    %v2262 = vadd.f32 %v1908, %v2143
    %v2263 = vadd.f32 %v1909, %v2146
    %v2264 = vadd.f32 %v1910, %v2149
    %v2265 = vadd.f32 %v1911, %v2152
    %v2266 = vadd.f32 %v1912, %v2155
    %v2267 = vadd.f32 %v1913, %v2158
    %v2268 = vadd.f32 %v1914, %v2161
    %v2269 = vadd.f32 %v1915, %v2164
    %v2270 = vadd.f32 %v1916, %v2167
    %v2271 = vadd.f32 %v1917, %v2170
    %v2272 = vadd.f32 %v1918, %v2173
    %v2273 = vadd.f32 %v1919, %v2176
    %v2274 = vadd.f32 %v1920, %v2179
    %v2275 = vadd.f32 %v1921, %v2182
    %v2276 = vadd.f32 %v1922, %v2185
    %v2277 = vadd.f32 %v1923, %v2188
    %v2278 = vadd.f32 %v1924, %v2191
    %v2279 = vadd.f32 %v1925, %v2194
    %v2280 = vadd.f32 %v1926, %v2197
    %v2281 = vadd.f32 %v1927, %v2200
    %v2282 = vadd.f32 %v1928, %v2203
    %v2283 = vadd.f32 %v1929, %v2206
    %v2284 = vadd.f32 %v1930, %v2209
    %v2285 = vadd.f32 %v1931, %v2212
    %v2286 = vadd.f32 %v1932, %v2215
    %v2287 = vadd.f32 %v1933, %v2218
    %v2288 = vadd.f32 %v1934, %v2221
    %v2289 = vadd.f32 %v1935, %v2224
    %s2290 = scalar_lea.vmem [#allocation2], 48
    %v2291 = vld [vmem:[%s2290] sm:$0xff]
    %v2292 = vld [vmem:[%s2290 + $0x8] sm:$0xff]
    %v2293 = vld [vmem:[%s2290 + $0x18] sm:$0xff]
    %v2294 = vld [vmem:[%s2290 + $0x20] sm:$0xff]
    %v2295 = vld [vmem:[%s2290 + $0x30] sm:$0xff]
    %v2296 = vld [vmem:[%s2290 + $0x38] sm:$0xff]
    %v2297 = vld [vmem:[%s2290 + $0x48] sm:$0xff]
    %v2298 = vld [vmem:[%s2290 + $0x50] sm:$0xff]
    %v2299 = vld [vmem:[%s2290 + $0x60] sm:$0xff]
    %v2300 = vld [vmem:[%s2290 + $0x68] sm:$0xff]
    %v2301 = vld [vmem:[%s2290 + $0x78] sm:$0xff]
    %v2302 = vld [vmem:[%s2290 + $0x80] sm:$0xff]
    %v2303 = vld [vmem:[%s2290 + $0x90] sm:$0xff]
    %v2304 = vld [vmem:[%s2290 + $0x98] sm:$0xff]
    %v2305 = vld [vmem:[%s2290 + $0xa8] sm:$0xff]
    %v2306 = vld [vmem:[%s2290 + $0xb0] sm:$0xff]
    %v2307 = vld [vmem:[%s2290 + $0xc0] sm:$0xff]
    %v2308 = vld [vmem:[%s2290 + $0xc8] sm:$0xff]
    %v2309 = vld [vmem:[%s2290 + $0xd8] sm:$0xff]
    %v2310 = vld [vmem:[%s2290 + $0xe0] sm:$0xff]
    %v2311 = vld [vmem:[%s2290 + $0xf0] sm:$0xff]
    %v2312 = vld [vmem:[%s2290 + $0xf8] sm:$0xff]
    %v2313 = vld [vmem:[%s2290 + $0x108] sm:$0xff]
    %v2314 = vld [vmem:[%s2290 + $0x110] sm:$0xff]
    %v2315 = vld [vmem:[%s2290 + $0x120] sm:$0xff]
    %v2316 = vld [vmem:[%s2290 + $0x128] sm:$0xff]
    %v2317 = vld [vmem:[%s2290 + $0x138] sm:$0xff]
    %v2318 = vld [vmem:[%s2290 + $0x140] sm:$0xff]
    %v2319 = vld [vmem:[%s2290 + $0x150] sm:$0xff]
    %v2320 = vld [vmem:[%s2290 + $0x158] sm:$0xff]
    %v2321 = vld [vmem:[%s2290 + $0x168] sm:$0xff]
    %v2322 = vld [vmem:[%s2290 + $0x170] sm:$0xff]
    %v2323 = vld [vmem:[%s2290 + $0x1b0] sm:$0xff]
    %v2324 = vld [vmem:[%s2290 + $0x1b8] sm:$0xff]
    %v2325 = vld [vmem:[%s2290 + $0x1c8] sm:$0xff]
    %v2326 = vld [vmem:[%s2290 + $0x1d0] sm:$0xff]
    %v2327 = vld [vmem:[%s2290 + $0x1e0] sm:$0xff]
    %v2328 = vld [vmem:[%s2290 + $0x1e8] sm:$0xff]
    %v2329 = vld [vmem:[%s2290 + $0x1f8] sm:$0xff]
    %v2330 = vld [vmem:[%s2290 + $0x200] sm:$0xff]
    %v2331 = vld [vmem:[%s2290 + $0x210] sm:$0xff]
    %v2332 = vld [vmem:[%s2290 + $0x218] sm:$0xff]
    %v2333 = vld [vmem:[%s2290 + $0x228] sm:$0xff]
    %v2334 = vld [vmem:[%s2290 + $0x230] sm:$0xff]
    %v2335 = vld [vmem:[%s2290 + $0x240] sm:$0xff]
    %v2336 = vld [vmem:[%s2290 + $0x248] sm:$0xff]
    %v2337 = vld [vmem:[%s2290 + $0x258] sm:$0xff]
    %v2338 = vld [vmem:[%s2290 + $0x260] sm:$0xff]
    %v2339 = vld [vmem:[%s2290 + $0x270] sm:$0xff]
    %v2340 = vld [vmem:[%s2290 + $0x278] sm:$0xff]
    %v2341 = vld [vmem:[%s2290 + $0x288] sm:$0xff]
    %v2342 = vld [vmem:[%s2290 + $0x290] sm:$0xff]
    %v2343 = vld [vmem:[%s2290 + $0x2a0] sm:$0xff]
    %v2344 = vld [vmem:[%s2290 + $0x2a8] sm:$0xff]
    %v2345 = vld [vmem:[%s2290 + $0x2b8] sm:$0xff]
    %v2346 = vld [vmem:[%s2290 + $0x2c0] sm:$0xff]
    %v2347 = vld [vmem:[%s2290 + $0x2d0] sm:$0xff]
    %v2348 = vld [vmem:[%s2290 + $0x2d8] sm:$0xff]
    %v2349 = vld [vmem:[%s2290 + $0x2e8] sm:$0xff]
    %v2350 = vld [vmem:[%s2290 + $0x2f0] sm:$0xff]
    %v2351 = vld [vmem:[%s2290 + $0x300] sm:$0xff]
    %v2352 = vld [vmem:[%s2290 + $0x308] sm:$0xff]
    %v2353 = vld [vmem:[%s2290 + $0x318] sm:$0xff]
    %v2354 = vld [vmem:[%s2290 + $0x320] sm:$0xff]
    %s2355 = scalar_lea.vmem [#allocation6], 768
    %v2356 = vld [vmem:[%s2355] sm:$0xff]
    %v2357 = vld [vmem:[%s2355 + $0x8] sm:$0xff]
    %v2358 = vld [vmem:[%s2355 + $0x10] sm:$0xff]
    %v2359 = vld [vmem:[%s2355 + $0x18] sm:$0xff]
    %v2360 = vld [vmem:[%s2355 + $0x20] sm:$0xff]
    %v2361 = vld [vmem:[%s2355 + $0x28] sm:$0xff]
    %v2362 = vld [vmem:[%s2355 + $0x30] sm:$0xff]
    %v2363 = vld [vmem:[%s2355 + $0x38] sm:$0xff]
    %v2364 = vld [vmem:[%s2355 + $0x40] sm:$0xff]
    %v2365 = vld [vmem:[%s2355 + $0x48] sm:$0xff]
    %v2366 = vld [vmem:[%s2355 + $0x50] sm:$0xff]
    %v2367 = vld [vmem:[%s2355 + $0x58] sm:$0xff]
    %v2368 = vld [vmem:[%s2355 + $0x60] sm:$0xff]
    %v2369 = vld [vmem:[%s2355 + $0x68] sm:$0xff]
    %v2370 = vld [vmem:[%s2355 + $0x70] sm:$0xff]
    %v2371 = vld [vmem:[%s2355 + $0x78] sm:$0xff]
    %2372 = vmatpush.msra.mxu0 %v2371
    %2373 = vmatpush.msra.mxu0 %v2370
    %2374 = vmatpush.msra.mxu0 %v2369
    %2375 = vmatpush.msra.mxu0 %v2368
    %2376 = vmatpush.msra.mxu0 %v2367
    %2377 = vmatpush.msra.mxu0 %v2366
    %2378 = vmatpush.msra.mxu0 %v2365
    %2379 = vmatpush.msra.mxu0 %v2364
    %2380 = vmatpush.msra.mxu0 %v2363
    %2381 = vmatpush.msra.mxu0 %v2362
    %2382 = vmatpush.msra.mxu0 %v2361
    %2383 = vmatpush.msra.mxu0 %v2360
    %2384 = vmatpush.msra.mxu0 %v2359
    %2385 = vmatpush.msra.mxu0 %v2358
    %2386 = vmatpush.msra.mxu0 %v2357
    %2387 = vmatpush.msra.mxu0 %v2356
    %2388 = vmatmul.f32.gmra.mxu0 %v2291
    %v2389 = vpop.f32.mrf.mxu0
    %v2390 = vadd.f32 0.0, %v2389
    %2391 = vmatmul.f32.gmra.mxu0 %v2292
    %v2392 = vpop.f32.mrf.mxu0
    %v2393 = vadd.f32 0.0, %v2392
    %2394 = vmatmul.f32.gmra.mxu0 %v2293
    %v2395 = vpop.f32.mrf.mxu0
    %v2396 = vadd.f32 0.0, %v2395
    %2397 = vmatmul.f32.gmra.mxu0 %v2294
    %v2398 = vpop.f32.mrf.mxu0
    %v2399 = vadd.f32 0.0, %v2398
    %2400 = vmatmul.f32.gmra.mxu0 %v2295
    %v2401 = vpop.f32.mrf.mxu0
    %v2402 = vadd.f32 0.0, %v2401
    %2403 = vmatmul.f32.gmra.mxu0 %v2296
    %v2404 = vpop.f32.mrf.mxu0
    %v2405 = vadd.f32 0.0, %v2404
    %2406 = vmatmul.f32.gmra.mxu0 %v2297
    %v2407 = vpop.f32.mrf.mxu0
    %v2408 = vadd.f32 0.0, %v2407
    %2409 = vmatmul.f32.gmra.mxu0 %v2298
    %v2410 = vpop.f32.mrf.mxu0
    %v2411 = vadd.f32 0.0, %v2410
    %2412 = vmatmul.f32.gmra.mxu0 %v2299
    %v2413 = vpop.f32.mrf.mxu0
    %v2414 = vadd.f32 0.0, %v2413
    %2415 = vmatmul.f32.gmra.mxu0 %v2300
    %v2416 = vpop.f32.mrf.mxu0
    %v2417 = vadd.f32 0.0, %v2416
    %2418 = vmatmul.f32.gmra.mxu0 %v2301
    %v2419 = vpop.f32.mrf.mxu0
    %v2420 = vadd.f32 0.0, %v2419
    %2421 = vmatmul.f32.gmra.mxu0 %v2302
    %v2422 = vpop.f32.mrf.mxu0
    %v2423 = vadd.f32 0.0, %v2422
    %2424 = vmatmul.f32.gmra.mxu0 %v2303
    %v2425 = vpop.f32.mrf.mxu0
    %v2426 = vadd.f32 0.0, %v2425
    %2427 = vmatmul.f32.gmra.mxu0 %v2304
    %v2428 = vpop.f32.mrf.mxu0
    %v2429 = vadd.f32 0.0, %v2428
    %2430 = vmatmul.f32.gmra.mxu0 %v2305
    %v2431 = vpop.f32.mrf.mxu0
    %v2432 = vadd.f32 0.0, %v2431
    %2433 = vmatmul.f32.gmra.mxu0 %v2306
    %v2434 = vpop.f32.mrf.mxu0
    %v2435 = vadd.f32 0.0, %v2434
    %2436 = vmatmul.f32.gmra.mxu0 %v2307
    %v2437 = vpop.f32.mrf.mxu0
    %v2438 = vadd.f32 0.0, %v2437
    %2439 = vmatmul.f32.gmra.mxu0 %v2308
    %v2440 = vpop.f32.mrf.mxu0
    %v2441 = vadd.f32 0.0, %v2440
    %2442 = vmatmul.f32.gmra.mxu0 %v2309
    %v2443 = vpop.f32.mrf.mxu0
    %v2444 = vadd.f32 0.0, %v2443
    %2445 = vmatmul.f32.gmra.mxu0 %v2310
    %v2446 = vpop.f32.mrf.mxu0
    %v2447 = vadd.f32 0.0, %v2446
    %2448 = vmatmul.f32.gmra.mxu0 %v2311
    %v2449 = vpop.f32.mrf.mxu0
    %v2450 = vadd.f32 0.0, %v2449
    %2451 = vmatmul.f32.gmra.mxu0 %v2312
    %v2452 = vpop.f32.mrf.mxu0
    %v2453 = vadd.f32 0.0, %v2452
    %2454 = vmatmul.f32.gmra.mxu0 %v2313
    %v2455 = vpop.f32.mrf.mxu0
    %v2456 = vadd.f32 0.0, %v2455
    %2457 = vmatmul.f32.gmra.mxu0 %v2314
    %v2458 = vpop.f32.mrf.mxu0
    %v2459 = vadd.f32 0.0, %v2458
    %2460 = vmatmul.f32.gmra.mxu0 %v2315
    %v2461 = vpop.f32.mrf.mxu0
    %v2462 = vadd.f32 0.0, %v2461
    %2463 = vmatmul.f32.gmra.mxu0 %v2316
    %v2464 = vpop.f32.mrf.mxu0
    %v2465 = vadd.f32 0.0, %v2464
    %2466 = vmatmul.f32.gmra.mxu0 %v2317
    %v2467 = vpop.f32.mrf.mxu0
    %v2468 = vadd.f32 0.0, %v2467
    %2469 = vmatmul.f32.gmra.mxu0 %v2318
    %v2470 = vpop.f32.mrf.mxu0
    %v2471 = vadd.f32 0.0, %v2470
    %2472 = vmatmul.f32.gmra.mxu0 %v2319
    %v2473 = vpop.f32.mrf.mxu0
    %v2474 = vadd.f32 0.0, %v2473
    %2475 = vmatmul.f32.gmra.mxu0 %v2320
    %v2476 = vpop.f32.mrf.mxu0
    %v2477 = vadd.f32 0.0, %v2476
    %2478 = vmatmul.f32.gmra.mxu0 %v2321
    %v2479 = vpop.f32.mrf.mxu0
    %v2480 = vadd.f32 0.0, %v2479
    %2481 = vmatmul.f32.gmra.mxu0 %v2322
    %v2482 = vpop.f32.mrf.mxu0
    %v2483 = vadd.f32 0.0, %v2482
    %2484 = vmatmul.f32.gmra.mxu0 %v2323
    %v2485 = vpop.f32.mrf.mxu0
    %v2486 = vadd.f32 0.0, %v2485
    %2487 = vmatmul.f32.gmra.mxu0 %v2324
    %v2488 = vpop.f32.mrf.mxu0
    %v2489 = vadd.f32 0.0, %v2488
    %2490 = vmatmul.f32.gmra.mxu0 %v2325
    %v2491 = vpop.f32.mrf.mxu0
    %v2492 = vadd.f32 0.0, %v2491
    %2493 = vmatmul.f32.gmra.mxu0 %v2326
    %v2494 = vpop.f32.mrf.mxu0
    %v2495 = vadd.f32 0.0, %v2494
    %2496 = vmatmul.f32.gmra.mxu0 %v2327
    %v2497 = vpop.f32.mrf.mxu0
    %v2498 = vadd.f32 0.0, %v2497
    %2499 = vmatmul.f32.gmra.mxu0 %v2328
    %v2500 = vpop.f32.mrf.mxu0
    %v2501 = vadd.f32 0.0, %v2500
    %2502 = vmatmul.f32.gmra.mxu0 %v2329
    %v2503 = vpop.f32.mrf.mxu0
    %v2504 = vadd.f32 0.0, %v2503
    %2505 = vmatmul.f32.gmra.mxu0 %v2330
    %v2506 = vpop.f32.mrf.mxu0
    %v2507 = vadd.f32 0.0, %v2506
    %2508 = vmatmul.f32.gmra.mxu0 %v2331
    %v2509 = vpop.f32.mrf.mxu0
    %v2510 = vadd.f32 0.0, %v2509
    %2511 = vmatmul.f32.gmra.mxu0 %v2332
    %v2512 = vpop.f32.mrf.mxu0
    %v2513 = vadd.f32 0.0, %v2512
    %2514 = vmatmul.f32.gmra.mxu0 %v2333
    %v2515 = vpop.f32.mrf.mxu0
    %v2516 = vadd.f32 0.0, %v2515
    %2517 = vmatmul.f32.gmra.mxu0 %v2334
    %v2518 = vpop.f32.mrf.mxu0
    %v2519 = vadd.f32 0.0, %v2518
    %2520 = vmatmul.f32.gmra.mxu0 %v2335
    %v2521 = vpop.f32.mrf.mxu0
    %v2522 = vadd.f32 0.0, %v2521
    %2523 = vmatmul.f32.gmra.mxu0 %v2336
    %v2524 = vpop.f32.mrf.mxu0
    %v2525 = vadd.f32 0.0, %v2524
    %2526 = vmatmul.f32.gmra.mxu0 %v2337
    %v2527 = vpop.f32.mrf.mxu0
    %v2528 = vadd.f32 0.0, %v2527
    %2529 = vmatmul.f32.gmra.mxu0 %v2338
    %v2530 = vpop.f32.mrf.mxu0
    %v2531 = vadd.f32 0.0, %v2530
    %2532 = vmatmul.f32.gmra.mxu0 %v2339
    %v2533 = vpop.f32.mrf.mxu0
    %v2534 = vadd.f32 0.0, %v2533
    %2535 = vmatmul.f32.gmra.mxu0 %v2340
    %v2536 = vpop.f32.mrf.mxu0
    %v2537 = vadd.f32 0.0, %v2536
    %2538 = vmatmul.f32.gmra.mxu0 %v2341
    %v2539 = vpop.f32.mrf.mxu0
    %v2540 = vadd.f32 0.0, %v2539
    %2541 = vmatmul.f32.gmra.mxu0 %v2342
    %v2542 = vpop.f32.mrf.mxu0
    %v2543 = vadd.f32 0.0, %v2542
    %2544 = vmatmul.f32.gmra.mxu0 %v2343
    %v2545 = vpop.f32.mrf.mxu0
    %v2546 = vadd.f32 0.0, %v2545
    %2547 = vmatmul.f32.gmra.mxu0 %v2344
    %v2548 = vpop.f32.mrf.mxu0
    %v2549 = vadd.f32 0.0, %v2548
    %2550 = vmatmul.f32.gmra.mxu0 %v2345
    %v2551 = vpop.f32.mrf.mxu0
    %v2552 = vadd.f32 0.0, %v2551
    %2553 = vmatmul.f32.gmra.mxu0 %v2346
    %v2554 = vpop.f32.mrf.mxu0
    %v2555 = vadd.f32 0.0, %v2554
    %2556 = vmatmul.f32.gmra.mxu0 %v2347
    %v2557 = vpop.f32.mrf.mxu0
    %v2558 = vadd.f32 0.0, %v2557
    %2559 = vmatmul.f32.gmra.mxu0 %v2348
    %v2560 = vpop.f32.mrf.mxu0
    %v2561 = vadd.f32 0.0, %v2560
    %2562 = vmatmul.f32.gmra.mxu0 %v2349
    %v2563 = vpop.f32.mrf.mxu0
    %v2564 = vadd.f32 0.0, %v2563
    %2565 = vmatmul.f32.gmra.mxu0 %v2350
    %v2566 = vpop.f32.mrf.mxu0
    %v2567 = vadd.f32 0.0, %v2566
    %2568 = vmatmul.f32.gmra.mxu0 %v2351
    %v2569 = vpop.f32.mrf.mxu0
    %v2570 = vadd.f32 0.0, %v2569
    %2571 = vmatmul.f32.gmra.mxu0 %v2352
    %v2572 = vpop.f32.mrf.mxu0
    %v2573 = vadd.f32 0.0, %v2572
    %2574 = vmatmul.f32.gmra.mxu0 %v2353
    %v2575 = vpop.f32.mrf.mxu0
    %v2576 = vadd.f32 0.0, %v2575
    %2577 = vmatmul.f32.gmra.mxu0 %v2354
    %v2578 = vpop.f32.mrf.mxu0
    %v2579 = vadd.f32 0.0, %v2578
    %2580 = vdwg.mxu0
    %v2581 = vadd.f32 %v2226, %v2390
    %v2582 = vadd.f32 %v2227, %v2393
    %v2583 = vadd.f32 %v2228, %v2396
    %v2584 = vadd.f32 %v2229, %v2399
    %v2585 = vadd.f32 %v2230, %v2402
    %v2586 = vadd.f32 %v2231, %v2405
    %v2587 = vadd.f32 %v2232, %v2408
    %v2588 = vadd.f32 %v2233, %v2411
    %v2589 = vadd.f32 %v2234, %v2414
    %v2590 = vadd.f32 %v2235, %v2417
    %v2591 = vadd.f32 %v2236, %v2420
    %v2592 = vadd.f32 %v2237, %v2423
    %v2593 = vadd.f32 %v2238, %v2426
    %v2594 = vadd.f32 %v2239, %v2429
    %v2595 = vadd.f32 %v2240, %v2432
    %v2596 = vadd.f32 %v2241, %v2435
    %v2597 = vadd.f32 %v2242, %v2438
    %v2598 = vadd.f32 %v2243, %v2441
    %v2599 = vadd.f32 %v2244, %v2444
    %v2600 = vadd.f32 %v2245, %v2447
    %v2601 = vadd.f32 %v2246, %v2450
    %v2602 = vadd.f32 %v2247, %v2453
    %v2603 = vadd.f32 %v2248, %v2456
    %v2604 = vadd.f32 %v2249, %v2459
    %v2605 = vadd.f32 %v2250, %v2462
    %v2606 = vadd.f32 %v2251, %v2465
    %v2607 = vadd.f32 %v2252, %v2468
    %v2608 = vadd.f32 %v2253, %v2471
    %v2609 = vadd.f32 %v2254, %v2474
    %v2610 = vadd.f32 %v2255, %v2477
    %v2611 = vadd.f32 %v2256, %v2480
    %v2612 = vadd.f32 %v2257, %v2483
    %v2613 = vadd.f32 %v2258, %v2486
    %v2614 = vadd.f32 %v2259, %v2489
    %v2615 = vadd.f32 %v2260, %v2492
    %v2616 = vadd.f32 %v2261, %v2495
    %v2617 = vadd.f32 %v2262, %v2498
    %v2618 = vadd.f32 %v2263, %v2501
    %v2619 = vadd.f32 %v2264, %v2504
    %v2620 = vadd.f32 %v2265, %v2507
    %v2621 = vadd.f32 %v2266, %v2510
    %v2622 = vadd.f32 %v2267, %v2513
    %v2623 = vadd.f32 %v2268, %v2516
    %v2624 = vadd.f32 %v2269, %v2519
    %v2625 = vadd.f32 %v2270, %v2522
    %v2626 = vadd.f32 %v2271, %v2525
    %v2627 = vadd.f32 %v2272, %v2528
    %v2628 = vadd.f32 %v2273, %v2531
    %v2629 = vadd.f32 %v2274, %v2534
    %v2630 = vadd.f32 %v2275, %v2537
    %v2631 = vadd.f32 %v2276, %v2540
    %v2632 = vadd.f32 %v2277, %v2543
    %v2633 = vadd.f32 %v2278, %v2546
    %v2634 = vadd.f32 %v2279, %v2549
    %v2635 = vadd.f32 %v2280, %v2552
    %v2636 = vadd.f32 %v2281, %v2555
    %v2637 = vadd.f32 %v2282, %v2558
    %v2638 = vadd.f32 %v2283, %v2561
    %v2639 = vadd.f32 %v2284, %v2564
    %v2640 = vadd.f32 %v2285, %v2567
    %v2641 = vadd.f32 %v2286, %v2570
    %v2642 = vadd.f32 %v2287, %v2573
    %v2643 = vadd.f32 %v2288, %v2576
    %v2644 = vadd.f32 %v2289, %v2579
    %v2645 = vld [vmem:[%s2290 + $0x1] sm:$0xff]
    %v2646 = vld [vmem:[%s2290 + $0x9] sm:$0xff]
    %v2647 = vld [vmem:[%s2290 + $0x19] sm:$0xff]
    %v2648 = vld [vmem:[%s2290 + $0x21] sm:$0xff]
    %v2649 = vld [vmem:[%s2290 + $0x31] sm:$0xff]
    %v2650 = vld [vmem:[%s2290 + $0x39] sm:$0xff]
    %v2651 = vld [vmem:[%s2290 + $0x49] sm:$0xff]
    %v2652 = vld [vmem:[%s2290 + $0x51] sm:$0xff]
    %v2653 = vld [vmem:[%s2290 + $0x61] sm:$0xff]
    %v2654 = vld [vmem:[%s2290 + $0x69] sm:$0xff]
    %v2655 = vld [vmem:[%s2290 + $0x79] sm:$0xff]
    %v2656 = vld [vmem:[%s2290 + $0x81] sm:$0xff]
    %v2657 = vld [vmem:[%s2290 + $0x91] sm:$0xff]
    %v2658 = vld [vmem:[%s2290 + $0x99] sm:$0xff]
    %v2659 = vld [vmem:[%s2290 + $0xa9] sm:$0xff]
    %v2660 = vld [vmem:[%s2290 + $0xb1] sm:$0xff]
    %v2661 = vld [vmem:[%s2290 + $0xc1] sm:$0xff]
    %v2662 = vld [vmem:[%s2290 + $0xc9] sm:$0xff]
    %v2663 = vld [vmem:[%s2290 + $0xd9] sm:$0xff]
    %v2664 = vld [vmem:[%s2290 + $0xe1] sm:$0xff]
    %v2665 = vld [vmem:[%s2290 + $0xf1] sm:$0xff]
    %v2666 = vld [vmem:[%s2290 + $0xf9] sm:$0xff]
    %v2667 = vld [vmem:[%s2290 + $0x109] sm:$0xff]
    %v2668 = vld [vmem:[%s2290 + $0x111] sm:$0xff]
    %v2669 = vld [vmem:[%s2290 + $0x121] sm:$0xff]
    %v2670 = vld [vmem:[%s2290 + $0x129] sm:$0xff]
    %v2671 = vld [vmem:[%s2290 + $0x139] sm:$0xff]
    %v2672 = vld [vmem:[%s2290 + $0x141] sm:$0xff]
    %v2673 = vld [vmem:[%s2290 + $0x151] sm:$0xff]
    %v2674 = vld [vmem:[%s2290 + $0x159] sm:$0xff]
    %v2675 = vld [vmem:[%s2290 + $0x169] sm:$0xff]
    %v2676 = vld [vmem:[%s2290 + $0x171] sm:$0xff]
    %v2677 = vld [vmem:[%s2290 + $0x1b1] sm:$0xff]
    %v2678 = vld [vmem:[%s2290 + $0x1b9] sm:$0xff]
    %v2679 = vld [vmem:[%s2290 + $0x1c9] sm:$0xff]
    %v2680 = vld [vmem:[%s2290 + $0x1d1] sm:$0xff]
    %v2681 = vld [vmem:[%s2290 + $0x1e1] sm:$0xff]
    %v2682 = vld [vmem:[%s2290 + $0x1e9] sm:$0xff]
    %v2683 = vld [vmem:[%s2290 + $0x1f9] sm:$0xff]
    %v2684 = vld [vmem:[%s2290 + $0x201] sm:$0xff]
    %v2685 = vld [vmem:[%s2290 + $0x211] sm:$0xff]
    %v2686 = vld [vmem:[%s2290 + $0x219] sm:$0xff]
    %v2687 = vld [vmem:[%s2290 + $0x229] sm:$0xff]
    %v2688 = vld [vmem:[%s2290 + $0x231] sm:$0xff]
    %v2689 = vld [vmem:[%s2290 + $0x241] sm:$0xff]
    %v2690 = vld [vmem:[%s2290 + $0x249] sm:$0xff]
    %v2691 = vld [vmem:[%s2290 + $0x259] sm:$0xff]
    %v2692 = vld [vmem:[%s2290 + $0x261] sm:$0xff]
    %v2693 = vld [vmem:[%s2290 + $0x271] sm:$0xff]
    %v2694 = vld [vmem:[%s2290 + $0x279] sm:$0xff]
    %v2695 = vld [vmem:[%s2290 + $0x289] sm:$0xff]
    %v2696 = vld [vmem:[%s2290 + $0x291] sm:$0xff]
    %v2697 = vld [vmem:[%s2290 + $0x2a1] sm:$0xff]
    %v2698 = vld [vmem:[%s2290 + $0x2a9] sm:$0xff]
    %v2699 = vld [vmem:[%s2290 + $0x2b9] sm:$0xff]
    %v2700 = vld [vmem:[%s2290 + $0x2c1] sm:$0xff]
    %v2701 = vld [vmem:[%s2290 + $0x2d1] sm:$0xff]
    %v2702 = vld [vmem:[%s2290 + $0x2d9] sm:$0xff]
    %v2703 = vld [vmem:[%s2290 + $0x2e9] sm:$0xff]
    %v2704 = vld [vmem:[%s2290 + $0x2f1] sm:$0xff]
    %v2705 = vld [vmem:[%s2290 + $0x301] sm:$0xff]
    %v2706 = vld [vmem:[%s2290 + $0x309] sm:$0xff]
    %v2707 = vld [vmem:[%s2290 + $0x319] sm:$0xff]
    %v2708 = vld [vmem:[%s2290 + $0x321] sm:$0xff]
    %s2709 = scalar_lea.vmem [#allocation6], 896
    %v2710 = vld [vmem:[%s2709] sm:$0xff]
    %v2711 = vld [vmem:[%s2709 + $0x8] sm:$0xff]
    %v2712 = vld [vmem:[%s2709 + $0x10] sm:$0xff]
    %v2713 = vld [vmem:[%s2709 + $0x18] sm:$0xff]
    %v2714 = vld [vmem:[%s2709 + $0x20] sm:$0xff]
    %v2715 = vld [vmem:[%s2709 + $0x28] sm:$0xff]
    %v2716 = vld [vmem:[%s2709 + $0x30] sm:$0xff]
    %v2717 = vld [vmem:[%s2709 + $0x38] sm:$0xff]
    %v2718 = vld [vmem:[%s2709 + $0x40] sm:$0xff]
    %v2719 = vld [vmem:[%s2709 + $0x48] sm:$0xff]
    %v2720 = vld [vmem:[%s2709 + $0x50] sm:$0xff]
    %v2721 = vld [vmem:[%s2709 + $0x58] sm:$0xff]
    %v2722 = vld [vmem:[%s2709 + $0x60] sm:$0xff]
    %v2723 = vld [vmem:[%s2709 + $0x68] sm:$0xff]
    %v2724 = vld [vmem:[%s2709 + $0x70] sm:$0xff]
    %v2725 = vld [vmem:[%s2709 + $0x78] sm:$0xff]
    %2726 = vmatpush.msra.mxu0 %v2725
    %2727 = vmatpush.msra.mxu0 %v2724
    %2728 = vmatpush.msra.mxu0 %v2723
    %2729 = vmatpush.msra.mxu0 %v2722
    %2730 = vmatpush.msra.mxu0 %v2721
    %2731 = vmatpush.msra.mxu0 %v2720
    %2732 = vmatpush.msra.mxu0 %v2719
    %2733 = vmatpush.msra.mxu0 %v2718
    %2734 = vmatpush.msra.mxu0 %v2717
    %2735 = vmatpush.msra.mxu0 %v2716
    %2736 = vmatpush.msra.mxu0 %v2715
    %2737 = vmatpush.msra.mxu0 %v2714
    %2738 = vmatpush.msra.mxu0 %v2713
    %2739 = vmatpush.msra.mxu0 %v2712
    %2740 = vmatpush.msra.mxu0 %v2711
    %2741 = vmatpush.msra.mxu0 %v2710
    %2742 = vmatmul.f32.gmra.mxu0 %v2645
    %v2743 = vpop.f32.mrf.mxu0
    %v2744 = vadd.f32 0.0, %v2743
    %2745 = vmatmul.f32.gmra.mxu0 %v2646
    %v2746 = vpop.f32.mrf.mxu0
    %v2747 = vadd.f32 0.0, %v2746
    %2748 = vmatmul.f32.gmra.mxu0 %v2647
    %v2749 = vpop.f32.mrf.mxu0
    %v2750 = vadd.f32 0.0, %v2749
    %2751 = vmatmul.f32.gmra.mxu0 %v2648
    %v2752 = vpop.f32.mrf.mxu0
    %v2753 = vadd.f32 0.0, %v2752
    %2754 = vmatmul.f32.gmra.mxu0 %v2649
    %v2755 = vpop.f32.mrf.mxu0
    %v2756 = vadd.f32 0.0, %v2755
    %2757 = vmatmul.f32.gmra.mxu0 %v2650
    %v2758 = vpop.f32.mrf.mxu0
    %v2759 = vadd.f32 0.0, %v2758
    %2760 = vmatmul.f32.gmra.mxu0 %v2651
    %v2761 = vpop.f32.mrf.mxu0
    %v2762 = vadd.f32 0.0, %v2761
    %2763 = vmatmul.f32.gmra.mxu0 %v2652
    %v2764 = vpop.f32.mrf.mxu0
    %v2765 = vadd.f32 0.0, %v2764
    %2766 = vmatmul.f32.gmra.mxu0 %v2653
    %v2767 = vpop.f32.mrf.mxu0
    %v2768 = vadd.f32 0.0, %v2767
    %2769 = vmatmul.f32.gmra.mxu0 %v2654
    %v2770 = vpop.f32.mrf.mxu0
    %v2771 = vadd.f32 0.0, %v2770
    %2772 = vmatmul.f32.gmra.mxu0 %v2655
    %v2773 = vpop.f32.mrf.mxu0
    %v2774 = vadd.f32 0.0, %v2773
    %2775 = vmatmul.f32.gmra.mxu0 %v2656
    %v2776 = vpop.f32.mrf.mxu0
    %v2777 = vadd.f32 0.0, %v2776
    %2778 = vmatmul.f32.gmra.mxu0 %v2657
    %v2779 = vpop.f32.mrf.mxu0
    %v2780 = vadd.f32 0.0, %v2779
    %2781 = vmatmul.f32.gmra.mxu0 %v2658
    %v2782 = vpop.f32.mrf.mxu0
    %v2783 = vadd.f32 0.0, %v2782
    %2784 = vmatmul.f32.gmra.mxu0 %v2659
    %v2785 = vpop.f32.mrf.mxu0
    %v2786 = vadd.f32 0.0, %v2785
    %2787 = vmatmul.f32.gmra.mxu0 %v2660
    %v2788 = vpop.f32.mrf.mxu0
    %v2789 = vadd.f32 0.0, %v2788
    %2790 = vmatmul.f32.gmra.mxu0 %v2661
    %v2791 = vpop.f32.mrf.mxu0
    %v2792 = vadd.f32 0.0, %v2791
    %2793 = vmatmul.f32.gmra.mxu0 %v2662
    %v2794 = vpop.f32.mrf.mxu0
    %v2795 = vadd.f32 0.0, %v2794
    %2796 = vmatmul.f32.gmra.mxu0 %v2663
    %v2797 = vpop.f32.mrf.mxu0
    %v2798 = vadd.f32 0.0, %v2797
    %2799 = vmatmul.f32.gmra.mxu0 %v2664
    %v2800 = vpop.f32.mrf.mxu0
    %v2801 = vadd.f32 0.0, %v2800
    %2802 = vmatmul.f32.gmra.mxu0 %v2665
    %v2803 = vpop.f32.mrf.mxu0
    %v2804 = vadd.f32 0.0, %v2803
    %2805 = vmatmul.f32.gmra.mxu0 %v2666
    %v2806 = vpop.f32.mrf.mxu0
    %v2807 = vadd.f32 0.0, %v2806
    %2808 = vmatmul.f32.gmra.mxu0 %v2667
    %v2809 = vpop.f32.mrf.mxu0
    %v2810 = vadd.f32 0.0, %v2809
    %2811 = vmatmul.f32.gmra.mxu0 %v2668
    %v2812 = vpop.f32.mrf.mxu0
    %v2813 = vadd.f32 0.0, %v2812
    %2814 = vmatmul.f32.gmra.mxu0 %v2669
    %v2815 = vpop.f32.mrf.mxu0
    %v2816 = vadd.f32 0.0, %v2815
    %2817 = vmatmul.f32.gmra.mxu0 %v2670
    %v2818 = vpop.f32.mrf.mxu0
    %v2819 = vadd.f32 0.0, %v2818
    %2820 = vmatmul.f32.gmra.mxu0 %v2671
    %v2821 = vpop.f32.mrf.mxu0
    %v2822 = vadd.f32 0.0, %v2821
    %2823 = vmatmul.f32.gmra.mxu0 %v2672
    %v2824 = vpop.f32.mrf.mxu0
    %v2825 = vadd.f32 0.0, %v2824
    %2826 = vmatmul.f32.gmra.mxu0 %v2673
    %v2827 = vpop.f32.mrf.mxu0
    %v2828 = vadd.f32 0.0, %v2827
    %2829 = vmatmul.f32.gmra.mxu0 %v2674
    %v2830 = vpop.f32.mrf.mxu0
    %v2831 = vadd.f32 0.0, %v2830
    %2832 = vmatmul.f32.gmra.mxu0 %v2675
    %v2833 = vpop.f32.mrf.mxu0
    %v2834 = vadd.f32 0.0, %v2833
    %2835 = vmatmul.f32.gmra.mxu0 %v2676
    %v2836 = vpop.f32.mrf.mxu0
    %v2837 = vadd.f32 0.0, %v2836
    %2838 = vmatmul.f32.gmra.mxu0 %v2677
    %v2839 = vpop.f32.mrf.mxu0
    %v2840 = vadd.f32 0.0, %v2839
    %2841 = vmatmul.f32.gmra.mxu0 %v2678
    %v2842 = vpop.f32.mrf.mxu0
    %v2843 = vadd.f32 0.0, %v2842
    %2844 = vmatmul.f32.gmra.mxu0 %v2679
    %v2845 = vpop.f32.mrf.mxu0
    %v2846 = vadd.f32 0.0, %v2845
    %2847 = vmatmul.f32.gmra.mxu0 %v2680
    %v2848 = vpop.f32.mrf.mxu0
    %v2849 = vadd.f32 0.0, %v2848
    %2850 = vmatmul.f32.gmra.mxu0 %v2681
    %v2851 = vpop.f32.mrf.mxu0
    %v2852 = vadd.f32 0.0, %v2851
    %2853 = vmatmul.f32.gmra.mxu0 %v2682
    %v2854 = vpop.f32.mrf.mxu0
    %v2855 = vadd.f32 0.0, %v2854
    %2856 = vmatmul.f32.gmra.mxu0 %v2683
    %v2857 = vpop.f32.mrf.mxu0
    %v2858 = vadd.f32 0.0, %v2857
    %2859 = vmatmul.f32.gmra.mxu0 %v2684
    %v2860 = vpop.f32.mrf.mxu0
    %v2861 = vadd.f32 0.0, %v2860
    %2862 = vmatmul.f32.gmra.mxu0 %v2685
    %v2863 = vpop.f32.mrf.mxu0
    %v2864 = vadd.f32 0.0, %v2863
    %2865 = vmatmul.f32.gmra.mxu0 %v2686
    %v2866 = vpop.f32.mrf.mxu0
    %v2867 = vadd.f32 0.0, %v2866
    %2868 = vmatmul.f32.gmra.mxu0 %v2687
    %v2869 = vpop.f32.mrf.mxu0
    %v2870 = vadd.f32 0.0, %v2869
    %2871 = vmatmul.f32.gmra.mxu0 %v2688
    %v2872 = vpop.f32.mrf.mxu0
    %v2873 = vadd.f32 0.0, %v2872
    %2874 = vmatmul.f32.gmra.mxu0 %v2689
    %v2875 = vpop.f32.mrf.mxu0
    %v2876 = vadd.f32 0.0, %v2875
    %2877 = vmatmul.f32.gmra.mxu0 %v2690
    %v2878 = vpop.f32.mrf.mxu0
    %v2879 = vadd.f32 0.0, %v2878
    %2880 = vmatmul.f32.gmra.mxu0 %v2691
    %v2881 = vpop.f32.mrf.mxu0
    %v2882 = vadd.f32 0.0, %v2881
    %2883 = vmatmul.f32.gmra.mxu0 %v2692
    %v2884 = vpop.f32.mrf.mxu0
    %v2885 = vadd.f32 0.0, %v2884
    %2886 = vmatmul.f32.gmra.mxu0 %v2693
    %v2887 = vpop.f32.mrf.mxu0
    %v2888 = vadd.f32 0.0, %v2887
    %2889 = vmatmul.f32.gmra.mxu0 %v2694
    %v2890 = vpop.f32.mrf.mxu0
    %v2891 = vadd.f32 0.0, %v2890
    %2892 = vmatmul.f32.gmra.mxu0 %v2695
    %v2893 = vpop.f32.mrf.mxu0
    %v2894 = vadd.f32 0.0, %v2893
    %2895 = vmatmul.f32.gmra.mxu0 %v2696
    %v2896 = vpop.f32.mrf.mxu0
    %v2897 = vadd.f32 0.0, %v2896
    %2898 = vmatmul.f32.gmra.mxu0 %v2697
    %v2899 = vpop.f32.mrf.mxu0
    %v2900 = vadd.f32 0.0, %v2899
    %2901 = vmatmul.f32.gmra.mxu0 %v2698
    %v2902 = vpop.f32.mrf.mxu0
    %v2903 = vadd.f32 0.0, %v2902
    %2904 = vmatmul.f32.gmra.mxu0 %v2699
    %v2905 = vpop.f32.mrf.mxu0
    %v2906 = vadd.f32 0.0, %v2905
    %2907 = vmatmul.f32.gmra.mxu0 %v2700
    %v2908 = vpop.f32.mrf.mxu0
    %v2909 = vadd.f32 0.0, %v2908
    %2910 = vmatmul.f32.gmra.mxu0 %v2701
    %v2911 = vpop.f32.mrf.mxu0
    %v2912 = vadd.f32 0.0, %v2911
    %2913 = vmatmul.f32.gmra.mxu0 %v2702
    %v2914 = vpop.f32.mrf.mxu0
    %v2915 = vadd.f32 0.0, %v2914
    %2916 = vmatmul.f32.gmra.mxu0 %v2703
    %v2917 = vpop.f32.mrf.mxu0
    %v2918 = vadd.f32 0.0, %v2917
    %2919 = vmatmul.f32.gmra.mxu0 %v2704
    %v2920 = vpop.f32.mrf.mxu0
    %v2921 = vadd.f32 0.0, %v2920
    %2922 = vmatmul.f32.gmra.mxu0 %v2705
    %v2923 = vpop.f32.mrf.mxu0
    %v2924 = vadd.f32 0.0, %v2923
    %2925 = vmatmul.f32.gmra.mxu0 %v2706
    %v2926 = vpop.f32.mrf.mxu0
    %v2927 = vadd.f32 0.0, %v2926
    %2928 = vmatmul.f32.gmra.mxu0 %v2707
    %v2929 = vpop.f32.mrf.mxu0
    %v2930 = vadd.f32 0.0, %v2929
    %2931 = vmatmul.f32.gmra.mxu0 %v2708
    %v2932 = vpop.f32.mrf.mxu0
    %v2933 = vadd.f32 0.0, %v2932
    %2934 = vdwg.mxu0
    %v2935 = vadd.f32 %v2581, %v2744
    %v2936 = vadd.f32 %v2582, %v2747
    %v2937 = vadd.f32 %v2583, %v2750
    %v2938 = vadd.f32 %v2584, %v2753
    %v2939 = vadd.f32 %v2585, %v2756
    %v2940 = vadd.f32 %v2586, %v2759
    %v2941 = vadd.f32 %v2587, %v2762
    %v2942 = vadd.f32 %v2588, %v2765
    %v2943 = vadd.f32 %v2589, %v2768
    %v2944 = vadd.f32 %v2590, %v2771
    %v2945 = vadd.f32 %v2591, %v2774
    %v2946 = vadd.f32 %v2592, %v2777
    %v2947 = vadd.f32 %v2593, %v2780
    %v2948 = vadd.f32 %v2594, %v2783
    %v2949 = vadd.f32 %v2595, %v2786
    %v2950 = vadd.f32 %v2596, %v2789
    %v2951 = vadd.f32 %v2597, %v2792
    %v2952 = vadd.f32 %v2598, %v2795
    %v2953 = vadd.f32 %v2599, %v2798
    %v2954 = vadd.f32 %v2600, %v2801
    %v2955 = vadd.f32 %v2601, %v2804
    %v2956 = vadd.f32 %v2602, %v2807
    %v2957 = vadd.f32 %v2603, %v2810
    %v2958 = vadd.f32 %v2604, %v2813
    %v2959 = vadd.f32 %v2605, %v2816
    %v2960 = vadd.f32 %v2606, %v2819
    %v2961 = vadd.f32 %v2607, %v2822
    %v2962 = vadd.f32 %v2608, %v2825
    %v2963 = vadd.f32 %v2609, %v2828
    %v2964 = vadd.f32 %v2610, %v2831
    %v2965 = vadd.f32 %v2611, %v2834
    %v2966 = vadd.f32 %v2612, %v2837
    %v2967 = vadd.f32 %v2613, %v2840
    %v2968 = vadd.f32 %v2614, %v2843
    %v2969 = vadd.f32 %v2615, %v2846
    %v2970 = vadd.f32 %v2616, %v2849
    %v2971 = vadd.f32 %v2617, %v2852
    %v2972 = vadd.f32 %v2618, %v2855
    %v2973 = vadd.f32 %v2619, %v2858
    %v2974 = vadd.f32 %v2620, %v2861
    %v2975 = vadd.f32 %v2621, %v2864
    %v2976 = vadd.f32 %v2622, %v2867
    %v2977 = vadd.f32 %v2623, %v2870
    %v2978 = vadd.f32 %v2624, %v2873
    %v2979 = vadd.f32 %v2625, %v2876
    %v2980 = vadd.f32 %v2626, %v2879
    %v2981 = vadd.f32 %v2627, %v2882
    %v2982 = vadd.f32 %v2628, %v2885
    %v2983 = vadd.f32 %v2629, %v2888
    %v2984 = vadd.f32 %v2630, %v2891
    %v2985 = vadd.f32 %v2631, %v2894
    %v2986 = vadd.f32 %v2632, %v2897
    %v2987 = vadd.f32 %v2633, %v2900
    %v2988 = vadd.f32 %v2634, %v2903
    %v2989 = vadd.f32 %v2635, %v2906
    %v2990 = vadd.f32 %v2636, %v2909
    %v2991 = vadd.f32 %v2637, %v2912
    %v2992 = vadd.f32 %v2638, %v2915
    %v2993 = vadd.f32 %v2639, %v2918
    %v2994 = vadd.f32 %v2640, %v2921
    %v2995 = vadd.f32 %v2641, %v2924
    %v2996 = vadd.f32 %v2642, %v2927
    %v2997 = vadd.f32 %v2643, %v2930
    %v2998 = vadd.f32 %v2644, %v2933
    %v2999 = vld [vmem:[%s2290 + $0x2] sm:$0xff]
    %v3000 = vld [vmem:[%s2290 + $0xa] sm:$0xff]
    %v3001 = vld [vmem:[%s2290 + $0x1a] sm:$0xff]
    %v3002 = vld [vmem:[%s2290 + $0x22] sm:$0xff]
    %v3003 = vld [vmem:[%s2290 + $0x32] sm:$0xff]
    %v3004 = vld [vmem:[%s2290 + $0x3a] sm:$0xff]
    %v3005 = vld [vmem:[%s2290 + $0x4a] sm:$0xff]
    %v3006 = vld [vmem:[%s2290 + $0x52] sm:$0xff]
    %v3007 = vld [vmem:[%s2290 + $0x62] sm:$0xff]
    %v3008 = vld [vmem:[%s2290 + $0x6a] sm:$0xff]
    %v3009 = vld [vmem:[%s2290 + $0x7a] sm:$0xff]
    %v3010 = vld [vmem:[%s2290 + $0x82] sm:$0xff]
    %v3011 = vld [vmem:[%s2290 + $0x92] sm:$0xff]
    %v3012 = vld [vmem:[%s2290 + $0x9a] sm:$0xff]
    %v3013 = vld [vmem:[%s2290 + $0xaa] sm:$0xff]
    %v3014 = vld [vmem:[%s2290 + $0xb2] sm:$0xff]
    %v3015 = vld [vmem:[%s2290 + $0xc2] sm:$0xff]
    %v3016 = vld [vmem:[%s2290 + $0xca] sm:$0xff]
    %v3017 = vld [vmem:[%s2290 + $0xda] sm:$0xff]
    %v3018 = vld [vmem:[%s2290 + $0xe2] sm:$0xff]
    %v3019 = vld [vmem:[%s2290 + $0xf2] sm:$0xff]
    %v3020 = vld [vmem:[%s2290 + $0xfa] sm:$0xff]
    %v3021 = vld [vmem:[%s2290 + $0x10a] sm:$0xff]
    %v3022 = vld [vmem:[%s2290 + $0x112] sm:$0xff]
    %v3023 = vld [vmem:[%s2290 + $0x122] sm:$0xff]
    %v3024 = vld [vmem:[%s2290 + $0x12a] sm:$0xff]
    %v3025 = vld [vmem:[%s2290 + $0x13a] sm:$0xff]
    %v3026 = vld [vmem:[%s2290 + $0x142] sm:$0xff]
    %v3027 = vld [vmem:[%s2290 + $0x152] sm:$0xff]
    %v3028 = vld [vmem:[%s2290 + $0x15a] sm:$0xff]
    %v3029 = vld [vmem:[%s2290 + $0x16a] sm:$0xff]
    %v3030 = vld [vmem:[%s2290 + $0x172] sm:$0xff]
    %v3031 = vld [vmem:[%s2290 + $0x1b2] sm:$0xff]
    %v3032 = vld [vmem:[%s2290 + $0x1ba] sm:$0xff]
    %v3033 = vld [vmem:[%s2290 + $0x1ca] sm:$0xff]
    %v3034 = vld [vmem:[%s2290 + $0x1d2] sm:$0xff]
    %v3035 = vld [vmem:[%s2290 + $0x1e2] sm:$0xff]
    %v3036 = vld [vmem:[%s2290 + $0x1ea] sm:$0xff]
    %v3037 = vld [vmem:[%s2290 + $0x1fa] sm:$0xff]
    %v3038 = vld [vmem:[%s2290 + $0x202] sm:$0xff]
    %v3039 = vld [vmem:[%s2290 + $0x212] sm:$0xff]
    %v3040 = vld [vmem:[%s2290 + $0x21a] sm:$0xff]
    %v3041 = vld [vmem:[%s2290 + $0x22a] sm:$0xff]
    %v3042 = vld [vmem:[%s2290 + $0x232] sm:$0xff]
    %v3043 = vld [vmem:[%s2290 + $0x242] sm:$0xff]
    %v3044 = vld [vmem:[%s2290 + $0x24a] sm:$0xff]
    %v3045 = vld [vmem:[%s2290 + $0x25a] sm:$0xff]
    %v3046 = vld [vmem:[%s2290 + $0x262] sm:$0xff]
    %v3047 = vld [vmem:[%s2290 + $0x272] sm:$0xff]
    %v3048 = vld [vmem:[%s2290 + $0x27a] sm:$0xff]
    %v3049 = vld [vmem:[%s2290 + $0x28a] sm:$0xff]
    %v3050 = vld [vmem:[%s2290 + $0x292] sm:$0xff]
    %v3051 = vld [vmem:[%s2290 + $0x2a2] sm:$0xff]
    %v3052 = vld [vmem:[%s2290 + $0x2aa] sm:$0xff]
    %v3053 = vld [vmem:[%s2290 + $0x2ba] sm:$0xff]
    %v3054 = vld [vmem:[%s2290 + $0x2c2] sm:$0xff]
    %v3055 = vld [vmem:[%s2290 + $0x2d2] sm:$0xff]
    %v3056 = vld [vmem:[%s2290 + $0x2da] sm:$0xff]
    %v3057 = vld [vmem:[%s2290 + $0x2ea] sm:$0xff]
    %v3058 = vld [vmem:[%s2290 + $0x2f2] sm:$0xff]
    %v3059 = vld [vmem:[%s2290 + $0x302] sm:$0xff]
    %v3060 = vld [vmem:[%s2290 + $0x30a] sm:$0xff]
    %v3061 = vld [vmem:[%s2290 + $0x31a] sm:$0xff]
    %v3062 = vld [vmem:[%s2290 + $0x322] sm:$0xff]
    %s3063 = scalar_lea.vmem [#allocation6], 1024
    %v3064 = vld [vmem:[%s3063] sm:$0xff]
    %v3065 = vld [vmem:[%s3063 + $0x8] sm:$0xff]
    %v3066 = vld [vmem:[%s3063 + $0x10] sm:$0xff]
    %v3067 = vld [vmem:[%s3063 + $0x18] sm:$0xff]
    %v3068 = vld [vmem:[%s3063 + $0x20] sm:$0xff]
    %v3069 = vld [vmem:[%s3063 + $0x28] sm:$0xff]
    %v3070 = vld [vmem:[%s3063 + $0x30] sm:$0xff]
    %v3071 = vld [vmem:[%s3063 + $0x38] sm:$0xff]
    %v3072 = vld [vmem:[%s3063 + $0x40] sm:$0xff]
    %v3073 = vld [vmem:[%s3063 + $0x48] sm:$0xff]
    %v3074 = vld [vmem:[%s3063 + $0x50] sm:$0xff]
    %v3075 = vld [vmem:[%s3063 + $0x58] sm:$0xff]
    %v3076 = vld [vmem:[%s3063 + $0x60] sm:$0xff]
    %v3077 = vld [vmem:[%s3063 + $0x68] sm:$0xff]
    %v3078 = vld [vmem:[%s3063 + $0x70] sm:$0xff]
    %v3079 = vld [vmem:[%s3063 + $0x78] sm:$0xff]
    %3080 = vmatpush.msra.mxu0 %v3079
    %3081 = vmatpush.msra.mxu0 %v3078
    %3082 = vmatpush.msra.mxu0 %v3077
    %3083 = vmatpush.msra.mxu0 %v3076
    %3084 = vmatpush.msra.mxu0 %v3075
    %3085 = vmatpush.msra.mxu0 %v3074
    %3086 = vmatpush.msra.mxu0 %v3073
    %3087 = vmatpush.msra.mxu0 %v3072
    %3088 = vmatpush.msra.mxu0 %v3071
    %3089 = vmatpush.msra.mxu0 %v3070
    %3090 = vmatpush.msra.mxu0 %v3069
    %3091 = vmatpush.msra.mxu0 %v3068
    %3092 = vmatpush.msra.mxu0 %v3067
    %3093 = vmatpush.msra.mxu0 %v3066
    %3094 = vmatpush.msra.mxu0 %v3065
    %3095 = vmatpush.msra.mxu0 %v3064
    %3096 = vmatmul.f32.gmra.mxu0 %v2999
    %v3097 = vpop.f32.mrf.mxu0
    %v3098 = vadd.f32 0.0, %v3097
    %3099 = vmatmul.f32.gmra.mxu0 %v3000
    %v3100 = vpop.f32.mrf.mxu0
    %v3101 = vadd.f32 0.0, %v3100
    %3102 = vmatmul.f32.gmra.mxu0 %v3001
    %v3103 = vpop.f32.mrf.mxu0
    %v3104 = vadd.f32 0.0, %v3103
    %3105 = vmatmul.f32.gmra.mxu0 %v3002
    %v3106 = vpop.f32.mrf.mxu0
    %v3107 = vadd.f32 0.0, %v3106
    %3108 = vmatmul.f32.gmra.mxu0 %v3003
    %v3109 = vpop.f32.mrf.mxu0
    %v3110 = vadd.f32 0.0, %v3109
    %3111 = vmatmul.f32.gmra.mxu0 %v3004
    %v3112 = vpop.f32.mrf.mxu0
    %v3113 = vadd.f32 0.0, %v3112
    %3114 = vmatmul.f32.gmra.mxu0 %v3005
    %v3115 = vpop.f32.mrf.mxu0
    %v3116 = vadd.f32 0.0, %v3115
    %3117 = vmatmul.f32.gmra.mxu0 %v3006
    %v3118 = vpop.f32.mrf.mxu0
    %v3119 = vadd.f32 0.0, %v3118
    %3120 = vmatmul.f32.gmra.mxu0 %v3007
    %v3121 = vpop.f32.mrf.mxu0
    %v3122 = vadd.f32 0.0, %v3121
    %3123 = vmatmul.f32.gmra.mxu0 %v3008
    %v3124 = vpop.f32.mrf.mxu0
    %v3125 = vadd.f32 0.0, %v3124
    %3126 = vmatmul.f32.gmra.mxu0 %v3009
    %v3127 = vpop.f32.mrf.mxu0
    %v3128 = vadd.f32 0.0, %v3127
    %3129 = vmatmul.f32.gmra.mxu0 %v3010
    %v3130 = vpop.f32.mrf.mxu0
    %v3131 = vadd.f32 0.0, %v3130
    %3132 = vmatmul.f32.gmra.mxu0 %v3011
    %v3133 = vpop.f32.mrf.mxu0
    %v3134 = vadd.f32 0.0, %v3133
    %3135 = vmatmul.f32.gmra.mxu0 %v3012
    %v3136 = vpop.f32.mrf.mxu0
    %v3137 = vadd.f32 0.0, %v3136
    %3138 = vmatmul.f32.gmra.mxu0 %v3013
    %v3139 = vpop.f32.mrf.mxu0
    %v3140 = vadd.f32 0.0, %v3139
    %3141 = vmatmul.f32.gmra.mxu0 %v3014
    %v3142 = vpop.f32.mrf.mxu0
    %v3143 = vadd.f32 0.0, %v3142
    %3144 = vmatmul.f32.gmra.mxu0 %v3015
    %v3145 = vpop.f32.mrf.mxu0
    %v3146 = vadd.f32 0.0, %v3145
    %3147 = vmatmul.f32.gmra.mxu0 %v3016
    %v3148 = vpop.f32.mrf.mxu0
    %v3149 = vadd.f32 0.0, %v3148
    %3150 = vmatmul.f32.gmra.mxu0 %v3017
    %v3151 = vpop.f32.mrf.mxu0
    %v3152 = vadd.f32 0.0, %v3151
    %3153 = vmatmul.f32.gmra.mxu0 %v3018
    %v3154 = vpop.f32.mrf.mxu0
    %v3155 = vadd.f32 0.0, %v3154
    %3156 = vmatmul.f32.gmra.mxu0 %v3019
    %v3157 = vpop.f32.mrf.mxu0
    %v3158 = vadd.f32 0.0, %v3157
    %3159 = vmatmul.f32.gmra.mxu0 %v3020
    %v3160 = vpop.f32.mrf.mxu0
    %v3161 = vadd.f32 0.0, %v3160
    %3162 = vmatmul.f32.gmra.mxu0 %v3021
    %v3163 = vpop.f32.mrf.mxu0
    %v3164 = vadd.f32 0.0, %v3163
    %3165 = vmatmul.f32.gmra.mxu0 %v3022
    %v3166 = vpop.f32.mrf.mxu0
    %v3167 = vadd.f32 0.0, %v3166
    %3168 = vmatmul.f32.gmra.mxu0 %v3023
    %v3169 = vpop.f32.mrf.mxu0
    %v3170 = vadd.f32 0.0, %v3169
    %3171 = vmatmul.f32.gmra.mxu0 %v3024
    %v3172 = vpop.f32.mrf.mxu0
    %v3173 = vadd.f32 0.0, %v3172
    %3174 = vmatmul.f32.gmra.mxu0 %v3025
    %v3175 = vpop.f32.mrf.mxu0
    %v3176 = vadd.f32 0.0, %v3175
    %3177 = vmatmul.f32.gmra.mxu0 %v3026
    %v3178 = vpop.f32.mrf.mxu0
    %v3179 = vadd.f32 0.0, %v3178
    %3180 = vmatmul.f32.gmra.mxu0 %v3027
    %v3181 = vpop.f32.mrf.mxu0
    %v3182 = vadd.f32 0.0, %v3181
    %3183 = vmatmul.f32.gmra.mxu0 %v3028
    %v3184 = vpop.f32.mrf.mxu0
    %v3185 = vadd.f32 0.0, %v3184
    %3186 = vmatmul.f32.gmra.mxu0 %v3029
    %v3187 = vpop.f32.mrf.mxu0
    %v3188 = vadd.f32 0.0, %v3187
    %3189 = vmatmul.f32.gmra.mxu0 %v3030
    %v3190 = vpop.f32.mrf.mxu0
    %v3191 = vadd.f32 0.0, %v3190
    %3192 = vmatmul.f32.gmra.mxu0 %v3031
    %v3193 = vpop.f32.mrf.mxu0
    %v3194 = vadd.f32 0.0, %v3193
    %3195 = vmatmul.f32.gmra.mxu0 %v3032
    %v3196 = vpop.f32.mrf.mxu0
    %v3197 = vadd.f32 0.0, %v3196
    %3198 = vmatmul.f32.gmra.mxu0 %v3033
    %v3199 = vpop.f32.mrf.mxu0
    %v3200 = vadd.f32 0.0, %v3199
    %3201 = vmatmul.f32.gmra.mxu0 %v3034
    %v3202 = vpop.f32.mrf.mxu0
    %v3203 = vadd.f32 0.0, %v3202
    %3204 = vmatmul.f32.gmra.mxu0 %v3035
    %v3205 = vpop.f32.mrf.mxu0
    %v3206 = vadd.f32 0.0, %v3205
    %3207 = vmatmul.f32.gmra.mxu0 %v3036
    %v3208 = vpop.f32.mrf.mxu0
    %v3209 = vadd.f32 0.0, %v3208
    %3210 = vmatmul.f32.gmra.mxu0 %v3037
    %v3211 = vpop.f32.mrf.mxu0
    %v3212 = vadd.f32 0.0, %v3211
    %3213 = vmatmul.f32.gmra.mxu0 %v3038
    %v3214 = vpop.f32.mrf.mxu0
    %v3215 = vadd.f32 0.0, %v3214
    %3216 = vmatmul.f32.gmra.mxu0 %v3039
    %v3217 = vpop.f32.mrf.mxu0
    %v3218 = vadd.f32 0.0, %v3217
    %3219 = vmatmul.f32.gmra.mxu0 %v3040
    %v3220 = vpop.f32.mrf.mxu0
    %v3221 = vadd.f32 0.0, %v3220
    %3222 = vmatmul.f32.gmra.mxu0 %v3041
    %v3223 = vpop.f32.mrf.mxu0
    %v3224 = vadd.f32 0.0, %v3223
    %3225 = vmatmul.f32.gmra.mxu0 %v3042
    %v3226 = vpop.f32.mrf.mxu0
    %v3227 = vadd.f32 0.0, %v3226
    %3228 = vmatmul.f32.gmra.mxu0 %v3043
    %v3229 = vpop.f32.mrf.mxu0
    %v3230 = vadd.f32 0.0, %v3229
    %3231 = vmatmul.f32.gmra.mxu0 %v3044
    %v3232 = vpop.f32.mrf.mxu0
    %v3233 = vadd.f32 0.0, %v3232
    %3234 = vmatmul.f32.gmra.mxu0 %v3045
    %v3235 = vpop.f32.mrf.mxu0
    %v3236 = vadd.f32 0.0, %v3235
    %3237 = vmatmul.f32.gmra.mxu0 %v3046
    %v3238 = vpop.f32.mrf.mxu0
    %v3239 = vadd.f32 0.0, %v3238
    %3240 = vmatmul.f32.gmra.mxu0 %v3047
    %v3241 = vpop.f32.mrf.mxu0
    %v3242 = vadd.f32 0.0, %v3241
    %3243 = vmatmul.f32.gmra.mxu0 %v3048
    %v3244 = vpop.f32.mrf.mxu0
    %v3245 = vadd.f32 0.0, %v3244
    %3246 = vmatmul.f32.gmra.mxu0 %v3049
    %v3247 = vpop.f32.mrf.mxu0
    %v3248 = vadd.f32 0.0, %v3247
    %3249 = vmatmul.f32.gmra.mxu0 %v3050
    %v3250 = vpop.f32.mrf.mxu0
    %v3251 = vadd.f32 0.0, %v3250
    %3252 = vmatmul.f32.gmra.mxu0 %v3051
    %v3253 = vpop.f32.mrf.mxu0
    %v3254 = vadd.f32 0.0, %v3253
    %3255 = vmatmul.f32.gmra.mxu0 %v3052
    %v3256 = vpop.f32.mrf.mxu0
    %v3257 = vadd.f32 0.0, %v3256
    %3258 = vmatmul.f32.gmra.mxu0 %v3053
    %v3259 = vpop.f32.mrf.mxu0
    %v3260 = vadd.f32 0.0, %v3259
    %3261 = vmatmul.f32.gmra.mxu0 %v3054
    %v3262 = vpop.f32.mrf.mxu0
    %v3263 = vadd.f32 0.0, %v3262
    %3264 = vmatmul.f32.gmra.mxu0 %v3055
    %v3265 = vpop.f32.mrf.mxu0
    %v3266 = vadd.f32 0.0, %v3265
    %3267 = vmatmul.f32.gmra.mxu0 %v3056
    %v3268 = vpop.f32.mrf.mxu0
    %v3269 = vadd.f32 0.0, %v3268
    %3270 = vmatmul.f32.gmra.mxu0 %v3057
    %v3271 = vpop.f32.mrf.mxu0
    %v3272 = vadd.f32 0.0, %v3271
    %3273 = vmatmul.f32.gmra.mxu0 %v3058
    %v3274 = vpop.f32.mrf.mxu0
    %v3275 = vadd.f32 0.0, %v3274
    %3276 = vmatmul.f32.gmra.mxu0 %v3059
    %v3277 = vpop.f32.mrf.mxu0
    %v3278 = vadd.f32 0.0, %v3277
    %3279 = vmatmul.f32.gmra.mxu0 %v3060
    %v3280 = vpop.f32.mrf.mxu0
    %v3281 = vadd.f32 0.0, %v3280
    %3282 = vmatmul.f32.gmra.mxu0 %v3061
    %v3283 = vpop.f32.mrf.mxu0
    %v3284 = vadd.f32 0.0, %v3283
    %3285 = vmatmul.f32.gmra.mxu0 %v3062
    %v3286 = vpop.f32.mrf.mxu0
    %v3287 = vadd.f32 0.0, %v3286
    %3288 = vdwg.mxu0
    %v3289 = vadd.f32 %v2935, %v3098
    %v3290 = vadd.f32 %v2936, %v3101
    %v3291 = vadd.f32 %v2937, %v3104
    %v3292 = vadd.f32 %v2938, %v3107
    %v3293 = vadd.f32 %v2939, %v3110
    %v3294 = vadd.f32 %v2940, %v3113
    %v3295 = vadd.f32 %v2941, %v3116
    %v3296 = vadd.f32 %v2942, %v3119
    %v3297 = vadd.f32 %v2943, %v3122
    %v3298 = vadd.f32 %v2944, %v3125
    %v3299 = vadd.f32 %v2945, %v3128
    %v3300 = vadd.f32 %v2946, %v3131
    %v3301 = vadd.f32 %v2947, %v3134
    %v3302 = vadd.f32 %v2948, %v3137
    %v3303 = vadd.f32 %v2949, %v3140
    %v3304 = vadd.f32 %v2950, %v3143
    %v3305 = vadd.f32 %v2951, %v3146
    %v3306 = vadd.f32 %v2952, %v3149
    %v3307 = vadd.f32 %v2953, %v3152
    %v3308 = vadd.f32 %v2954, %v3155
    %v3309 = vadd.f32 %v2955, %v3158
    %v3310 = vadd.f32 %v2956, %v3161
    %v3311 = vadd.f32 %v2957, %v3164
    %v3312 = vadd.f32 %v2958, %v3167
    %v3313 = vadd.f32 %v2959, %v3170
    %v3314 = vadd.f32 %v2960, %v3173
    %v3315 = vadd.f32 %v2961, %v3176
    %v3316 = vadd.f32 %v2962, %v3179
    %v3317 = vadd.f32 %v2963, %v3182
    %v3318 = vadd.f32 %v2964, %v3185
    %v3319 = vadd.f32 %v2965, %v3188
    %v3320 = vadd.f32 %v2966, %v3191
    %v3321 = vadd.f32 %v2967, %v3194
    %v3322 = vadd.f32 %v2968, %v3197
    %v3323 = vadd.f32 %v2969, %v3200
    %v3324 = vadd.f32 %v2970, %v3203
    %v3325 = vadd.f32 %v2971, %v3206
    %v3326 = vadd.f32 %v2972, %v3209
    %v3327 = vadd.f32 %v2973, %v3212
    %v3328 = vadd.f32 %v2974, %v3215
    %v3329 = vadd.f32 %v2975, %v3218
    %v3330 = vadd.f32 %v2976, %v3221
    %v3331 = vadd.f32 %v2977, %v3224
    %v3332 = vadd.f32 %v2978, %v3227
    %v3333 = vadd.f32 %v2979, %v3230
    %v3334 = vadd.f32 %v2980, %v3233
    %v3335 = vadd.f32 %v2981, %v3236
    %v3336 = vadd.f32 %v2982, %v3239
    %v3337 = vadd.f32 %v2983, %v3242
    %v3338 = vadd.f32 %v2984, %v3245
    %v3339 = vadd.f32 %v2985, %v3248
    %v3340 = vadd.f32 %v2986, %v3251
    %v3341 = vadd.f32 %v2987, %v3254
    %v3342 = vadd.f32 %v2988, %v3257
    %v3343 = vadd.f32 %v2989, %v3260
    %v3344 = vadd.f32 %v2990, %v3263
    %v3345 = vadd.f32 %v2991, %v3266
    %v3346 = vadd.f32 %v2992, %v3269
    %v3347 = vadd.f32 %v2993, %v3272
    %v3348 = vadd.f32 %v2994, %v3275
    %v3349 = vadd.f32 %v2995, %v3278
    %v3350 = vadd.f32 %v2996, %v3281
    %v3351 = vadd.f32 %v2997, %v3284
    %v3352 = vadd.f32 %v2998, %v3287
    %v3353 = vadd.f32 %v3289, %v3290
    %v3354 = vadd.f32 %v3353, %v3291
    %v3355 = vadd.f32 %v3354, %v3292
    %v3356 = vadd.f32 %v3355, %v3293
    %v3357 = vadd.f32 %v3356, %v3294
    %v3358 = vadd.f32 %v3357, %v3295
    %v3359 = vadd.f32 %v3358, %v3296
    %v3360 = vadd.f32 %v3359, %v3297
    %v3361 = vadd.f32 %v3360, %v3298
    %v3362 = vadd.f32 %v3361, %v3299
    %v3363 = vadd.f32 %v3362, %v3300
    %v3364 = vadd.f32 %v3363, %v3301
    %v3365 = vadd.f32 %v3364, %v3302
    %v3366 = vadd.f32 %v3365, %v3303
    %v3367 = vadd.f32 %v3366, %v3304
    %v3368 = vadd.f32 %v3367, %v3305
    %v3369 = vadd.f32 %v3368, %v3306
    %v3370 = vadd.f32 %v3369, %v3307
    %v3371 = vadd.f32 %v3370, %v3308
    %v3372 = vadd.f32 %v3371, %v3309
    %v3373 = vadd.f32 %v3372, %v3310
    %v3374 = vadd.f32 %v3373, %v3311
    %v3375 = vadd.f32 %v3374, %v3312
    %v3376 = vadd.f32 %v3375, %v3313
    %v3377 = vadd.f32 %v3376, %v3314
    %v3378 = vadd.f32 %v3377, %v3315
    %v3379 = vadd.f32 %v3378, %v3316
    %v3380 = vadd.f32 %v3379, %v3317
    %v3381 = vadd.f32 %v3380, %v3318
    %v3382 = vadd.f32 %v3381, %v3319
    %v3383 = vadd.f32 %v3382, %v3320
    %v3384 = vadd.f32 %v3383, %v3321
    %v3385 = vadd.f32 %v3384, %v3322
    %v3386 = vadd.f32 %v3385, %v3323
    %v3387 = vadd.f32 %v3386, %v3324
    %v3388 = vadd.f32 %v3387, %v3325
    %v3389 = vadd.f32 %v3388, %v3326
    %v3390 = vadd.f32 %v3389, %v3327
    %v3391 = vadd.f32 %v3390, %v3328
    %v3392 = vadd.f32 %v3391, %v3329
    %v3393 = vadd.f32 %v3392, %v3330
    %v3394 = vadd.f32 %v3393, %v3331
    %v3395 = vadd.f32 %v3394, %v3332
    %v3396 = vadd.f32 %v3395, %v3333
    %v3397 = vadd.f32 %v3396, %v3334
    %v3398 = vadd.f32 %v3397, %v3335
    %v3399 = vadd.f32 %v3398, %v3336
    %v3400 = vadd.f32 %v3399, %v3337
    %v3401 = vadd.f32 %v3400, %v3338
    %v3402 = vadd.f32 %v3401, %v3339
    %v3403 = vadd.f32 %v3402, %v3340
    %v3404 = vadd.f32 %v3403, %v3341
    %v3405 = vadd.f32 %v3404, %v3342
    %v3406 = vadd.f32 %v3405, %v3343
    %v3407 = vadd.f32 %v3406, %v3344
    %v3408 = vadd.f32 %v3407, %v3345
    %v3409 = vadd.f32 %v3408, %v3346
    %v3410 = vadd.f32 %v3409, %v3347
    %v3411 = vadd.f32 %v3410, %v3348
    %v3412 = vadd.f32 %v3411, %v3349
    %v3413 = vadd.f32 %v3412, %v3350
    %v3414 = vadd.f32 %v3413, %v3351
    %v3415 = vadd.f32 %v3414, %v3352
    %v3416 = vrot.slane %v3415, 4
    %v3417 = vadd.f32 %v3415, %v3416
    %v3418 = vrot.slane %v3417, 2
    %v3419 = vadd.f32 %v3417, %v3418
    %v3420 = vrot.slane %v3419, 1
    %v3421 = vadd.f32 %v3419, %v3420
    %v3422 = vrcp.pop 512.0
    %v3423 = vmul.f32 512.0, %v3422
    %v3424 = vsub.f32 1.0, %v3423
    %v3425 = vmul.f32 %v3422, %v3424
    %v3426 = vadd.f32 %v3422, %v3425
    %vm3427 = vweird.f32 %v3422
    %v3428 = vsel %vm3427, %v3422, %v3426
    %v3429 = vmul.f32 %v3421, %v3428
    %v3430 = vmul.f32 %v3289, %v3289
    %v3431 = vmul.f32 %v3290, %v3290
    %v3432 = vmul.f32 %v3291, %v3291
    %v3433 = vmul.f32 %v3292, %v3292
    %v3434 = vmul.f32 %v3293, %v3293
    %v3435 = vmul.f32 %v3294, %v3294
    %v3436 = vmul.f32 %v3295, %v3295
    %v3437 = vmul.f32 %v3296, %v3296
    %v3438 = vmul.f32 %v3297, %v3297
    %v3439 = vmul.f32 %v3298, %v3298
    %v3440 = vmul.f32 %v3299, %v3299
    %v3441 = vmul.f32 %v3300, %v3300
    %v3442 = vmul.f32 %v3301, %v3301
    %v3443 = vmul.f32 %v3302, %v3302
    %v3444 = vmul.f32 %v3303, %v3303
    %v3445 = vmul.f32 %v3304, %v3304
    %v3446 = vmul.f32 %v3305, %v3305
    %v3447 = vmul.f32 %v3306, %v3306
    %v3448 = vmul.f32 %v3307, %v3307
    %v3449 = vmul.f32 %v3308, %v3308
    %v3450 = vmul.f32 %v3309, %v3309
    %v3451 = vmul.f32 %v3310, %v3310
    %v3452 = vmul.f32 %v3311, %v3311
    %v3453 = vmul.f32 %v3312, %v3312
    %v3454 = vmul.f32 %v3313, %v3313
    %v3455 = vmul.f32 %v3314, %v3314
    %v3456 = vmul.f32 %v3315, %v3315
    %v3457 = vmul.f32 %v3316, %v3316
    %v3458 = vmul.f32 %v3317, %v3317
    %v3459 = vmul.f32 %v3318, %v3318
    %v3460 = vmul.f32 %v3319, %v3319
    %v3461 = vmul.f32 %v3320, %v3320
    %v3462 = vmul.f32 %v3321, %v3321
    %v3463 = vmul.f32 %v3322, %v3322
    %v3464 = vmul.f32 %v3323, %v3323
    %v3465 = vmul.f32 %v3324, %v3324
    %v3466 = vmul.f32 %v3325, %v3325
    %v3467 = vmul.f32 %v3326, %v3326
    %v3468 = vmul.f32 %v3327, %v3327
    %v3469 = vmul.f32 %v3328, %v3328
    %v3470 = vmul.f32 %v3329, %v3329
    %v3471 = vmul.f32 %v3330, %v3330
    %v3472 = vmul.f32 %v3331, %v3331
    %v3473 = vmul.f32 %v3332, %v3332
    %v3474 = vmul.f32 %v3333, %v3333
    %v3475 = vmul.f32 %v3334, %v3334
    %v3476 = vmul.f32 %v3335, %v3335
    %v3477 = vmul.f32 %v3336, %v3336
    %v3478 = vmul.f32 %v3337, %v3337
    %v3479 = vmul.f32 %v3338, %v3338
    %v3480 = vmul.f32 %v3339, %v3339
    %v3481 = vmul.f32 %v3340, %v3340
    %v3482 = vmul.f32 %v3341, %v3341
    %v3483 = vmul.f32 %v3342, %v3342
    %v3484 = vmul.f32 %v3343, %v3343
    %v3485 = vmul.f32 %v3344, %v3344
    %v3486 = vmul.f32 %v3345, %v3345
    %v3487 = vmul.f32 %v3346, %v3346
    %v3488 = vmul.f32 %v3347, %v3347
    %v3489 = vmul.f32 %v3348, %v3348
    %v3490 = vmul.f32 %v3349, %v3349
    %v3491 = vmul.f32 %v3350, %v3350
    %v3492 = vmul.f32 %v3351, %v3351
    %v3493 = vmul.f32 %v3352, %v3352
    %v3494 = vadd.f32 %v3430, %v3431
    %v3495 = vadd.f32 %v3494, %v3432
    %v3496 = vadd.f32 %v3495, %v3433
    %v3497 = vadd.f32 %v3496, %v3434
    %v3498 = vadd.f32 %v3497, %v3435
    %v3499 = vadd.f32 %v3498, %v3436
    %v3500 = vadd.f32 %v3499, %v3437
    %v3501 = vadd.f32 %v3500, %v3438
    %v3502 = vadd.f32 %v3501, %v3439
    %v3503 = vadd.f32 %v3502, %v3440
    %v3504 = vadd.f32 %v3503, %v3441
    %v3505 = vadd.f32 %v3504, %v3442
    %v3506 = vadd.f32 %v3505, %v3443
    %v3507 = vadd.f32 %v3506, %v3444
    %v3508 = vadd.f32 %v3507, %v3445
    %v3509 = vadd.f32 %v3508, %v3446
    %v3510 = vadd.f32 %v3509, %v3447
    %v3511 = vadd.f32 %v3510, %v3448
    %v3512 = vadd.f32 %v3511, %v3449
    %v3513 = vadd.f32 %v3512, %v3450
    %v3514 = vadd.f32 %v3513, %v3451
    %v3515 = vadd.f32 %v3514, %v3452
    %v3516 = vadd.f32 %v3515, %v3453
    %v3517 = vadd.f32 %v3516, %v3454
    %v3518 = vadd.f32 %v3517, %v3455
    %v3519 = vadd.f32 %v3518, %v3456
    %v3520 = vadd.f32 %v3519, %v3457
    %v3521 = vadd.f32 %v3520, %v3458
    %v3522 = vadd.f32 %v3521, %v3459
    %v3523 = vadd.f32 %v3522, %v3460
    %v3524 = vadd.f32 %v3523, %v3461
    %v3525 = vadd.f32 %v3524, %v3462
    %v3526 = vadd.f32 %v3525, %v3463
    %v3527 = vadd.f32 %v3526, %v3464
    %v3528 = vadd.f32 %v3527, %v3465
    %v3529 = vadd.f32 %v3528, %v3466
    %v3530 = vadd.f32 %v3529, %v3467
    %v3531 = vadd.f32 %v3530, %v3468
    %v3532 = vadd.f32 %v3531, %v3469
    %v3533 = vadd.f32 %v3532, %v3470
    %v3534 = vadd.f32 %v3533, %v3471
    %v3535 = vadd.f32 %v3534, %v3472
    %v3536 = vadd.f32 %v3535, %v3473
    %v3537 = vadd.f32 %v3536, %v3474
    %v3538 = vadd.f32 %v3537, %v3475
    %v3539 = vadd.f32 %v3538, %v3476
    %v3540 = vadd.f32 %v3539, %v3477
    %v3541 = vadd.f32 %v3540, %v3478
    %v3542 = vadd.f32 %v3541, %v3479
    %v3543 = vadd.f32 %v3542, %v3480
    %v3544 = vadd.f32 %v3543, %v3481
    %v3545 = vadd.f32 %v3544, %v3482
    %v3546 = vadd.f32 %v3545, %v3483
    %v3547 = vadd.f32 %v3546, %v3484
    %v3548 = vadd.f32 %v3547, %v3485
    %v3549 = vadd.f32 %v3548, %v3486
    %v3550 = vadd.f32 %v3549, %v3487
    %v3551 = vadd.f32 %v3550, %v3488
    %v3552 = vadd.f32 %v3551, %v3489
    %v3553 = vadd.f32 %v3552, %v3490
    %v3554 = vadd.f32 %v3553, %v3491
    %v3555 = vadd.f32 %v3554, %v3492
    %v3556 = vadd.f32 %v3555, %v3493
    %v3557 = vrot.slane %v3556, 4
    %v3558 = vadd.f32 %v3556, %v3557
    %v3559 = vrot.slane %v3558, 2
    %v3560 = vadd.f32 %v3558, %v3559
    %v3561 = vrot.slane %v3560, 1
    %v3562 = vadd.f32 %v3560, %v3561
    %v3563 = vmul.f32 %v3562, %v3428
    %v3564 = vmul.f32 %v3429, %v3429
    %v3565 = vsub.f32 %v3563, %v3564
    %v3566 = vmax.f32 %v3565, 0.0
    %v3567 = vld [vmem:[#allocation8] sm:$0x1]
    %v3568 = vadd.f32 %v3566, 1e-05
    %v3569 = vrsqrt.pop %v3568
    %v3570 = vmul.f32 %v3569, %v3568
    %v3571 = vmul.f32 %v3570, %v3569
    %v3572 = vmul.f32 0.5, %v3571
    %v3573 = vsub.f32 1.5, %v3572
    %v3574 = vmul.f32 %v3569, %v3573
    %vm3575 = vweird.f32 %v3568
    %vm3576 = vweird.f32 %v3569
    %vm3577 = vmor %vm3575, %vm3576
    %v3578 = vsel %vm3577, %v3569, %v3574
    %v3579 = vmul.f32 %v3567, %v3578
    %v3580 = vld [vmem:[#allocation9] sm:$0x1]
    %v3581 = vmul.f32 %v3429, %v3579
    %v3582 = vsub.f32 %v3580, %v3581
    %v3584 = vperm.slane %v3579, 0
    %v3586 = vmul.f32 %v3289, %v3584
    %v3587 = vmul.f32 %v3290, %v3584
    %v3588 = vmul.f32 %v3291, %v3584
    %v3589 = vmul.f32 %v3292, %v3584
    %v3590 = vmul.f32 %v3293, %v3584
    %v3591 = vmul.f32 %v3294, %v3584
    %v3592 = vmul.f32 %v3295, %v3584
    %v3593 = vmul.f32 %v3296, %v3584
    %v3594 = vmul.f32 %v3297, %v3584
    %v3595 = vmul.f32 %v3298, %v3584
    %v3596 = vmul.f32 %v3299, %v3584
    %v3597 = vmul.f32 %v3300, %v3584
    %v3598 = vmul.f32 %v3301, %v3584
    %v3599 = vmul.f32 %v3302, %v3584
    %v3600 = vmul.f32 %v3303, %v3584
    %v3601 = vmul.f32 %v3304, %v3584
    %v3602 = vmul.f32 %v3305, %v3584
    %v3603 = vmul.f32 %v3306, %v3584
    %v3604 = vmul.f32 %v3307, %v3584
    %v3605 = vmul.f32 %v3308, %v3584
    %v3606 = vmul.f32 %v3309, %v3584
    %v3607 = vmul.f32 %v3310, %v3584
    %v3608 = vmul.f32 %v3311, %v3584
    %v3609 = vmul.f32 %v3312, %v3584
    %v3610 = vmul.f32 %v3313, %v3584
    %v3611 = vmul.f32 %v3314, %v3584
    %v3612 = vmul.f32 %v3315, %v3584
    %v3613 = vmul.f32 %v3316, %v3584
    %v3614 = vmul.f32 %v3317, %v3584
    %v3615 = vmul.f32 %v3318, %v3584
    %v3616 = vmul.f32 %v3319, %v3584
    %v3617 = vmul.f32 %v3320, %v3584
    %v3618 = vmul.f32 %v3321, %v3584
    %v3619 = vmul.f32 %v3322, %v3584
    %v3620 = vmul.f32 %v3323, %v3584
    %v3621 = vmul.f32 %v3324, %v3584
    %v3622 = vmul.f32 %v3325, %v3584
    %v3623 = vmul.f32 %v3326, %v3584
    %v3624 = vmul.f32 %v3327, %v3584
    %v3625 = vmul.f32 %v3328, %v3584
    %v3626 = vmul.f32 %v3329, %v3584
    %v3627 = vmul.f32 %v3330, %v3584
    %v3628 = vmul.f32 %v3331, %v3584
    %v3629 = vmul.f32 %v3332, %v3584
    %v3630 = vmul.f32 %v3333, %v3584
    %v3631 = vmul.f32 %v3334, %v3584
    %v3632 = vmul.f32 %v3335, %v3584
    %v3633 = vmul.f32 %v3336, %v3584
    %v3634 = vmul.f32 %v3337, %v3584
    %v3635 = vmul.f32 %v3338, %v3584
    %v3636 = vmul.f32 %v3339, %v3584
    %v3637 = vmul.f32 %v3340, %v3584
    %v3638 = vmul.f32 %v3341, %v3584
    %v3639 = vmul.f32 %v3342, %v3584
    %v3640 = vmul.f32 %v3343, %v3584
    %v3641 = vmul.f32 %v3344, %v3584
    %v3642 = vmul.f32 %v3345, %v3584
    %v3643 = vmul.f32 %v3346, %v3584
    %v3644 = vmul.f32 %v3347, %v3584
    %v3645 = vmul.f32 %v3348, %v3584
    %v3646 = vmul.f32 %v3349, %v3584
    %v3647 = vmul.f32 %v3350, %v3584
    %v3648 = vmul.f32 %v3351, %v3584
    %v3649 = vmul.f32 %v3352, %v3584
    %v3651 = vperm.slane %v3582, 0
    %v3653 = vadd.f32 %v3586, %v3651
    %v3654 = vadd.f32 %v3587, %v3651
    %v3655 = vadd.f32 %v3588, %v3651
    %v3656 = vadd.f32 %v3589, %v3651
    %v3657 = vadd.f32 %v3590, %v3651
    %v3658 = vadd.f32 %v3591, %v3651
    %v3659 = vadd.f32 %v3592, %v3651
    %v3660 = vadd.f32 %v3593, %v3651
    %v3661 = vadd.f32 %v3594, %v3651
    %v3662 = vadd.f32 %v3595, %v3651
    %v3663 = vadd.f32 %v3596, %v3651
    %v3664 = vadd.f32 %v3597, %v3651
    %v3665 = vadd.f32 %v3598, %v3651
    %v3666 = vadd.f32 %v3599, %v3651
    %v3667 = vadd.f32 %v3600, %v3651
    %v3668 = vadd.f32 %v3601, %v3651
    %v3669 = vadd.f32 %v3602, %v3651
    %v3670 = vadd.f32 %v3603, %v3651
    %v3671 = vadd.f32 %v3604, %v3651
    %v3672 = vadd.f32 %v3605, %v3651
    %v3673 = vadd.f32 %v3606, %v3651
    %v3674 = vadd.f32 %v3607, %v3651
    %v3675 = vadd.f32 %v3608, %v3651
    %v3676 = vadd.f32 %v3609, %v3651
    %v3677 = vadd.f32 %v3610, %v3651
    %v3678 = vadd.f32 %v3611, %v3651
    %v3679 = vadd.f32 %v3612, %v3651
    %v3680 = vadd.f32 %v3613, %v3651
    %v3681 = vadd.f32 %v3614, %v3651
    %v3682 = vadd.f32 %v3615, %v3651
    %v3683 = vadd.f32 %v3616, %v3651
    %v3684 = vadd.f32 %v3617, %v3651
    %v3685 = vadd.f32 %v3618, %v3651
    %v3686 = vadd.f32 %v3619, %v3651
    %v3687 = vadd.f32 %v3620, %v3651
    %v3688 = vadd.f32 %v3621, %v3651
    %v3689 = vadd.f32 %v3622, %v3651
    %v3690 = vadd.f32 %v3623, %v3651
    %v3691 = vadd.f32 %v3624, %v3651
    %v3692 = vadd.f32 %v3625, %v3651
    %v3693 = vadd.f32 %v3626, %v3651
    %v3694 = vadd.f32 %v3627, %v3651
    %v3695 = vadd.f32 %v3628, %v3651
    %v3696 = vadd.f32 %v3629, %v3651
    %v3697 = vadd.f32 %v3630, %v3651
    %v3698 = vadd.f32 %v3631, %v3651
    %v3699 = vadd.f32 %v3632, %v3651
    %v3700 = vadd.f32 %v3633, %v3651
    %v3701 = vadd.f32 %v3634, %v3651
    %v3702 = vadd.f32 %v3635, %v3651
    %v3703 = vadd.f32 %v3636, %v3651
    %v3704 = vadd.f32 %v3637, %v3651
    %v3705 = vadd.f32 %v3638, %v3651
    %v3706 = vadd.f32 %v3639, %v3651
    %v3707 = vadd.f32 %v3640, %v3651
    %v3708 = vadd.f32 %v3641, %v3651
    %v3709 = vadd.f32 %v3642, %v3651
    %v3710 = vadd.f32 %v3643, %v3651
    %v3711 = vadd.f32 %v3644, %v3651
    %v3712 = vadd.f32 %v3645, %v3651
    %v3713 = vadd.f32 %v3646, %v3651
    %v3714 = vadd.f32 %v3647, %v3651
    %v3715 = vadd.f32 %v3648, %v3651
    %v3716 = vadd.f32 %v3649, %v3651
    %v3717 = vadd.f32 %v3653, %v1582
    %v3718 = vadd.f32 %v3654, %v1583
    %v3719 = vadd.f32 %v3655, %v1584
    %v3720 = vadd.f32 %v3656, %v1585
    %v3721 = vadd.f32 %v3657, %v1586
    %v3722 = vadd.f32 %v3658, %v1587
    %v3723 = vadd.f32 %v3659, %v1588
    %v3724 = vadd.f32 %v3660, %v1589
    %v3725 = vadd.f32 %v3661, %v1590
    %v3726 = vadd.f32 %v3662, %v1591
    %v3727 = vadd.f32 %v3663, %v1592
    %v3728 = vadd.f32 %v3664, %v1593
    %v3729 = vadd.f32 %v3665, %v1594
    %v3730 = vadd.f32 %v3666, %v1595
    %v3731 = vadd.f32 %v3667, %v1596
    %v3732 = vadd.f32 %v3668, %v1597
    %v3733 = vadd.f32 %v3669, %v1598
    %v3734 = vadd.f32 %v3670, %v1599
    %v3735 = vadd.f32 %v3671, %v1600
    %v3736 = vadd.f32 %v3672, %v1601
    %v3737 = vadd.f32 %v3673, %v1602
    %v3738 = vadd.f32 %v3674, %v1603
    %v3739 = vadd.f32 %v3675, %v1604
    %v3740 = vadd.f32 %v3676, %v1605
    %v3741 = vadd.f32 %v3677, %v1606
    %v3742 = vadd.f32 %v3678, %v1607
    %v3743 = vadd.f32 %v3679, %v1608
    %v3744 = vadd.f32 %v3680, %v1609
    %v3745 = vadd.f32 %v3681, %v1610
    %v3746 = vadd.f32 %v3682, %v1611
    %v3747 = vadd.f32 %v3683, %v1612
    %v3748 = vadd.f32 %v3684, %v1613
    %v3749 = vadd.f32 %v3685, %v1614
    %v3750 = vadd.f32 %v3686, %v1615
    %v3751 = vadd.f32 %v3687, %v1616
    %v3752 = vadd.f32 %v3688, %v1617
    %v3753 = vadd.f32 %v3689, %v1618
    %v3754 = vadd.f32 %v3690, %v1619
    %v3755 = vadd.f32 %v3691, %v1620
    %v3756 = vadd.f32 %v3692, %v1621
    %v3757 = vadd.f32 %v3693, %v1622
    %v3758 = vadd.f32 %v3694, %v1623
    %v3759 = vadd.f32 %v3695, %v1624
    %v3760 = vadd.f32 %v3696, %v1625
    %v3761 = vadd.f32 %v3697, %v1626
    %v3762 = vadd.f32 %v3698, %v1627
    %v3763 = vadd.f32 %v3699, %v1628
    %v3764 = vadd.f32 %v3700, %v1629
    %v3765 = vadd.f32 %v3701, %v1630
    %v3766 = vadd.f32 %v3702, %v1631
    %v3767 = vadd.f32 %v3703, %v1632
    %v3768 = vadd.f32 %v3704, %v1633
    %v3769 = vadd.f32 %v3705, %v1634
    %v3770 = vadd.f32 %v3706, %v1635
    %v3771 = vadd.f32 %v3707, %v1636
    %v3772 = vadd.f32 %v3708, %v1637
    %v3773 = vadd.f32 %v3709, %v1638
    %v3774 = vadd.f32 %v3710, %v1639
    %v3775 = vadd.f32 %v3711, %v1640
    %v3776 = vadd.f32 %v3712, %v1641
    %v3777 = vadd.f32 %v3713, %v1642
    %v3778 = vadd.f32 %v3714, %v1643
    %v3779 = vadd.f32 %v3715, %v1644
    %v3780 = vadd.f32 %v3716, %v1645
    %3781 = vst [vmem:[%s230 + $0x1] sm:$0xff] %v3717
    %3782 = vst [vmem:[%s230 + $0x9] sm:$0xff] %v3718
    %3783 = vst [vmem:[%s230 + $0x19] sm:$0xff] %v3719
    %3784 = vst [vmem:[%s230 + $0x21] sm:$0xff] %v3720
    %3785 = vst [vmem:[%s230 + $0x31] sm:$0xff] %v3721
    %3786 = vst [vmem:[%s230 + $0x39] sm:$0xff] %v3722
    %3787 = vst [vmem:[%s230 + $0x49] sm:$0xff] %v3723
    %3788 = vst [vmem:[%s230 + $0x51] sm:$0xff] %v3724
    %3789 = vst [vmem:[%s230 + $0x61] sm:$0xff] %v3725
    %3790 = vst [vmem:[%s230 + $0x69] sm:$0xff] %v3726
    %3791 = vst [vmem:[%s230 + $0x79] sm:$0xff] %v3727
    %3792 = vst [vmem:[%s230 + $0x81] sm:$0xff] %v3728
    %3793 = vst [vmem:[%s230 + $0x91] sm:$0xff] %v3729
    %3794 = vst [vmem:[%s230 + $0x99] sm:$0xff] %v3730
    %3795 = vst [vmem:[%s230 + $0xa9] sm:$0xff] %v3731
    %3796 = vst [vmem:[%s230 + $0xb1] sm:$0xff] %v3732
    %3797 = vst [vmem:[%s230 + $0xc1] sm:$0xff] %v3733
    %3798 = vst [vmem:[%s230 + $0xc9] sm:$0xff] %v3734
    %3799 = vst [vmem:[%s230 + $0xd9] sm:$0xff] %v3735
    %3800 = vst [vmem:[%s230 + $0xe1] sm:$0xff] %v3736
    %3801 = vst [vmem:[%s230 + $0xf1] sm:$0xff] %v3737
    %3802 = vst [vmem:[%s230 + $0xf9] sm:$0xff] %v3738
    %3803 = vst [vmem:[%s230 + $0x109] sm:$0xff] %v3739
    %3804 = vst [vmem:[%s230 + $0x111] sm:$0xff] %v3740
    %3805 = vst [vmem:[%s230 + $0x121] sm:$0xff] %v3741
    %3806 = vst [vmem:[%s230 + $0x129] sm:$0xff] %v3742
    %3807 = vst [vmem:[%s230 + $0x139] sm:$0xff] %v3743
    %3808 = vst [vmem:[%s230 + $0x141] sm:$0xff] %v3744
    %3809 = vst [vmem:[%s230 + $0x151] sm:$0xff] %v3745
    %3810 = vst [vmem:[%s230 + $0x159] sm:$0xff] %v3746
    %3811 = vst [vmem:[%s230 + $0x169] sm:$0xff] %v3747
    %3812 = vst [vmem:[%s230 + $0x171] sm:$0xff] %v3748
    %3813 = vst [vmem:[%s230 + $0x1b1] sm:$0xff] %v3749
    %3814 = vst [vmem:[%s230 + $0x1b9] sm:$0xff] %v3750
    %3815 = vst [vmem:[%s230 + $0x1c9] sm:$0xff] %v3751
    %3816 = vst [vmem:[%s230 + $0x1d1] sm:$0xff] %v3752
    %3817 = vst [vmem:[%s230 + $0x1e1] sm:$0xff] %v3753
    %3818 = vst [vmem:[%s230 + $0x1e9] sm:$0xff] %v3754
    %3819 = vst [vmem:[%s230 + $0x1f9] sm:$0xff] %v3755
    %3820 = vst [vmem:[%s230 + $0x201] sm:$0xff] %v3756
    %3821 = vst [vmem:[%s230 + $0x211] sm:$0xff] %v3757
    %3822 = vst [vmem:[%s230 + $0x219] sm:$0xff] %v3758
    %3823 = vst [vmem:[%s230 + $0x229] sm:$0xff] %v3759
    %3824 = vst [vmem:[%s230 + $0x231] sm:$0xff] %v3760
    %3825 = vst [vmem:[%s230 + $0x241] sm:$0xff] %v3761
    %3826 = vst [vmem:[%s230 + $0x249] sm:$0xff] %v3762
    %3827 = vst [vmem:[%s230 + $0x259] sm:$0xff] %v3763
    %3828 = vst [vmem:[%s230 + $0x261] sm:$0xff] %v3764
    %3829 = vst [vmem:[%s230 + $0x271] sm:$0xff] %v3765
    %3830 = vst [vmem:[%s230 + $0x279] sm:$0xff] %v3766
    %3831 = vst [vmem:[%s230 + $0x289] sm:$0xff] %v3767
    %3832 = vst [vmem:[%s230 + $0x291] sm:$0xff] %v3768
    %3833 = vst [vmem:[%s230 + $0x2a1] sm:$0xff] %v3769
    %3834 = vst [vmem:[%s230 + $0x2a9] sm:$0xff] %v3770
    %3835 = vst [vmem:[%s230 + $0x2b9] sm:$0xff] %v3771
    %3836 = vst [vmem:[%s230 + $0x2c1] sm:$0xff] %v3772
    %3837 = vst [vmem:[%s230 + $0x2d1] sm:$0xff] %v3773
    %3838 = vst [vmem:[%s230 + $0x2d9] sm:$0xff] %v3774
    %3839 = vst [vmem:[%s230 + $0x2e9] sm:$0xff] %v3775
    %3840 = vst [vmem:[%s230 + $0x2f1] sm:$0xff] %v3776
    %3841 = vst [vmem:[%s230 + $0x301] sm:$0xff] %v3777
    %3842 = vst [vmem:[%s230 + $0x309] sm:$0xff] %v3778
    %3843 = vst [vmem:[%s230 + $0x319] sm:$0xff] %v3779
    %3844 = vst [vmem:[%s230 + $0x321] sm:$0xff] %v3780
    %v3845 = vld [vmem:[#allocation2] sm:$0xff]
    %v3846 = vld [vmem:[#allocation2 + $0x8] sm:$0xff]
    %v3847 = vld [vmem:[#allocation2 + $0x18] sm:$0xff]
    %v3848 = vld [vmem:[#allocation2 + $0x20] sm:$0xff]
    %v3849 = vld [vmem:[#allocation2 + $0x30] sm:$0xff]
    %v3850 = vld [vmem:[#allocation2 + $0x38] sm:$0xff]
    %v3851 = vld [vmem:[#allocation2 + $0x48] sm:$0xff]
    %v3852 = vld [vmem:[#allocation2 + $0x50] sm:$0xff]
    %v3853 = vld [vmem:[#allocation2 + $0x60] sm:$0xff]
    %v3854 = vld [vmem:[#allocation2 + $0x68] sm:$0xff]
    %v3855 = vld [vmem:[#allocation2 + $0x78] sm:$0xff]
    %v3856 = vld [vmem:[#allocation2 + $0x80] sm:$0xff]
    %v3857 = vld [vmem:[#allocation2 + $0x90] sm:$0xff]
    %v3858 = vld [vmem:[#allocation2 + $0x98] sm:$0xff]
    %v3859 = vld [vmem:[#allocation2 + $0xa8] sm:$0xff]
    %v3860 = vld [vmem:[#allocation2 + $0xb0] sm:$0xff]
    %v3861 = vld [vmem:[#allocation2 + $0xc0] sm:$0xff]
    %v3862 = vld [vmem:[#allocation2 + $0xc8] sm:$0xff]
    %v3863 = vld [vmem:[#allocation2 + $0xd8] sm:$0xff]
    %v3864 = vld [vmem:[#allocation2 + $0xe0] sm:$0xff]
    %v3865 = vld [vmem:[#allocation2 + $0xf0] sm:$0xff]
    %v3866 = vld [vmem:[#allocation2 + $0xf8] sm:$0xff]
    %v3867 = vld [vmem:[#allocation2 + $0x108] sm:$0xff]
    %v3868 = vld [vmem:[#allocation2 + $0x110] sm:$0xff]
    %v3869 = vld [vmem:[#allocation2 + $0x120] sm:$0xff]
    %v3870 = vld [vmem:[#allocation2 + $0x128] sm:$0xff]
    %v3871 = vld [vmem:[#allocation2 + $0x138] sm:$0xff]
    %v3872 = vld [vmem:[#allocation2 + $0x140] sm:$0xff]
    %v3873 = vld [vmem:[#allocation2 + $0x150] sm:$0xff]
    %v3874 = vld [vmem:[#allocation2 + $0x158] sm:$0xff]
    %v3875 = vld [vmem:[#allocation2 + $0x168] sm:$0xff]
    %v3876 = vld [vmem:[#allocation2 + $0x170] sm:$0xff]
    %v3877 = vld [vmem:[#allocation2 + $0x1b0] sm:$0xff]
    %v3878 = vld [vmem:[#allocation2 + $0x1b8] sm:$0xff]
    %v3879 = vld [vmem:[#allocation2 + $0x1c8] sm:$0xff]
    %v3880 = vld [vmem:[#allocation2 + $0x1d0] sm:$0xff]
    %v3881 = vld [vmem:[#allocation2 + $0x1e0] sm:$0xff]
    %v3882 = vld [vmem:[#allocation2 + $0x1e8] sm:$0xff]
    %v3883 = vld [vmem:[#allocation2 + $0x1f8] sm:$0xff]
    %v3884 = vld [vmem:[#allocation2 + $0x200] sm:$0xff]
    %v3885 = vld [vmem:[#allocation2 + $0x210] sm:$0xff]
    %v3886 = vld [vmem:[#allocation2 + $0x218] sm:$0xff]
    %v3887 = vld [vmem:[#allocation2 + $0x228] sm:$0xff]
    %v3888 = vld [vmem:[#allocation2 + $0x230] sm:$0xff]
    %v3889 = vld [vmem:[#allocation2 + $0x240] sm:$0xff]
    %v3890 = vld [vmem:[#allocation2 + $0x248] sm:$0xff]
    %v3891 = vld [vmem:[#allocation2 + $0x258] sm:$0xff]
    %v3892 = vld [vmem:[#allocation2 + $0x260] sm:$0xff]
    %v3893 = vld [vmem:[#allocation2 + $0x270] sm:$0xff]
    %v3894 = vld [vmem:[#allocation2 + $0x278] sm:$0xff]
    %v3895 = vld [vmem:[#allocation2 + $0x288] sm:$0xff]
    %v3896 = vld [vmem:[#allocation2 + $0x290] sm:$0xff]
    %v3897 = vld [vmem:[#allocation2 + $0x2a0] sm:$0xff]
    %v3898 = vld [vmem:[#allocation2 + $0x2a8] sm:$0xff]
    %v3899 = vld [vmem:[#allocation2 + $0x2b8] sm:$0xff]
    %v3900 = vld [vmem:[#allocation2 + $0x2c0] sm:$0xff]
    %v3901 = vld [vmem:[#allocation2 + $0x2d0] sm:$0xff]
    %v3902 = vld [vmem:[#allocation2 + $0x2d8] sm:$0xff]
    %v3903 = vld [vmem:[#allocation2 + $0x2e8] sm:$0xff]
    %v3904 = vld [vmem:[#allocation2 + $0x2f0] sm:$0xff]
    %v3905 = vld [vmem:[#allocation2 + $0x300] sm:$0xff]
    %v3906 = vld [vmem:[#allocation2 + $0x308] sm:$0xff]
    %v3907 = vld [vmem:[#allocation2 + $0x318] sm:$0xff]
    %v3908 = vld [vmem:[#allocation2 + $0x320] sm:$0xff]
    %s3909 = scalar_lea.vmem [#allocation6], 1152
    %v3910 = vld [vmem:[%s3909] sm:$0xff]
    %v3911 = vld [vmem:[%s3909 + $0x8] sm:$0xff]
    %v3912 = vld [vmem:[%s3909 + $0x10] sm:$0xff]
    %v3913 = vld [vmem:[%s3909 + $0x18] sm:$0xff]
    %v3914 = vld [vmem:[%s3909 + $0x20] sm:$0xff]
    %v3915 = vld [vmem:[%s3909 + $0x28] sm:$0xff]
    %v3916 = vld [vmem:[%s3909 + $0x30] sm:$0xff]
    %v3917 = vld [vmem:[%s3909 + $0x38] sm:$0xff]
    %v3918 = vld [vmem:[%s3909 + $0x40] sm:$0xff]
    %v3919 = vld [vmem:[%s3909 + $0x48] sm:$0xff]
    %v3920 = vld [vmem:[%s3909 + $0x50] sm:$0xff]
    %v3921 = vld [vmem:[%s3909 + $0x58] sm:$0xff]
    %v3922 = vld [vmem:[%s3909 + $0x60] sm:$0xff]
    %v3923 = vld [vmem:[%s3909 + $0x68] sm:$0xff]
    %v3924 = vld [vmem:[%s3909 + $0x70] sm:$0xff]
    %v3925 = vld [vmem:[%s3909 + $0x78] sm:$0xff]
    %v3926 = vld [vmem:[#allocation2 + $0x1] sm:$0xff]
    %v3927 = vld [vmem:[#allocation2 + $0x9] sm:$0xff]
    %v3928 = vld [vmem:[#allocation2 + $0x19] sm:$0xff]
    %v3929 = vld [vmem:[#allocation2 + $0x21] sm:$0xff]
    %v3930 = vld [vmem:[#allocation2 + $0x31] sm:$0xff]
    %v3931 = vld [vmem:[#allocation2 + $0x39] sm:$0xff]
    %v3932 = vld [vmem:[#allocation2 + $0x49] sm:$0xff]
    %v3933 = vld [vmem:[#allocation2 + $0x51] sm:$0xff]
    %v3934 = vld [vmem:[#allocation2 + $0x61] sm:$0xff]
    %v3935 = vld [vmem:[#allocation2 + $0x69] sm:$0xff]
    %v3936 = vld [vmem:[#allocation2 + $0x79] sm:$0xff]
    %v3937 = vld [vmem:[#allocation2 + $0x81] sm:$0xff]
    %v3938 = vld [vmem:[#allocation2 + $0x91] sm:$0xff]
    %v3939 = vld [vmem:[#allocation2 + $0x99] sm:$0xff]
    %v3940 = vld [vmem:[#allocation2 + $0xa9] sm:$0xff]
    %v3941 = vld [vmem:[#allocation2 + $0xb1] sm:$0xff]
    %v3942 = vld [vmem:[#allocation2 + $0xc1] sm:$0xff]
    %v3943 = vld [vmem:[#allocation2 + $0xc9] sm:$0xff]
    %v3944 = vld [vmem:[#allocation2 + $0xd9] sm:$0xff]
    %v3945 = vld [vmem:[#allocation2 + $0xe1] sm:$0xff]
    %v3946 = vld [vmem:[#allocation2 + $0xf1] sm:$0xff]
    %v3947 = vld [vmem:[#allocation2 + $0xf9] sm:$0xff]
    %v3948 = vld [vmem:[#allocation2 + $0x109] sm:$0xff]
    %v3949 = vld [vmem:[#allocation2 + $0x111] sm:$0xff]
    %v3950 = vld [vmem:[#allocation2 + $0x121] sm:$0xff]
    %v3951 = vld [vmem:[#allocation2 + $0x129] sm:$0xff]
    %v3952 = vld [vmem:[#allocation2 + $0x139] sm:$0xff]
    %v3953 = vld [vmem:[#allocation2 + $0x141] sm:$0xff]
    %v3954 = vld [vmem:[#allocation2 + $0x151] sm:$0xff]
    %v3955 = vld [vmem:[#allocation2 + $0x159] sm:$0xff]
    %v3956 = vld [vmem:[#allocation2 + $0x169] sm:$0xff]
    %v3957 = vld [vmem:[#allocation2 + $0x171] sm:$0xff]
    %v3958 = vld [vmem:[#allocation2 + $0x1b1] sm:$0xff]
    %v3959 = vld [vmem:[#allocation2 + $0x1b9] sm:$0xff]
    %v3960 = vld [vmem:[#allocation2 + $0x1c9] sm:$0xff]
    %v3961 = vld [vmem:[#allocation2 + $0x1d1] sm:$0xff]
    %v3962 = vld [vmem:[#allocation2 + $0x1e1] sm:$0xff]
    %v3963 = vld [vmem:[#allocation2 + $0x1e9] sm:$0xff]
    %v3964 = vld [vmem:[#allocation2 + $0x1f9] sm:$0xff]
    %v3965 = vld [vmem:[#allocation2 + $0x201] sm:$0xff]
    %v3966 = vld [vmem:[#allocation2 + $0x211] sm:$0xff]
    %v3967 = vld [vmem:[#allocation2 + $0x219] sm:$0xff]
    %v3968 = vld [vmem:[#allocation2 + $0x229] sm:$0xff]
    %v3969 = vld [vmem:[#allocation2 + $0x231] sm:$0xff]
    %v3970 = vld [vmem:[#allocation2 + $0x241] sm:$0xff]
    %v3971 = vld [vmem:[#allocation2 + $0x249] sm:$0xff]
    %v3972 = vld [vmem:[#allocation2 + $0x259] sm:$0xff]
    %v3973 = vld [vmem:[#allocation2 + $0x261] sm:$0xff]
    %v3974 = vld [vmem:[#allocation2 + $0x271] sm:$0xff]
    %v3975 = vld [vmem:[#allocation2 + $0x279] sm:$0xff]
    %v3976 = vld [vmem:[#allocation2 + $0x289] sm:$0xff]
    %v3977 = vld [vmem:[#allocation2 + $0x291] sm:$0xff]
    %v3978 = vld [vmem:[#allocation2 + $0x2a1] sm:$0xff]
    %v3979 = vld [vmem:[#allocation2 + $0x2a9] sm:$0xff]
    %v3980 = vld [vmem:[#allocation2 + $0x2b9] sm:$0xff]
    %v3981 = vld [vmem:[#allocation2 + $0x2c1] sm:$0xff]
    %v3982 = vld [vmem:[#allocation2 + $0x2d1] sm:$0xff]
    %v3983 = vld [vmem:[#allocation2 + $0x2d9] sm:$0xff]
    %v3984 = vld [vmem:[#allocation2 + $0x2e9] sm:$0xff]
    %v3985 = vld [vmem:[#allocation2 + $0x2f1] sm:$0xff]
    %v3986 = vld [vmem:[#allocation2 + $0x301] sm:$0xff]
    %v3987 = vld [vmem:[#allocation2 + $0x309] sm:$0xff]
    %v3988 = vld [vmem:[#allocation2 + $0x319] sm:$0xff]
    %v3989 = vld [vmem:[#allocation2 + $0x321] sm:$0xff]
    %s3990 = scalar_lea.vmem [#allocation6], 1280
    %v3991 = vld [vmem:[%s3990] sm:$0xff]
    %v3992 = vld [vmem:[%s3990 + $0x8] sm:$0xff]
    %v3993 = vld [vmem:[%s3990 + $0x10] sm:$0xff]
    %v3994 = vld [vmem:[%s3990 + $0x18] sm:$0xff]
    %v3995 = vld [vmem:[%s3990 + $0x20] sm:$0xff]
    %v3996 = vld [vmem:[%s3990 + $0x28] sm:$0xff]
    %v3997 = vld [vmem:[%s3990 + $0x30] sm:$0xff]
    %v3998 = vld [vmem:[%s3990 + $0x38] sm:$0xff]
    %v3999 = vld [vmem:[%s3990 + $0x40] sm:$0xff]
    %v4000 = vld [vmem:[%s3990 + $0x48] sm:$0xff]
    %v4001 = vld [vmem:[%s3990 + $0x50] sm:$0xff]
    %v4002 = vld [vmem:[%s3990 + $0x58] sm:$0xff]
    %v4003 = vld [vmem:[%s3990 + $0x60] sm:$0xff]
    %v4004 = vld [vmem:[%s3990 + $0x68] sm:$0xff]
    %v4005 = vld [vmem:[%s3990 + $0x70] sm:$0xff]
    %v4006 = vld [vmem:[%s3990 + $0x78] sm:$0xff]
    %4007 = vmatpush.msra.mxu0 %v4006
    %4008 = vmatpush.msra.mxu0 %v4005
    %4009 = vmatpush.msra.mxu0 %v4004
    %4010 = vmatpush.msra.mxu0 %v4003
    %4011 = vmatpush.msra.mxu0 %v4002
    %4012 = vmatpush.msra.mxu0 %v4001
    %4013 = vmatpush.msra.mxu0 %v4000
    %4014 = vmatpush.msra.mxu0 %v3999
    %4015 = vmatpush.msra.mxu0 %v3998
    %4016 = vmatpush.msra.mxu0 %v3997
    %4017 = vmatpush.msra.mxu0 %v3996
    %4018 = vmatpush.msra.mxu0 %v3995
    %4019 = vmatpush.msra.mxu0 %v3994
    %4020 = vmatpush.msra.mxu0 %v3993
    %4021 = vmatpush.msra.mxu0 %v3992
    %4022 = vmatpush.msra.mxu0 %v3991
    %4023 = vmatmul.f32.gmra.mxu0 %v3926
    %v4024 = vpop.f32.mrf.mxu0
    %v4025 = vadd.f32 0.0, %v4024
    %4026 = vmatmul.f32.gmra.mxu0 %v3927
    %v4027 = vpop.f32.mrf.mxu0
    %v4028 = vadd.f32 0.0, %v4027
    %4029 = vmatmul.f32.gmra.mxu0 %v3928
    %v4030 = vpop.f32.mrf.mxu0
    %v4031 = vadd.f32 0.0, %v4030
    %4032 = vmatmul.f32.gmra.mxu0 %v3929
    %v4033 = vpop.f32.mrf.mxu0
    %v4034 = vadd.f32 0.0, %v4033
    %4035 = vmatmul.f32.gmra.mxu0 %v3930
    %v4036 = vpop.f32.mrf.mxu0
    %v4037 = vadd.f32 0.0, %v4036
    %4038 = vmatmul.f32.gmra.mxu0 %v3931
    %v4039 = vpop.f32.mrf.mxu0
    %v4040 = vadd.f32 0.0, %v4039
    %4041 = vmatmul.f32.gmra.mxu0 %v3932
    %v4042 = vpop.f32.mrf.mxu0
    %v4043 = vadd.f32 0.0, %v4042
    %4044 = vmatmul.f32.gmra.mxu0 %v3933
    %v4045 = vpop.f32.mrf.mxu0
    %v4046 = vadd.f32 0.0, %v4045
    %4047 = vmatmul.f32.gmra.mxu0 %v3934
    %v4048 = vpop.f32.mrf.mxu0
    %v4049 = vadd.f32 0.0, %v4048
    %4050 = vmatmul.f32.gmra.mxu0 %v3935
    %v4051 = vpop.f32.mrf.mxu0
    %v4052 = vadd.f32 0.0, %v4051
    %4053 = vmatmul.f32.gmra.mxu0 %v3936
    %v4054 = vpop.f32.mrf.mxu0
    %v4055 = vadd.f32 0.0, %v4054
    %4056 = vmatmul.f32.gmra.mxu0 %v3937
    %v4057 = vpop.f32.mrf.mxu0
    %v4058 = vadd.f32 0.0, %v4057
    %4059 = vmatmul.f32.gmra.mxu0 %v3938
    %v4060 = vpop.f32.mrf.mxu0
    %v4061 = vadd.f32 0.0, %v4060
    %4062 = vmatmul.f32.gmra.mxu0 %v3939
    %v4063 = vpop.f32.mrf.mxu0
    %v4064 = vadd.f32 0.0, %v4063
    %4065 = vmatmul.f32.gmra.mxu0 %v3940
    %v4066 = vpop.f32.mrf.mxu0
    %v4067 = vadd.f32 0.0, %v4066
    %4068 = vmatmul.f32.gmra.mxu0 %v3941
    %v4069 = vpop.f32.mrf.mxu0
    %v4070 = vadd.f32 0.0, %v4069
    %4071 = vmatmul.f32.gmra.mxu0 %v3942
    %v4072 = vpop.f32.mrf.mxu0
    %v4073 = vadd.f32 0.0, %v4072
    %4074 = vmatmul.f32.gmra.mxu0 %v3943
    %v4075 = vpop.f32.mrf.mxu0
    %v4076 = vadd.f32 0.0, %v4075
    %4077 = vmatmul.f32.gmra.mxu0 %v3944
    %v4078 = vpop.f32.mrf.mxu0
    %v4079 = vadd.f32 0.0, %v4078
    %4080 = vmatmul.f32.gmra.mxu0 %v3945
    %v4081 = vpop.f32.mrf.mxu0
    %v4082 = vadd.f32 0.0, %v4081
    %4083 = vmatmul.f32.gmra.mxu0 %v3946
    %v4084 = vpop.f32.mrf.mxu0
    %v4085 = vadd.f32 0.0, %v4084
    %4086 = vmatmul.f32.gmra.mxu0 %v3947
    %v4087 = vpop.f32.mrf.mxu0
    %v4088 = vadd.f32 0.0, %v4087
    %4089 = vmatmul.f32.gmra.mxu0 %v3948
    %v4090 = vpop.f32.mrf.mxu0
    %v4091 = vadd.f32 0.0, %v4090
    %4092 = vmatmul.f32.gmra.mxu0 %v3949
    %v4093 = vpop.f32.mrf.mxu0
    %v4094 = vadd.f32 0.0, %v4093
    %4095 = vmatmul.f32.gmra.mxu0 %v3950
    %v4096 = vpop.f32.mrf.mxu0
    %v4097 = vadd.f32 0.0, %v4096
    %4098 = vmatmul.f32.gmra.mxu0 %v3951
    %v4099 = vpop.f32.mrf.mxu0
    %v4100 = vadd.f32 0.0, %v4099
    %4101 = vmatmul.f32.gmra.mxu0 %v3952
    %v4102 = vpop.f32.mrf.mxu0
    %v4103 = vadd.f32 0.0, %v4102
    %4104 = vmatmul.f32.gmra.mxu0 %v3953
    %v4105 = vpop.f32.mrf.mxu0
    %v4106 = vadd.f32 0.0, %v4105
    %4107 = vmatmul.f32.gmra.mxu0 %v3954
    %v4108 = vpop.f32.mrf.mxu0
    %v4109 = vadd.f32 0.0, %v4108
    %4110 = vmatmul.f32.gmra.mxu0 %v3955
    %v4111 = vpop.f32.mrf.mxu0
    %v4112 = vadd.f32 0.0, %v4111
    %4113 = vmatmul.f32.gmra.mxu0 %v3956
    %v4114 = vpop.f32.mrf.mxu0
    %v4115 = vadd.f32 0.0, %v4114
    %4116 = vmatmul.f32.gmra.mxu0 %v3957
    %v4117 = vpop.f32.mrf.mxu0
    %v4118 = vadd.f32 0.0, %v4117
    %4119 = vmatmul.f32.gmra.mxu0 %v3958
    %v4120 = vpop.f32.mrf.mxu0
    %v4121 = vadd.f32 0.0, %v4120
    %4122 = vmatmul.f32.gmra.mxu0 %v3959
    %v4123 = vpop.f32.mrf.mxu0
    %v4124 = vadd.f32 0.0, %v4123
    %4125 = vmatmul.f32.gmra.mxu0 %v3960
    %v4126 = vpop.f32.mrf.mxu0
    %v4127 = vadd.f32 0.0, %v4126
    %4128 = vmatmul.f32.gmra.mxu0 %v3961
    %v4129 = vpop.f32.mrf.mxu0
    %v4130 = vadd.f32 0.0, %v4129
    %4131 = vmatmul.f32.gmra.mxu0 %v3962
    %v4132 = vpop.f32.mrf.mxu0
    %v4133 = vadd.f32 0.0, %v4132
    %4134 = vmatmul.f32.gmra.mxu0 %v3963
    %v4135 = vpop.f32.mrf.mxu0
    %v4136 = vadd.f32 0.0, %v4135
    %4137 = vmatmul.f32.gmra.mxu0 %v3964
    %v4138 = vpop.f32.mrf.mxu0
    %v4139 = vadd.f32 0.0, %v4138
    %4140 = vmatmul.f32.gmra.mxu0 %v3965
    %v4141 = vpop.f32.mrf.mxu0
    %v4142 = vadd.f32 0.0, %v4141
    %4143 = vmatmul.f32.gmra.mxu0 %v3966
    %v4144 = vpop.f32.mrf.mxu0
    %v4145 = vadd.f32 0.0, %v4144
    %4146 = vmatmul.f32.gmra.mxu0 %v3967
    %v4147 = vpop.f32.mrf.mxu0
    %v4148 = vadd.f32 0.0, %v4147
    %4149 = vmatmul.f32.gmra.mxu0 %v3968
    %v4150 = vpop.f32.mrf.mxu0
    %v4151 = vadd.f32 0.0, %v4150
    %4152 = vmatmul.f32.gmra.mxu0 %v3969
    %v4153 = vpop.f32.mrf.mxu0
    %v4154 = vadd.f32 0.0, %v4153
    %4155 = vmatmul.f32.gmra.mxu0 %v3970
    %v4156 = vpop.f32.mrf.mxu0
    %v4157 = vadd.f32 0.0, %v4156
    %4158 = vmatmul.f32.gmra.mxu0 %v3971
    %v4159 = vpop.f32.mrf.mxu0
    %v4160 = vadd.f32 0.0, %v4159
    %4161 = vmatmul.f32.gmra.mxu0 %v3972
    %v4162 = vpop.f32.mrf.mxu0
    %v4163 = vadd.f32 0.0, %v4162
    %4164 = vmatmul.f32.gmra.mxu0 %v3973
    %v4165 = vpop.f32.mrf.mxu0
    %v4166 = vadd.f32 0.0, %v4165
    %4167 = vmatmul.f32.gmra.mxu0 %v3974
    %v4168 = vpop.f32.mrf.mxu0
    %v4169 = vadd.f32 0.0, %v4168
    %4170 = vmatmul.f32.gmra.mxu0 %v3975
    %v4171 = vpop.f32.mrf.mxu0
    %v4172 = vadd.f32 0.0, %v4171
    %4173 = vmatmul.f32.gmra.mxu0 %v3976
    %v4174 = vpop.f32.mrf.mxu0
    %v4175 = vadd.f32 0.0, %v4174
    %4176 = vmatmul.f32.gmra.mxu0 %v3977
    %v4177 = vpop.f32.mrf.mxu0
    %v4178 = vadd.f32 0.0, %v4177
    %4179 = vmatmul.f32.gmra.mxu0 %v3978
    %v4180 = vpop.f32.mrf.mxu0
    %v4181 = vadd.f32 0.0, %v4180
    %4182 = vmatmul.f32.gmra.mxu0 %v3979
    %v4183 = vpop.f32.mrf.mxu0
    %v4184 = vadd.f32 0.0, %v4183
    %4185 = vmatmul.f32.gmra.mxu0 %v3980
    %v4186 = vpop.f32.mrf.mxu0
    %v4187 = vadd.f32 0.0, %v4186
    %4188 = vmatmul.f32.gmra.mxu0 %v3981
    %v4189 = vpop.f32.mrf.mxu0
    %v4190 = vadd.f32 0.0, %v4189
    %4191 = vmatmul.f32.gmra.mxu0 %v3982
    %v4192 = vpop.f32.mrf.mxu0
    %v4193 = vadd.f32 0.0, %v4192
    %4194 = vmatmul.f32.gmra.mxu0 %v3983
    %v4195 = vpop.f32.mrf.mxu0
    %v4196 = vadd.f32 0.0, %v4195
    %4197 = vmatmul.f32.gmra.mxu0 %v3984
    %v4198 = vpop.f32.mrf.mxu0
    %v4199 = vadd.f32 0.0, %v4198
    %4200 = vmatmul.f32.gmra.mxu0 %v3985
    %v4201 = vpop.f32.mrf.mxu0
    %v4202 = vadd.f32 0.0, %v4201
    %4203 = vmatmul.f32.gmra.mxu0 %v3986
    %v4204 = vpop.f32.mrf.mxu0
    %v4205 = vadd.f32 0.0, %v4204
    %4206 = vmatmul.f32.gmra.mxu0 %v3987
    %v4207 = vpop.f32.mrf.mxu0
    %v4208 = vadd.f32 0.0, %v4207
    %4209 = vmatmul.f32.gmra.mxu0 %v3988
    %v4210 = vpop.f32.mrf.mxu0
    %v4211 = vadd.f32 0.0, %v4210
    %4212 = vmatmul.f32.gmra.mxu0 %v3989
    %v4213 = vpop.f32.mrf.mxu0
    %v4214 = vadd.f32 0.0, %v4213
    %4215 = vdwg.mxu0
    %4216 = vmatpush.msra.mxu0 %v3925
    %4217 = vmatpush.msra.mxu0 %v3924
    %4218 = vmatpush.msra.mxu0 %v3923
    %4219 = vmatpush.msra.mxu0 %v3922
    %4220 = vmatpush.msra.mxu0 %v3921
    %4221 = vmatpush.msra.mxu0 %v3920
    %4222 = vmatpush.msra.mxu0 %v3919
    %4223 = vmatpush.msra.mxu0 %v3918
    %4224 = vmatpush.msra.mxu0 %v3917
    %4225 = vmatpush.msra.mxu0 %v3916
    %4226 = vmatpush.msra.mxu0 %v3915
    %4227 = vmatpush.msra.mxu0 %v3914
    %4228 = vmatpush.msra.mxu0 %v3913
    %4229 = vmatpush.msra.mxu0 %v3912
    %4230 = vmatpush.msra.mxu0 %v3911
    %4231 = vmatpush.msra.mxu0 %v3910
    %4232 = vmatmul.f32.gmra.mxu0 %v3845
    %v4233 = vpop.f32.mrf.mxu0
    %v4234 = vadd.f32 %v4025, %v4233
    %4235 = vmatmul.f32.gmra.mxu0 %v3846
    %v4236 = vpop.f32.mrf.mxu0
    %v4237 = vadd.f32 %v4028, %v4236
    %4238 = vmatmul.f32.gmra.mxu0 %v3847
    %v4239 = vpop.f32.mrf.mxu0
    %v4240 = vadd.f32 %v4031, %v4239
    %4241 = vmatmul.f32.gmra.mxu0 %v3848
    %v4242 = vpop.f32.mrf.mxu0
    %v4243 = vadd.f32 %v4034, %v4242
    %4244 = vmatmul.f32.gmra.mxu0 %v3849
    %v4245 = vpop.f32.mrf.mxu0
    %v4246 = vadd.f32 %v4037, %v4245
    %4247 = vmatmul.f32.gmra.mxu0 %v3850
    %v4248 = vpop.f32.mrf.mxu0
    %v4249 = vadd.f32 %v4040, %v4248
    %4250 = vmatmul.f32.gmra.mxu0 %v3851
    %v4251 = vpop.f32.mrf.mxu0
    %v4252 = vadd.f32 %v4043, %v4251
    %4253 = vmatmul.f32.gmra.mxu0 %v3852
    %v4254 = vpop.f32.mrf.mxu0
    %v4255 = vadd.f32 %v4046, %v4254
    %4256 = vmatmul.f32.gmra.mxu0 %v3853
    %v4257 = vpop.f32.mrf.mxu0
    %v4258 = vadd.f32 %v4049, %v4257
    %4259 = vmatmul.f32.gmra.mxu0 %v3854
    %v4260 = vpop.f32.mrf.mxu0
    %v4261 = vadd.f32 %v4052, %v4260
    %4262 = vmatmul.f32.gmra.mxu0 %v3855
    %v4263 = vpop.f32.mrf.mxu0
    %v4264 = vadd.f32 %v4055, %v4263
    %4265 = vmatmul.f32.gmra.mxu0 %v3856
    %v4266 = vpop.f32.mrf.mxu0
    %v4267 = vadd.f32 %v4058, %v4266
    %4268 = vmatmul.f32.gmra.mxu0 %v3857
    %v4269 = vpop.f32.mrf.mxu0
    %v4270 = vadd.f32 %v4061, %v4269
    %4271 = vmatmul.f32.gmra.mxu0 %v3858
    %v4272 = vpop.f32.mrf.mxu0
    %v4273 = vadd.f32 %v4064, %v4272
    %4274 = vmatmul.f32.gmra.mxu0 %v3859
    %v4275 = vpop.f32.mrf.mxu0
    %v4276 = vadd.f32 %v4067, %v4275
    %4277 = vmatmul.f32.gmra.mxu0 %v3860
    %v4278 = vpop.f32.mrf.mxu0
    %v4279 = vadd.f32 %v4070, %v4278
    %4280 = vmatmul.f32.gmra.mxu0 %v3861
    %v4281 = vpop.f32.mrf.mxu0
    %v4282 = vadd.f32 %v4073, %v4281
    %4283 = vmatmul.f32.gmra.mxu0 %v3862
    %v4284 = vpop.f32.mrf.mxu0
    %v4285 = vadd.f32 %v4076, %v4284
    %4286 = vmatmul.f32.gmra.mxu0 %v3863
    %v4287 = vpop.f32.mrf.mxu0
    %v4288 = vadd.f32 %v4079, %v4287
    %4289 = vmatmul.f32.gmra.mxu0 %v3864
    %v4290 = vpop.f32.mrf.mxu0
    %v4291 = vadd.f32 %v4082, %v4290
    %4292 = vmatmul.f32.gmra.mxu0 %v3865
    %v4293 = vpop.f32.mrf.mxu0
    %v4294 = vadd.f32 %v4085, %v4293
    %4295 = vmatmul.f32.gmra.mxu0 %v3866
    %v4296 = vpop.f32.mrf.mxu0
    %v4297 = vadd.f32 %v4088, %v4296
    %4298 = vmatmul.f32.gmra.mxu0 %v3867
    %v4299 = vpop.f32.mrf.mxu0
    %v4300 = vadd.f32 %v4091, %v4299
    %4301 = vmatmul.f32.gmra.mxu0 %v3868
    %v4302 = vpop.f32.mrf.mxu0
    %v4303 = vadd.f32 %v4094, %v4302
    %4304 = vmatmul.f32.gmra.mxu0 %v3869
    %v4305 = vpop.f32.mrf.mxu0
    %v4306 = vadd.f32 %v4097, %v4305
    %4307 = vmatmul.f32.gmra.mxu0 %v3870
    %v4308 = vpop.f32.mrf.mxu0
    %v4309 = vadd.f32 %v4100, %v4308
    %4310 = vmatmul.f32.gmra.mxu0 %v3871
    %v4311 = vpop.f32.mrf.mxu0
    %v4312 = vadd.f32 %v4103, %v4311
    %4313 = vmatmul.f32.gmra.mxu0 %v3872
    %v4314 = vpop.f32.mrf.mxu0
    %v4315 = vadd.f32 %v4106, %v4314
    %4316 = vmatmul.f32.gmra.mxu0 %v3873
    %v4317 = vpop.f32.mrf.mxu0
    %v4318 = vadd.f32 %v4109, %v4317
    %4319 = vmatmul.f32.gmra.mxu0 %v3874
    %v4320 = vpop.f32.mrf.mxu0
    %v4321 = vadd.f32 %v4112, %v4320
    %4322 = vmatmul.f32.gmra.mxu0 %v3875
    %v4323 = vpop.f32.mrf.mxu0
    %v4324 = vadd.f32 %v4115, %v4323
    %4325 = vmatmul.f32.gmra.mxu0 %v3876
    %v4326 = vpop.f32.mrf.mxu0
    %v4327 = vadd.f32 %v4118, %v4326
    %4328 = vmatmul.f32.gmra.mxu0 %v3877
    %v4329 = vpop.f32.mrf.mxu0
    %v4330 = vadd.f32 %v4121, %v4329
    %4331 = vmatmul.f32.gmra.mxu0 %v3878
    %v4332 = vpop.f32.mrf.mxu0
    %v4333 = vadd.f32 %v4124, %v4332
    %4334 = vmatmul.f32.gmra.mxu0 %v3879
    %v4335 = vpop.f32.mrf.mxu0
    %v4336 = vadd.f32 %v4127, %v4335
    %4337 = vmatmul.f32.gmra.mxu0 %v3880
    %v4338 = vpop.f32.mrf.mxu0
    %v4339 = vadd.f32 %v4130, %v4338
    %4340 = vmatmul.f32.gmra.mxu0 %v3881
    %v4341 = vpop.f32.mrf.mxu0
    %v4342 = vadd.f32 %v4133, %v4341
    %4343 = vmatmul.f32.gmra.mxu0 %v3882
    %v4344 = vpop.f32.mrf.mxu0
    %v4345 = vadd.f32 %v4136, %v4344
    %4346 = vmatmul.f32.gmra.mxu0 %v3883
    %v4347 = vpop.f32.mrf.mxu0
    %v4348 = vadd.f32 %v4139, %v4347
    %4349 = vmatmul.f32.gmra.mxu0 %v3884
    %v4350 = vpop.f32.mrf.mxu0
    %v4351 = vadd.f32 %v4142, %v4350
    %4352 = vmatmul.f32.gmra.mxu0 %v3885
    %v4353 = vpop.f32.mrf.mxu0
    %v4354 = vadd.f32 %v4145, %v4353
    %4355 = vmatmul.f32.gmra.mxu0 %v3886
    %v4356 = vpop.f32.mrf.mxu0
    %v4357 = vadd.f32 %v4148, %v4356
    %4358 = vmatmul.f32.gmra.mxu0 %v3887
    %v4359 = vpop.f32.mrf.mxu0
    %v4360 = vadd.f32 %v4151, %v4359
    %4361 = vmatmul.f32.gmra.mxu0 %v3888
    %v4362 = vpop.f32.mrf.mxu0
    %v4363 = vadd.f32 %v4154, %v4362
    %4364 = vmatmul.f32.gmra.mxu0 %v3889
    %v4365 = vpop.f32.mrf.mxu0
    %v4366 = vadd.f32 %v4157, %v4365
    %4367 = vmatmul.f32.gmra.mxu0 %v3890
    %v4368 = vpop.f32.mrf.mxu0
    %v4369 = vadd.f32 %v4160, %v4368
    %4370 = vmatmul.f32.gmra.mxu0 %v3891
    %v4371 = vpop.f32.mrf.mxu0
    %v4372 = vadd.f32 %v4163, %v4371
    %4373 = vmatmul.f32.gmra.mxu0 %v3892
    %v4374 = vpop.f32.mrf.mxu0
    %v4375 = vadd.f32 %v4166, %v4374
    %4376 = vmatmul.f32.gmra.mxu0 %v3893
    %v4377 = vpop.f32.mrf.mxu0
    %v4378 = vadd.f32 %v4169, %v4377
    %4379 = vmatmul.f32.gmra.mxu0 %v3894
    %v4380 = vpop.f32.mrf.mxu0
    %v4381 = vadd.f32 %v4172, %v4380
    %4382 = vmatmul.f32.gmra.mxu0 %v3895
    %v4383 = vpop.f32.mrf.mxu0
    %v4384 = vadd.f32 %v4175, %v4383
    %4385 = vmatmul.f32.gmra.mxu0 %v3896
    %v4386 = vpop.f32.mrf.mxu0
    %v4387 = vadd.f32 %v4178, %v4386
    %4388 = vmatmul.f32.gmra.mxu0 %v3897
    %v4389 = vpop.f32.mrf.mxu0
    %v4390 = vadd.f32 %v4181, %v4389
    %4391 = vmatmul.f32.gmra.mxu0 %v3898
    %v4392 = vpop.f32.mrf.mxu0
    %v4393 = vadd.f32 %v4184, %v4392
    %4394 = vmatmul.f32.gmra.mxu0 %v3899
    %v4395 = vpop.f32.mrf.mxu0
    %v4396 = vadd.f32 %v4187, %v4395
    %4397 = vmatmul.f32.gmra.mxu0 %v3900
    %v4398 = vpop.f32.mrf.mxu0
    %v4399 = vadd.f32 %v4190, %v4398
    %4400 = vmatmul.f32.gmra.mxu0 %v3901
    %v4401 = vpop.f32.mrf.mxu0
    %v4402 = vadd.f32 %v4193, %v4401
    %4403 = vmatmul.f32.gmra.mxu0 %v3902
    %v4404 = vpop.f32.mrf.mxu0
    %v4405 = vadd.f32 %v4196, %v4404
    %4406 = vmatmul.f32.gmra.mxu0 %v3903
    %v4407 = vpop.f32.mrf.mxu0
    %v4408 = vadd.f32 %v4199, %v4407
    %4409 = vmatmul.f32.gmra.mxu0 %v3904
    %v4410 = vpop.f32.mrf.mxu0
    %v4411 = vadd.f32 %v4202, %v4410
    %4412 = vmatmul.f32.gmra.mxu0 %v3905
    %v4413 = vpop.f32.mrf.mxu0
    %v4414 = vadd.f32 %v4205, %v4413
    %4415 = vmatmul.f32.gmra.mxu0 %v3906
    %v4416 = vpop.f32.mrf.mxu0
    %v4417 = vadd.f32 %v4208, %v4416
    %4418 = vmatmul.f32.gmra.mxu0 %v3907
    %v4419 = vpop.f32.mrf.mxu0
    %v4420 = vadd.f32 %v4211, %v4419
    %4421 = vmatmul.f32.gmra.mxu0 %v3908
    %v4422 = vpop.f32.mrf.mxu0
    %v4423 = vadd.f32 %v4214, %v4422
    %4424 = vdwg.mxu0
    %v4425 = vld [vmem:[#allocation2 + $0x2] sm:$0xff]
    %v4426 = vld [vmem:[#allocation2 + $0xa] sm:$0xff]
    %v4427 = vld [vmem:[#allocation2 + $0x1a] sm:$0xff]
    %v4428 = vld [vmem:[#allocation2 + $0x22] sm:$0xff]
    %v4429 = vld [vmem:[#allocation2 + $0x32] sm:$0xff]
    %v4430 = vld [vmem:[#allocation2 + $0x3a] sm:$0xff]
    %v4431 = vld [vmem:[#allocation2 + $0x4a] sm:$0xff]
    %v4432 = vld [vmem:[#allocation2 + $0x52] sm:$0xff]
    %v4433 = vld [vmem:[#allocation2 + $0x62] sm:$0xff]
    %v4434 = vld [vmem:[#allocation2 + $0x6a] sm:$0xff]
    %v4435 = vld [vmem:[#allocation2 + $0x7a] sm:$0xff]
    %v4436 = vld [vmem:[#allocation2 + $0x82] sm:$0xff]
    %v4437 = vld [vmem:[#allocation2 + $0x92] sm:$0xff]
    %v4438 = vld [vmem:[#allocation2 + $0x9a] sm:$0xff]
    %v4439 = vld [vmem:[#allocation2 + $0xaa] sm:$0xff]
    %v4440 = vld [vmem:[#allocation2 + $0xb2] sm:$0xff]
    %v4441 = vld [vmem:[#allocation2 + $0xc2] sm:$0xff]
    %v4442 = vld [vmem:[#allocation2 + $0xca] sm:$0xff]
    %v4443 = vld [vmem:[#allocation2 + $0xda] sm:$0xff]
    %v4444 = vld [vmem:[#allocation2 + $0xe2] sm:$0xff]
    %v4445 = vld [vmem:[#allocation2 + $0xf2] sm:$0xff]
    %v4446 = vld [vmem:[#allocation2 + $0xfa] sm:$0xff]
    %v4447 = vld [vmem:[#allocation2 + $0x10a] sm:$0xff]
    %v4448 = vld [vmem:[#allocation2 + $0x112] sm:$0xff]
    %v4449 = vld [vmem:[#allocation2 + $0x122] sm:$0xff]
    %v4450 = vld [vmem:[#allocation2 + $0x12a] sm:$0xff]
    %v4451 = vld [vmem:[#allocation2 + $0x13a] sm:$0xff]
    %v4452 = vld [vmem:[#allocation2 + $0x142] sm:$0xff]
    %v4453 = vld [vmem:[#allocation2 + $0x152] sm:$0xff]
    %v4454 = vld [vmem:[#allocation2 + $0x15a] sm:$0xff]
    %v4455 = vld [vmem:[#allocation2 + $0x16a] sm:$0xff]
    %v4456 = vld [vmem:[#allocation2 + $0x172] sm:$0xff]
    %v4457 = vld [vmem:[#allocation2 + $0x1b2] sm:$0xff]
    %v4458 = vld [vmem:[#allocation2 + $0x1ba] sm:$0xff]
    %v4459 = vld [vmem:[#allocation2 + $0x1ca] sm:$0xff]
    %v4460 = vld [vmem:[#allocation2 + $0x1d2] sm:$0xff]
    %v4461 = vld [vmem:[#allocation2 + $0x1e2] sm:$0xff]
    %v4462 = vld [vmem:[#allocation2 + $0x1ea] sm:$0xff]
    %v4463 = vld [vmem:[#allocation2 + $0x1fa] sm:$0xff]
    %v4464 = vld [vmem:[#allocation2 + $0x202] sm:$0xff]
    %v4465 = vld [vmem:[#allocation2 + $0x212] sm:$0xff]
    %v4466 = vld [vmem:[#allocation2 + $0x21a] sm:$0xff]
    %v4467 = vld [vmem:[#allocation2 + $0x22a] sm:$0xff]
    %v4468 = vld [vmem:[#allocation2 + $0x232] sm:$0xff]
    %v4469 = vld [vmem:[#allocation2 + $0x242] sm:$0xff]
    %v4470 = vld [vmem:[#allocation2 + $0x24a] sm:$0xff]
    %v4471 = vld [vmem:[#allocation2 + $0x25a] sm:$0xff]
    %v4472 = vld [vmem:[#allocation2 + $0x262] sm:$0xff]
    %v4473 = vld [vmem:[#allocation2 + $0x272] sm:$0xff]
    %v4474 = vld [vmem:[#allocation2 + $0x27a] sm:$0xff]
    %v4475 = vld [vmem:[#allocation2 + $0x28a] sm:$0xff]
    %v4476 = vld [vmem:[#allocation2 + $0x292] sm:$0xff]
    %v4477 = vld [vmem:[#allocation2 + $0x2a2] sm:$0xff]
    %v4478 = vld [vmem:[#allocation2 + $0x2aa] sm:$0xff]
    %v4479 = vld [vmem:[#allocation2 + $0x2ba] sm:$0xff]
    %v4480 = vld [vmem:[#allocation2 + $0x2c2] sm:$0xff]
    %v4481 = vld [vmem:[#allocation2 + $0x2d2] sm:$0xff]
    %v4482 = vld [vmem:[#allocation2 + $0x2da] sm:$0xff]
    %v4483 = vld [vmem:[#allocation2 + $0x2ea] sm:$0xff]
    %v4484 = vld [vmem:[#allocation2 + $0x2f2] sm:$0xff]
    %v4485 = vld [vmem:[#allocation2 + $0x302] sm:$0xff]
    %v4486 = vld [vmem:[#allocation2 + $0x30a] sm:$0xff]
    %v4487 = vld [vmem:[#allocation2 + $0x31a] sm:$0xff]
    %v4488 = vld [vmem:[#allocation2 + $0x322] sm:$0xff]
    %s4489 = scalar_lea.vmem [#allocation6], 1408
    %v4490 = vld [vmem:[%s4489] sm:$0xff]
    %v4491 = vld [vmem:[%s4489 + $0x8] sm:$0xff]
    %v4492 = vld [vmem:[%s4489 + $0x10] sm:$0xff]
    %v4493 = vld [vmem:[%s4489 + $0x18] sm:$0xff]
    %v4494 = vld [vmem:[%s4489 + $0x20] sm:$0xff]
    %v4495 = vld [vmem:[%s4489 + $0x28] sm:$0xff]
    %v4496 = vld [vmem:[%s4489 + $0x30] sm:$0xff]
    %v4497 = vld [vmem:[%s4489 + $0x38] sm:$0xff]
    %v4498 = vld [vmem:[%s4489 + $0x40] sm:$0xff]
    %v4499 = vld [vmem:[%s4489 + $0x48] sm:$0xff]
    %v4500 = vld [vmem:[%s4489 + $0x50] sm:$0xff]
    %v4501 = vld [vmem:[%s4489 + $0x58] sm:$0xff]
    %v4502 = vld [vmem:[%s4489 + $0x60] sm:$0xff]
    %v4503 = vld [vmem:[%s4489 + $0x68] sm:$0xff]
    %v4504 = vld [vmem:[%s4489 + $0x70] sm:$0xff]
    %v4505 = vld [vmem:[%s4489 + $0x78] sm:$0xff]
    %4506 = vmatpush.msra.mxu0 %v4505
    %4507 = vmatpush.msra.mxu0 %v4504
    %4508 = vmatpush.msra.mxu0 %v4503
    %4509 = vmatpush.msra.mxu0 %v4502
    %4510 = vmatpush.msra.mxu0 %v4501
    %4511 = vmatpush.msra.mxu0 %v4500
    %4512 = vmatpush.msra.mxu0 %v4499
    %4513 = vmatpush.msra.mxu0 %v4498
    %4514 = vmatpush.msra.mxu0 %v4497
    %4515 = vmatpush.msra.mxu0 %v4496
    %4516 = vmatpush.msra.mxu0 %v4495
    %4517 = vmatpush.msra.mxu0 %v4494
    %4518 = vmatpush.msra.mxu0 %v4493
    %4519 = vmatpush.msra.mxu0 %v4492
    %4520 = vmatpush.msra.mxu0 %v4491
    %4521 = vmatpush.msra.mxu0 %v4490
    %4522 = vmatmul.f32.gmra.mxu0 %v4425
    %v4523 = vpop.f32.mrf.mxu0
    %v4524 = vadd.f32 0.0, %v4523
    %4525 = vmatmul.f32.gmra.mxu0 %v4426
    %v4526 = vpop.f32.mrf.mxu0
    %v4527 = vadd.f32 0.0, %v4526
    %4528 = vmatmul.f32.gmra.mxu0 %v4427
    %v4529 = vpop.f32.mrf.mxu0
    %v4530 = vadd.f32 0.0, %v4529
    %4531 = vmatmul.f32.gmra.mxu0 %v4428
    %v4532 = vpop.f32.mrf.mxu0
    %v4533 = vadd.f32 0.0, %v4532
    %4534 = vmatmul.f32.gmra.mxu0 %v4429
    %v4535 = vpop.f32.mrf.mxu0
    %v4536 = vadd.f32 0.0, %v4535
    %4537 = vmatmul.f32.gmra.mxu0 %v4430
    %v4538 = vpop.f32.mrf.mxu0
    %v4539 = vadd.f32 0.0, %v4538
    %4540 = vmatmul.f32.gmra.mxu0 %v4431
    %v4541 = vpop.f32.mrf.mxu0
    %v4542 = vadd.f32 0.0, %v4541
    %4543 = vmatmul.f32.gmra.mxu0 %v4432
    %v4544 = vpop.f32.mrf.mxu0
    %v4545 = vadd.f32 0.0, %v4544
    %4546 = vmatmul.f32.gmra.mxu0 %v4433
    %v4547 = vpop.f32.mrf.mxu0
    %v4548 = vadd.f32 0.0, %v4547
    %4549 = vmatmul.f32.gmra.mxu0 %v4434
    %v4550 = vpop.f32.mrf.mxu0
    %v4551 = vadd.f32 0.0, %v4550
    %4552 = vmatmul.f32.gmra.mxu0 %v4435
    %v4553 = vpop.f32.mrf.mxu0
    %v4554 = vadd.f32 0.0, %v4553
    %4555 = vmatmul.f32.gmra.mxu0 %v4436
    %v4556 = vpop.f32.mrf.mxu0
    %v4557 = vadd.f32 0.0, %v4556
    %4558 = vmatmul.f32.gmra.mxu0 %v4437
    %v4559 = vpop.f32.mrf.mxu0
    %v4560 = vadd.f32 0.0, %v4559
    %4561 = vmatmul.f32.gmra.mxu0 %v4438
    %v4562 = vpop.f32.mrf.mxu0
    %v4563 = vadd.f32 0.0, %v4562
    %4564 = vmatmul.f32.gmra.mxu0 %v4439
    %v4565 = vpop.f32.mrf.mxu0
    %v4566 = vadd.f32 0.0, %v4565
    %4567 = vmatmul.f32.gmra.mxu0 %v4440
    %v4568 = vpop.f32.mrf.mxu0
    %v4569 = vadd.f32 0.0, %v4568
    %4570 = vmatmul.f32.gmra.mxu0 %v4441
    %v4571 = vpop.f32.mrf.mxu0
    %v4572 = vadd.f32 0.0, %v4571
    %4573 = vmatmul.f32.gmra.mxu0 %v4442
    %v4574 = vpop.f32.mrf.mxu0
    %v4575 = vadd.f32 0.0, %v4574
    %4576 = vmatmul.f32.gmra.mxu0 %v4443
    %v4577 = vpop.f32.mrf.mxu0
    %v4578 = vadd.f32 0.0, %v4577
    %4579 = vmatmul.f32.gmra.mxu0 %v4444
    %v4580 = vpop.f32.mrf.mxu0
    %v4581 = vadd.f32 0.0, %v4580
    %4582 = vmatmul.f32.gmra.mxu0 %v4445
    %v4583 = vpop.f32.mrf.mxu0
    %v4584 = vadd.f32 0.0, %v4583
    %4585 = vmatmul.f32.gmra.mxu0 %v4446
    %v4586 = vpop.f32.mrf.mxu0
    %v4587 = vadd.f32 0.0, %v4586
    %4588 = vmatmul.f32.gmra.mxu0 %v4447
    %v4589 = vpop.f32.mrf.mxu0
    %v4590 = vadd.f32 0.0, %v4589
    %4591 = vmatmul.f32.gmra.mxu0 %v4448
    %v4592 = vpop.f32.mrf.mxu0
    %v4593 = vadd.f32 0.0, %v4592
    %4594 = vmatmul.f32.gmra.mxu0 %v4449
    %v4595 = vpop.f32.mrf.mxu0
    %v4596 = vadd.f32 0.0, %v4595
    %4597 = vmatmul.f32.gmra.mxu0 %v4450
    %v4598 = vpop.f32.mrf.mxu0
    %v4599 = vadd.f32 0.0, %v4598
    %4600 = vmatmul.f32.gmra.mxu0 %v4451
    %v4601 = vpop.f32.mrf.mxu0
    %v4602 = vadd.f32 0.0, %v4601
    %4603 = vmatmul.f32.gmra.mxu0 %v4452
    %v4604 = vpop.f32.mrf.mxu0
    %v4605 = vadd.f32 0.0, %v4604
    %4606 = vmatmul.f32.gmra.mxu0 %v4453
    %v4607 = vpop.f32.mrf.mxu0
    %v4608 = vadd.f32 0.0, %v4607
    %4609 = vmatmul.f32.gmra.mxu0 %v4454
    %v4610 = vpop.f32.mrf.mxu0
    %v4611 = vadd.f32 0.0, %v4610
    %4612 = vmatmul.f32.gmra.mxu0 %v4455
    %v4613 = vpop.f32.mrf.mxu0
    %v4614 = vadd.f32 0.0, %v4613
    %4615 = vmatmul.f32.gmra.mxu0 %v4456
    %v4616 = vpop.f32.mrf.mxu0
    %v4617 = vadd.f32 0.0, %v4616
    %4618 = vmatmul.f32.gmra.mxu0 %v4457
    %v4619 = vpop.f32.mrf.mxu0
    %v4620 = vadd.f32 0.0, %v4619
    %4621 = vmatmul.f32.gmra.mxu0 %v4458
    %v4622 = vpop.f32.mrf.mxu0
    %v4623 = vadd.f32 0.0, %v4622
    %4624 = vmatmul.f32.gmra.mxu0 %v4459
    %v4625 = vpop.f32.mrf.mxu0
    %v4626 = vadd.f32 0.0, %v4625
    %4627 = vmatmul.f32.gmra.mxu0 %v4460
    %v4628 = vpop.f32.mrf.mxu0
    %v4629 = vadd.f32 0.0, %v4628
    %4630 = vmatmul.f32.gmra.mxu0 %v4461
    %v4631 = vpop.f32.mrf.mxu0
    %v4632 = vadd.f32 0.0, %v4631
    %4633 = vmatmul.f32.gmra.mxu0 %v4462
    %v4634 = vpop.f32.mrf.mxu0
    %v4635 = vadd.f32 0.0, %v4634
    %4636 = vmatmul.f32.gmra.mxu0 %v4463
    %v4637 = vpop.f32.mrf.mxu0
    %v4638 = vadd.f32 0.0, %v4637
    %4639 = vmatmul.f32.gmra.mxu0 %v4464
    %v4640 = vpop.f32.mrf.mxu0
    %v4641 = vadd.f32 0.0, %v4640
    %4642 = vmatmul.f32.gmra.mxu0 %v4465
    %v4643 = vpop.f32.mrf.mxu0
    %v4644 = vadd.f32 0.0, %v4643
    %4645 = vmatmul.f32.gmra.mxu0 %v4466
    %v4646 = vpop.f32.mrf.mxu0
    %v4647 = vadd.f32 0.0, %v4646
    %4648 = vmatmul.f32.gmra.mxu0 %v4467
    %v4649 = vpop.f32.mrf.mxu0
    %v4650 = vadd.f32 0.0, %v4649
    %4651 = vmatmul.f32.gmra.mxu0 %v4468
    %v4652 = vpop.f32.mrf.mxu0
    %v4653 = vadd.f32 0.0, %v4652
    %4654 = vmatmul.f32.gmra.mxu0 %v4469
    %v4655 = vpop.f32.mrf.mxu0
    %v4656 = vadd.f32 0.0, %v4655
    %4657 = vmatmul.f32.gmra.mxu0 %v4470
    %v4658 = vpop.f32.mrf.mxu0
    %v4659 = vadd.f32 0.0, %v4658
    %4660 = vmatmul.f32.gmra.mxu0 %v4471
    %v4661 = vpop.f32.mrf.mxu0
    %v4662 = vadd.f32 0.0, %v4661
    %4663 = vmatmul.f32.gmra.mxu0 %v4472
    %v4664 = vpop.f32.mrf.mxu0
    %v4665 = vadd.f32 0.0, %v4664
    %4666 = vmatmul.f32.gmra.mxu0 %v4473
    %v4667 = vpop.f32.mrf.mxu0
    %v4668 = vadd.f32 0.0, %v4667
    %4669 = vmatmul.f32.gmra.mxu0 %v4474
    %v4670 = vpop.f32.mrf.mxu0
    %v4671 = vadd.f32 0.0, %v4670
    %4672 = vmatmul.f32.gmra.mxu0 %v4475
    %v4673 = vpop.f32.mrf.mxu0
    %v4674 = vadd.f32 0.0, %v4673
    %4675 = vmatmul.f32.gmra.mxu0 %v4476
    %v4676 = vpop.f32.mrf.mxu0
    %v4677 = vadd.f32 0.0, %v4676
    %4678 = vmatmul.f32.gmra.mxu0 %v4477
    %v4679 = vpop.f32.mrf.mxu0
    %v4680 = vadd.f32 0.0, %v4679
    %4681 = vmatmul.f32.gmra.mxu0 %v4478
    %v4682 = vpop.f32.mrf.mxu0
    %v4683 = vadd.f32 0.0, %v4682
    %4684 = vmatmul.f32.gmra.mxu0 %v4479
    %v4685 = vpop.f32.mrf.mxu0
    %v4686 = vadd.f32 0.0, %v4685
    %4687 = vmatmul.f32.gmra.mxu0 %v4480
    %v4688 = vpop.f32.mrf.mxu0
    %v4689 = vadd.f32 0.0, %v4688
    %4690 = vmatmul.f32.gmra.mxu0 %v4481
    %v4691 = vpop.f32.mrf.mxu0
    %v4692 = vadd.f32 0.0, %v4691
    %4693 = vmatmul.f32.gmra.mxu0 %v4482
    %v4694 = vpop.f32.mrf.mxu0
    %v4695 = vadd.f32 0.0, %v4694
    %4696 = vmatmul.f32.gmra.mxu0 %v4483
    %v4697 = vpop.f32.mrf.mxu0
    %v4698 = vadd.f32 0.0, %v4697
    %4699 = vmatmul.f32.gmra.mxu0 %v4484
    %v4700 = vpop.f32.mrf.mxu0
    %v4701 = vadd.f32 0.0, %v4700
    %4702 = vmatmul.f32.gmra.mxu0 %v4485
    %v4703 = vpop.f32.mrf.mxu0
    %v4704 = vadd.f32 0.0, %v4703
    %4705 = vmatmul.f32.gmra.mxu0 %v4486
    %v4706 = vpop.f32.mrf.mxu0
    %v4707 = vadd.f32 0.0, %v4706
    %4708 = vmatmul.f32.gmra.mxu0 %v4487
    %v4709 = vpop.f32.mrf.mxu0
    %v4710 = vadd.f32 0.0, %v4709
    %4711 = vmatmul.f32.gmra.mxu0 %v4488
    %v4712 = vpop.f32.mrf.mxu0
    %v4713 = vadd.f32 0.0, %v4712
    %4714 = vdwg.mxu0
    %v4715 = vadd.f32 %v4234, %v4524
    %v4716 = vadd.f32 %v4237, %v4527
    %v4717 = vadd.f32 %v4240, %v4530
    %v4718 = vadd.f32 %v4243, %v4533
    %v4719 = vadd.f32 %v4246, %v4536
    %v4720 = vadd.f32 %v4249, %v4539
    %v4721 = vadd.f32 %v4252, %v4542
    %v4722 = vadd.f32 %v4255, %v4545
    %v4723 = vadd.f32 %v4258, %v4548
    %v4724 = vadd.f32 %v4261, %v4551
    %v4725 = vadd.f32 %v4264, %v4554
    %v4726 = vadd.f32 %v4267, %v4557
    %v4727 = vadd.f32 %v4270, %v4560
    %v4728 = vadd.f32 %v4273, %v4563
    %v4729 = vadd.f32 %v4276, %v4566
    %v4730 = vadd.f32 %v4279, %v4569
    %v4731 = vadd.f32 %v4282, %v4572
    %v4732 = vadd.f32 %v4285, %v4575
    %v4733 = vadd.f32 %v4288, %v4578
    %v4734 = vadd.f32 %v4291, %v4581
    %v4735 = vadd.f32 %v4294, %v4584
    %v4736 = vadd.f32 %v4297, %v4587
    %v4737 = vadd.f32 %v4300, %v4590
    %v4738 = vadd.f32 %v4303, %v4593
    %v4739 = vadd.f32 %v4306, %v4596
    %v4740 = vadd.f32 %v4309, %v4599
    %v4741 = vadd.f32 %v4312, %v4602
    %v4742 = vadd.f32 %v4315, %v4605
    %v4743 = vadd.f32 %v4318, %v4608
    %v4744 = vadd.f32 %v4321, %v4611
    %v4745 = vadd.f32 %v4324, %v4614
    %v4746 = vadd.f32 %v4327, %v4617
    %v4747 = vadd.f32 %v4330, %v4620
    %v4748 = vadd.f32 %v4333, %v4623
    %v4749 = vadd.f32 %v4336, %v4626
    %v4750 = vadd.f32 %v4339, %v4629
    %v4751 = vadd.f32 %v4342, %v4632
    %v4752 = vadd.f32 %v4345, %v4635
    %v4753 = vadd.f32 %v4348, %v4638
    %v4754 = vadd.f32 %v4351, %v4641
    %v4755 = vadd.f32 %v4354, %v4644
    %v4756 = vadd.f32 %v4357, %v4647
    %v4757 = vadd.f32 %v4360, %v4650
    %v4758 = vadd.f32 %v4363, %v4653
    %v4759 = vadd.f32 %v4366, %v4656
    %v4760 = vadd.f32 %v4369, %v4659
    %v4761 = vadd.f32 %v4372, %v4662
    %v4762 = vadd.f32 %v4375, %v4665
    %v4763 = vadd.f32 %v4378, %v4668
    %v4764 = vadd.f32 %v4381, %v4671
    %v4765 = vadd.f32 %v4384, %v4674
    %v4766 = vadd.f32 %v4387, %v4677
    %v4767 = vadd.f32 %v4390, %v4680
    %v4768 = vadd.f32 %v4393, %v4683
    %v4769 = vadd.f32 %v4396, %v4686
    %v4770 = vadd.f32 %v4399, %v4689
    %v4771 = vadd.f32 %v4402, %v4692
    %v4772 = vadd.f32 %v4405, %v4695
    %v4773 = vadd.f32 %v4408, %v4698
    %v4774 = vadd.f32 %v4411, %v4701
    %v4775 = vadd.f32 %v4414, %v4704
    %v4776 = vadd.f32 %v4417, %v4707
    %v4777 = vadd.f32 %v4420, %v4710
    %v4778 = vadd.f32 %v4423, %v4713
    %v4779 = vld [vmem:[%s230] sm:$0xff]
    %v4780 = vld [vmem:[%s230 + $0x8] sm:$0xff]
    %v4781 = vld [vmem:[%s230 + $0x18] sm:$0xff]
    %v4782 = vld [vmem:[%s230 + $0x20] sm:$0xff]
    %v4783 = vld [vmem:[%s230 + $0x30] sm:$0xff]
    %v4784 = vld [vmem:[%s230 + $0x38] sm:$0xff]
    %v4785 = vld [vmem:[%s230 + $0x48] sm:$0xff]
    %v4786 = vld [vmem:[%s230 + $0x50] sm:$0xff]
    %v4787 = vld [vmem:[%s230 + $0x60] sm:$0xff]
    %v4788 = vld [vmem:[%s230 + $0x68] sm:$0xff]
    %v4789 = vld [vmem:[%s230 + $0x78] sm:$0xff]
    %v4790 = vld [vmem:[%s230 + $0x80] sm:$0xff]
    %v4791 = vld [vmem:[%s230 + $0x90] sm:$0xff]
    %v4792 = vld [vmem:[%s230 + $0x98] sm:$0xff]
    %v4793 = vld [vmem:[%s230 + $0xa8] sm:$0xff]
    %v4794 = vld [vmem:[%s230 + $0xb0] sm:$0xff]
    %v4795 = vld [vmem:[%s230 + $0xc0] sm:$0xff]
    %v4796 = vld [vmem:[%s230 + $0xc8] sm:$0xff]
    %v4797 = vld [vmem:[%s230 + $0xd8] sm:$0xff]
    %v4798 = vld [vmem:[%s230 + $0xe0] sm:$0xff]
    %v4799 = vld [vmem:[%s230 + $0xf0] sm:$0xff]
    %v4800 = vld [vmem:[%s230 + $0xf8] sm:$0xff]
    %v4801 = vld [vmem:[%s230 + $0x108] sm:$0xff]
    %v4802 = vld [vmem:[%s230 + $0x110] sm:$0xff]
    %v4803 = vld [vmem:[%s230 + $0x120] sm:$0xff]
    %v4804 = vld [vmem:[%s230 + $0x128] sm:$0xff]
    %v4805 = vld [vmem:[%s230 + $0x138] sm:$0xff]
    %v4806 = vld [vmem:[%s230 + $0x140] sm:$0xff]
    %v4807 = vld [vmem:[%s230 + $0x150] sm:$0xff]
    %v4808 = vld [vmem:[%s230 + $0x158] sm:$0xff]
    %v4809 = vld [vmem:[%s230 + $0x168] sm:$0xff]
    %v4810 = vld [vmem:[%s230 + $0x170] sm:$0xff]
    %v4811 = vld [vmem:[%s230 + $0x1b0] sm:$0xff]
    %v4812 = vld [vmem:[%s230 + $0x1b8] sm:$0xff]
    %v4813 = vld [vmem:[%s230 + $0x1c8] sm:$0xff]
    %v4814 = vld [vmem:[%s230 + $0x1d0] sm:$0xff]
    %v4815 = vld [vmem:[%s230 + $0x1e0] sm:$0xff]
    %v4816 = vld [vmem:[%s230 + $0x1e8] sm:$0xff]
    %v4817 = vld [vmem:[%s230 + $0x1f8] sm:$0xff]
    %v4818 = vld [vmem:[%s230 + $0x200] sm:$0xff]
    %v4819 = vld [vmem:[%s230 + $0x210] sm:$0xff]
    %v4820 = vld [vmem:[%s230 + $0x218] sm:$0xff]
    %v4821 = vld [vmem:[%s230 + $0x228] sm:$0xff]
    %v4822 = vld [vmem:[%s230 + $0x230] sm:$0xff]
    %v4823 = vld [vmem:[%s230 + $0x240] sm:$0xff]
    %v4824 = vld [vmem:[%s230 + $0x248] sm:$0xff]
    %v4825 = vld [vmem:[%s230 + $0x258] sm:$0xff]
    %v4826 = vld [vmem:[%s230 + $0x260] sm:$0xff]
    %v4827 = vld [vmem:[%s230 + $0x270] sm:$0xff]
    %v4828 = vld [vmem:[%s230 + $0x278] sm:$0xff]
    %v4829 = vld [vmem:[%s230 + $0x288] sm:$0xff]
    %v4830 = vld [vmem:[%s230 + $0x290] sm:$0xff]
    %v4831 = vld [vmem:[%s230 + $0x2a0] sm:$0xff]
    %v4832 = vld [vmem:[%s230 + $0x2a8] sm:$0xff]
    %v4833 = vld [vmem:[%s230 + $0x2b8] sm:$0xff]
    %v4834 = vld [vmem:[%s230 + $0x2c0] sm:$0xff]
    %v4835 = vld [vmem:[%s230 + $0x2d0] sm:$0xff]
    %v4836 = vld [vmem:[%s230 + $0x2d8] sm:$0xff]
    %v4837 = vld [vmem:[%s230 + $0x2e8] sm:$0xff]
    %v4838 = vld [vmem:[%s230 + $0x2f0] sm:$0xff]
    %v4839 = vld [vmem:[%s230 + $0x300] sm:$0xff]
    %v4840 = vld [vmem:[%s230 + $0x308] sm:$0xff]
    %v4841 = vld [vmem:[%s230 + $0x318] sm:$0xff]
    %v4842 = vld [vmem:[%s230 + $0x320] sm:$0xff]
    %s4843 = scalar_lea.vmem [#allocation6], 1536
    %v4844 = vld [vmem:[%s4843] sm:$0xff]
    %v4845 = vld [vmem:[%s4843 + $0x8] sm:$0xff]
    %v4846 = vld [vmem:[%s4843 + $0x10] sm:$0xff]
    %v4847 = vld [vmem:[%s4843 + $0x18] sm:$0xff]
    %v4848 = vld [vmem:[%s4843 + $0x20] sm:$0xff]
    %v4849 = vld [vmem:[%s4843 + $0x28] sm:$0xff]
    %v4850 = vld [vmem:[%s4843 + $0x30] sm:$0xff]
    %v4851 = vld [vmem:[%s4843 + $0x38] sm:$0xff]
    %v4852 = vld [vmem:[%s4843 + $0x40] sm:$0xff]
    %v4853 = vld [vmem:[%s4843 + $0x48] sm:$0xff]
    %v4854 = vld [vmem:[%s4843 + $0x50] sm:$0xff]
    %v4855 = vld [vmem:[%s4843 + $0x58] sm:$0xff]
    %v4856 = vld [vmem:[%s4843 + $0x60] sm:$0xff]
    %v4857 = vld [vmem:[%s4843 + $0x68] sm:$0xff]
    %v4858 = vld [vmem:[%s4843 + $0x70] sm:$0xff]
    %v4859 = vld [vmem:[%s4843 + $0x78] sm:$0xff]
    %4860 = vmatpush.msra.mxu0 %v4859
    %4861 = vmatpush.msra.mxu0 %v4858
    %4862 = vmatpush.msra.mxu0 %v4857
    %4863 = vmatpush.msra.mxu0 %v4856
    %4864 = vmatpush.msra.mxu0 %v4855
    %4865 = vmatpush.msra.mxu0 %v4854
    %4866 = vmatpush.msra.mxu0 %v4853
    %4867 = vmatpush.msra.mxu0 %v4852
    %4868 = vmatpush.msra.mxu0 %v4851
    %4869 = vmatpush.msra.mxu0 %v4850
    %4870 = vmatpush.msra.mxu0 %v4849
    %4871 = vmatpush.msra.mxu0 %v4848
    %4872 = vmatpush.msra.mxu0 %v4847
    %4873 = vmatpush.msra.mxu0 %v4846
    %4874 = vmatpush.msra.mxu0 %v4845
    %4875 = vmatpush.msra.mxu0 %v4844
    %4876 = vmatmul.f32.gmra.mxu0 %v4779
    %v4877 = vpop.f32.mrf.mxu0
    %v4878 = vadd.f32 0.0, %v4877
    %4879 = vmatmul.f32.gmra.mxu0 %v4780
    %v4880 = vpop.f32.mrf.mxu0
    %v4881 = vadd.f32 0.0, %v4880
    %4882 = vmatmul.f32.gmra.mxu0 %v4781
    %v4883 = vpop.f32.mrf.mxu0
    %v4884 = vadd.f32 0.0, %v4883
    %4885 = vmatmul.f32.gmra.mxu0 %v4782
    %v4886 = vpop.f32.mrf.mxu0
    %v4887 = vadd.f32 0.0, %v4886
    %4888 = vmatmul.f32.gmra.mxu0 %v4783
    %v4889 = vpop.f32.mrf.mxu0
    %v4890 = vadd.f32 0.0, %v4889
    %4891 = vmatmul.f32.gmra.mxu0 %v4784
    %v4892 = vpop.f32.mrf.mxu0
    %v4893 = vadd.f32 0.0, %v4892
    %4894 = vmatmul.f32.gmra.mxu0 %v4785
    %v4895 = vpop.f32.mrf.mxu0
    %v4896 = vadd.f32 0.0, %v4895
    %4897 = vmatmul.f32.gmra.mxu0 %v4786
    %v4898 = vpop.f32.mrf.mxu0
    %v4899 = vadd.f32 0.0, %v4898
    %4900 = vmatmul.f32.gmra.mxu0 %v4787
    %v4901 = vpop.f32.mrf.mxu0
    %v4902 = vadd.f32 0.0, %v4901
    %4903 = vmatmul.f32.gmra.mxu0 %v4788
    %v4904 = vpop.f32.mrf.mxu0
    %v4905 = vadd.f32 0.0, %v4904
    %4906 = vmatmul.f32.gmra.mxu0 %v4789
    %v4907 = vpop.f32.mrf.mxu0
    %v4908 = vadd.f32 0.0, %v4907
    %4909 = vmatmul.f32.gmra.mxu0 %v4790
    %v4910 = vpop.f32.mrf.mxu0
    %v4911 = vadd.f32 0.0, %v4910
    %4912 = vmatmul.f32.gmra.mxu0 %v4791
    %v4913 = vpop.f32.mrf.mxu0
    %v4914 = vadd.f32 0.0, %v4913
    %4915 = vmatmul.f32.gmra.mxu0 %v4792
    %v4916 = vpop.f32.mrf.mxu0
    %v4917 = vadd.f32 0.0, %v4916
    %4918 = vmatmul.f32.gmra.mxu0 %v4793
    %v4919 = vpop.f32.mrf.mxu0
    %v4920 = vadd.f32 0.0, %v4919
    %4921 = vmatmul.f32.gmra.mxu0 %v4794
    %v4922 = vpop.f32.mrf.mxu0
    %v4923 = vadd.f32 0.0, %v4922
    %4924 = vmatmul.f32.gmra.mxu0 %v4795
    %v4925 = vpop.f32.mrf.mxu0
    %v4926 = vadd.f32 0.0, %v4925
    %4927 = vmatmul.f32.gmra.mxu0 %v4796
    %v4928 = vpop.f32.mrf.mxu0
    %v4929 = vadd.f32 0.0, %v4928
    %4930 = vmatmul.f32.gmra.mxu0 %v4797
    %v4931 = vpop.f32.mrf.mxu0
    %v4932 = vadd.f32 0.0, %v4931
    %4933 = vmatmul.f32.gmra.mxu0 %v4798
    %v4934 = vpop.f32.mrf.mxu0
    %v4935 = vadd.f32 0.0, %v4934
    %4936 = vmatmul.f32.gmra.mxu0 %v4799
    %v4937 = vpop.f32.mrf.mxu0
    %v4938 = vadd.f32 0.0, %v4937
    %4939 = vmatmul.f32.gmra.mxu0 %v4800
    %v4940 = vpop.f32.mrf.mxu0
    %v4941 = vadd.f32 0.0, %v4940
    %4942 = vmatmul.f32.gmra.mxu0 %v4801
    %v4943 = vpop.f32.mrf.mxu0
    %v4944 = vadd.f32 0.0, %v4943
    %4945 = vmatmul.f32.gmra.mxu0 %v4802
    %v4946 = vpop.f32.mrf.mxu0
    %v4947 = vadd.f32 0.0, %v4946
    %4948 = vmatmul.f32.gmra.mxu0 %v4803
    %v4949 = vpop.f32.mrf.mxu0
    %v4950 = vadd.f32 0.0, %v4949
    %4951 = vmatmul.f32.gmra.mxu0 %v4804
    %v4952 = vpop.f32.mrf.mxu0
    %v4953 = vadd.f32 0.0, %v4952
    %4954 = vmatmul.f32.gmra.mxu0 %v4805
    %v4955 = vpop.f32.mrf.mxu0
    %v4956 = vadd.f32 0.0, %v4955
    %4957 = vmatmul.f32.gmra.mxu0 %v4806
    %v4958 = vpop.f32.mrf.mxu0
    %v4959 = vadd.f32 0.0, %v4958
    %4960 = vmatmul.f32.gmra.mxu0 %v4807
    %v4961 = vpop.f32.mrf.mxu0
    %v4962 = vadd.f32 0.0, %v4961
    %4963 = vmatmul.f32.gmra.mxu0 %v4808
    %v4964 = vpop.f32.mrf.mxu0
    %v4965 = vadd.f32 0.0, %v4964
    %4966 = vmatmul.f32.gmra.mxu0 %v4809
    %v4967 = vpop.f32.mrf.mxu0
    %v4968 = vadd.f32 0.0, %v4967
    %4969 = vmatmul.f32.gmra.mxu0 %v4810
    %v4970 = vpop.f32.mrf.mxu0
    %v4971 = vadd.f32 0.0, %v4970
    %4972 = vmatmul.f32.gmra.mxu0 %v4811
    %v4973 = vpop.f32.mrf.mxu0
    %v4974 = vadd.f32 0.0, %v4973
    %4975 = vmatmul.f32.gmra.mxu0 %v4812
    %v4976 = vpop.f32.mrf.mxu0
    %v4977 = vadd.f32 0.0, %v4976
    %4978 = vmatmul.f32.gmra.mxu0 %v4813
    %v4979 = vpop.f32.mrf.mxu0
    %v4980 = vadd.f32 0.0, %v4979
    %4981 = vmatmul.f32.gmra.mxu0 %v4814
    %v4982 = vpop.f32.mrf.mxu0
    %v4983 = vadd.f32 0.0, %v4982
    %4984 = vmatmul.f32.gmra.mxu0 %v4815
    %v4985 = vpop.f32.mrf.mxu0
    %v4986 = vadd.f32 0.0, %v4985
    %4987 = vmatmul.f32.gmra.mxu0 %v4816
    %v4988 = vpop.f32.mrf.mxu0
    %v4989 = vadd.f32 0.0, %v4988
    %4990 = vmatmul.f32.gmra.mxu0 %v4817
    %v4991 = vpop.f32.mrf.mxu0
    %v4992 = vadd.f32 0.0, %v4991
    %4993 = vmatmul.f32.gmra.mxu0 %v4818
    %v4994 = vpop.f32.mrf.mxu0
    %v4995 = vadd.f32 0.0, %v4994
    %4996 = vmatmul.f32.gmra.mxu0 %v4819
    %v4997 = vpop.f32.mrf.mxu0
    %v4998 = vadd.f32 0.0, %v4997
    %4999 = vmatmul.f32.gmra.mxu0 %v4820
    %v5000 = vpop.f32.mrf.mxu0
    %v5001 = vadd.f32 0.0, %v5000
    %5002 = vmatmul.f32.gmra.mxu0 %v4821
    %v5003 = vpop.f32.mrf.mxu0
    %v5004 = vadd.f32 0.0, %v5003
    %5005 = vmatmul.f32.gmra.mxu0 %v4822
    %v5006 = vpop.f32.mrf.mxu0
    %v5007 = vadd.f32 0.0, %v5006
    %5008 = vmatmul.f32.gmra.mxu0 %v4823
    %v5009 = vpop.f32.mrf.mxu0
    %v5010 = vadd.f32 0.0, %v5009
    %5011 = vmatmul.f32.gmra.mxu0 %v4824
    %v5012 = vpop.f32.mrf.mxu0
    %v5013 = vadd.f32 0.0, %v5012
    %5014 = vmatmul.f32.gmra.mxu0 %v4825
    %v5015 = vpop.f32.mrf.mxu0
    %v5016 = vadd.f32 0.0, %v5015
    %5017 = vmatmul.f32.gmra.mxu0 %v4826
    %v5018 = vpop.f32.mrf.mxu0
    %v5019 = vadd.f32 0.0, %v5018
    %5020 = vmatmul.f32.gmra.mxu0 %v4827
    %v5021 = vpop.f32.mrf.mxu0
    %v5022 = vadd.f32 0.0, %v5021
    %5023 = vmatmul.f32.gmra.mxu0 %v4828
    %v5024 = vpop.f32.mrf.mxu0
    %v5025 = vadd.f32 0.0, %v5024
    %5026 = vmatmul.f32.gmra.mxu0 %v4829
    %v5027 = vpop.f32.mrf.mxu0
    %v5028 = vadd.f32 0.0, %v5027
    %5029 = vmatmul.f32.gmra.mxu0 %v4830
    %v5030 = vpop.f32.mrf.mxu0
    %v5031 = vadd.f32 0.0, %v5030
    %5032 = vmatmul.f32.gmra.mxu0 %v4831
    %v5033 = vpop.f32.mrf.mxu0
    %v5034 = vadd.f32 0.0, %v5033
    %5035 = vmatmul.f32.gmra.mxu0 %v4832
    %v5036 = vpop.f32.mrf.mxu0
    %v5037 = vadd.f32 0.0, %v5036
    %5038 = vmatmul.f32.gmra.mxu0 %v4833
    %v5039 = vpop.f32.mrf.mxu0
    %v5040 = vadd.f32 0.0, %v5039
    %5041 = vmatmul.f32.gmra.mxu0 %v4834
    %v5042 = vpop.f32.mrf.mxu0
    %v5043 = vadd.f32 0.0, %v5042
    %5044 = vmatmul.f32.gmra.mxu0 %v4835
    %v5045 = vpop.f32.mrf.mxu0
    %v5046 = vadd.f32 0.0, %v5045
    %5047 = vmatmul.f32.gmra.mxu0 %v4836
    %v5048 = vpop.f32.mrf.mxu0
    %v5049 = vadd.f32 0.0, %v5048
    %5050 = vmatmul.f32.gmra.mxu0 %v4837
    %v5051 = vpop.f32.mrf.mxu0
    %v5052 = vadd.f32 0.0, %v5051
    %5053 = vmatmul.f32.gmra.mxu0 %v4838
    %v5054 = vpop.f32.mrf.mxu0
    %v5055 = vadd.f32 0.0, %v5054
    %5056 = vmatmul.f32.gmra.mxu0 %v4839
    %v5057 = vpop.f32.mrf.mxu0
    %v5058 = vadd.f32 0.0, %v5057
    %5059 = vmatmul.f32.gmra.mxu0 %v4840
    %v5060 = vpop.f32.mrf.mxu0
    %v5061 = vadd.f32 0.0, %v5060
    %5062 = vmatmul.f32.gmra.mxu0 %v4841
    %v5063 = vpop.f32.mrf.mxu0
    %v5064 = vadd.f32 0.0, %v5063
    %5065 = vmatmul.f32.gmra.mxu0 %v4842
    %v5066 = vpop.f32.mrf.mxu0
    %v5067 = vadd.f32 0.0, %v5066
    %5068 = vdwg.mxu0
    %v5069 = vadd.f32 %v4715, %v4878
    %v5070 = vadd.f32 %v4716, %v4881
    %v5071 = vadd.f32 %v4717, %v4884
    %v5072 = vadd.f32 %v4718, %v4887
    %v5073 = vadd.f32 %v4719, %v4890
    %v5074 = vadd.f32 %v4720, %v4893
    %v5075 = vadd.f32 %v4721, %v4896
    %v5076 = vadd.f32 %v4722, %v4899
    %v5077 = vadd.f32 %v4723, %v4902
    %v5078 = vadd.f32 %v4724, %v4905
    %v5079 = vadd.f32 %v4725, %v4908
    %v5080 = vadd.f32 %v4726, %v4911
    %v5081 = vadd.f32 %v4727, %v4914
    %v5082 = vadd.f32 %v4728, %v4917
    %v5083 = vadd.f32 %v4729, %v4920
    %v5084 = vadd.f32 %v4730, %v4923
    %v5085 = vadd.f32 %v4731, %v4926
    %v5086 = vadd.f32 %v4732, %v4929
    %v5087 = vadd.f32 %v4733, %v4932
    %v5088 = vadd.f32 %v4734, %v4935
    %v5089 = vadd.f32 %v4735, %v4938
    %v5090 = vadd.f32 %v4736, %v4941
    %v5091 = vadd.f32 %v4737, %v4944
    %v5092 = vadd.f32 %v4738, %v4947
    %v5093 = vadd.f32 %v4739, %v4950
    %v5094 = vadd.f32 %v4740, %v4953
    %v5095 = vadd.f32 %v4741, %v4956
    %v5096 = vadd.f32 %v4742, %v4959
    %v5097 = vadd.f32 %v4743, %v4962
    %v5098 = vadd.f32 %v4744, %v4965
    %v5099 = vadd.f32 %v4745, %v4968
    %v5100 = vadd.f32 %v4746, %v4971
    %v5101 = vadd.f32 %v4747, %v4974
    %v5102 = vadd.f32 %v4748, %v4977
    %v5103 = vadd.f32 %v4749, %v4980
    %v5104 = vadd.f32 %v4750, %v4983
    %v5105 = vadd.f32 %v4751, %v4986
    %v5106 = vadd.f32 %v4752, %v4989
    %v5107 = vadd.f32 %v4753, %v4992
    %v5108 = vadd.f32 %v4754, %v4995
    %v5109 = vadd.f32 %v4755, %v4998
    %v5110 = vadd.f32 %v4756, %v5001
    %v5111 = vadd.f32 %v4757, %v5004
    %v5112 = vadd.f32 %v4758, %v5007
    %v5113 = vadd.f32 %v4759, %v5010
    %v5114 = vadd.f32 %v4760, %v5013
    %v5115 = vadd.f32 %v4761, %v5016
    %v5116 = vadd.f32 %v4762, %v5019
    %v5117 = vadd.f32 %v4763, %v5022
    %v5118 = vadd.f32 %v4764, %v5025
    %v5119 = vadd.f32 %v4765, %v5028
    %v5120 = vadd.f32 %v4766, %v5031
    %v5121 = vadd.f32 %v4767, %v5034
    %v5122 = vadd.f32 %v4768, %v5037
    %v5123 = vadd.f32 %v4769, %v5040
    %v5124 = vadd.f32 %v4770, %v5043
    %v5125 = vadd.f32 %v4771, %v5046
    %v5126 = vadd.f32 %v4772, %v5049
    %v5127 = vadd.f32 %v4773, %v5052
    %v5128 = vadd.f32 %v4774, %v5055
    %v5129 = vadd.f32 %v4775, %v5058
    %v5130 = vadd.f32 %v4776, %v5061
    %v5131 = vadd.f32 %v4777, %v5064
    %v5132 = vadd.f32 %v4778, %v5067
    %v5133 = vld [vmem:[%s230 + $0x1] sm:$0xff]
    %v5134 = vld [vmem:[%s230 + $0x9] sm:$0xff]
    %v5135 = vld [vmem:[%s230 + $0x19] sm:$0xff]
    %v5136 = vld [vmem:[%s230 + $0x21] sm:$0xff]
    %v5137 = vld [vmem:[%s230 + $0x31] sm:$0xff]
    %v5138 = vld [vmem:[%s230 + $0x39] sm:$0xff]
    %v5139 = vld [vmem:[%s230 + $0x49] sm:$0xff]
    %v5140 = vld [vmem:[%s230 + $0x51] sm:$0xff]
    %v5141 = vld [vmem:[%s230 + $0x61] sm:$0xff]
    %v5142 = vld [vmem:[%s230 + $0x69] sm:$0xff]
    %v5143 = vld [vmem:[%s230 + $0x79] sm:$0xff]
    %v5144 = vld [vmem:[%s230 + $0x81] sm:$0xff]
    %v5145 = vld [vmem:[%s230 + $0x91] sm:$0xff]
    %v5146 = vld [vmem:[%s230 + $0x99] sm:$0xff]
    %v5147 = vld [vmem:[%s230 + $0xa9] sm:$0xff]
    %v5148 = vld [vmem:[%s230 + $0xb1] sm:$0xff]
    %v5149 = vld [vmem:[%s230 + $0xc1] sm:$0xff]
    %v5150 = vld [vmem:[%s230 + $0xc9] sm:$0xff]
    %v5151 = vld [vmem:[%s230 + $0xd9] sm:$0xff]
    %v5152 = vld [vmem:[%s230 + $0xe1] sm:$0xff]
    %v5153 = vld [vmem:[%s230 + $0xf1] sm:$0xff]
    %v5154 = vld [vmem:[%s230 + $0xf9] sm:$0xff]
    %v5155 = vld [vmem:[%s230 + $0x109] sm:$0xff]
    %v5156 = vld [vmem:[%s230 + $0x111] sm:$0xff]
    %v5157 = vld [vmem:[%s230 + $0x121] sm:$0xff]
    %v5158 = vld [vmem:[%s230 + $0x129] sm:$0xff]
    %v5159 = vld [vmem:[%s230 + $0x139] sm:$0xff]
    %v5160 = vld [vmem:[%s230 + $0x141] sm:$0xff]
    %v5161 = vld [vmem:[%s230 + $0x151] sm:$0xff]
    %v5162 = vld [vmem:[%s230 + $0x159] sm:$0xff]
    %v5163 = vld [vmem:[%s230 + $0x169] sm:$0xff]
    %v5164 = vld [vmem:[%s230 + $0x171] sm:$0xff]
    %v5165 = vld [vmem:[%s230 + $0x1b1] sm:$0xff]
    %v5166 = vld [vmem:[%s230 + $0x1b9] sm:$0xff]
    %v5167 = vld [vmem:[%s230 + $0x1c9] sm:$0xff]
    %v5168 = vld [vmem:[%s230 + $0x1d1] sm:$0xff]
    %v5169 = vld [vmem:[%s230 + $0x1e1] sm:$0xff]
    %v5170 = vld [vmem:[%s230 + $0x1e9] sm:$0xff]
    %v5171 = vld [vmem:[%s230 + $0x1f9] sm:$0xff]
    %v5172 = vld [vmem:[%s230 + $0x201] sm:$0xff]
    %v5173 = vld [vmem:[%s230 + $0x211] sm:$0xff]
    %v5174 = vld [vmem:[%s230 + $0x219] sm:$0xff]
    %v5175 = vld [vmem:[%s230 + $0x229] sm:$0xff]
    %v5176 = vld [vmem:[%s230 + $0x231] sm:$0xff]
    %v5177 = vld [vmem:[%s230 + $0x241] sm:$0xff]
    %v5178 = vld [vmem:[%s230 + $0x249] sm:$0xff]
    %v5179 = vld [vmem:[%s230 + $0x259] sm:$0xff]
    %v5180 = vld [vmem:[%s230 + $0x261] sm:$0xff]
    %v5181 = vld [vmem:[%s230 + $0x271] sm:$0xff]
    %v5182 = vld [vmem:[%s230 + $0x279] sm:$0xff]
    %v5183 = vld [vmem:[%s230 + $0x289] sm:$0xff]
    %v5184 = vld [vmem:[%s230 + $0x291] sm:$0xff]
    %v5185 = vld [vmem:[%s230 + $0x2a1] sm:$0xff]
    %v5186 = vld [vmem:[%s230 + $0x2a9] sm:$0xff]
    %v5187 = vld [vmem:[%s230 + $0x2b9] sm:$0xff]
    %v5188 = vld [vmem:[%s230 + $0x2c1] sm:$0xff]
    %v5189 = vld [vmem:[%s230 + $0x2d1] sm:$0xff]
    %v5190 = vld [vmem:[%s230 + $0x2d9] sm:$0xff]
    %v5191 = vld [vmem:[%s230 + $0x2e9] sm:$0xff]
    %v5192 = vld [vmem:[%s230 + $0x2f1] sm:$0xff]
    %v5193 = vld [vmem:[%s230 + $0x301] sm:$0xff]
    %v5194 = vld [vmem:[%s230 + $0x309] sm:$0xff]
    %v5195 = vld [vmem:[%s230 + $0x319] sm:$0xff]
    %v5196 = vld [vmem:[%s230 + $0x321] sm:$0xff]
    %s5197 = scalar_lea.vmem [#allocation6], 1664
    %v5198 = vld [vmem:[%s5197] sm:$0xff]
    %v5199 = vld [vmem:[%s5197 + $0x8] sm:$0xff]
    %v5200 = vld [vmem:[%s5197 + $0x10] sm:$0xff]
    %v5201 = vld [vmem:[%s5197 + $0x18] sm:$0xff]
    %v5202 = vld [vmem:[%s5197 + $0x20] sm:$0xff]
    %v5203 = vld [vmem:[%s5197 + $0x28] sm:$0xff]
    %v5204 = vld [vmem:[%s5197 + $0x30] sm:$0xff]
    %v5205 = vld [vmem:[%s5197 + $0x38] sm:$0xff]
    %v5206 = vld [vmem:[%s5197 + $0x40] sm:$0xff]
    %v5207 = vld [vmem:[%s5197 + $0x48] sm:$0xff]
    %v5208 = vld [vmem:[%s5197 + $0x50] sm:$0xff]
    %v5209 = vld [vmem:[%s5197 + $0x58] sm:$0xff]
    %v5210 = vld [vmem:[%s5197 + $0x60] sm:$0xff]
    %v5211 = vld [vmem:[%s5197 + $0x68] sm:$0xff]
    %v5212 = vld [vmem:[%s5197 + $0x70] sm:$0xff]
    %v5213 = vld [vmem:[%s5197 + $0x78] sm:$0xff]
    %5214 = vmatpush.msra.mxu0 %v5213
    %5215 = vmatpush.msra.mxu0 %v5212
    %5216 = vmatpush.msra.mxu0 %v5211
    %5217 = vmatpush.msra.mxu0 %v5210
    %5218 = vmatpush.msra.mxu0 %v5209
    %5219 = vmatpush.msra.mxu0 %v5208
    %5220 = vmatpush.msra.mxu0 %v5207
    %5221 = vmatpush.msra.mxu0 %v5206
    %5222 = vmatpush.msra.mxu0 %v5205
    %5223 = vmatpush.msra.mxu0 %v5204
    %5224 = vmatpush.msra.mxu0 %v5203
    %5225 = vmatpush.msra.mxu0 %v5202
    %5226 = vmatpush.msra.mxu0 %v5201
    %5227 = vmatpush.msra.mxu0 %v5200
    %5228 = vmatpush.msra.mxu0 %v5199
    %5229 = vmatpush.msra.mxu0 %v5198
    %5230 = vmatmul.f32.gmra.mxu0 %v5133
    %v5231 = vpop.f32.mrf.mxu0
    %v5232 = vadd.f32 0.0, %v5231
    %5233 = vmatmul.f32.gmra.mxu0 %v5134
    %v5234 = vpop.f32.mrf.mxu0
    %v5235 = vadd.f32 0.0, %v5234
    %5236 = vmatmul.f32.gmra.mxu0 %v5135
    %v5237 = vpop.f32.mrf.mxu0
    %v5238 = vadd.f32 0.0, %v5237
    %5239 = vmatmul.f32.gmra.mxu0 %v5136
    %v5240 = vpop.f32.mrf.mxu0
    %v5241 = vadd.f32 0.0, %v5240
    %5242 = vmatmul.f32.gmra.mxu0 %v5137
    %v5243 = vpop.f32.mrf.mxu0
    %v5244 = vadd.f32 0.0, %v5243
    %5245 = vmatmul.f32.gmra.mxu0 %v5138
    %v5246 = vpop.f32.mrf.mxu0
    %v5247 = vadd.f32 0.0, %v5246
    %5248 = vmatmul.f32.gmra.mxu0 %v5139
    %v5249 = vpop.f32.mrf.mxu0
    %v5250 = vadd.f32 0.0, %v5249
    %5251 = vmatmul.f32.gmra.mxu0 %v5140
    %v5252 = vpop.f32.mrf.mxu0
    %v5253 = vadd.f32 0.0, %v5252
    %5254 = vmatmul.f32.gmra.mxu0 %v5141
    %v5255 = vpop.f32.mrf.mxu0
    %v5256 = vadd.f32 0.0, %v5255
    %5257 = vmatmul.f32.gmra.mxu0 %v5142
    %v5258 = vpop.f32.mrf.mxu0
    %v5259 = vadd.f32 0.0, %v5258
    %5260 = vmatmul.f32.gmra.mxu0 %v5143
    %v5261 = vpop.f32.mrf.mxu0
    %v5262 = vadd.f32 0.0, %v5261
    %5263 = vmatmul.f32.gmra.mxu0 %v5144
    %v5264 = vpop.f32.mrf.mxu0
    %v5265 = vadd.f32 0.0, %v5264
    %5266 = vmatmul.f32.gmra.mxu0 %v5145
    %v5267 = vpop.f32.mrf.mxu0
    %v5268 = vadd.f32 0.0, %v5267
    %5269 = vmatmul.f32.gmra.mxu0 %v5146
    %v5270 = vpop.f32.mrf.mxu0
    %v5271 = vadd.f32 0.0, %v5270
    %5272 = vmatmul.f32.gmra.mxu0 %v5147
    %v5273 = vpop.f32.mrf.mxu0
    %v5274 = vadd.f32 0.0, %v5273
    %5275 = vmatmul.f32.gmra.mxu0 %v5148
    %v5276 = vpop.f32.mrf.mxu0
    %v5277 = vadd.f32 0.0, %v5276
    %5278 = vmatmul.f32.gmra.mxu0 %v5149
    %v5279 = vpop.f32.mrf.mxu0
    %v5280 = vadd.f32 0.0, %v5279
    %5281 = vmatmul.f32.gmra.mxu0 %v5150
    %v5282 = vpop.f32.mrf.mxu0
    %v5283 = vadd.f32 0.0, %v5282
    %5284 = vmatmul.f32.gmra.mxu0 %v5151
    %v5285 = vpop.f32.mrf.mxu0
    %v5286 = vadd.f32 0.0, %v5285
    %5287 = vmatmul.f32.gmra.mxu0 %v5152
    %v5288 = vpop.f32.mrf.mxu0
    %v5289 = vadd.f32 0.0, %v5288
    %5290 = vmatmul.f32.gmra.mxu0 %v5153
    %v5291 = vpop.f32.mrf.mxu0
    %v5292 = vadd.f32 0.0, %v5291
    %5293 = vmatmul.f32.gmra.mxu0 %v5154
    %v5294 = vpop.f32.mrf.mxu0
    %v5295 = vadd.f32 0.0, %v5294
    %5296 = vmatmul.f32.gmra.mxu0 %v5155
    %v5297 = vpop.f32.mrf.mxu0
    %v5298 = vadd.f32 0.0, %v5297
    %5299 = vmatmul.f32.gmra.mxu0 %v5156
    %v5300 = vpop.f32.mrf.mxu0
    %v5301 = vadd.f32 0.0, %v5300
    %5302 = vmatmul.f32.gmra.mxu0 %v5157
    %v5303 = vpop.f32.mrf.mxu0
    %v5304 = vadd.f32 0.0, %v5303
    %5305 = vmatmul.f32.gmra.mxu0 %v5158
    %v5306 = vpop.f32.mrf.mxu0
    %v5307 = vadd.f32 0.0, %v5306
    %5308 = vmatmul.f32.gmra.mxu0 %v5159
    %v5309 = vpop.f32.mrf.mxu0
    %v5310 = vadd.f32 0.0, %v5309
    %5311 = vmatmul.f32.gmra.mxu0 %v5160
    %v5312 = vpop.f32.mrf.mxu0
    %v5313 = vadd.f32 0.0, %v5312
    %5314 = vmatmul.f32.gmra.mxu0 %v5161
    %v5315 = vpop.f32.mrf.mxu0
    %v5316 = vadd.f32 0.0, %v5315
    %5317 = vmatmul.f32.gmra.mxu0 %v5162
    %v5318 = vpop.f32.mrf.mxu0
    %v5319 = vadd.f32 0.0, %v5318
    %5320 = vmatmul.f32.gmra.mxu0 %v5163
    %v5321 = vpop.f32.mrf.mxu0
    %v5322 = vadd.f32 0.0, %v5321
    %5323 = vmatmul.f32.gmra.mxu0 %v5164
    %v5324 = vpop.f32.mrf.mxu0
    %v5325 = vadd.f32 0.0, %v5324
    %5326 = vmatmul.f32.gmra.mxu0 %v5165
    %v5327 = vpop.f32.mrf.mxu0
    %v5328 = vadd.f32 0.0, %v5327
    %5329 = vmatmul.f32.gmra.mxu0 %v5166
    %v5330 = vpop.f32.mrf.mxu0
    %v5331 = vadd.f32 0.0, %v5330
    %5332 = vmatmul.f32.gmra.mxu0 %v5167
    %v5333 = vpop.f32.mrf.mxu0
    %v5334 = vadd.f32 0.0, %v5333
    %5335 = vmatmul.f32.gmra.mxu0 %v5168
    %v5336 = vpop.f32.mrf.mxu0
    %v5337 = vadd.f32 0.0, %v5336
    %5338 = vmatmul.f32.gmra.mxu0 %v5169
    %v5339 = vpop.f32.mrf.mxu0
    %v5340 = vadd.f32 0.0, %v5339
    %5341 = vmatmul.f32.gmra.mxu0 %v5170
    %v5342 = vpop.f32.mrf.mxu0
    %v5343 = vadd.f32 0.0, %v5342
    %5344 = vmatmul.f32.gmra.mxu0 %v5171
    %v5345 = vpop.f32.mrf.mxu0
    %v5346 = vadd.f32 0.0, %v5345
    %5347 = vmatmul.f32.gmra.mxu0 %v5172
    %v5348 = vpop.f32.mrf.mxu0
    %v5349 = vadd.f32 0.0, %v5348
    %5350 = vmatmul.f32.gmra.mxu0 %v5173
    %v5351 = vpop.f32.mrf.mxu0
    %v5352 = vadd.f32 0.0, %v5351
    %5353 = vmatmul.f32.gmra.mxu0 %v5174
    %v5354 = vpop.f32.mrf.mxu0
    %v5355 = vadd.f32 0.0, %v5354
    %5356 = vmatmul.f32.gmra.mxu0 %v5175
    %v5357 = vpop.f32.mrf.mxu0
    %v5358 = vadd.f32 0.0, %v5357
    %5359 = vmatmul.f32.gmra.mxu0 %v5176
    %v5360 = vpop.f32.mrf.mxu0
    %v5361 = vadd.f32 0.0, %v5360
    %5362 = vmatmul.f32.gmra.mxu0 %v5177
    %v5363 = vpop.f32.mrf.mxu0
    %v5364 = vadd.f32 0.0, %v5363
    %5365 = vmatmul.f32.gmra.mxu0 %v5178
    %v5366 = vpop.f32.mrf.mxu0
    %v5367 = vadd.f32 0.0, %v5366
    %5368 = vmatmul.f32.gmra.mxu0 %v5179
    %v5369 = vpop.f32.mrf.mxu0
    %v5370 = vadd.f32 0.0, %v5369
    %5371 = vmatmul.f32.gmra.mxu0 %v5180
    %v5372 = vpop.f32.mrf.mxu0
    %v5373 = vadd.f32 0.0, %v5372
    %5374 = vmatmul.f32.gmra.mxu0 %v5181
    %v5375 = vpop.f32.mrf.mxu0
    %v5376 = vadd.f32 0.0, %v5375
    %5377 = vmatmul.f32.gmra.mxu0 %v5182
    %v5378 = vpop.f32.mrf.mxu0
    %v5379 = vadd.f32 0.0, %v5378
    %5380 = vmatmul.f32.gmra.mxu0 %v5183
    %v5381 = vpop.f32.mrf.mxu0
    %v5382 = vadd.f32 0.0, %v5381
    %5383 = vmatmul.f32.gmra.mxu0 %v5184
    %v5384 = vpop.f32.mrf.mxu0
    %v5385 = vadd.f32 0.0, %v5384
    %5386 = vmatmul.f32.gmra.mxu0 %v5185
    %v5387 = vpop.f32.mrf.mxu0
    %v5388 = vadd.f32 0.0, %v5387
    %5389 = vmatmul.f32.gmra.mxu0 %v5186
    %v5390 = vpop.f32.mrf.mxu0
    %v5391 = vadd.f32 0.0, %v5390
    %5392 = vmatmul.f32.gmra.mxu0 %v5187
    %v5393 = vpop.f32.mrf.mxu0
    %v5394 = vadd.f32 0.0, %v5393
    %5395 = vmatmul.f32.gmra.mxu0 %v5188
    %v5396 = vpop.f32.mrf.mxu0
    %v5397 = vadd.f32 0.0, %v5396
    %5398 = vmatmul.f32.gmra.mxu0 %v5189
    %v5399 = vpop.f32.mrf.mxu0
    %v5400 = vadd.f32 0.0, %v5399
    %5401 = vmatmul.f32.gmra.mxu0 %v5190
    %v5402 = vpop.f32.mrf.mxu0
    %v5403 = vadd.f32 0.0, %v5402
    %5404 = vmatmul.f32.gmra.mxu0 %v5191
    %v5405 = vpop.f32.mrf.mxu0
    %v5406 = vadd.f32 0.0, %v5405
    %5407 = vmatmul.f32.gmra.mxu0 %v5192
    %v5408 = vpop.f32.mrf.mxu0
    %v5409 = vadd.f32 0.0, %v5408
    %5410 = vmatmul.f32.gmra.mxu0 %v5193
    %v5411 = vpop.f32.mrf.mxu0
    %v5412 = vadd.f32 0.0, %v5411
    %5413 = vmatmul.f32.gmra.mxu0 %v5194
    %v5414 = vpop.f32.mrf.mxu0
    %v5415 = vadd.f32 0.0, %v5414
    %5416 = vmatmul.f32.gmra.mxu0 %v5195
    %v5417 = vpop.f32.mrf.mxu0
    %v5418 = vadd.f32 0.0, %v5417
    %5419 = vmatmul.f32.gmra.mxu0 %v5196
    %v5420 = vpop.f32.mrf.mxu0
    %v5421 = vadd.f32 0.0, %v5420
    %5422 = vdwg.mxu0
    %v5423 = vadd.f32 %v5069, %v5232
    %v5424 = vadd.f32 %v5070, %v5235
    %v5425 = vadd.f32 %v5071, %v5238
    %v5426 = vadd.f32 %v5072, %v5241
    %v5427 = vadd.f32 %v5073, %v5244
    %v5428 = vadd.f32 %v5074, %v5247
    %v5429 = vadd.f32 %v5075, %v5250
    %v5430 = vadd.f32 %v5076, %v5253
    %v5431 = vadd.f32 %v5077, %v5256
    %v5432 = vadd.f32 %v5078, %v5259
    %v5433 = vadd.f32 %v5079, %v5262
    %v5434 = vadd.f32 %v5080, %v5265
    %v5435 = vadd.f32 %v5081, %v5268
    %v5436 = vadd.f32 %v5082, %v5271
    %v5437 = vadd.f32 %v5083, %v5274
    %v5438 = vadd.f32 %v5084, %v5277
    %v5439 = vadd.f32 %v5085, %v5280
    %v5440 = vadd.f32 %v5086, %v5283
    %v5441 = vadd.f32 %v5087, %v5286
    %v5442 = vadd.f32 %v5088, %v5289
    %v5443 = vadd.f32 %v5089, %v5292
    %v5444 = vadd.f32 %v5090, %v5295
    %v5445 = vadd.f32 %v5091, %v5298
    %v5446 = vadd.f32 %v5092, %v5301
    %v5447 = vadd.f32 %v5093, %v5304
    %v5448 = vadd.f32 %v5094, %v5307
    %v5449 = vadd.f32 %v5095, %v5310
    %v5450 = vadd.f32 %v5096, %v5313
    %v5451 = vadd.f32 %v5097, %v5316
    %v5452 = vadd.f32 %v5098, %v5319
    %v5453 = vadd.f32 %v5099, %v5322
    %v5454 = vadd.f32 %v5100, %v5325
    %v5455 = vadd.f32 %v5101, %v5328
    %v5456 = vadd.f32 %v5102, %v5331
    %v5457 = vadd.f32 %v5103, %v5334
    %v5458 = vadd.f32 %v5104, %v5337
    %v5459 = vadd.f32 %v5105, %v5340
    %v5460 = vadd.f32 %v5106, %v5343
    %v5461 = vadd.f32 %v5107, %v5346
    %v5462 = vadd.f32 %v5108, %v5349
    %v5463 = vadd.f32 %v5109, %v5352
    %v5464 = vadd.f32 %v5110, %v5355
    %v5465 = vadd.f32 %v5111, %v5358
    %v5466 = vadd.f32 %v5112, %v5361
    %v5467 = vadd.f32 %v5113, %v5364
    %v5468 = vadd.f32 %v5114, %v5367
    %v5469 = vadd.f32 %v5115, %v5370
    %v5470 = vadd.f32 %v5116, %v5373
    %v5471 = vadd.f32 %v5117, %v5376
    %v5472 = vadd.f32 %v5118, %v5379
    %v5473 = vadd.f32 %v5119, %v5382
    %v5474 = vadd.f32 %v5120, %v5385
    %v5475 = vadd.f32 %v5121, %v5388
    %v5476 = vadd.f32 %v5122, %v5391
    %v5477 = vadd.f32 %v5123, %v5394
    %v5478 = vadd.f32 %v5124, %v5397
    %v5479 = vadd.f32 %v5125, %v5400
    %v5480 = vadd.f32 %v5126, %v5403
    %v5481 = vadd.f32 %v5127, %v5406
    %v5482 = vadd.f32 %v5128, %v5409
    %v5483 = vadd.f32 %v5129, %v5412
    %v5484 = vadd.f32 %v5130, %v5415
    %v5485 = vadd.f32 %v5131, %v5418
    %v5486 = vadd.f32 %v5132, %v5421
    %v5487 = vld [vmem:[%s230 + $0x2] sm:$0xff]
    %v5488 = vld [vmem:[%s230 + $0xa] sm:$0xff]
    %v5489 = vld [vmem:[%s230 + $0x1a] sm:$0xff]
    %v5490 = vld [vmem:[%s230 + $0x22] sm:$0xff]
    %v5491 = vld [vmem:[%s230 + $0x32] sm:$0xff]
    %v5492 = vld [vmem:[%s230 + $0x3a] sm:$0xff]
    %v5493 = vld [vmem:[%s230 + $0x4a] sm:$0xff]
    %v5494 = vld [vmem:[%s230 + $0x52] sm:$0xff]
    %v5495 = vld [vmem:[%s230 + $0x62] sm:$0xff]
    %v5496 = vld [vmem:[%s230 + $0x6a] sm:$0xff]
    %v5497 = vld [vmem:[%s230 + $0x7a] sm:$0xff]
    %v5498 = vld [vmem:[%s230 + $0x82] sm:$0xff]
    %v5499 = vld [vmem:[%s230 + $0x92] sm:$0xff]
    %v5500 = vld [vmem:[%s230 + $0x9a] sm:$0xff]
    %v5501 = vld [vmem:[%s230 + $0xaa] sm:$0xff]
    %v5502 = vld [vmem:[%s230 + $0xb2] sm:$0xff]
    %v5503 = vld [vmem:[%s230 + $0xc2] sm:$0xff]
    %v5504 = vld [vmem:[%s230 + $0xca] sm:$0xff]
    %v5505 = vld [vmem:[%s230 + $0xda] sm:$0xff]
    %v5506 = vld [vmem:[%s230 + $0xe2] sm:$0xff]
    %v5507 = vld [vmem:[%s230 + $0xf2] sm:$0xff]
    %v5508 = vld [vmem:[%s230 + $0xfa] sm:$0xff]
    %v5509 = vld [vmem:[%s230 + $0x10a] sm:$0xff]
    %v5510 = vld [vmem:[%s230 + $0x112] sm:$0xff]
    %v5511 = vld [vmem:[%s230 + $0x122] sm:$0xff]
    %v5512 = vld [vmem:[%s230 + $0x12a] sm:$0xff]
    %v5513 = vld [vmem:[%s230 + $0x13a] sm:$0xff]
    %v5514 = vld [vmem:[%s230 + $0x142] sm:$0xff]
    %v5515 = vld [vmem:[%s230 + $0x152] sm:$0xff]
    %v5516 = vld [vmem:[%s230 + $0x15a] sm:$0xff]
    %v5517 = vld [vmem:[%s230 + $0x16a] sm:$0xff]
    %v5518 = vld [vmem:[%s230 + $0x172] sm:$0xff]
    %v5519 = vld [vmem:[%s230 + $0x1b2] sm:$0xff]
    %v5520 = vld [vmem:[%s230 + $0x1ba] sm:$0xff]
    %v5521 = vld [vmem:[%s230 + $0x1ca] sm:$0xff]
    %v5522 = vld [vmem:[%s230 + $0x1d2] sm:$0xff]
    %v5523 = vld [vmem:[%s230 + $0x1e2] sm:$0xff]
    %v5524 = vld [vmem:[%s230 + $0x1ea] sm:$0xff]
    %v5525 = vld [vmem:[%s230 + $0x1fa] sm:$0xff]
    %v5526 = vld [vmem:[%s230 + $0x202] sm:$0xff]
    %v5527 = vld [vmem:[%s230 + $0x212] sm:$0xff]
    %v5528 = vld [vmem:[%s230 + $0x21a] sm:$0xff]
    %v5529 = vld [vmem:[%s230 + $0x22a] sm:$0xff]
    %v5530 = vld [vmem:[%s230 + $0x232] sm:$0xff]
    %v5531 = vld [vmem:[%s230 + $0x242] sm:$0xff]
    %v5532 = vld [vmem:[%s230 + $0x24a] sm:$0xff]
    %v5533 = vld [vmem:[%s230 + $0x25a] sm:$0xff]
    %v5534 = vld [vmem:[%s230 + $0x262] sm:$0xff]
    %v5535 = vld [vmem:[%s230 + $0x272] sm:$0xff]
    %v5536 = vld [vmem:[%s230 + $0x27a] sm:$0xff]
    %v5537 = vld [vmem:[%s230 + $0x28a] sm:$0xff]
    %v5538 = vld [vmem:[%s230 + $0x292] sm:$0xff]
    %v5539 = vld [vmem:[%s230 + $0x2a2] sm:$0xff]
    %v5540 = vld [vmem:[%s230 + $0x2aa] sm:$0xff]
    %v5541 = vld [vmem:[%s230 + $0x2ba] sm:$0xff]
    %v5542 = vld [vmem:[%s230 + $0x2c2] sm:$0xff]
    %v5543 = vld [vmem:[%s230 + $0x2d2] sm:$0xff]
    %v5544 = vld [vmem:[%s230 + $0x2da] sm:$0xff]
    %v5545 = vld [vmem:[%s230 + $0x2ea] sm:$0xff]
    %v5546 = vld [vmem:[%s230 + $0x2f2] sm:$0xff]
    %v5547 = vld [vmem:[%s230 + $0x302] sm:$0xff]
    %v5548 = vld [vmem:[%s230 + $0x30a] sm:$0xff]
    %v5549 = vld [vmem:[%s230 + $0x31a] sm:$0xff]
    %v5550 = vld [vmem:[%s230 + $0x322] sm:$0xff]
    %s5551 = scalar_lea.vmem [#allocation6], 1792
    %v5552 = vld [vmem:[%s5551] sm:$0xff]
    %v5553 = vld [vmem:[%s5551 + $0x8] sm:$0xff]
    %v5554 = vld [vmem:[%s5551 + $0x10] sm:$0xff]
    %v5555 = vld [vmem:[%s5551 + $0x18] sm:$0xff]
    %v5556 = vld [vmem:[%s5551 + $0x20] sm:$0xff]
    %v5557 = vld [vmem:[%s5551 + $0x28] sm:$0xff]
    %v5558 = vld [vmem:[%s5551 + $0x30] sm:$0xff]
    %v5559 = vld [vmem:[%s5551 + $0x38] sm:$0xff]
    %v5560 = vld [vmem:[%s5551 + $0x40] sm:$0xff]
    %v5561 = vld [vmem:[%s5551 + $0x48] sm:$0xff]
    %v5562 = vld [vmem:[%s5551 + $0x50] sm:$0xff]
    %v5563 = vld [vmem:[%s5551 + $0x58] sm:$0xff]
    %v5564 = vld [vmem:[%s5551 + $0x60] sm:$0xff]
    %v5565 = vld [vmem:[%s5551 + $0x68] sm:$0xff]
    %v5566 = vld [vmem:[%s5551 + $0x70] sm:$0xff]
    %v5567 = vld [vmem:[%s5551 + $0x78] sm:$0xff]
    %5568 = vmatpush.msra.mxu0 %v5567
    %5569 = vmatpush.msra.mxu0 %v5566
    %5570 = vmatpush.msra.mxu0 %v5565
    %5571 = vmatpush.msra.mxu0 %v5564
    %5572 = vmatpush.msra.mxu0 %v5563
    %5573 = vmatpush.msra.mxu0 %v5562
    %5574 = vmatpush.msra.mxu0 %v5561
    %5575 = vmatpush.msra.mxu0 %v5560
    %5576 = vmatpush.msra.mxu0 %v5559
    %5577 = vmatpush.msra.mxu0 %v5558
    %5578 = vmatpush.msra.mxu0 %v5557
    %5579 = vmatpush.msra.mxu0 %v5556
    %5580 = vmatpush.msra.mxu0 %v5555
    %5581 = vmatpush.msra.mxu0 %v5554
    %5582 = vmatpush.msra.mxu0 %v5553
    %5583 = vmatpush.msra.mxu0 %v5552
    %5584 = vmatmul.f32.gmra.mxu0 %v5487
    %v5585 = vpop.f32.mrf.mxu0
    %v5586 = vadd.f32 0.0, %v5585
    %5587 = vmatmul.f32.gmra.mxu0 %v5488
    %v5588 = vpop.f32.mrf.mxu0
    %v5589 = vadd.f32 0.0, %v5588
    %5590 = vmatmul.f32.gmra.mxu0 %v5489
    %v5591 = vpop.f32.mrf.mxu0
    %v5592 = vadd.f32 0.0, %v5591
    %5593 = vmatmul.f32.gmra.mxu0 %v5490
    %v5594 = vpop.f32.mrf.mxu0
    %v5595 = vadd.f32 0.0, %v5594
    %5596 = vmatmul.f32.gmra.mxu0 %v5491
    %v5597 = vpop.f32.mrf.mxu0
    %v5598 = vadd.f32 0.0, %v5597
    %5599 = vmatmul.f32.gmra.mxu0 %v5492
    %v5600 = vpop.f32.mrf.mxu0
    %v5601 = vadd.f32 0.0, %v5600
    %5602 = vmatmul.f32.gmra.mxu0 %v5493
    %v5603 = vpop.f32.mrf.mxu0
    %v5604 = vadd.f32 0.0, %v5603
    %5605 = vmatmul.f32.gmra.mxu0 %v5494
    %v5606 = vpop.f32.mrf.mxu0
    %v5607 = vadd.f32 0.0, %v5606
    %5608 = vmatmul.f32.gmra.mxu0 %v5495
    %v5609 = vpop.f32.mrf.mxu0
    %v5610 = vadd.f32 0.0, %v5609
    %5611 = vmatmul.f32.gmra.mxu0 %v5496
    %v5612 = vpop.f32.mrf.mxu0
    %v5613 = vadd.f32 0.0, %v5612
    %5614 = vmatmul.f32.gmra.mxu0 %v5497
    %v5615 = vpop.f32.mrf.mxu0
    %v5616 = vadd.f32 0.0, %v5615
    %5617 = vmatmul.f32.gmra.mxu0 %v5498
    %v5618 = vpop.f32.mrf.mxu0
    %v5619 = vadd.f32 0.0, %v5618
    %5620 = vmatmul.f32.gmra.mxu0 %v5499
    %v5621 = vpop.f32.mrf.mxu0
    %v5622 = vadd.f32 0.0, %v5621
    %5623 = vmatmul.f32.gmra.mxu0 %v5500
    %v5624 = vpop.f32.mrf.mxu0
    %v5625 = vadd.f32 0.0, %v5624
    %5626 = vmatmul.f32.gmra.mxu0 %v5501
    %v5627 = vpop.f32.mrf.mxu0
    %v5628 = vadd.f32 0.0, %v5627
    %5629 = vmatmul.f32.gmra.mxu0 %v5502
    %v5630 = vpop.f32.mrf.mxu0
    %v5631 = vadd.f32 0.0, %v5630
    %5632 = vmatmul.f32.gmra.mxu0 %v5503
    %v5633 = vpop.f32.mrf.mxu0
    %v5634 = vadd.f32 0.0, %v5633
    %5635 = vmatmul.f32.gmra.mxu0 %v5504
    %v5636 = vpop.f32.mrf.mxu0
    %v5637 = vadd.f32 0.0, %v5636
    %5638 = vmatmul.f32.gmra.mxu0 %v5505
    %v5639 = vpop.f32.mrf.mxu0
    %v5640 = vadd.f32 0.0, %v5639
    %5641 = vmatmul.f32.gmra.mxu0 %v5506
    %v5642 = vpop.f32.mrf.mxu0
    %v5643 = vadd.f32 0.0, %v5642
    %5644 = vmatmul.f32.gmra.mxu0 %v5507
    %v5645 = vpop.f32.mrf.mxu0
    %v5646 = vadd.f32 0.0, %v5645
    %5647 = vmatmul.f32.gmra.mxu0 %v5508
    %v5648 = vpop.f32.mrf.mxu0
    %v5649 = vadd.f32 0.0, %v5648
    %5650 = vmatmul.f32.gmra.mxu0 %v5509
    %v5651 = vpop.f32.mrf.mxu0
    %v5652 = vadd.f32 0.0, %v5651
    %5653 = vmatmul.f32.gmra.mxu0 %v5510
    %v5654 = vpop.f32.mrf.mxu0
    %v5655 = vadd.f32 0.0, %v5654
    %5656 = vmatmul.f32.gmra.mxu0 %v5511
    %v5657 = vpop.f32.mrf.mxu0
    %v5658 = vadd.f32 0.0, %v5657
    %5659 = vmatmul.f32.gmra.mxu0 %v5512
    %v5660 = vpop.f32.mrf.mxu0
    %v5661 = vadd.f32 0.0, %v5660
    %5662 = vmatmul.f32.gmra.mxu0 %v5513
    %v5663 = vpop.f32.mrf.mxu0
    %v5664 = vadd.f32 0.0, %v5663
    %5665 = vmatmul.f32.gmra.mxu0 %v5514
    %v5666 = vpop.f32.mrf.mxu0
    %v5667 = vadd.f32 0.0, %v5666
    %5668 = vmatmul.f32.gmra.mxu0 %v5515
    %v5669 = vpop.f32.mrf.mxu0
    %v5670 = vadd.f32 0.0, %v5669
    %5671 = vmatmul.f32.gmra.mxu0 %v5516
    %v5672 = vpop.f32.mrf.mxu0
    %v5673 = vadd.f32 0.0, %v5672
    %5674 = vmatmul.f32.gmra.mxu0 %v5517
    %v5675 = vpop.f32.mrf.mxu0
    %v5676 = vadd.f32 0.0, %v5675
    %5677 = vmatmul.f32.gmra.mxu0 %v5518
    %v5678 = vpop.f32.mrf.mxu0
    %v5679 = vadd.f32 0.0, %v5678
    %5680 = vmatmul.f32.gmra.mxu0 %v5519
    %v5681 = vpop.f32.mrf.mxu0
    %v5682 = vadd.f32 0.0, %v5681
    %5683 = vmatmul.f32.gmra.mxu0 %v5520
    %v5684 = vpop.f32.mrf.mxu0
    %v5685 = vadd.f32 0.0, %v5684
    %5686 = vmatmul.f32.gmra.mxu0 %v5521
    %v5687 = vpop.f32.mrf.mxu0
    %v5688 = vadd.f32 0.0, %v5687
    %5689 = vmatmul.f32.gmra.mxu0 %v5522
    %v5690 = vpop.f32.mrf.mxu0
    %v5691 = vadd.f32 0.0, %v5690
    %5692 = vmatmul.f32.gmra.mxu0 %v5523
    %v5693 = vpop.f32.mrf.mxu0
    %v5694 = vadd.f32 0.0, %v5693
    %5695 = vmatmul.f32.gmra.mxu0 %v5524
    %v5696 = vpop.f32.mrf.mxu0
    %v5697 = vadd.f32 0.0, %v5696
    %5698 = vmatmul.f32.gmra.mxu0 %v5525
    %v5699 = vpop.f32.mrf.mxu0
    %v5700 = vadd.f32 0.0, %v5699
    %5701 = vmatmul.f32.gmra.mxu0 %v5526
    %v5702 = vpop.f32.mrf.mxu0
    %v5703 = vadd.f32 0.0, %v5702
    %5704 = vmatmul.f32.gmra.mxu0 %v5527
    %v5705 = vpop.f32.mrf.mxu0
    %v5706 = vadd.f32 0.0, %v5705
    %5707 = vmatmul.f32.gmra.mxu0 %v5528
    %v5708 = vpop.f32.mrf.mxu0
    %v5709 = vadd.f32 0.0, %v5708
    %5710 = vmatmul.f32.gmra.mxu0 %v5529
    %v5711 = vpop.f32.mrf.mxu0
    %v5712 = vadd.f32 0.0, %v5711
    %5713 = vmatmul.f32.gmra.mxu0 %v5530
    %v5714 = vpop.f32.mrf.mxu0
    %v5715 = vadd.f32 0.0, %v5714
    %5716 = vmatmul.f32.gmra.mxu0 %v5531
    %v5717 = vpop.f32.mrf.mxu0
    %v5718 = vadd.f32 0.0, %v5717
    %5719 = vmatmul.f32.gmra.mxu0 %v5532
    %v5720 = vpop.f32.mrf.mxu0
    %v5721 = vadd.f32 0.0, %v5720
    %5722 = vmatmul.f32.gmra.mxu0 %v5533
    %v5723 = vpop.f32.mrf.mxu0
    %v5724 = vadd.f32 0.0, %v5723
    %5725 = vmatmul.f32.gmra.mxu0 %v5534
    %v5726 = vpop.f32.mrf.mxu0
    %v5727 = vadd.f32 0.0, %v5726
    %5728 = vmatmul.f32.gmra.mxu0 %v5535
    %v5729 = vpop.f32.mrf.mxu0
    %v5730 = vadd.f32 0.0, %v5729
    %5731 = vmatmul.f32.gmra.mxu0 %v5536
    %v5732 = vpop.f32.mrf.mxu0
    %v5733 = vadd.f32 0.0, %v5732
    %5734 = vmatmul.f32.gmra.mxu0 %v5537
    %v5735 = vpop.f32.mrf.mxu0
    %v5736 = vadd.f32 0.0, %v5735
    %5737 = vmatmul.f32.gmra.mxu0 %v5538
    %v5738 = vpop.f32.mrf.mxu0
    %v5739 = vadd.f32 0.0, %v5738
    %5740 = vmatmul.f32.gmra.mxu0 %v5539
    %v5741 = vpop.f32.mrf.mxu0
    %v5742 = vadd.f32 0.0, %v5741
    %5743 = vmatmul.f32.gmra.mxu0 %v5540
    %v5744 = vpop.f32.mrf.mxu0
    %v5745 = vadd.f32 0.0, %v5744
    %5746 = vmatmul.f32.gmra.mxu0 %v5541
    %v5747 = vpop.f32.mrf.mxu0
    %v5748 = vadd.f32 0.0, %v5747
    %5749 = vmatmul.f32.gmra.mxu0 %v5542
    %v5750 = vpop.f32.mrf.mxu0
    %v5751 = vadd.f32 0.0, %v5750
    %5752 = vmatmul.f32.gmra.mxu0 %v5543
    %v5753 = vpop.f32.mrf.mxu0
    %v5754 = vadd.f32 0.0, %v5753
    %5755 = vmatmul.f32.gmra.mxu0 %v5544
    %v5756 = vpop.f32.mrf.mxu0
    %v5757 = vadd.f32 0.0, %v5756
    %5758 = vmatmul.f32.gmra.mxu0 %v5545
    %v5759 = vpop.f32.mrf.mxu0
    %v5760 = vadd.f32 0.0, %v5759
    %5761 = vmatmul.f32.gmra.mxu0 %v5546
    %v5762 = vpop.f32.mrf.mxu0
    %v5763 = vadd.f32 0.0, %v5762
    %5764 = vmatmul.f32.gmra.mxu0 %v5547
    %v5765 = vpop.f32.mrf.mxu0
    %v5766 = vadd.f32 0.0, %v5765
    %5767 = vmatmul.f32.gmra.mxu0 %v5548
    %v5768 = vpop.f32.mrf.mxu0
    %v5769 = vadd.f32 0.0, %v5768
    %5770 = vmatmul.f32.gmra.mxu0 %v5549
    %v5771 = vpop.f32.mrf.mxu0
    %v5772 = vadd.f32 0.0, %v5771
    %5773 = vmatmul.f32.gmra.mxu0 %v5550
    %v5774 = vpop.f32.mrf.mxu0
    %v5775 = vadd.f32 0.0, %v5774
    %5776 = vdwg.mxu0
    %v5777 = vadd.f32 %v5423, %v5586
    %v5778 = vadd.f32 %v5424, %v5589
    %v5779 = vadd.f32 %v5425, %v5592
    %v5780 = vadd.f32 %v5426, %v5595
    %v5781 = vadd.f32 %v5427, %v5598
    %v5782 = vadd.f32 %v5428, %v5601
    %v5783 = vadd.f32 %v5429, %v5604
    %v5784 = vadd.f32 %v5430, %v5607
    %v5785 = vadd.f32 %v5431, %v5610
    %v5786 = vadd.f32 %v5432, %v5613
    %v5787 = vadd.f32 %v5433, %v5616
    %v5788 = vadd.f32 %v5434, %v5619
    %v5789 = vadd.f32 %v5435, %v5622
    %v5790 = vadd.f32 %v5436, %v5625
    %v5791 = vadd.f32 %v5437, %v5628
    %v5792 = vadd.f32 %v5438, %v5631
    %v5793 = vadd.f32 %v5439, %v5634
    %v5794 = vadd.f32 %v5440, %v5637
    %v5795 = vadd.f32 %v5441, %v5640
    %v5796 = vadd.f32 %v5442, %v5643
    %v5797 = vadd.f32 %v5443, %v5646
    %v5798 = vadd.f32 %v5444, %v5649
    %v5799 = vadd.f32 %v5445, %v5652
    %v5800 = vadd.f32 %v5446, %v5655
    %v5801 = vadd.f32 %v5447, %v5658
    %v5802 = vadd.f32 %v5448, %v5661
    %v5803 = vadd.f32 %v5449, %v5664
    %v5804 = vadd.f32 %v5450, %v5667
    %v5805 = vadd.f32 %v5451, %v5670
    %v5806 = vadd.f32 %v5452, %v5673
    %v5807 = vadd.f32 %v5453, %v5676
    %v5808 = vadd.f32 %v5454, %v5679
    %v5809 = vadd.f32 %v5455, %v5682
    %v5810 = vadd.f32 %v5456, %v5685
    %v5811 = vadd.f32 %v5457, %v5688
    %v5812 = vadd.f32 %v5458, %v5691
    %v5813 = vadd.f32 %v5459, %v5694
    %v5814 = vadd.f32 %v5460, %v5697
    %v5815 = vadd.f32 %v5461, %v5700
    %v5816 = vadd.f32 %v5462, %v5703
    %v5817 = vadd.f32 %v5463, %v5706
    %v5818 = vadd.f32 %v5464, %v5709
    %v5819 = vadd.f32 %v5465, %v5712
    %v5820 = vadd.f32 %v5466, %v5715
    %v5821 = vadd.f32 %v5467, %v5718
    %v5822 = vadd.f32 %v5468, %v5721
    %v5823 = vadd.f32 %v5469, %v5724
    %v5824 = vadd.f32 %v5470, %v5727
    %v5825 = vadd.f32 %v5471, %v5730
    %v5826 = vadd.f32 %v5472, %v5733
    %v5827 = vadd.f32 %v5473, %v5736
    %v5828 = vadd.f32 %v5474, %v5739
    %v5829 = vadd.f32 %v5475, %v5742
    %v5830 = vadd.f32 %v5476, %v5745
    %v5831 = vadd.f32 %v5477, %v5748
    %v5832 = vadd.f32 %v5478, %v5751
    %v5833 = vadd.f32 %v5479, %v5754
    %v5834 = vadd.f32 %v5480, %v5757
    %v5835 = vadd.f32 %v5481, %v5760
    %v5836 = vadd.f32 %v5482, %v5763
    %v5837 = vadd.f32 %v5483, %v5766
    %v5838 = vadd.f32 %v5484, %v5769
    %v5839 = vadd.f32 %v5485, %v5772
    %v5840 = vadd.f32 %v5486, %v5775
    %v5841 = vld [vmem:[%s2290] sm:$0xff]
    %v5842 = vld [vmem:[%s2290 + $0x8] sm:$0xff]
    %v5843 = vld [vmem:[%s2290 + $0x18] sm:$0xff]
    %v5844 = vld [vmem:[%s2290 + $0x20] sm:$0xff]
    %v5845 = vld [vmem:[%s2290 + $0x30] sm:$0xff]
    %v5846 = vld [vmem:[%s2290 + $0x38] sm:$0xff]
    %v5847 = vld [vmem:[%s2290 + $0x48] sm:$0xff]
    %v5848 = vld [vmem:[%s2290 + $0x50] sm:$0xff]
    %v5849 = vld [vmem:[%s2290 + $0x60] sm:$0xff]
    %v5850 = vld [vmem:[%s2290 + $0x68] sm:$0xff]
    %v5851 = vld [vmem:[%s2290 + $0x78] sm:$0xff]
    %v5852 = vld [vmem:[%s2290 + $0x80] sm:$0xff]
    %v5853 = vld [vmem:[%s2290 + $0x90] sm:$0xff]
    %v5854 = vld [vmem:[%s2290 + $0x98] sm:$0xff]
    %v5855 = vld [vmem:[%s2290 + $0xa8] sm:$0xff]
    %v5856 = vld [vmem:[%s2290 + $0xb0] sm:$0xff]
    %v5857 = vld [vmem:[%s2290 + $0xc0] sm:$0xff]
    %v5858 = vld [vmem:[%s2290 + $0xc8] sm:$0xff]
    %v5859 = vld [vmem:[%s2290 + $0xd8] sm:$0xff]
    %v5860 = vld [vmem:[%s2290 + $0xe0] sm:$0xff]
    %v5861 = vld [vmem:[%s2290 + $0xf0] sm:$0xff]
    %v5862 = vld [vmem:[%s2290 + $0xf8] sm:$0xff]
    %v5863 = vld [vmem:[%s2290 + $0x108] sm:$0xff]
    %v5864 = vld [vmem:[%s2290 + $0x110] sm:$0xff]
    %v5865 = vld [vmem:[%s2290 + $0x120] sm:$0xff]
    %v5866 = vld [vmem:[%s2290 + $0x128] sm:$0xff]
    %v5867 = vld [vmem:[%s2290 + $0x138] sm:$0xff]
    %v5868 = vld [vmem:[%s2290 + $0x140] sm:$0xff]
    %v5869 = vld [vmem:[%s2290 + $0x150] sm:$0xff]
    %v5870 = vld [vmem:[%s2290 + $0x158] sm:$0xff]
    %v5871 = vld [vmem:[%s2290 + $0x168] sm:$0xff]
    %v5872 = vld [vmem:[%s2290 + $0x170] sm:$0xff]
    %v5873 = vld [vmem:[%s2290 + $0x1b0] sm:$0xff]
    %v5874 = vld [vmem:[%s2290 + $0x1b8] sm:$0xff]
    %v5875 = vld [vmem:[%s2290 + $0x1c8] sm:$0xff]
    %v5876 = vld [vmem:[%s2290 + $0x1d0] sm:$0xff]
    %v5877 = vld [vmem:[%s2290 + $0x1e0] sm:$0xff]
    %v5878 = vld [vmem:[%s2290 + $0x1e8] sm:$0xff]
    %v5879 = vld [vmem:[%s2290 + $0x1f8] sm:$0xff]
    %v5880 = vld [vmem:[%s2290 + $0x200] sm:$0xff]
    %v5881 = vld [vmem:[%s2290 + $0x210] sm:$0xff]
    %v5882 = vld [vmem:[%s2290 + $0x218] sm:$0xff]
    %v5883 = vld [vmem:[%s2290 + $0x228] sm:$0xff]
    %v5884 = vld [vmem:[%s2290 + $0x230] sm:$0xff]
    %v5885 = vld [vmem:[%s2290 + $0x240] sm:$0xff]
    %v5886 = vld [vmem:[%s2290 + $0x248] sm:$0xff]
    %v5887 = vld [vmem:[%s2290 + $0x258] sm:$0xff]
    %v5888 = vld [vmem:[%s2290 + $0x260] sm:$0xff]
    %v5889 = vld [vmem:[%s2290 + $0x270] sm:$0xff]
    %v5890 = vld [vmem:[%s2290 + $0x278] sm:$0xff]
    %v5891 = vld [vmem:[%s2290 + $0x288] sm:$0xff]
    %v5892 = vld [vmem:[%s2290 + $0x290] sm:$0xff]
    %v5893 = vld [vmem:[%s2290 + $0x2a0] sm:$0xff]
    %v5894 = vld [vmem:[%s2290 + $0x2a8] sm:$0xff]
    %v5895 = vld [vmem:[%s2290 + $0x2b8] sm:$0xff]
    %v5896 = vld [vmem:[%s2290 + $0x2c0] sm:$0xff]
    %v5897 = vld [vmem:[%s2290 + $0x2d0] sm:$0xff]
    %v5898 = vld [vmem:[%s2290 + $0x2d8] sm:$0xff]
    %v5899 = vld [vmem:[%s2290 + $0x2e8] sm:$0xff]
    %v5900 = vld [vmem:[%s2290 + $0x2f0] sm:$0xff]
    %v5901 = vld [vmem:[%s2290 + $0x300] sm:$0xff]
    %v5902 = vld [vmem:[%s2290 + $0x308] sm:$0xff]
    %v5903 = vld [vmem:[%s2290 + $0x318] sm:$0xff]
    %v5904 = vld [vmem:[%s2290 + $0x320] sm:$0xff]
    %s5905 = scalar_lea.vmem [#allocation6], 1920
    %v5906 = vld [vmem:[%s5905] sm:$0xff]
    %v5907 = vld [vmem:[%s5905 + $0x8] sm:$0xff]
    %v5908 = vld [vmem:[%s5905 + $0x10] sm:$0xff]
    %v5909 = vld [vmem:[%s5905 + $0x18] sm:$0xff]
    %v5910 = vld [vmem:[%s5905 + $0x20] sm:$0xff]
    %v5911 = vld [vmem:[%s5905 + $0x28] sm:$0xff]
    %v5912 = vld [vmem:[%s5905 + $0x30] sm:$0xff]
    %v5913 = vld [vmem:[%s5905 + $0x38] sm:$0xff]
    %v5914 = vld [vmem:[%s5905 + $0x40] sm:$0xff]
    %v5915 = vld [vmem:[%s5905 + $0x48] sm:$0xff]
    %v5916 = vld [vmem:[%s5905 + $0x50] sm:$0xff]
    %v5917 = vld [vmem:[%s5905 + $0x58] sm:$0xff]
    %v5918 = vld [vmem:[%s5905 + $0x60] sm:$0xff]
    %v5919 = vld [vmem:[%s5905 + $0x68] sm:$0xff]
    %v5920 = vld [vmem:[%s5905 + $0x70] sm:$0xff]
    %v5921 = vld [vmem:[%s5905 + $0x78] sm:$0xff]
    %5922 = vmatpush.msra.mxu0 %v5921
    %5923 = vmatpush.msra.mxu0 %v5920
    %5924 = vmatpush.msra.mxu0 %v5919
    %5925 = vmatpush.msra.mxu0 %v5918
    %5926 = vmatpush.msra.mxu0 %v5917
    %5927 = vmatpush.msra.mxu0 %v5916
    %5928 = vmatpush.msra.mxu0 %v5915
    %5929 = vmatpush.msra.mxu0 %v5914
    %5930 = vmatpush.msra.mxu0 %v5913
    %5931 = vmatpush.msra.mxu0 %v5912
    %5932 = vmatpush.msra.mxu0 %v5911
    %5933 = vmatpush.msra.mxu0 %v5910
    %5934 = vmatpush.msra.mxu0 %v5909
    %5935 = vmatpush.msra.mxu0 %v5908
    %5936 = vmatpush.msra.mxu0 %v5907
    %5937 = vmatpush.msra.mxu0 %v5906
    %5938 = vmatmul.f32.gmra.mxu0 %v5841
    %v5939 = vpop.f32.mrf.mxu0
    %v5940 = vadd.f32 0.0, %v5939
    %5941 = vmatmul.f32.gmra.mxu0 %v5842
    %v5942 = vpop.f32.mrf.mxu0
    %v5943 = vadd.f32 0.0, %v5942
    %5944 = vmatmul.f32.gmra.mxu0 %v5843
    %v5945 = vpop.f32.mrf.mxu0
    %v5946 = vadd.f32 0.0, %v5945
    %5947 = vmatmul.f32.gmra.mxu0 %v5844
    %v5948 = vpop.f32.mrf.mxu0
    %v5949 = vadd.f32 0.0, %v5948
    %5950 = vmatmul.f32.gmra.mxu0 %v5845
    %v5951 = vpop.f32.mrf.mxu0
    %v5952 = vadd.f32 0.0, %v5951
    %5953 = vmatmul.f32.gmra.mxu0 %v5846
    %v5954 = vpop.f32.mrf.mxu0
    %v5955 = vadd.f32 0.0, %v5954
    %5956 = vmatmul.f32.gmra.mxu0 %v5847
    %v5957 = vpop.f32.mrf.mxu0
    %v5958 = vadd.f32 0.0, %v5957
    %5959 = vmatmul.f32.gmra.mxu0 %v5848
    %v5960 = vpop.f32.mrf.mxu0
    %v5961 = vadd.f32 0.0, %v5960
    %5962 = vmatmul.f32.gmra.mxu0 %v5849
    %v5963 = vpop.f32.mrf.mxu0
    %v5964 = vadd.f32 0.0, %v5963
    %5965 = vmatmul.f32.gmra.mxu0 %v5850
    %v5966 = vpop.f32.mrf.mxu0
    %v5967 = vadd.f32 0.0, %v5966
    %5968 = vmatmul.f32.gmra.mxu0 %v5851
    %v5969 = vpop.f32.mrf.mxu0
    %v5970 = vadd.f32 0.0, %v5969
    %5971 = vmatmul.f32.gmra.mxu0 %v5852
    %v5972 = vpop.f32.mrf.mxu0
    %v5973 = vadd.f32 0.0, %v5972
    %5974 = vmatmul.f32.gmra.mxu0 %v5853
    %v5975 = vpop.f32.mrf.mxu0
    %v5976 = vadd.f32 0.0, %v5975
    %5977 = vmatmul.f32.gmra.mxu0 %v5854
    %v5978 = vpop.f32.mrf.mxu0
    %v5979 = vadd.f32 0.0, %v5978
    %5980 = vmatmul.f32.gmra.mxu0 %v5855
    %v5981 = vpop.f32.mrf.mxu0
    %v5982 = vadd.f32 0.0, %v5981
    %5983 = vmatmul.f32.gmra.mxu0 %v5856
    %v5984 = vpop.f32.mrf.mxu0
    %v5985 = vadd.f32 0.0, %v5984
    %5986 = vmatmul.f32.gmra.mxu0 %v5857
    %v5987 = vpop.f32.mrf.mxu0
    %v5988 = vadd.f32 0.0, %v5987
    %5989 = vmatmul.f32.gmra.mxu0 %v5858
    %v5990 = vpop.f32.mrf.mxu0
    %v5991 = vadd.f32 0.0, %v5990
    %5992 = vmatmul.f32.gmra.mxu0 %v5859
    %v5993 = vpop.f32.mrf.mxu0
    %v5994 = vadd.f32 0.0, %v5993
    %5995 = vmatmul.f32.gmra.mxu0 %v5860
    %v5996 = vpop.f32.mrf.mxu0
    %v5997 = vadd.f32 0.0, %v5996
    %5998 = vmatmul.f32.gmra.mxu0 %v5861
    %v5999 = vpop.f32.mrf.mxu0
    %v6000 = vadd.f32 0.0, %v5999
    %6001 = vmatmul.f32.gmra.mxu0 %v5862
    %v6002 = vpop.f32.mrf.mxu0
    %v6003 = vadd.f32 0.0, %v6002
    %6004 = vmatmul.f32.gmra.mxu0 %v5863
    %v6005 = vpop.f32.mrf.mxu0
    %v6006 = vadd.f32 0.0, %v6005
    %6007 = vmatmul.f32.gmra.mxu0 %v5864
    %v6008 = vpop.f32.mrf.mxu0
    %v6009 = vadd.f32 0.0, %v6008
    %6010 = vmatmul.f32.gmra.mxu0 %v5865
    %v6011 = vpop.f32.mrf.mxu0
    %v6012 = vadd.f32 0.0, %v6011
    %6013 = vmatmul.f32.gmra.mxu0 %v5866
    %v6014 = vpop.f32.mrf.mxu0
    %v6015 = vadd.f32 0.0, %v6014
    %6016 = vmatmul.f32.gmra.mxu0 %v5867
    %v6017 = vpop.f32.mrf.mxu0
    %v6018 = vadd.f32 0.0, %v6017
    %6019 = vmatmul.f32.gmra.mxu0 %v5868
    %v6020 = vpop.f32.mrf.mxu0
    %v6021 = vadd.f32 0.0, %v6020
    %6022 = vmatmul.f32.gmra.mxu0 %v5869
    %v6023 = vpop.f32.mrf.mxu0
    %v6024 = vadd.f32 0.0, %v6023
    %6025 = vmatmul.f32.gmra.mxu0 %v5870
    %v6026 = vpop.f32.mrf.mxu0
    %v6027 = vadd.f32 0.0, %v6026
    %6028 = vmatmul.f32.gmra.mxu0 %v5871
    %v6029 = vpop.f32.mrf.mxu0
    %v6030 = vadd.f32 0.0, %v6029
    %6031 = vmatmul.f32.gmra.mxu0 %v5872
    %v6032 = vpop.f32.mrf.mxu0
    %v6033 = vadd.f32 0.0, %v6032
    %6034 = vmatmul.f32.gmra.mxu0 %v5873
    %v6035 = vpop.f32.mrf.mxu0
    %v6036 = vadd.f32 0.0, %v6035
    %6037 = vmatmul.f32.gmra.mxu0 %v5874
    %v6038 = vpop.f32.mrf.mxu0
    %v6039 = vadd.f32 0.0, %v6038
    %6040 = vmatmul.f32.gmra.mxu0 %v5875
    %v6041 = vpop.f32.mrf.mxu0
    %v6042 = vadd.f32 0.0, %v6041
    %6043 = vmatmul.f32.gmra.mxu0 %v5876
    %v6044 = vpop.f32.mrf.mxu0
    %v6045 = vadd.f32 0.0, %v6044
    %6046 = vmatmul.f32.gmra.mxu0 %v5877
    %v6047 = vpop.f32.mrf.mxu0
    %v6048 = vadd.f32 0.0, %v6047
    %6049 = vmatmul.f32.gmra.mxu0 %v5878
    %v6050 = vpop.f32.mrf.mxu0
    %v6051 = vadd.f32 0.0, %v6050
    %6052 = vmatmul.f32.gmra.mxu0 %v5879
    %v6053 = vpop.f32.mrf.mxu0
    %v6054 = vadd.f32 0.0, %v6053
    %6055 = vmatmul.f32.gmra.mxu0 %v5880
    %v6056 = vpop.f32.mrf.mxu0
    %v6057 = vadd.f32 0.0, %v6056
    %6058 = vmatmul.f32.gmra.mxu0 %v5881
    %v6059 = vpop.f32.mrf.mxu0
    %v6060 = vadd.f32 0.0, %v6059
    %6061 = vmatmul.f32.gmra.mxu0 %v5882
    %v6062 = vpop.f32.mrf.mxu0
    %v6063 = vadd.f32 0.0, %v6062
    %6064 = vmatmul.f32.gmra.mxu0 %v5883
    %v6065 = vpop.f32.mrf.mxu0
    %v6066 = vadd.f32 0.0, %v6065
    %6067 = vmatmul.f32.gmra.mxu0 %v5884
    %v6068 = vpop.f32.mrf.mxu0
    %v6069 = vadd.f32 0.0, %v6068
    %6070 = vmatmul.f32.gmra.mxu0 %v5885
    %v6071 = vpop.f32.mrf.mxu0
    %v6072 = vadd.f32 0.0, %v6071
    %6073 = vmatmul.f32.gmra.mxu0 %v5886
    %v6074 = vpop.f32.mrf.mxu0
    %v6075 = vadd.f32 0.0, %v6074
    %6076 = vmatmul.f32.gmra.mxu0 %v5887
    %v6077 = vpop.f32.mrf.mxu0
    %v6078 = vadd.f32 0.0, %v6077
    %6079 = vmatmul.f32.gmra.mxu0 %v5888
    %v6080 = vpop.f32.mrf.mxu0
    %v6081 = vadd.f32 0.0, %v6080
    %6082 = vmatmul.f32.gmra.mxu0 %v5889
    %v6083 = vpop.f32.mrf.mxu0
    %v6084 = vadd.f32 0.0, %v6083
    %6085 = vmatmul.f32.gmra.mxu0 %v5890
    %v6086 = vpop.f32.mrf.mxu0
    %v6087 = vadd.f32 0.0, %v6086
    %6088 = vmatmul.f32.gmra.mxu0 %v5891
    %v6089 = vpop.f32.mrf.mxu0
    %v6090 = vadd.f32 0.0, %v6089
    %6091 = vmatmul.f32.gmra.mxu0 %v5892
    %v6092 = vpop.f32.mrf.mxu0
    %v6093 = vadd.f32 0.0, %v6092
    %6094 = vmatmul.f32.gmra.mxu0 %v5893
    %v6095 = vpop.f32.mrf.mxu0
    %v6096 = vadd.f32 0.0, %v6095
    %6097 = vmatmul.f32.gmra.mxu0 %v5894
    %v6098 = vpop.f32.mrf.mxu0
    %v6099 = vadd.f32 0.0, %v6098
    %6100 = vmatmul.f32.gmra.mxu0 %v5895
    %v6101 = vpop.f32.mrf.mxu0
    %v6102 = vadd.f32 0.0, %v6101
    %6103 = vmatmul.f32.gmra.mxu0 %v5896
    %v6104 = vpop.f32.mrf.mxu0
    %v6105 = vadd.f32 0.0, %v6104
    %6106 = vmatmul.f32.gmra.mxu0 %v5897
    %v6107 = vpop.f32.mrf.mxu0
    %v6108 = vadd.f32 0.0, %v6107
    %6109 = vmatmul.f32.gmra.mxu0 %v5898
    %v6110 = vpop.f32.mrf.mxu0
    %v6111 = vadd.f32 0.0, %v6110
    %6112 = vmatmul.f32.gmra.mxu0 %v5899
    %v6113 = vpop.f32.mrf.mxu0
    %v6114 = vadd.f32 0.0, %v6113
    %6115 = vmatmul.f32.gmra.mxu0 %v5900
    %v6116 = vpop.f32.mrf.mxu0
    %v6117 = vadd.f32 0.0, %v6116
    %6118 = vmatmul.f32.gmra.mxu0 %v5901
    %v6119 = vpop.f32.mrf.mxu0
    %v6120 = vadd.f32 0.0, %v6119
    %6121 = vmatmul.f32.gmra.mxu0 %v5902
    %v6122 = vpop.f32.mrf.mxu0
    %v6123 = vadd.f32 0.0, %v6122
    %6124 = vmatmul.f32.gmra.mxu0 %v5903
    %v6125 = vpop.f32.mrf.mxu0
    %v6126 = vadd.f32 0.0, %v6125
    %6127 = vmatmul.f32.gmra.mxu0 %v5904
    %v6128 = vpop.f32.mrf.mxu0
    %v6129 = vadd.f32 0.0, %v6128
    %6130 = vdwg.mxu0
    %v6131 = vadd.f32 %v5777, %v5940
    %v6132 = vadd.f32 %v5778, %v5943
    %v6133 = vadd.f32 %v5779, %v5946
    %v6134 = vadd.f32 %v5780, %v5949
    %v6135 = vadd.f32 %v5781, %v5952
    %v6136 = vadd.f32 %v5782, %v5955
    %v6137 = vadd.f32 %v5783, %v5958
    %v6138 = vadd.f32 %v5784, %v5961
    %v6139 = vadd.f32 %v5785, %v5964
    %v6140 = vadd.f32 %v5786, %v5967
    %v6141 = vadd.f32 %v5787, %v5970
    %v6142 = vadd.f32 %v5788, %v5973
    %v6143 = vadd.f32 %v5789, %v5976
    %v6144 = vadd.f32 %v5790, %v5979
    %v6145 = vadd.f32 %v5791, %v5982
    %v6146 = vadd.f32 %v5792, %v5985
    %v6147 = vadd.f32 %v5793, %v5988
    %v6148 = vadd.f32 %v5794, %v5991
    %v6149 = vadd.f32 %v5795, %v5994
    %v6150 = vadd.f32 %v5796, %v5997
    %v6151 = vadd.f32 %v5797, %v6000
    %v6152 = vadd.f32 %v5798, %v6003
    %v6153 = vadd.f32 %v5799, %v6006
    %v6154 = vadd.f32 %v5800, %v6009
    %v6155 = vadd.f32 %v5801, %v6012
    %v6156 = vadd.f32 %v5802, %v6015
    %v6157 = vadd.f32 %v5803, %v6018
    %v6158 = vadd.f32 %v5804, %v6021
    %v6159 = vadd.f32 %v5805, %v6024
    %v6160 = vadd.f32 %v5806, %v6027
    %v6161 = vadd.f32 %v5807, %v6030
    %v6162 = vadd.f32 %v5808, %v6033
    %v6163 = vadd.f32 %v5809, %v6036
    %v6164 = vadd.f32 %v5810, %v6039
    %v6165 = vadd.f32 %v5811, %v6042
    %v6166 = vadd.f32 %v5812, %v6045
    %v6167 = vadd.f32 %v5813, %v6048
    %v6168 = vadd.f32 %v5814, %v6051
    %v6169 = vadd.f32 %v5815, %v6054
    %v6170 = vadd.f32 %v5816, %v6057
    %v6171 = vadd.f32 %v5817, %v6060
    %v6172 = vadd.f32 %v5818, %v6063
    %v6173 = vadd.f32 %v5819, %v6066
    %v6174 = vadd.f32 %v5820, %v6069
    %v6175 = vadd.f32 %v5821, %v6072
    %v6176 = vadd.f32 %v5822, %v6075
    %v6177 = vadd.f32 %v5823, %v6078
    %v6178 = vadd.f32 %v5824, %v6081
    %v6179 = vadd.f32 %v5825, %v6084
    %v6180 = vadd.f32 %v5826, %v6087
    %v6181 = vadd.f32 %v5827, %v6090
    %v6182 = vadd.f32 %v5828, %v6093
    %v6183 = vadd.f32 %v5829, %v6096
    %v6184 = vadd.f32 %v5830, %v6099
    %v6185 = vadd.f32 %v5831, %v6102
    %v6186 = vadd.f32 %v5832, %v6105
    %v6187 = vadd.f32 %v5833, %v6108
    %v6188 = vadd.f32 %v5834, %v6111
    %v6189 = vadd.f32 %v5835, %v6114
    %v6190 = vadd.f32 %v5836, %v6117
    %v6191 = vadd.f32 %v5837, %v6120
    %v6192 = vadd.f32 %v5838, %v6123
    %v6193 = vadd.f32 %v5839, %v6126
    %v6194 = vadd.f32 %v5840, %v6129
    %v6195 = vld [vmem:[%s2290 + $0x1] sm:$0xff]
    %v6196 = vld [vmem:[%s2290 + $0x9] sm:$0xff]
    %v6197 = vld [vmem:[%s2290 + $0x19] sm:$0xff]
    %v6198 = vld [vmem:[%s2290 + $0x21] sm:$0xff]
    %v6199 = vld [vmem:[%s2290 + $0x31] sm:$0xff]
    %v6200 = vld [vmem:[%s2290 + $0x39] sm:$0xff]
    %v6201 = vld [vmem:[%s2290 + $0x49] sm:$0xff]
    %v6202 = vld [vmem:[%s2290 + $0x51] sm:$0xff]
    %v6203 = vld [vmem:[%s2290 + $0x61] sm:$0xff]
    %v6204 = vld [vmem:[%s2290 + $0x69] sm:$0xff]
    %v6205 = vld [vmem:[%s2290 + $0x79] sm:$0xff]
    %v6206 = vld [vmem:[%s2290 + $0x81] sm:$0xff]
    %v6207 = vld [vmem:[%s2290 + $0x91] sm:$0xff]
    %v6208 = vld [vmem:[%s2290 + $0x99] sm:$0xff]
    %v6209 = vld [vmem:[%s2290 + $0xa9] sm:$0xff]
    %v6210 = vld [vmem:[%s2290 + $0xb1] sm:$0xff]
    %v6211 = vld [vmem:[%s2290 + $0xc1] sm:$0xff]
    %v6212 = vld [vmem:[%s2290 + $0xc9] sm:$0xff]
    %v6213 = vld [vmem:[%s2290 + $0xd9] sm:$0xff]
    %v6214 = vld [vmem:[%s2290 + $0xe1] sm:$0xff]
    %v6215 = vld [vmem:[%s2290 + $0xf1] sm:$0xff]
    %v6216 = vld [vmem:[%s2290 + $0xf9] sm:$0xff]
    %v6217 = vld [vmem:[%s2290 + $0x109] sm:$0xff]
    %v6218 = vld [vmem:[%s2290 + $0x111] sm:$0xff]
    %v6219 = vld [vmem:[%s2290 + $0x121] sm:$0xff]
    %v6220 = vld [vmem:[%s2290 + $0x129] sm:$0xff]
    %v6221 = vld [vmem:[%s2290 + $0x139] sm:$0xff]
    %v6222 = vld [vmem:[%s2290 + $0x141] sm:$0xff]
    %v6223 = vld [vmem:[%s2290 + $0x151] sm:$0xff]
    %v6224 = vld [vmem:[%s2290 + $0x159] sm:$0xff]
    %v6225 = vld [vmem:[%s2290 + $0x169] sm:$0xff]
    %v6226 = vld [vmem:[%s2290 + $0x171] sm:$0xff]
    %v6227 = vld [vmem:[%s2290 + $0x1b1] sm:$0xff]
    %v6228 = vld [vmem:[%s2290 + $0x1b9] sm:$0xff]
    %v6229 = vld [vmem:[%s2290 + $0x1c9] sm:$0xff]
    %v6230 = vld [vmem:[%s2290 + $0x1d1] sm:$0xff]
    %v6231 = vld [vmem:[%s2290 + $0x1e1] sm:$0xff]
    %v6232 = vld [vmem:[%s2290 + $0x1e9] sm:$0xff]
    %v6233 = vld [vmem:[%s2290 + $0x1f9] sm:$0xff]
    %v6234 = vld [vmem:[%s2290 + $0x201] sm:$0xff]
    %v6235 = vld [vmem:[%s2290 + $0x211] sm:$0xff]
    %v6236 = vld [vmem:[%s2290 + $0x219] sm:$0xff]
    %v6237 = vld [vmem:[%s2290 + $0x229] sm:$0xff]
    %v6238 = vld [vmem:[%s2290 + $0x231] sm:$0xff]
    %v6239 = vld [vmem:[%s2290 + $0x241] sm:$0xff]
    %v6240 = vld [vmem:[%s2290 + $0x249] sm:$0xff]
    %v6241 = vld [vmem:[%s2290 + $0x259] sm:$0xff]
    %v6242 = vld [vmem:[%s2290 + $0x261] sm:$0xff]
    %v6243 = vld [vmem:[%s2290 + $0x271] sm:$0xff]
    %v6244 = vld [vmem:[%s2290 + $0x279] sm:$0xff]
    %v6245 = vld [vmem:[%s2290 + $0x289] sm:$0xff]
    %v6246 = vld [vmem:[%s2290 + $0x291] sm:$0xff]
    %v6247 = vld [vmem:[%s2290 + $0x2a1] sm:$0xff]
    %v6248 = vld [vmem:[%s2290 + $0x2a9] sm:$0xff]
    %v6249 = vld [vmem:[%s2290 + $0x2b9] sm:$0xff]
    %v6250 = vld [vmem:[%s2290 + $0x2c1] sm:$0xff]
    %v6251 = vld [vmem:[%s2290 + $0x2d1] sm:$0xff]
    %v6252 = vld [vmem:[%s2290 + $0x2d9] sm:$0xff]
    %v6253 = vld [vmem:[%s2290 + $0x2e9] sm:$0xff]
    %v6254 = vld [vmem:[%s2290 + $0x2f1] sm:$0xff]
    %v6255 = vld [vmem:[%s2290 + $0x301] sm:$0xff]
    %v6256 = vld [vmem:[%s2290 + $0x309] sm:$0xff]
    %v6257 = vld [vmem:[%s2290 + $0x319] sm:$0xff]
    %v6258 = vld [vmem:[%s2290 + $0x321] sm:$0xff]
    %s6259 = scalar_lea.vmem [#allocation6], 2048
    %v6260 = vld [vmem:[%s6259] sm:$0xff]
    %v6261 = vld [vmem:[%s6259 + $0x8] sm:$0xff]
    %v6262 = vld [vmem:[%s6259 + $0x10] sm:$0xff]
    %v6263 = vld [vmem:[%s6259 + $0x18] sm:$0xff]
    %v6264 = vld [vmem:[%s6259 + $0x20] sm:$0xff]
    %v6265 = vld [vmem:[%s6259 + $0x28] sm:$0xff]
    %v6266 = vld [vmem:[%s6259 + $0x30] sm:$0xff]
    %v6267 = vld [vmem:[%s6259 + $0x38] sm:$0xff]
    %v6268 = vld [vmem:[%s6259 + $0x40] sm:$0xff]
    %v6269 = vld [vmem:[%s6259 + $0x48] sm:$0xff]
    %v6270 = vld [vmem:[%s6259 + $0x50] sm:$0xff]
    %v6271 = vld [vmem:[%s6259 + $0x58] sm:$0xff]
    %v6272 = vld [vmem:[%s6259 + $0x60] sm:$0xff]
    %v6273 = vld [vmem:[%s6259 + $0x68] sm:$0xff]
    %v6274 = vld [vmem:[%s6259 + $0x70] sm:$0xff]
    %v6275 = vld [vmem:[%s6259 + $0x78] sm:$0xff]
    %6276 = vmatpush.msra.mxu0 %v6275
    %6277 = vmatpush.msra.mxu0 %v6274
    %6278 = vmatpush.msra.mxu0 %v6273
    %6279 = vmatpush.msra.mxu0 %v6272
    %6280 = vmatpush.msra.mxu0 %v6271
    %6281 = vmatpush.msra.mxu0 %v6270
    %6282 = vmatpush.msra.mxu0 %v6269
    %6283 = vmatpush.msra.mxu0 %v6268
    %6284 = vmatpush.msra.mxu0 %v6267
    %6285 = vmatpush.msra.mxu0 %v6266
    %6286 = vmatpush.msra.mxu0 %v6265
    %6287 = vmatpush.msra.mxu0 %v6264
    %6288 = vmatpush.msra.mxu0 %v6263
    %6289 = vmatpush.msra.mxu0 %v6262
    %6290 = vmatpush.msra.mxu0 %v6261
    %6291 = vmatpush.msra.mxu0 %v6260
    %6292 = vmatmul.f32.gmra.mxu0 %v6195
    %v6293 = vpop.f32.mrf.mxu0
    %v6294 = vadd.f32 0.0, %v6293
    %6295 = vmatmul.f32.gmra.mxu0 %v6196
    %v6296 = vpop.f32.mrf.mxu0
    %v6297 = vadd.f32 0.0, %v6296
    %6298 = vmatmul.f32.gmra.mxu0 %v6197
    %v6299 = vpop.f32.mrf.mxu0
    %v6300 = vadd.f32 0.0, %v6299
    %6301 = vmatmul.f32.gmra.mxu0 %v6198
    %v6302 = vpop.f32.mrf.mxu0
    %v6303 = vadd.f32 0.0, %v6302
    %6304 = vmatmul.f32.gmra.mxu0 %v6199
    %v6305 = vpop.f32.mrf.mxu0
    %v6306 = vadd.f32 0.0, %v6305
    %6307 = vmatmul.f32.gmra.mxu0 %v6200
    %v6308 = vpop.f32.mrf.mxu0
    %v6309 = vadd.f32 0.0, %v6308
    %6310 = vmatmul.f32.gmra.mxu0 %v6201
    %v6311 = vpop.f32.mrf.mxu0
    %v6312 = vadd.f32 0.0, %v6311
    %6313 = vmatmul.f32.gmra.mxu0 %v6202
    %v6314 = vpop.f32.mrf.mxu0
    %v6315 = vadd.f32 0.0, %v6314
    %6316 = vmatmul.f32.gmra.mxu0 %v6203
    %v6317 = vpop.f32.mrf.mxu0
    %v6318 = vadd.f32 0.0, %v6317
    %6319 = vmatmul.f32.gmra.mxu0 %v6204
    %v6320 = vpop.f32.mrf.mxu0
    %v6321 = vadd.f32 0.0, %v6320
    %6322 = vmatmul.f32.gmra.mxu0 %v6205
    %v6323 = vpop.f32.mrf.mxu0
    %v6324 = vadd.f32 0.0, %v6323
    %6325 = vmatmul.f32.gmra.mxu0 %v6206
    %v6326 = vpop.f32.mrf.mxu0
    %v6327 = vadd.f32 0.0, %v6326
    %6328 = vmatmul.f32.gmra.mxu0 %v6207
    %v6329 = vpop.f32.mrf.mxu0
    %v6330 = vadd.f32 0.0, %v6329
    %6331 = vmatmul.f32.gmra.mxu0 %v6208
    %v6332 = vpop.f32.mrf.mxu0
    %v6333 = vadd.f32 0.0, %v6332
    %6334 = vmatmul.f32.gmra.mxu0 %v6209
    %v6335 = vpop.f32.mrf.mxu0
    %v6336 = vadd.f32 0.0, %v6335
    %6337 = vmatmul.f32.gmra.mxu0 %v6210
    %v6338 = vpop.f32.mrf.mxu0
    %v6339 = vadd.f32 0.0, %v6338
    %6340 = vmatmul.f32.gmra.mxu0 %v6211
    %v6341 = vpop.f32.mrf.mxu0
    %v6342 = vadd.f32 0.0, %v6341
    %6343 = vmatmul.f32.gmra.mxu0 %v6212
    %v6344 = vpop.f32.mrf.mxu0
    %v6345 = vadd.f32 0.0, %v6344
    %6346 = vmatmul.f32.gmra.mxu0 %v6213
    %v6347 = vpop.f32.mrf.mxu0
    %v6348 = vadd.f32 0.0, %v6347
    %6349 = vmatmul.f32.gmra.mxu0 %v6214
    %v6350 = vpop.f32.mrf.mxu0
    %v6351 = vadd.f32 0.0, %v6350
    %6352 = vmatmul.f32.gmra.mxu0 %v6215
    %v6353 = vpop.f32.mrf.mxu0
    %v6354 = vadd.f32 0.0, %v6353
    %6355 = vmatmul.f32.gmra.mxu0 %v6216
    %v6356 = vpop.f32.mrf.mxu0
    %v6357 = vadd.f32 0.0, %v6356
    %6358 = vmatmul.f32.gmra.mxu0 %v6217
    %v6359 = vpop.f32.mrf.mxu0
    %v6360 = vadd.f32 0.0, %v6359
    %6361 = vmatmul.f32.gmra.mxu0 %v6218
    %v6362 = vpop.f32.mrf.mxu0
    %v6363 = vadd.f32 0.0, %v6362
    %6364 = vmatmul.f32.gmra.mxu0 %v6219
    %v6365 = vpop.f32.mrf.mxu0
    %v6366 = vadd.f32 0.0, %v6365
    %6367 = vmatmul.f32.gmra.mxu0 %v6220
    %v6368 = vpop.f32.mrf.mxu0
    %v6369 = vadd.f32 0.0, %v6368
    %6370 = vmatmul.f32.gmra.mxu0 %v6221
    %v6371 = vpop.f32.mrf.mxu0
    %v6372 = vadd.f32 0.0, %v6371
    %6373 = vmatmul.f32.gmra.mxu0 %v6222
    %v6374 = vpop.f32.mrf.mxu0
    %v6375 = vadd.f32 0.0, %v6374
    %6376 = vmatmul.f32.gmra.mxu0 %v6223
    %v6377 = vpop.f32.mrf.mxu0
    %v6378 = vadd.f32 0.0, %v6377
    %6379 = vmatmul.f32.gmra.mxu0 %v6224
    %v6380 = vpop.f32.mrf.mxu0
    %v6381 = vadd.f32 0.0, %v6380
    %6382 = vmatmul.f32.gmra.mxu0 %v6225
    %v6383 = vpop.f32.mrf.mxu0
    %v6384 = vadd.f32 0.0, %v6383
    %6385 = vmatmul.f32.gmra.mxu0 %v6226
    %v6386 = vpop.f32.mrf.mxu0
    %v6387 = vadd.f32 0.0, %v6386
    %6388 = vmatmul.f32.gmra.mxu0 %v6227
    %v6389 = vpop.f32.mrf.mxu0
    %v6390 = vadd.f32 0.0, %v6389
    %6391 = vmatmul.f32.gmra.mxu0 %v6228
    %v6392 = vpop.f32.mrf.mxu0
    %v6393 = vadd.f32 0.0, %v6392
    %6394 = vmatmul.f32.gmra.mxu0 %v6229
    %v6395 = vpop.f32.mrf.mxu0
    %v6396 = vadd.f32 0.0, %v6395
    %6397 = vmatmul.f32.gmra.mxu0 %v6230
    %v6398 = vpop.f32.mrf.mxu0
    %v6399 = vadd.f32 0.0, %v6398
    %6400 = vmatmul.f32.gmra.mxu0 %v6231
    %v6401 = vpop.f32.mrf.mxu0
    %v6402 = vadd.f32 0.0, %v6401
    %6403 = vmatmul.f32.gmra.mxu0 %v6232
    %v6404 = vpop.f32.mrf.mxu0
    %v6405 = vadd.f32 0.0, %v6404
    %6406 = vmatmul.f32.gmra.mxu0 %v6233
    %v6407 = vpop.f32.mrf.mxu0
    %v6408 = vadd.f32 0.0, %v6407
    %6409 = vmatmul.f32.gmra.mxu0 %v6234
    %v6410 = vpop.f32.mrf.mxu0
    %v6411 = vadd.f32 0.0, %v6410
    %6412 = vmatmul.f32.gmra.mxu0 %v6235
    %v6413 = vpop.f32.mrf.mxu0
    %v6414 = vadd.f32 0.0, %v6413
    %6415 = vmatmul.f32.gmra.mxu0 %v6236
    %v6416 = vpop.f32.mrf.mxu0
    %v6417 = vadd.f32 0.0, %v6416
    %6418 = vmatmul.f32.gmra.mxu0 %v6237
    %v6419 = vpop.f32.mrf.mxu0
    %v6420 = vadd.f32 0.0, %v6419
    %6421 = vmatmul.f32.gmra.mxu0 %v6238
    %v6422 = vpop.f32.mrf.mxu0
    %v6423 = vadd.f32 0.0, %v6422
    %6424 = vmatmul.f32.gmra.mxu0 %v6239
    %v6425 = vpop.f32.mrf.mxu0
    %v6426 = vadd.f32 0.0, %v6425
    %6427 = vmatmul.f32.gmra.mxu0 %v6240
    %v6428 = vpop.f32.mrf.mxu0
    %v6429 = vadd.f32 0.0, %v6428
    %6430 = vmatmul.f32.gmra.mxu0 %v6241
    %v6431 = vpop.f32.mrf.mxu0
    %v6432 = vadd.f32 0.0, %v6431
    %6433 = vmatmul.f32.gmra.mxu0 %v6242
    %v6434 = vpop.f32.mrf.mxu0
    %v6435 = vadd.f32 0.0, %v6434
    %6436 = vmatmul.f32.gmra.mxu0 %v6243
    %v6437 = vpop.f32.mrf.mxu0
    %v6438 = vadd.f32 0.0, %v6437
    %6439 = vmatmul.f32.gmra.mxu0 %v6244
    %v6440 = vpop.f32.mrf.mxu0
    %v6441 = vadd.f32 0.0, %v6440
    %6442 = vmatmul.f32.gmra.mxu0 %v6245
    %v6443 = vpop.f32.mrf.mxu0
    %v6444 = vadd.f32 0.0, %v6443
    %6445 = vmatmul.f32.gmra.mxu0 %v6246
    %v6446 = vpop.f32.mrf.mxu0
    %v6447 = vadd.f32 0.0, %v6446
    %6448 = vmatmul.f32.gmra.mxu0 %v6247
    %v6449 = vpop.f32.mrf.mxu0
    %v6450 = vadd.f32 0.0, %v6449
    %6451 = vmatmul.f32.gmra.mxu0 %v6248
    %v6452 = vpop.f32.mrf.mxu0
    %v6453 = vadd.f32 0.0, %v6452
    %6454 = vmatmul.f32.gmra.mxu0 %v6249
    %v6455 = vpop.f32.mrf.mxu0
    %v6456 = vadd.f32 0.0, %v6455
    %6457 = vmatmul.f32.gmra.mxu0 %v6250
    %v6458 = vpop.f32.mrf.mxu0
    %v6459 = vadd.f32 0.0, %v6458
    %6460 = vmatmul.f32.gmra.mxu0 %v6251
    %v6461 = vpop.f32.mrf.mxu0
    %v6462 = vadd.f32 0.0, %v6461
    %6463 = vmatmul.f32.gmra.mxu0 %v6252
    %v6464 = vpop.f32.mrf.mxu0
    %v6465 = vadd.f32 0.0, %v6464
    %6466 = vmatmul.f32.gmra.mxu0 %v6253
    %v6467 = vpop.f32.mrf.mxu0
    %v6468 = vadd.f32 0.0, %v6467
    %6469 = vmatmul.f32.gmra.mxu0 %v6254
    %v6470 = vpop.f32.mrf.mxu0
    %v6471 = vadd.f32 0.0, %v6470
    %6472 = vmatmul.f32.gmra.mxu0 %v6255
    %v6473 = vpop.f32.mrf.mxu0
    %v6474 = vadd.f32 0.0, %v6473
    %6475 = vmatmul.f32.gmra.mxu0 %v6256
    %v6476 = vpop.f32.mrf.mxu0
    %v6477 = vadd.f32 0.0, %v6476
    %6478 = vmatmul.f32.gmra.mxu0 %v6257
    %v6479 = vpop.f32.mrf.mxu0
    %v6480 = vadd.f32 0.0, %v6479
    %6481 = vmatmul.f32.gmra.mxu0 %v6258
    %v6482 = vpop.f32.mrf.mxu0
    %v6483 = vadd.f32 0.0, %v6482
    %6484 = vdwg.mxu0
    %v6485 = vadd.f32 %v6131, %v6294
    %v6486 = vadd.f32 %v6132, %v6297
    %v6487 = vadd.f32 %v6133, %v6300
    %v6488 = vadd.f32 %v6134, %v6303
    %v6489 = vadd.f32 %v6135, %v6306
    %v6490 = vadd.f32 %v6136, %v6309
    %v6491 = vadd.f32 %v6137, %v6312
    %v6492 = vadd.f32 %v6138, %v6315
    %v6493 = vadd.f32 %v6139, %v6318
    %v6494 = vadd.f32 %v6140, %v6321
    %v6495 = vadd.f32 %v6141, %v6324
    %v6496 = vadd.f32 %v6142, %v6327
    %v6497 = vadd.f32 %v6143, %v6330
    %v6498 = vadd.f32 %v6144, %v6333
    %v6499 = vadd.f32 %v6145, %v6336
    %v6500 = vadd.f32 %v6146, %v6339
    %v6501 = vadd.f32 %v6147, %v6342
    %v6502 = vadd.f32 %v6148, %v6345
    %v6503 = vadd.f32 %v6149, %v6348
    %v6504 = vadd.f32 %v6150, %v6351
    %v6505 = vadd.f32 %v6151, %v6354
    %v6506 = vadd.f32 %v6152, %v6357
    %v6507 = vadd.f32 %v6153, %v6360
    %v6508 = vadd.f32 %v6154, %v6363
    %v6509 = vadd.f32 %v6155, %v6366
    %v6510 = vadd.f32 %v6156, %v6369
    %v6511 = vadd.f32 %v6157, %v6372
    %v6512 = vadd.f32 %v6158, %v6375
    %v6513 = vadd.f32 %v6159, %v6378
    %v6514 = vadd.f32 %v6160, %v6381
    %v6515 = vadd.f32 %v6161, %v6384
    %v6516 = vadd.f32 %v6162, %v6387
    %v6517 = vadd.f32 %v6163, %v6390
    %v6518 = vadd.f32 %v6164, %v6393
    %v6519 = vadd.f32 %v6165, %v6396
    %v6520 = vadd.f32 %v6166, %v6399
    %v6521 = vadd.f32 %v6167, %v6402
    %v6522 = vadd.f32 %v6168, %v6405
    %v6523 = vadd.f32 %v6169, %v6408
    %v6524 = vadd.f32 %v6170, %v6411
    %v6525 = vadd.f32 %v6171, %v6414
    %v6526 = vadd.f32 %v6172, %v6417
    %v6527 = vadd.f32 %v6173, %v6420
    %v6528 = vadd.f32 %v6174, %v6423
    %v6529 = vadd.f32 %v6175, %v6426
    %v6530 = vadd.f32 %v6176, %v6429
    %v6531 = vadd.f32 %v6177, %v6432
    %v6532 = vadd.f32 %v6178, %v6435
    %v6533 = vadd.f32 %v6179, %v6438
    %v6534 = vadd.f32 %v6180, %v6441
    %v6535 = vadd.f32 %v6181, %v6444
    %v6536 = vadd.f32 %v6182, %v6447
    %v6537 = vadd.f32 %v6183, %v6450
    %v6538 = vadd.f32 %v6184, %v6453
    %v6539 = vadd.f32 %v6185, %v6456
    %v6540 = vadd.f32 %v6186, %v6459
    %v6541 = vadd.f32 %v6187, %v6462
    %v6542 = vadd.f32 %v6188, %v6465
    %v6543 = vadd.f32 %v6189, %v6468
    %v6544 = vadd.f32 %v6190, %v6471
    %v6545 = vadd.f32 %v6191, %v6474
    %v6546 = vadd.f32 %v6192, %v6477
    %v6547 = vadd.f32 %v6193, %v6480
    %v6548 = vadd.f32 %v6194, %v6483
    %v6549 = vld [vmem:[%s2290 + $0x2] sm:$0xff]
    %v6550 = vld [vmem:[%s2290 + $0xa] sm:$0xff]
    %v6551 = vld [vmem:[%s2290 + $0x1a] sm:$0xff]
    %v6552 = vld [vmem:[%s2290 + $0x22] sm:$0xff]
    %v6553 = vld [vmem:[%s2290 + $0x32] sm:$0xff]
    %v6554 = vld [vmem:[%s2290 + $0x3a] sm:$0xff]
    %v6555 = vld [vmem:[%s2290 + $0x4a] sm:$0xff]
    %v6556 = vld [vmem:[%s2290 + $0x52] sm:$0xff]
    %v6557 = vld [vmem:[%s2290 + $0x62] sm:$0xff]
    %v6558 = vld [vmem:[%s2290 + $0x6a] sm:$0xff]
    %v6559 = vld [vmem:[%s2290 + $0x7a] sm:$0xff]
    %v6560 = vld [vmem:[%s2290 + $0x82] sm:$0xff]
    %v6561 = vld [vmem:[%s2290 + $0x92] sm:$0xff]
    %v6562 = vld [vmem:[%s2290 + $0x9a] sm:$0xff]
    %v6563 = vld [vmem:[%s2290 + $0xaa] sm:$0xff]
    %v6564 = vld [vmem:[%s2290 + $0xb2] sm:$0xff]
    %v6565 = vld [vmem:[%s2290 + $0xc2] sm:$0xff]
    %v6566 = vld [vmem:[%s2290 + $0xca] sm:$0xff]
    %v6567 = vld [vmem:[%s2290 + $0xda] sm:$0xff]
    %v6568 = vld [vmem:[%s2290 + $0xe2] sm:$0xff]
    %v6569 = vld [vmem:[%s2290 + $0xf2] sm:$0xff]
    %v6570 = vld [vmem:[%s2290 + $0xfa] sm:$0xff]
    %v6571 = vld [vmem:[%s2290 + $0x10a] sm:$0xff]
    %v6572 = vld [vmem:[%s2290 + $0x112] sm:$0xff]
    %v6573 = vld [vmem:[%s2290 + $0x122] sm:$0xff]
    %v6574 = vld [vmem:[%s2290 + $0x12a] sm:$0xff]
    %v6575 = vld [vmem:[%s2290 + $0x13a] sm:$0xff]
    %v6576 = vld [vmem:[%s2290 + $0x142] sm:$0xff]
    %v6577 = vld [vmem:[%s2290 + $0x152] sm:$0xff]
    %v6578 = vld [vmem:[%s2290 + $0x15a] sm:$0xff]
    %v6579 = vld [vmem:[%s2290 + $0x16a] sm:$0xff]
    %v6580 = vld [vmem:[%s2290 + $0x172] sm:$0xff]
    %v6581 = vld [vmem:[%s2290 + $0x1b2] sm:$0xff]
    %v6582 = vld [vmem:[%s2290 + $0x1ba] sm:$0xff]
    %v6583 = vld [vmem:[%s2290 + $0x1ca] sm:$0xff]
    %v6584 = vld [vmem:[%s2290 + $0x1d2] sm:$0xff]
    %v6585 = vld [vmem:[%s2290 + $0x1e2] sm:$0xff]
    %v6586 = vld [vmem:[%s2290 + $0x1ea] sm:$0xff]
    %v6587 = vld [vmem:[%s2290 + $0x1fa] sm:$0xff]
    %v6588 = vld [vmem:[%s2290 + $0x202] sm:$0xff]
    %v6589 = vld [vmem:[%s2290 + $0x212] sm:$0xff]
    %v6590 = vld [vmem:[%s2290 + $0x21a] sm:$0xff]
    %v6591 = vld [vmem:[%s2290 + $0x22a] sm:$0xff]
    %v6592 = vld [vmem:[%s2290 + $0x232] sm:$0xff]
    %v6593 = vld [vmem:[%s2290 + $0x242] sm:$0xff]
    %v6594 = vld [vmem:[%s2290 + $0x24a] sm:$0xff]
    %v6595 = vld [vmem:[%s2290 + $0x25a] sm:$0xff]
    %v6596 = vld [vmem:[%s2290 + $0x262] sm:$0xff]
    %v6597 = vld [vmem:[%s2290 + $0x272] sm:$0xff]
    %v6598 = vld [vmem:[%s2290 + $0x27a] sm:$0xff]
    %v6599 = vld [vmem:[%s2290 + $0x28a] sm:$0xff]
    %v6600 = vld [vmem:[%s2290 + $0x292] sm:$0xff]
    %v6601 = vld [vmem:[%s2290 + $0x2a2] sm:$0xff]
    %v6602 = vld [vmem:[%s2290 + $0x2aa] sm:$0xff]
    %v6603 = vld [vmem:[%s2290 + $0x2ba] sm:$0xff]
    %v6604 = vld [vmem:[%s2290 + $0x2c2] sm:$0xff]
    %v6605 = vld [vmem:[%s2290 + $0x2d2] sm:$0xff]
    %v6606 = vld [vmem:[%s2290 + $0x2da] sm:$0xff]
    %v6607 = vld [vmem:[%s2290 + $0x2ea] sm:$0xff]
    %v6608 = vld [vmem:[%s2290 + $0x2f2] sm:$0xff]
    %v6609 = vld [vmem:[%s2290 + $0x302] sm:$0xff]
    %v6610 = vld [vmem:[%s2290 + $0x30a] sm:$0xff]
    %v6611 = vld [vmem:[%s2290 + $0x31a] sm:$0xff]
    %v6612 = vld [vmem:[%s2290 + $0x322] sm:$0xff]
    %s6613 = scalar_lea.vmem [#allocation6], 2176
    %v6614 = vld [vmem:[%s6613] sm:$0xff]
    %v6615 = vld [vmem:[%s6613 + $0x8] sm:$0xff]
    %v6616 = vld [vmem:[%s6613 + $0x10] sm:$0xff]
    %v6617 = vld [vmem:[%s6613 + $0x18] sm:$0xff]
    %v6618 = vld [vmem:[%s6613 + $0x20] sm:$0xff]
    %v6619 = vld [vmem:[%s6613 + $0x28] sm:$0xff]
    %v6620 = vld [vmem:[%s6613 + $0x30] sm:$0xff]
    %v6621 = vld [vmem:[%s6613 + $0x38] sm:$0xff]
    %v6622 = vld [vmem:[%s6613 + $0x40] sm:$0xff]
    %v6623 = vld [vmem:[%s6613 + $0x48] sm:$0xff]
    %v6624 = vld [vmem:[%s6613 + $0x50] sm:$0xff]
    %v6625 = vld [vmem:[%s6613 + $0x58] sm:$0xff]
    %v6626 = vld [vmem:[%s6613 + $0x60] sm:$0xff]
    %v6627 = vld [vmem:[%s6613 + $0x68] sm:$0xff]
    %v6628 = vld [vmem:[%s6613 + $0x70] sm:$0xff]
    %v6629 = vld [vmem:[%s6613 + $0x78] sm:$0xff]
    %6630 = vmatpush.msra.mxu0 %v6629
    %6631 = vmatpush.msra.mxu0 %v6628
    %6632 = vmatpush.msra.mxu0 %v6627
    %6633 = vmatpush.msra.mxu0 %v6626
    %6634 = vmatpush.msra.mxu0 %v6625
    %6635 = vmatpush.msra.mxu0 %v6624
    %6636 = vmatpush.msra.mxu0 %v6623
    %6637 = vmatpush.msra.mxu0 %v6622
    %6638 = vmatpush.msra.mxu0 %v6621
    %6639 = vmatpush.msra.mxu0 %v6620
    %6640 = vmatpush.msra.mxu0 %v6619
    %6641 = vmatpush.msra.mxu0 %v6618
    %6642 = vmatpush.msra.mxu0 %v6617
    %6643 = vmatpush.msra.mxu0 %v6616
    %6644 = vmatpush.msra.mxu0 %v6615
    %6645 = vmatpush.msra.mxu0 %v6614
    %6646 = vmatmul.f32.gmra.mxu0 %v6549
    %v6647 = vpop.f32.mrf.mxu0
    %v6648 = vadd.f32 0.0, %v6647
    %6649 = vmatmul.f32.gmra.mxu0 %v6550
    %v6650 = vpop.f32.mrf.mxu0
    %v6651 = vadd.f32 0.0, %v6650
    %6652 = vmatmul.f32.gmra.mxu0 %v6551
    %v6653 = vpop.f32.mrf.mxu0
    %v6654 = vadd.f32 0.0, %v6653
    %6655 = vmatmul.f32.gmra.mxu0 %v6552
    %v6656 = vpop.f32.mrf.mxu0
    %v6657 = vadd.f32 0.0, %v6656
    %6658 = vmatmul.f32.gmra.mxu0 %v6553
    %v6659 = vpop.f32.mrf.mxu0
    %v6660 = vadd.f32 0.0, %v6659
    %6661 = vmatmul.f32.gmra.mxu0 %v6554
    %v6662 = vpop.f32.mrf.mxu0
    %v6663 = vadd.f32 0.0, %v6662
    %6664 = vmatmul.f32.gmra.mxu0 %v6555
    %v6665 = vpop.f32.mrf.mxu0
    %v6666 = vadd.f32 0.0, %v6665
    %6667 = vmatmul.f32.gmra.mxu0 %v6556
    %v6668 = vpop.f32.mrf.mxu0
    %v6669 = vadd.f32 0.0, %v6668
    %6670 = vmatmul.f32.gmra.mxu0 %v6557
    %v6671 = vpop.f32.mrf.mxu0
    %v6672 = vadd.f32 0.0, %v6671
    %6673 = vmatmul.f32.gmra.mxu0 %v6558
    %v6674 = vpop.f32.mrf.mxu0
    %v6675 = vadd.f32 0.0, %v6674
    %6676 = vmatmul.f32.gmra.mxu0 %v6559
    %v6677 = vpop.f32.mrf.mxu0
    %v6678 = vadd.f32 0.0, %v6677
    %6679 = vmatmul.f32.gmra.mxu0 %v6560
    %v6680 = vpop.f32.mrf.mxu0
    %v6681 = vadd.f32 0.0, %v6680
    %6682 = vmatmul.f32.gmra.mxu0 %v6561
    %v6683 = vpop.f32.mrf.mxu0
    %v6684 = vadd.f32 0.0, %v6683
    %6685 = vmatmul.f32.gmra.mxu0 %v6562
    %v6686 = vpop.f32.mrf.mxu0
    %v6687 = vadd.f32 0.0, %v6686
    %6688 = vmatmul.f32.gmra.mxu0 %v6563
    %v6689 = vpop.f32.mrf.mxu0
    %v6690 = vadd.f32 0.0, %v6689
    %6691 = vmatmul.f32.gmra.mxu0 %v6564
    %v6692 = vpop.f32.mrf.mxu0
    %v6693 = vadd.f32 0.0, %v6692
    %6694 = vmatmul.f32.gmra.mxu0 %v6565
    %v6695 = vpop.f32.mrf.mxu0
    %v6696 = vadd.f32 0.0, %v6695
    %6697 = vmatmul.f32.gmra.mxu0 %v6566
    %v6698 = vpop.f32.mrf.mxu0
    %v6699 = vadd.f32 0.0, %v6698
    %6700 = vmatmul.f32.gmra.mxu0 %v6567
    %v6701 = vpop.f32.mrf.mxu0
    %v6702 = vadd.f32 0.0, %v6701
    %6703 = vmatmul.f32.gmra.mxu0 %v6568
    %v6704 = vpop.f32.mrf.mxu0
    %v6705 = vadd.f32 0.0, %v6704
    %6706 = vmatmul.f32.gmra.mxu0 %v6569
    %v6707 = vpop.f32.mrf.mxu0
    %v6708 = vadd.f32 0.0, %v6707
    %6709 = vmatmul.f32.gmra.mxu0 %v6570
    %v6710 = vpop.f32.mrf.mxu0
    %v6711 = vadd.f32 0.0, %v6710
    %6712 = vmatmul.f32.gmra.mxu0 %v6571
    %v6713 = vpop.f32.mrf.mxu0
    %v6714 = vadd.f32 0.0, %v6713
    %6715 = vmatmul.f32.gmra.mxu0 %v6572
    %v6716 = vpop.f32.mrf.mxu0
    %v6717 = vadd.f32 0.0, %v6716
    %6718 = vmatmul.f32.gmra.mxu0 %v6573
    %v6719 = vpop.f32.mrf.mxu0
    %v6720 = vadd.f32 0.0, %v6719
    %6721 = vmatmul.f32.gmra.mxu0 %v6574
    %v6722 = vpop.f32.mrf.mxu0
    %v6723 = vadd.f32 0.0, %v6722
    %6724 = vmatmul.f32.gmra.mxu0 %v6575
    %v6725 = vpop.f32.mrf.mxu0
    %v6726 = vadd.f32 0.0, %v6725
    %6727 = vmatmul.f32.gmra.mxu0 %v6576
    %v6728 = vpop.f32.mrf.mxu0
    %v6729 = vadd.f32 0.0, %v6728
    %6730 = vmatmul.f32.gmra.mxu0 %v6577
    %v6731 = vpop.f32.mrf.mxu0
    %v6732 = vadd.f32 0.0, %v6731
    %6733 = vmatmul.f32.gmra.mxu0 %v6578
    %v6734 = vpop.f32.mrf.mxu0
    %v6735 = vadd.f32 0.0, %v6734
    %6736 = vmatmul.f32.gmra.mxu0 %v6579
    %v6737 = vpop.f32.mrf.mxu0
    %v6738 = vadd.f32 0.0, %v6737
    %6739 = vmatmul.f32.gmra.mxu0 %v6580
    %v6740 = vpop.f32.mrf.mxu0
    %v6741 = vadd.f32 0.0, %v6740
    %6742 = vmatmul.f32.gmra.mxu0 %v6581
    %v6743 = vpop.f32.mrf.mxu0
    %v6744 = vadd.f32 0.0, %v6743
    %6745 = vmatmul.f32.gmra.mxu0 %v6582
    %v6746 = vpop.f32.mrf.mxu0
    %v6747 = vadd.f32 0.0, %v6746
    %6748 = vmatmul.f32.gmra.mxu0 %v6583
    %v6749 = vpop.f32.mrf.mxu0
    %v6750 = vadd.f32 0.0, %v6749
    %6751 = vmatmul.f32.gmra.mxu0 %v6584
    %v6752 = vpop.f32.mrf.mxu0
    %v6753 = vadd.f32 0.0, %v6752
    %6754 = vmatmul.f32.gmra.mxu0 %v6585
    %v6755 = vpop.f32.mrf.mxu0
    %v6756 = vadd.f32 0.0, %v6755
    %6757 = vmatmul.f32.gmra.mxu0 %v6586
    %v6758 = vpop.f32.mrf.mxu0
    %v6759 = vadd.f32 0.0, %v6758
    %6760 = vmatmul.f32.gmra.mxu0 %v6587
    %v6761 = vpop.f32.mrf.mxu0
    %v6762 = vadd.f32 0.0, %v6761
    %6763 = vmatmul.f32.gmra.mxu0 %v6588
    %v6764 = vpop.f32.mrf.mxu0
    %v6765 = vadd.f32 0.0, %v6764
    %6766 = vmatmul.f32.gmra.mxu0 %v6589
    %v6767 = vpop.f32.mrf.mxu0
    %v6768 = vadd.f32 0.0, %v6767
    %6769 = vmatmul.f32.gmra.mxu0 %v6590
    %v6770 = vpop.f32.mrf.mxu0
    %v6771 = vadd.f32 0.0, %v6770
    %6772 = vmatmul.f32.gmra.mxu0 %v6591
    %v6773 = vpop.f32.mrf.mxu0
    %v6774 = vadd.f32 0.0, %v6773
    %6775 = vmatmul.f32.gmra.mxu0 %v6592
    %v6776 = vpop.f32.mrf.mxu0
    %v6777 = vadd.f32 0.0, %v6776
    %6778 = vmatmul.f32.gmra.mxu0 %v6593
    %v6779 = vpop.f32.mrf.mxu0
    %v6780 = vadd.f32 0.0, %v6779
    %6781 = vmatmul.f32.gmra.mxu0 %v6594
    %v6782 = vpop.f32.mrf.mxu0
    %v6783 = vadd.f32 0.0, %v6782
    %6784 = vmatmul.f32.gmra.mxu0 %v6595
    %v6785 = vpop.f32.mrf.mxu0
    %v6786 = vadd.f32 0.0, %v6785
    %6787 = vmatmul.f32.gmra.mxu0 %v6596
    %v6788 = vpop.f32.mrf.mxu0
    %v6789 = vadd.f32 0.0, %v6788
    %6790 = vmatmul.f32.gmra.mxu0 %v6597
    %v6791 = vpop.f32.mrf.mxu0
    %v6792 = vadd.f32 0.0, %v6791
    %6793 = vmatmul.f32.gmra.mxu0 %v6598
    %v6794 = vpop.f32.mrf.mxu0
    %v6795 = vadd.f32 0.0, %v6794
    %6796 = vmatmul.f32.gmra.mxu0 %v6599
    %v6797 = vpop.f32.mrf.mxu0
    %v6798 = vadd.f32 0.0, %v6797
    %6799 = vmatmul.f32.gmra.mxu0 %v6600
    %v6800 = vpop.f32.mrf.mxu0
    %v6801 = vadd.f32 0.0, %v6800
    %6802 = vmatmul.f32.gmra.mxu0 %v6601
    %v6803 = vpop.f32.mrf.mxu0
    %v6804 = vadd.f32 0.0, %v6803
    %6805 = vmatmul.f32.gmra.mxu0 %v6602
    %v6806 = vpop.f32.mrf.mxu0
    %v6807 = vadd.f32 0.0, %v6806
    %6808 = vmatmul.f32.gmra.mxu0 %v6603
    %v6809 = vpop.f32.mrf.mxu0
    %v6810 = vadd.f32 0.0, %v6809
    %6811 = vmatmul.f32.gmra.mxu0 %v6604
    %v6812 = vpop.f32.mrf.mxu0
    %v6813 = vadd.f32 0.0, %v6812
    %6814 = vmatmul.f32.gmra.mxu0 %v6605
    %v6815 = vpop.f32.mrf.mxu0
    %v6816 = vadd.f32 0.0, %v6815
    %6817 = vmatmul.f32.gmra.mxu0 %v6606
    %v6818 = vpop.f32.mrf.mxu0
    %v6819 = vadd.f32 0.0, %v6818
    %6820 = vmatmul.f32.gmra.mxu0 %v6607
    %v6821 = vpop.f32.mrf.mxu0
    %v6822 = vadd.f32 0.0, %v6821
    %6823 = vmatmul.f32.gmra.mxu0 %v6608
    %v6824 = vpop.f32.mrf.mxu0
    %v6825 = vadd.f32 0.0, %v6824
    %6826 = vmatmul.f32.gmra.mxu0 %v6609
    %v6827 = vpop.f32.mrf.mxu0
    %v6828 = vadd.f32 0.0, %v6827
    %6829 = vmatmul.f32.gmra.mxu0 %v6610
    %v6830 = vpop.f32.mrf.mxu0
    %v6831 = vadd.f32 0.0, %v6830
    %6832 = vmatmul.f32.gmra.mxu0 %v6611
    %v6833 = vpop.f32.mrf.mxu0
    %v6834 = vadd.f32 0.0, %v6833
    %6835 = vmatmul.f32.gmra.mxu0 %v6612
    %v6836 = vpop.f32.mrf.mxu0
    %v6837 = vadd.f32 0.0, %v6836
    %6838 = vdwg.mxu0
    %v6839 = vadd.f32 %v6485, %v6648
    %v6840 = vadd.f32 %v6486, %v6651
    %v6841 = vadd.f32 %v6487, %v6654
    %v6842 = vadd.f32 %v6488, %v6657
    %v6843 = vadd.f32 %v6489, %v6660
    %v6844 = vadd.f32 %v6490, %v6663
    %v6845 = vadd.f32 %v6491, %v6666
    %v6846 = vadd.f32 %v6492, %v6669
    %v6847 = vadd.f32 %v6493, %v6672
    %v6848 = vadd.f32 %v6494, %v6675
    %v6849 = vadd.f32 %v6495, %v6678
    %v6850 = vadd.f32 %v6496, %v6681
    %v6851 = vadd.f32 %v6497, %v6684
    %v6852 = vadd.f32 %v6498, %v6687
    %v6853 = vadd.f32 %v6499, %v6690
    %v6854 = vadd.f32 %v6500, %v6693
    %v6855 = vadd.f32 %v6501, %v6696
    %v6856 = vadd.f32 %v6502, %v6699
    %v6857 = vadd.f32 %v6503, %v6702
    %v6858 = vadd.f32 %v6504, %v6705
    %v6859 = vadd.f32 %v6505, %v6708
    %v6860 = vadd.f32 %v6506, %v6711
    %v6861 = vadd.f32 %v6507, %v6714
    %v6862 = vadd.f32 %v6508, %v6717
    %v6863 = vadd.f32 %v6509, %v6720
    %v6864 = vadd.f32 %v6510, %v6723
    %v6865 = vadd.f32 %v6511, %v6726
    %v6866 = vadd.f32 %v6512, %v6729
    %v6867 = vadd.f32 %v6513, %v6732
    %v6868 = vadd.f32 %v6514, %v6735
    %v6869 = vadd.f32 %v6515, %v6738
    %v6870 = vadd.f32 %v6516, %v6741
    %v6871 = vadd.f32 %v6517, %v6744
    %v6872 = vadd.f32 %v6518, %v6747
    %v6873 = vadd.f32 %v6519, %v6750
    %v6874 = vadd.f32 %v6520, %v6753
    %v6875 = vadd.f32 %v6521, %v6756
    %v6876 = vadd.f32 %v6522, %v6759
    %v6877 = vadd.f32 %v6523, %v6762
    %v6878 = vadd.f32 %v6524, %v6765
    %v6879 = vadd.f32 %v6525, %v6768
    %v6880 = vadd.f32 %v6526, %v6771
    %v6881 = vadd.f32 %v6527, %v6774
    %v6882 = vadd.f32 %v6528, %v6777
    %v6883 = vadd.f32 %v6529, %v6780
    %v6884 = vadd.f32 %v6530, %v6783
    %v6885 = vadd.f32 %v6531, %v6786
    %v6886 = vadd.f32 %v6532, %v6789
    %v6887 = vadd.f32 %v6533, %v6792
    %v6888 = vadd.f32 %v6534, %v6795
    %v6889 = vadd.f32 %v6535, %v6798
    %v6890 = vadd.f32 %v6536, %v6801
    %v6891 = vadd.f32 %v6537, %v6804
    %v6892 = vadd.f32 %v6538, %v6807
    %v6893 = vadd.f32 %v6539, %v6810
    %v6894 = vadd.f32 %v6540, %v6813
    %v6895 = vadd.f32 %v6541, %v6816
    %v6896 = vadd.f32 %v6542, %v6819
    %v6897 = vadd.f32 %v6543, %v6822
    %v6898 = vadd.f32 %v6544, %v6825
    %v6899 = vadd.f32 %v6545, %v6828
    %v6900 = vadd.f32 %v6546, %v6831
    %v6901 = vadd.f32 %v6547, %v6834
    %v6902 = vadd.f32 %v6548, %v6837
    %v6903 = vadd.f32 %v6839, %v6840
    %v6904 = vadd.f32 %v6903, %v6841
    %v6905 = vadd.f32 %v6904, %v6842
    %v6906 = vadd.f32 %v6905, %v6843
    %v6907 = vadd.f32 %v6906, %v6844
    %v6908 = vadd.f32 %v6907, %v6845
    %v6909 = vadd.f32 %v6908, %v6846
    %v6910 = vadd.f32 %v6909, %v6847
    %v6911 = vadd.f32 %v6910, %v6848
    %v6912 = vadd.f32 %v6911, %v6849
    %v6913 = vadd.f32 %v6912, %v6850
    %v6914 = vadd.f32 %v6913, %v6851
    %v6915 = vadd.f32 %v6914, %v6852
    %v6916 = vadd.f32 %v6915, %v6853
    %v6917 = vadd.f32 %v6916, %v6854
    %v6918 = vadd.f32 %v6917, %v6855
    %v6919 = vadd.f32 %v6918, %v6856
    %v6920 = vadd.f32 %v6919, %v6857
    %v6921 = vadd.f32 %v6920, %v6858
    %v6922 = vadd.f32 %v6921, %v6859
    %v6923 = vadd.f32 %v6922, %v6860
    %v6924 = vadd.f32 %v6923, %v6861
    %v6925 = vadd.f32 %v6924, %v6862
    %v6926 = vadd.f32 %v6925, %v6863
    %v6927 = vadd.f32 %v6926, %v6864
    %v6928 = vadd.f32 %v6927, %v6865
    %v6929 = vadd.f32 %v6928, %v6866
    %v6930 = vadd.f32 %v6929, %v6867
    %v6931 = vadd.f32 %v6930, %v6868
    %v6932 = vadd.f32 %v6931, %v6869
    %v6933 = vadd.f32 %v6932, %v6870
    %v6934 = vadd.f32 %v6933, %v6871
    %v6935 = vadd.f32 %v6934, %v6872
    %v6936 = vadd.f32 %v6935, %v6873
    %v6937 = vadd.f32 %v6936, %v6874
    %v6938 = vadd.f32 %v6937, %v6875
    %v6939 = vadd.f32 %v6938, %v6876
    %v6940 = vadd.f32 %v6939, %v6877
    %v6941 = vadd.f32 %v6940, %v6878
    %v6942 = vadd.f32 %v6941, %v6879
    %v6943 = vadd.f32 %v6942, %v6880
    %v6944 = vadd.f32 %v6943, %v6881
    %v6945 = vadd.f32 %v6944, %v6882
    %v6946 = vadd.f32 %v6945, %v6883
    %v6947 = vadd.f32 %v6946, %v6884
    %v6948 = vadd.f32 %v6947, %v6885
    %v6949 = vadd.f32 %v6948, %v6886
    %v6950 = vadd.f32 %v6949, %v6887
    %v6951 = vadd.f32 %v6950, %v6888
    %v6952 = vadd.f32 %v6951, %v6889
    %v6953 = vadd.f32 %v6952, %v6890
    %v6954 = vadd.f32 %v6953, %v6891
    %v6955 = vadd.f32 %v6954, %v6892
    %v6956 = vadd.f32 %v6955, %v6893
    %v6957 = vadd.f32 %v6956, %v6894
    %v6958 = vadd.f32 %v6957, %v6895
    %v6959 = vadd.f32 %v6958, %v6896
    %v6960 = vadd.f32 %v6959, %v6897
    %v6961 = vadd.f32 %v6960, %v6898
    %v6962 = vadd.f32 %v6961, %v6899
    %v6963 = vadd.f32 %v6962, %v6900
    %v6964 = vadd.f32 %v6963, %v6901
    %v6965 = vadd.f32 %v6964, %v6902
    %v6966 = vrot.slane %v6965, 4
    %v6967 = vadd.f32 %v6965, %v6966
    %v6968 = vrot.slane %v6967, 2
    %v6969 = vadd.f32 %v6967, %v6968
    %v6970 = vrot.slane %v6969, 1
    %v6971 = vadd.f32 %v6969, %v6970
    %v6972 = vmul.f32 %v6971, %v3428
    %v6973 = vmul.f32 %v6839, %v6839
    %v6974 = vmul.f32 %v6840, %v6840
    %v6975 = vmul.f32 %v6841, %v6841
    %v6976 = vmul.f32 %v6842, %v6842
    %v6977 = vmul.f32 %v6843, %v6843
    %v6978 = vmul.f32 %v6844, %v6844
    %v6979 = vmul.f32 %v6845, %v6845
    %v6980 = vmul.f32 %v6846, %v6846
    %v6981 = vmul.f32 %v6847, %v6847
    %v6982 = vmul.f32 %v6848, %v6848
    %v6983 = vmul.f32 %v6849, %v6849
    %v6984 = vmul.f32 %v6850, %v6850
    %v6985 = vmul.f32 %v6851, %v6851
    %v6986 = vmul.f32 %v6852, %v6852
    %v6987 = vmul.f32 %v6853, %v6853
    %v6988 = vmul.f32 %v6854, %v6854
    %v6989 = vmul.f32 %v6855, %v6855
    %v6990 = vmul.f32 %v6856, %v6856
    %v6991 = vmul.f32 %v6857, %v6857
    %v6992 = vmul.f32 %v6858, %v6858
    %v6993 = vmul.f32 %v6859, %v6859
    %v6994 = vmul.f32 %v6860, %v6860
    %v6995 = vmul.f32 %v6861, %v6861
    %v6996 = vmul.f32 %v6862, %v6862
    %v6997 = vmul.f32 %v6863, %v6863
    %v6998 = vmul.f32 %v6864, %v6864
    %v6999 = vmul.f32 %v6865, %v6865
    %v7000 = vmul.f32 %v6866, %v6866
    %v7001 = vmul.f32 %v6867, %v6867
    %v7002 = vmul.f32 %v6868, %v6868
    %v7003 = vmul.f32 %v6869, %v6869
    %v7004 = vmul.f32 %v6870, %v6870
    %v7005 = vmul.f32 %v6871, %v6871
    %v7006 = vmul.f32 %v6872, %v6872
    %v7007 = vmul.f32 %v6873, %v6873
    %v7008 = vmul.f32 %v6874, %v6874
    %v7009 = vmul.f32 %v6875, %v6875
    %v7010 = vmul.f32 %v6876, %v6876
    %v7011 = vmul.f32 %v6877, %v6877
    %v7012 = vmul.f32 %v6878, %v6878
    %v7013 = vmul.f32 %v6879, %v6879
    %v7014 = vmul.f32 %v6880, %v6880
    %v7015 = vmul.f32 %v6881, %v6881
    %v7016 = vmul.f32 %v6882, %v6882
    %v7017 = vmul.f32 %v6883, %v6883
    %v7018 = vmul.f32 %v6884, %v6884
    %v7019 = vmul.f32 %v6885, %v6885
    %v7020 = vmul.f32 %v6886, %v6886
    %v7021 = vmul.f32 %v6887, %v6887
    %v7022 = vmul.f32 %v6888, %v6888
    %v7023 = vmul.f32 %v6889, %v6889
    %v7024 = vmul.f32 %v6890, %v6890
    %v7025 = vmul.f32 %v6891, %v6891
    %v7026 = vmul.f32 %v6892, %v6892
    %v7027 = vmul.f32 %v6893, %v6893
    %v7028 = vmul.f32 %v6894, %v6894
    %v7029 = vmul.f32 %v6895, %v6895
    %v7030 = vmul.f32 %v6896, %v6896
    %v7031 = vmul.f32 %v6897, %v6897
    %v7032 = vmul.f32 %v6898, %v6898
    %v7033 = vmul.f32 %v6899, %v6899
    %v7034 = vmul.f32 %v6900, %v6900
    %v7035 = vmul.f32 %v6901, %v6901
    %v7036 = vmul.f32 %v6902, %v6902
    %v7037 = vadd.f32 %v6973, %v6974
    %v7038 = vadd.f32 %v7037, %v6975
    %v7039 = vadd.f32 %v7038, %v6976
    %v7040 = vadd.f32 %v7039, %v6977
    %v7041 = vadd.f32 %v7040, %v6978
    %v7042 = vadd.f32 %v7041, %v6979
    %v7043 = vadd.f32 %v7042, %v6980
    %v7044 = vadd.f32 %v7043, %v6981
    %v7045 = vadd.f32 %v7044, %v6982
    %v7046 = vadd.f32 %v7045, %v6983
    %v7047 = vadd.f32 %v7046, %v6984
    %v7048 = vadd.f32 %v7047, %v6985
    %v7049 = vadd.f32 %v7048, %v6986
    %v7050 = vadd.f32 %v7049, %v6987
    %v7051 = vadd.f32 %v7050, %v6988
    %v7052 = vadd.f32 %v7051, %v6989
    %v7053 = vadd.f32 %v7052, %v6990
    %v7054 = vadd.f32 %v7053, %v6991
    %v7055 = vadd.f32 %v7054, %v6992
    %v7056 = vadd.f32 %v7055, %v6993
    %v7057 = vadd.f32 %v7056, %v6994
    %v7058 = vadd.f32 %v7057, %v6995
    %v7059 = vadd.f32 %v7058, %v6996
    %v7060 = vadd.f32 %v7059, %v6997
    %v7061 = vadd.f32 %v7060, %v6998
    %v7062 = vadd.f32 %v7061, %v6999
    %v7063 = vadd.f32 %v7062, %v7000
    %v7064 = vadd.f32 %v7063, %v7001
    %v7065 = vadd.f32 %v7064, %v7002
    %v7066 = vadd.f32 %v7065, %v7003
    %v7067 = vadd.f32 %v7066, %v7004
    %v7068 = vadd.f32 %v7067, %v7005
    %v7069 = vadd.f32 %v7068, %v7006
    %v7070 = vadd.f32 %v7069, %v7007
    %v7071 = vadd.f32 %v7070, %v7008
    %v7072 = vadd.f32 %v7071, %v7009
    %v7073 = vadd.f32 %v7072, %v7010
    %v7074 = vadd.f32 %v7073, %v7011
    %v7075 = vadd.f32 %v7074, %v7012
    %v7076 = vadd.f32 %v7075, %v7013
    %v7077 = vadd.f32 %v7076, %v7014
    %v7078 = vadd.f32 %v7077, %v7015
    %v7079 = vadd.f32 %v7078, %v7016
    %v7080 = vadd.f32 %v7079, %v7017
    %v7081 = vadd.f32 %v7080, %v7018
    %v7082 = vadd.f32 %v7081, %v7019
    %v7083 = vadd.f32 %v7082, %v7020
    %v7084 = vadd.f32 %v7083, %v7021
    %v7085 = vadd.f32 %v7084, %v7022
    %v7086 = vadd.f32 %v7085, %v7023
    %v7087 = vadd.f32 %v7086, %v7024
    %v7088 = vadd.f32 %v7087, %v7025
    %v7089 = vadd.f32 %v7088, %v7026
    %v7090 = vadd.f32 %v7089, %v7027
    %v7091 = vadd.f32 %v7090, %v7028
    %v7092 = vadd.f32 %v7091, %v7029
    %v7093 = vadd.f32 %v7092, %v7030
    %v7094 = vadd.f32 %v7093, %v7031
    %v7095 = vadd.f32 %v7094, %v7032
    %v7096 = vadd.f32 %v7095, %v7033
    %v7097 = vadd.f32 %v7096, %v7034
    %v7098 = vadd.f32 %v7097, %v7035
    %v7099 = vadd.f32 %v7098, %v7036
    %v7100 = vrot.slane %v7099, 4
    %v7101 = vadd.f32 %v7099, %v7100
    %v7102 = vrot.slane %v7101, 2
    %v7103 = vadd.f32 %v7101, %v7102
    %v7104 = vrot.slane %v7103, 1
    %v7105 = vadd.f32 %v7103, %v7104
    %v7106 = vmul.f32 %v7105, %v3428
    %v7107 = vmul.f32 %v6972, %v6972
    %v7108 = vsub.f32 %v7106, %v7107
    %v7109 = vmax.f32 %v7108, 0.0
    %s7110 = scalar_lea.vmem [#allocation8], 1
    %v7111 = vld [vmem:[%s7110] sm:$0x1]
    %v7112 = vadd.f32 %v7109, 1e-05
    %v7113 = vrsqrt.pop %v7112
    %v7114 = vmul.f32 %v7113, %v7112
    %v7115 = vmul.f32 %v7114, %v7113
    %v7116 = vmul.f32 0.5, %v7115
    %v7117 = vsub.f32 1.5, %v7116
    %v7118 = vmul.f32 %v7113, %v7117
    %vm7119 = vweird.f32 %v7112
    %vm7120 = vweird.f32 %v7113
    %vm7121 = vmor %vm7119, %vm7120
    %v7122 = vsel %vm7121, %v7113, %v7118
    %v7123 = vmul.f32 %v7111, %v7122
    %s7124 = scalar_lea.vmem [#allocation9], 1
    %v7125 = vld [vmem:[%s7124] sm:$0x1]
    %v7126 = vmul.f32 %v6972, %v7123
    %v7127 = vsub.f32 %v7125, %v7126
    %v7129 = vperm.slane %v7123, 0
    %v7131 = vmul.f32 %v6839, %v7129
    %v7132 = vmul.f32 %v6840, %v7129
    %v7133 = vmul.f32 %v6841, %v7129
    %v7134 = vmul.f32 %v6842, %v7129
    %v7135 = vmul.f32 %v6843, %v7129
    %v7136 = vmul.f32 %v6844, %v7129
    %v7137 = vmul.f32 %v6845, %v7129
    %v7138 = vmul.f32 %v6846, %v7129
    %v7139 = vmul.f32 %v6847, %v7129
    %v7140 = vmul.f32 %v6848, %v7129
    %v7141 = vmul.f32 %v6849, %v7129
    %v7142 = vmul.f32 %v6850, %v7129
    %v7143 = vmul.f32 %v6851, %v7129
    %v7144 = vmul.f32 %v6852, %v7129
    %v7145 = vmul.f32 %v6853, %v7129
    %v7146 = vmul.f32 %v6854, %v7129
    %v7147 = vmul.f32 %v6855, %v7129
    %v7148 = vmul.f32 %v6856, %v7129
    %v7149 = vmul.f32 %v6857, %v7129
    %v7150 = vmul.f32 %v6858, %v7129
    %v7151 = vmul.f32 %v6859, %v7129
    %v7152 = vmul.f32 %v6860, %v7129
    %v7153 = vmul.f32 %v6861, %v7129
    %v7154 = vmul.f32 %v6862, %v7129
    %v7155 = vmul.f32 %v6863, %v7129
    %v7156 = vmul.f32 %v6864, %v7129
    %v7157 = vmul.f32 %v6865, %v7129
    %v7158 = vmul.f32 %v6866, %v7129
    %v7159 = vmul.f32 %v6867, %v7129
    %v7160 = vmul.f32 %v6868, %v7129
    %v7161 = vmul.f32 %v6869, %v7129
    %v7162 = vmul.f32 %v6870, %v7129
    %v7163 = vmul.f32 %v6871, %v7129
    %v7164 = vmul.f32 %v6872, %v7129
    %v7165 = vmul.f32 %v6873, %v7129
    %v7166 = vmul.f32 %v6874, %v7129
    %v7167 = vmul.f32 %v6875, %v7129
    %v7168 = vmul.f32 %v6876, %v7129
    %v7169 = vmul.f32 %v6877, %v7129
    %v7170 = vmul.f32 %v6878, %v7129
    %v7171 = vmul.f32 %v6879, %v7129
    %v7172 = vmul.f32 %v6880, %v7129
    %v7173 = vmul.f32 %v6881, %v7129
    %v7174 = vmul.f32 %v6882, %v7129
    %v7175 = vmul.f32 %v6883, %v7129
    %v7176 = vmul.f32 %v6884, %v7129
    %v7177 = vmul.f32 %v6885, %v7129
    %v7178 = vmul.f32 %v6886, %v7129
    %v7179 = vmul.f32 %v6887, %v7129
    %v7180 = vmul.f32 %v6888, %v7129
    %v7181 = vmul.f32 %v6889, %v7129
    %v7182 = vmul.f32 %v6890, %v7129
    %v7183 = vmul.f32 %v6891, %v7129
    %v7184 = vmul.f32 %v6892, %v7129
    %v7185 = vmul.f32 %v6893, %v7129
    %v7186 = vmul.f32 %v6894, %v7129
    %v7187 = vmul.f32 %v6895, %v7129
    %v7188 = vmul.f32 %v6896, %v7129
    %v7189 = vmul.f32 %v6897, %v7129
    %v7190 = vmul.f32 %v6898, %v7129
    %v7191 = vmul.f32 %v6899, %v7129
    %v7192 = vmul.f32 %v6900, %v7129
    %v7193 = vmul.f32 %v6901, %v7129
    %v7194 = vmul.f32 %v6902, %v7129
    %v7196 = vperm.slane %v7127, 0
    %v7198 = vadd.f32 %v7131, %v7196
    %v7199 = vadd.f32 %v7132, %v7196
    %v7200 = vadd.f32 %v7133, %v7196
    %v7201 = vadd.f32 %v7134, %v7196
    %v7202 = vadd.f32 %v7135, %v7196
    %v7203 = vadd.f32 %v7136, %v7196
    %v7204 = vadd.f32 %v7137, %v7196
    %v7205 = vadd.f32 %v7138, %v7196
    %v7206 = vadd.f32 %v7139, %v7196
    %v7207 = vadd.f32 %v7140, %v7196
    %v7208 = vadd.f32 %v7141, %v7196
    %v7209 = vadd.f32 %v7142, %v7196
    %v7210 = vadd.f32 %v7143, %v7196
    %v7211 = vadd.f32 %v7144, %v7196
    %v7212 = vadd.f32 %v7145, %v7196
    %v7213 = vadd.f32 %v7146, %v7196
    %v7214 = vadd.f32 %v7147, %v7196
    %v7215 = vadd.f32 %v7148, %v7196
    %v7216 = vadd.f32 %v7149, %v7196
    %v7217 = vadd.f32 %v7150, %v7196
    %v7218 = vadd.f32 %v7151, %v7196
    %v7219 = vadd.f32 %v7152, %v7196
    %v7220 = vadd.f32 %v7153, %v7196
    %v7221 = vadd.f32 %v7154, %v7196
    %v7222 = vadd.f32 %v7155, %v7196
    %v7223 = vadd.f32 %v7156, %v7196
    %v7224 = vadd.f32 %v7157, %v7196
    %v7225 = vadd.f32 %v7158, %v7196
    %v7226 = vadd.f32 %v7159, %v7196
    %v7227 = vadd.f32 %v7160, %v7196
    %v7228 = vadd.f32 %v7161, %v7196
    %v7229 = vadd.f32 %v7162, %v7196
    %v7230 = vadd.f32 %v7163, %v7196
    %v7231 = vadd.f32 %v7164, %v7196
    %v7232 = vadd.f32 %v7165, %v7196
    %v7233 = vadd.f32 %v7166, %v7196
    %v7234 = vadd.f32 %v7167, %v7196
    %v7235 = vadd.f32 %v7168, %v7196
    %v7236 = vadd.f32 %v7169, %v7196
    %v7237 = vadd.f32 %v7170, %v7196
    %v7238 = vadd.f32 %v7171, %v7196
    %v7239 = vadd.f32 %v7172, %v7196
    %v7240 = vadd.f32 %v7173, %v7196
    %v7241 = vadd.f32 %v7174, %v7196
    %v7242 = vadd.f32 %v7175, %v7196
    %v7243 = vadd.f32 %v7176, %v7196
    %v7244 = vadd.f32 %v7177, %v7196
    %v7245 = vadd.f32 %v7178, %v7196
    %v7246 = vadd.f32 %v7179, %v7196
    %v7247 = vadd.f32 %v7180, %v7196
    %v7248 = vadd.f32 %v7181, %v7196
    %v7249 = vadd.f32 %v7182, %v7196
    %v7250 = vadd.f32 %v7183, %v7196
    %v7251 = vadd.f32 %v7184, %v7196
    %v7252 = vadd.f32 %v7185, %v7196
    %v7253 = vadd.f32 %v7186, %v7196
    %v7254 = vadd.f32 %v7187, %v7196
    %v7255 = vadd.f32 %v7188, %v7196
    %v7256 = vadd.f32 %v7189, %v7196
    %v7257 = vadd.f32 %v7190, %v7196
    %v7258 = vadd.f32 %v7191, %v7196
    %v7259 = vadd.f32 %v7192, %v7196
    %v7260 = vadd.f32 %v7193, %v7196
    %v7261 = vadd.f32 %v7194, %v7196
    %v7262 = vadd.f32 %v7198, %v5133
    %v7263 = vadd.f32 %v7199, %v5134
    %v7264 = vadd.f32 %v7200, %v5135
    %v7265 = vadd.f32 %v7201, %v5136
    %v7266 = vadd.f32 %v7202, %v5137
    %v7267 = vadd.f32 %v7203, %v5138
    %v7268 = vadd.f32 %v7204, %v5139
    %v7269 = vadd.f32 %v7205, %v5140
    %v7270 = vadd.f32 %v7206, %v5141
    %v7271 = vadd.f32 %v7207, %v5142
    %v7272 = vadd.f32 %v7208, %v5143
    %v7273 = vadd.f32 %v7209, %v5144
    %v7274 = vadd.f32 %v7210, %v5145
    %v7275 = vadd.f32 %v7211, %v5146
    %v7276 = vadd.f32 %v7212, %v5147
    %v7277 = vadd.f32 %v7213, %v5148
    %v7278 = vadd.f32 %v7214, %v5149
    %v7279 = vadd.f32 %v7215, %v5150
    %v7280 = vadd.f32 %v7216, %v5151
    %v7281 = vadd.f32 %v7217, %v5152
    %v7282 = vadd.f32 %v7218, %v5153
    %v7283 = vadd.f32 %v7219, %v5154
    %v7284 = vadd.f32 %v7220, %v5155
    %v7285 = vadd.f32 %v7221, %v5156
    %v7286 = vadd.f32 %v7222, %v5157
    %v7287 = vadd.f32 %v7223, %v5158
    %v7288 = vadd.f32 %v7224, %v5159
    %v7289 = vadd.f32 %v7225, %v5160
    %v7290 = vadd.f32 %v7226, %v5161
    %v7291 = vadd.f32 %v7227, %v5162
    %v7292 = vadd.f32 %v7228, %v5163
    %v7293 = vadd.f32 %v7229, %v5164
    %v7294 = vadd.f32 %v7230, %v5165
    %v7295 = vadd.f32 %v7231, %v5166
    %v7296 = vadd.f32 %v7232, %v5167
    %v7297 = vadd.f32 %v7233, %v5168
    %v7298 = vadd.f32 %v7234, %v5169
    %v7299 = vadd.f32 %v7235, %v5170
    %v7300 = vadd.f32 %v7236, %v5171
    %v7301 = vadd.f32 %v7237, %v5172
    %v7302 = vadd.f32 %v7238, %v5173
    %v7303 = vadd.f32 %v7239, %v5174
    %v7304 = vadd.f32 %v7240, %v5175
    %v7305 = vadd.f32 %v7241, %v5176
    %v7306 = vadd.f32 %v7242, %v5177
    %v7307 = vadd.f32 %v7243, %v5178
    %v7308 = vadd.f32 %v7244, %v5179
    %v7309 = vadd.f32 %v7245, %v5180
    %v7310 = vadd.f32 %v7246, %v5181
    %v7311 = vadd.f32 %v7247, %v5182
    %v7312 = vadd.f32 %v7248, %v5183
    %v7313 = vadd.f32 %v7249, %v5184
    %v7314 = vadd.f32 %v7250, %v5185
    %v7315 = vadd.f32 %v7251, %v5186
    %v7316 = vadd.f32 %v7252, %v5187
    %v7317 = vadd.f32 %v7253, %v5188
    %v7318 = vadd.f32 %v7254, %v5189
    %v7319 = vadd.f32 %v7255, %v5190
    %v7320 = vadd.f32 %v7256, %v5191
    %v7321 = vadd.f32 %v7257, %v5192
    %v7322 = vadd.f32 %v7258, %v5193
    %v7323 = vadd.f32 %v7259, %v5194
    %v7324 = vadd.f32 %v7260, %v5195
    %v7325 = vadd.f32 %v7261, %v5196
    %7326 = vst [vmem:[%s230 + $0x1] sm:$0xff] %v7262
    %7327 = vst [vmem:[%s230 + $0x9] sm:$0xff] %v7263
    %7328 = vst [vmem:[%s230 + $0x19] sm:$0xff] %v7264
    %7329 = vst [vmem:[%s230 + $0x21] sm:$0xff] %v7265
    %7330 = vst [vmem:[%s230 + $0x31] sm:$0xff] %v7266
    %7331 = vst [vmem:[%s230 + $0x39] sm:$0xff] %v7267
    %7332 = vst [vmem:[%s230 + $0x49] sm:$0xff] %v7268
    %7333 = vst [vmem:[%s230 + $0x51] sm:$0xff] %v7269
    %7334 = vst [vmem:[%s230 + $0x61] sm:$0xff] %v7270
    %7335 = vst [vmem:[%s230 + $0x69] sm:$0xff] %v7271
    %7336 = vst [vmem:[%s230 + $0x79] sm:$0xff] %v7272
    %7337 = vst [vmem:[%s230 + $0x81] sm:$0xff] %v7273
    %7338 = vst [vmem:[%s230 + $0x91] sm:$0xff] %v7274
    %7339 = vst [vmem:[%s230 + $0x99] sm:$0xff] %v7275
    %7340 = vst [vmem:[%s230 + $0xa9] sm:$0xff] %v7276
    %7341 = vst [vmem:[%s230 + $0xb1] sm:$0xff] %v7277
    %7342 = vst [vmem:[%s230 + $0xc1] sm:$0xff] %v7278
    %7343 = vst [vmem:[%s230 + $0xc9] sm:$0xff] %v7279
    %7344 = vst [vmem:[%s230 + $0xd9] sm:$0xff] %v7280
    %7345 = vst [vmem:[%s230 + $0xe1] sm:$0xff] %v7281
    %7346 = vst [vmem:[%s230 + $0xf1] sm:$0xff] %v7282
    %7347 = vst [vmem:[%s230 + $0xf9] sm:$0xff] %v7283
    %7348 = vst [vmem:[%s230 + $0x109] sm:$0xff] %v7284
    %7349 = vst [vmem:[%s230 + $0x111] sm:$0xff] %v7285
    %7350 = vst [vmem:[%s230 + $0x121] sm:$0xff] %v7286
    %7351 = vst [vmem:[%s230 + $0x129] sm:$0xff] %v7287
    %7352 = vst [vmem:[%s230 + $0x139] sm:$0xff] %v7288
    %7353 = vst [vmem:[%s230 + $0x141] sm:$0xff] %v7289
    %7354 = vst [vmem:[%s230 + $0x151] sm:$0xff] %v7290
    %7355 = vst [vmem:[%s230 + $0x159] sm:$0xff] %v7291
    %7356 = vst [vmem:[%s230 + $0x169] sm:$0xff] %v7292
    %7357 = vst [vmem:[%s230 + $0x171] sm:$0xff] %v7293
    %7358 = vst [vmem:[%s230 + $0x1b1] sm:$0xff] %v7294
    %7359 = vst [vmem:[%s230 + $0x1b9] sm:$0xff] %v7295
    %7360 = vst [vmem:[%s230 + $0x1c9] sm:$0xff] %v7296
    %7361 = vst [vmem:[%s230 + $0x1d1] sm:$0xff] %v7297
    %7362 = vst [vmem:[%s230 + $0x1e1] sm:$0xff] %v7298
    %7363 = vst [vmem:[%s230 + $0x1e9] sm:$0xff] %v7299
    %7364 = vst [vmem:[%s230 + $0x1f9] sm:$0xff] %v7300
    %7365 = vst [vmem:[%s230 + $0x201] sm:$0xff] %v7301
    %7366 = vst [vmem:[%s230 + $0x211] sm:$0xff] %v7302
    %7367 = vst [vmem:[%s230 + $0x219] sm:$0xff] %v7303
    %7368 = vst [vmem:[%s230 + $0x229] sm:$0xff] %v7304
    %7369 = vst [vmem:[%s230 + $0x231] sm:$0xff] %v7305
    %7370 = vst [vmem:[%s230 + $0x241] sm:$0xff] %v7306
    %7371 = vst [vmem:[%s230 + $0x249] sm:$0xff] %v7307
    %7372 = vst [vmem:[%s230 + $0x259] sm:$0xff] %v7308
    %7373 = vst [vmem:[%s230 + $0x261] sm:$0xff] %v7309
    %7374 = vst [vmem:[%s230 + $0x271] sm:$0xff] %v7310
    %7375 = vst [vmem:[%s230 + $0x279] sm:$0xff] %v7311
    %7376 = vst [vmem:[%s230 + $0x289] sm:$0xff] %v7312
    %7377 = vst [vmem:[%s230 + $0x291] sm:$0xff] %v7313
    %7378 = vst [vmem:[%s230 + $0x2a1] sm:$0xff] %v7314
    %7379 = vst [vmem:[%s230 + $0x2a9] sm:$0xff] %v7315
    %7380 = vst [vmem:[%s230 + $0x2b9] sm:$0xff] %v7316
    %7381 = vst [vmem:[%s230 + $0x2c1] sm:$0xff] %v7317
    %7382 = vst [vmem:[%s230 + $0x2d1] sm:$0xff] %v7318
    %7383 = vst [vmem:[%s230 + $0x2d9] sm:$0xff] %v7319
    %7384 = vst [vmem:[%s230 + $0x2e9] sm:$0xff] %v7320
    %7385 = vst [vmem:[%s230 + $0x2f1] sm:$0xff] %v7321
    %7386 = vst [vmem:[%s230 + $0x301] sm:$0xff] %v7322
    %7387 = vst [vmem:[%s230 + $0x309] sm:$0xff] %v7323
    %7388 = vst [vmem:[%s230 + $0x319] sm:$0xff] %v7324
    %7389 = vst [vmem:[%s230 + $0x321] sm:$0xff] %v7325
    %v7390 = vld [vmem:[#allocation2] sm:$0xff]
    %v7391 = vld [vmem:[#allocation2 + $0x8] sm:$0xff]
    %v7392 = vld [vmem:[#allocation2 + $0x18] sm:$0xff]
    %v7393 = vld [vmem:[#allocation2 + $0x20] sm:$0xff]
    %v7394 = vld [vmem:[#allocation2 + $0x30] sm:$0xff]
    %v7395 = vld [vmem:[#allocation2 + $0x38] sm:$0xff]
    %v7396 = vld [vmem:[#allocation2 + $0x48] sm:$0xff]
    %v7397 = vld [vmem:[#allocation2 + $0x50] sm:$0xff]
    %v7398 = vld [vmem:[#allocation2 + $0x60] sm:$0xff]
    %v7399 = vld [vmem:[#allocation2 + $0x68] sm:$0xff]
    %v7400 = vld [vmem:[#allocation2 + $0x78] sm:$0xff]
    %v7401 = vld [vmem:[#allocation2 + $0x80] sm:$0xff]
    %v7402 = vld [vmem:[#allocation2 + $0x90] sm:$0xff]
    %v7403 = vld [vmem:[#allocation2 + $0x98] sm:$0xff]
    %v7404 = vld [vmem:[#allocation2 + $0xa8] sm:$0xff]
    %v7405 = vld [vmem:[#allocation2 + $0xb0] sm:$0xff]
    %v7406 = vld [vmem:[#allocation2 + $0xc0] sm:$0xff]
    %v7407 = vld [vmem:[#allocation2 + $0xc8] sm:$0xff]
    %v7408 = vld [vmem:[#allocation2 + $0xd8] sm:$0xff]
    %v7409 = vld [vmem:[#allocation2 + $0xe0] sm:$0xff]
    %v7410 = vld [vmem:[#allocation2 + $0xf0] sm:$0xff]
    %v7411 = vld [vmem:[#allocation2 + $0xf8] sm:$0xff]
    %v7412 = vld [vmem:[#allocation2 + $0x108] sm:$0xff]
    %v7413 = vld [vmem:[#allocation2 + $0x110] sm:$0xff]
    %v7414 = vld [vmem:[#allocation2 + $0x120] sm:$0xff]
    %v7415 = vld [vmem:[#allocation2 + $0x128] sm:$0xff]
    %v7416 = vld [vmem:[#allocation2 + $0x138] sm:$0xff]
    %v7417 = vld [vmem:[#allocation2 + $0x140] sm:$0xff]
    %v7418 = vld [vmem:[#allocation2 + $0x150] sm:$0xff]
    %v7419 = vld [vmem:[#allocation2 + $0x158] sm:$0xff]
    %v7420 = vld [vmem:[#allocation2 + $0x168] sm:$0xff]
    %v7421 = vld [vmem:[#allocation2 + $0x170] sm:$0xff]
    %v7422 = vld [vmem:[#allocation2 + $0x1b0] sm:$0xff]
    %v7423 = vld [vmem:[#allocation2 + $0x1b8] sm:$0xff]
    %v7424 = vld [vmem:[#allocation2 + $0x1c8] sm:$0xff]
    %v7425 = vld [vmem:[#allocation2 + $0x1d0] sm:$0xff]
    %v7426 = vld [vmem:[#allocation2 + $0x1e0] sm:$0xff]
    %v7427 = vld [vmem:[#allocation2 + $0x1e8] sm:$0xff]
    %v7428 = vld [vmem:[#allocation2 + $0x1f8] sm:$0xff]
    %v7429 = vld [vmem:[#allocation2 + $0x200] sm:$0xff]
    %v7430 = vld [vmem:[#allocation2 + $0x210] sm:$0xff]
    %v7431 = vld [vmem:[#allocation2 + $0x218] sm:$0xff]
    %v7432 = vld [vmem:[#allocation2 + $0x228] sm:$0xff]
    %v7433 = vld [vmem:[#allocation2 + $0x230] sm:$0xff]
    %v7434 = vld [vmem:[#allocation2 + $0x240] sm:$0xff]
    %v7435 = vld [vmem:[#allocation2 + $0x248] sm:$0xff]
    %v7436 = vld [vmem:[#allocation2 + $0x258] sm:$0xff]
    %v7437 = vld [vmem:[#allocation2 + $0x260] sm:$0xff]
    %v7438 = vld [vmem:[#allocation2 + $0x270] sm:$0xff]
    %v7439 = vld [vmem:[#allocation2 + $0x278] sm:$0xff]
    %v7440 = vld [vmem:[#allocation2 + $0x288] sm:$0xff]
    %v7441 = vld [vmem:[#allocation2 + $0x290] sm:$0xff]
    %v7442 = vld [vmem:[#allocation2 + $0x2a0] sm:$0xff]
    %v7443 = vld [vmem:[#allocation2 + $0x2a8] sm:$0xff]
    %v7444 = vld [vmem:[#allocation2 + $0x2b8] sm:$0xff]
    %v7445 = vld [vmem:[#allocation2 + $0x2c0] sm:$0xff]
    %v7446 = vld [vmem:[#allocation2 + $0x2d0] sm:$0xff]
    %v7447 = vld [vmem:[#allocation2 + $0x2d8] sm:$0xff]
    %v7448 = vld [vmem:[#allocation2 + $0x2e8] sm:$0xff]
    %v7449 = vld [vmem:[#allocation2 + $0x2f0] sm:$0xff]
    %v7450 = vld [vmem:[#allocation2 + $0x300] sm:$0xff]
    %v7451 = vld [vmem:[#allocation2 + $0x308] sm:$0xff]
    %v7452 = vld [vmem:[#allocation2 + $0x318] sm:$0xff]
    %v7453 = vld [vmem:[#allocation2 + $0x320] sm:$0xff]
    %s7454 = scalar_lea.vmem [#allocation6], 2304
    %v7455 = vld [vmem:[%s7454] sm:$0xff]
    %v7456 = vld [vmem:[%s7454 + $0x8] sm:$0xff]
    %v7457 = vld [vmem:[%s7454 + $0x10] sm:$0xff]
    %v7458 = vld [vmem:[%s7454 + $0x18] sm:$0xff]
    %v7459 = vld [vmem:[%s7454 + $0x20] sm:$0xff]
    %v7460 = vld [vmem:[%s7454 + $0x28] sm:$0xff]
    %v7461 = vld [vmem:[%s7454 + $0x30] sm:$0xff]
    %v7462 = vld [vmem:[%s7454 + $0x38] sm:$0xff]
    %v7463 = vld [vmem:[%s7454 + $0x40] sm:$0xff]
    %v7464 = vld [vmem:[%s7454 + $0x48] sm:$0xff]
    %v7465 = vld [vmem:[%s7454 + $0x50] sm:$0xff]
    %v7466 = vld [vmem:[%s7454 + $0x58] sm:$0xff]
    %v7467 = vld [vmem:[%s7454 + $0x60] sm:$0xff]
    %v7468 = vld [vmem:[%s7454 + $0x68] sm:$0xff]
    %v7469 = vld [vmem:[%s7454 + $0x70] sm:$0xff]
    %v7470 = vld [vmem:[%s7454 + $0x78] sm:$0xff]
    %v7471 = vld [vmem:[#allocation2 + $0x1] sm:$0xff]
    %v7472 = vld [vmem:[#allocation2 + $0x9] sm:$0xff]
    %v7473 = vld [vmem:[#allocation2 + $0x19] sm:$0xff]
    %v7474 = vld [vmem:[#allocation2 + $0x21] sm:$0xff]
    %v7475 = vld [vmem:[#allocation2 + $0x31] sm:$0xff]
    %v7476 = vld [vmem:[#allocation2 + $0x39] sm:$0xff]
    %v7477 = vld [vmem:[#allocation2 + $0x49] sm:$0xff]
    %v7478 = vld [vmem:[#allocation2 + $0x51] sm:$0xff]
    %v7479 = vld [vmem:[#allocation2 + $0x61] sm:$0xff]
    %v7480 = vld [vmem:[#allocation2 + $0x69] sm:$0xff]
    %v7481 = vld [vmem:[#allocation2 + $0x79] sm:$0xff]
    %v7482 = vld [vmem:[#allocation2 + $0x81] sm:$0xff]
    %v7483 = vld [vmem:[#allocation2 + $0x91] sm:$0xff]
    %v7484 = vld [vmem:[#allocation2 + $0x99] sm:$0xff]
    %v7485 = vld [vmem:[#allocation2 + $0xa9] sm:$0xff]
    %v7486 = vld [vmem:[#allocation2 + $0xb1] sm:$0xff]
    %v7487 = vld [vmem:[#allocation2 + $0xc1] sm:$0xff]
    %v7488 = vld [vmem:[#allocation2 + $0xc9] sm:$0xff]
    %v7489 = vld [vmem:[#allocation2 + $0xd9] sm:$0xff]
    %v7490 = vld [vmem:[#allocation2 + $0xe1] sm:$0xff]
    %v7491 = vld [vmem:[#allocation2 + $0xf1] sm:$0xff]
    %v7492 = vld [vmem:[#allocation2 + $0xf9] sm:$0xff]
    %v7493 = vld [vmem:[#allocation2 + $0x109] sm:$0xff]
    %v7494 = vld [vmem:[#allocation2 + $0x111] sm:$0xff]
    %v7495 = vld [vmem:[#allocation2 + $0x121] sm:$0xff]
    %v7496 = vld [vmem:[#allocation2 + $0x129] sm:$0xff]
    %v7497 = vld [vmem:[#allocation2 + $0x139] sm:$0xff]
    %v7498 = vld [vmem:[#allocation2 + $0x141] sm:$0xff]
    %v7499 = vld [vmem:[#allocation2 + $0x151] sm:$0xff]
    %v7500 = vld [vmem:[#allocation2 + $0x159] sm:$0xff]
    %v7501 = vld [vmem:[#allocation2 + $0x169] sm:$0xff]
    %v7502 = vld [vmem:[#allocation2 + $0x171] sm:$0xff]
    %v7503 = vld [vmem:[#allocation2 + $0x1b1] sm:$0xff]
    %v7504 = vld [vmem:[#allocation2 + $0x1b9] sm:$0xff]
    %v7505 = vld [vmem:[#allocation2 + $0x1c9] sm:$0xff]
    %v7506 = vld [vmem:[#allocation2 + $0x1d1] sm:$0xff]
    %v7507 = vld [vmem:[#allocation2 + $0x1e1] sm:$0xff]
    %v7508 = vld [vmem:[#allocation2 + $0x1e9] sm:$0xff]
    %v7509 = vld [vmem:[#allocation2 + $0x1f9] sm:$0xff]
    %v7510 = vld [vmem:[#allocation2 + $0x201] sm:$0xff]
    %v7511 = vld [vmem:[#allocation2 + $0x211] sm:$0xff]
    %v7512 = vld [vmem:[#allocation2 + $0x219] sm:$0xff]
    %v7513 = vld [vmem:[#allocation2 + $0x229] sm:$0xff]
    %v7514 = vld [vmem:[#allocation2 + $0x231] sm:$0xff]
    %v7515 = vld [vmem:[#allocation2 + $0x241] sm:$0xff]
    %v7516 = vld [vmem:[#allocation2 + $0x249] sm:$0xff]
    %v7517 = vld [vmem:[#allocation2 + $0x259] sm:$0xff]
    %v7518 = vld [vmem:[#allocation2 + $0x261] sm:$0xff]
    %v7519 = vld [vmem:[#allocation2 + $0x271] sm:$0xff]
    %v7520 = vld [vmem:[#allocation2 + $0x279] sm:$0xff]
    %v7521 = vld [vmem:[#allocation2 + $0x289] sm:$0xff]
    %v7522 = vld [vmem:[#allocation2 + $0x291] sm:$0xff]
    %v7523 = vld [vmem:[#allocation2 + $0x2a1] sm:$0xff]
    %v7524 = vld [vmem:[#allocation2 + $0x2a9] sm:$0xff]
    %v7525 = vld [vmem:[#allocation2 + $0x2b9] sm:$0xff]
    %v7526 = vld [vmem:[#allocation2 + $0x2c1] sm:$0xff]
    %v7527 = vld [vmem:[#allocation2 + $0x2d1] sm:$0xff]
    %v7528 = vld [vmem:[#allocation2 + $0x2d9] sm:$0xff]
    %v7529 = vld [vmem:[#allocation2 + $0x2e9] sm:$0xff]
    %v7530 = vld [vmem:[#allocation2 + $0x2f1] sm:$0xff]
    %v7531 = vld [vmem:[#allocation2 + $0x301] sm:$0xff]
    %v7532 = vld [vmem:[#allocation2 + $0x309] sm:$0xff]
    %v7533 = vld [vmem:[#allocation2 + $0x319] sm:$0xff]
    %v7534 = vld [vmem:[#allocation2 + $0x321] sm:$0xff]
    %s7535 = scalar_lea.vmem [#allocation6], 2432
    %v7536 = vld [vmem:[%s7535] sm:$0xff]
    %v7537 = vld [vmem:[%s7535 + $0x8] sm:$0xff]
    %v7538 = vld [vmem:[%s7535 + $0x10] sm:$0xff]
    %v7539 = vld [vmem:[%s7535 + $0x18] sm:$0xff]
    %v7540 = vld [vmem:[%s7535 + $0x20] sm:$0xff]
    %v7541 = vld [vmem:[%s7535 + $0x28] sm:$0xff]
    %v7542 = vld [vmem:[%s7535 + $0x30] sm:$0xff]
    %v7543 = vld [vmem:[%s7535 + $0x38] sm:$0xff]
    %v7544 = vld [vmem:[%s7535 + $0x40] sm:$0xff]
    %v7545 = vld [vmem:[%s7535 + $0x48] sm:$0xff]
    %v7546 = vld [vmem:[%s7535 + $0x50] sm:$0xff]
    %v7547 = vld [vmem:[%s7535 + $0x58] sm:$0xff]
    %v7548 = vld [vmem:[%s7535 + $0x60] sm:$0xff]
    %v7549 = vld [vmem:[%s7535 + $0x68] sm:$0xff]
    %v7550 = vld [vmem:[%s7535 + $0x70] sm:$0xff]
    %v7551 = vld [vmem:[%s7535 + $0x78] sm:$0xff]
    %7552 = vmatpush.msra.mxu0 %v7551
    %7553 = vmatpush.msra.mxu0 %v7550
    %7554 = vmatpush.msra.mxu0 %v7549
    %7555 = vmatpush.msra.mxu0 %v7548
    %7556 = vmatpush.msra.mxu0 %v7547
    %7557 = vmatpush.msra.mxu0 %v7546
    %7558 = vmatpush.msra.mxu0 %v7545
    %7559 = vmatpush.msra.mxu0 %v7544
    %7560 = vmatpush.msra.mxu0 %v7543
    %7561 = vmatpush.msra.mxu0 %v7542
    %7562 = vmatpush.msra.mxu0 %v7541
    %7563 = vmatpush.msra.mxu0 %v7540
    %7564 = vmatpush.msra.mxu0 %v7539
    %7565 = vmatpush.msra.mxu0 %v7538
    %7566 = vmatpush.msra.mxu0 %v7537
    %7567 = vmatpush.msra.mxu0 %v7536
    %7568 = vmatmul.f32.gmra.mxu0 %v7471
    %v7569 = vpop.f32.mrf.mxu0
    %v7570 = vadd.f32 0.0, %v7569
    %7571 = vmatmul.f32.gmra.mxu0 %v7472
    %v7572 = vpop.f32.mrf.mxu0
    %v7573 = vadd.f32 0.0, %v7572
    %7574 = vmatmul.f32.gmra.mxu0 %v7473
    %v7575 = vpop.f32.mrf.mxu0
    %v7576 = vadd.f32 0.0, %v7575
    %7577 = vmatmul.f32.gmra.mxu0 %v7474
    %v7578 = vpop.f32.mrf.mxu0
    %v7579 = vadd.f32 0.0, %v7578
    %7580 = vmatmul.f32.gmra.mxu0 %v7475
    %v7581 = vpop.f32.mrf.mxu0
    %v7582 = vadd.f32 0.0, %v7581
    %7583 = vmatmul.f32.gmra.mxu0 %v7476
    %v7584 = vpop.f32.mrf.mxu0
    %v7585 = vadd.f32 0.0, %v7584
    %7586 = vmatmul.f32.gmra.mxu0 %v7477
    %v7587 = vpop.f32.mrf.mxu0
    %v7588 = vadd.f32 0.0, %v7587
    %7589 = vmatmul.f32.gmra.mxu0 %v7478
    %v7590 = vpop.f32.mrf.mxu0
    %v7591 = vadd.f32 0.0, %v7590
    %7592 = vmatmul.f32.gmra.mxu0 %v7479
    %v7593 = vpop.f32.mrf.mxu0
    %v7594 = vadd.f32 0.0, %v7593
    %7595 = vmatmul.f32.gmra.mxu0 %v7480
    %v7596 = vpop.f32.mrf.mxu0
    %v7597 = vadd.f32 0.0, %v7596
    %7598 = vmatmul.f32.gmra.mxu0 %v7481
    %v7599 = vpop.f32.mrf.mxu0
    %v7600 = vadd.f32 0.0, %v7599
    %7601 = vmatmul.f32.gmra.mxu0 %v7482
    %v7602 = vpop.f32.mrf.mxu0
    %v7603 = vadd.f32 0.0, %v7602
    %7604 = vmatmul.f32.gmra.mxu0 %v7483
    %v7605 = vpop.f32.mrf.mxu0
    %v7606 = vadd.f32 0.0, %v7605
    %7607 = vmatmul.f32.gmra.mxu0 %v7484
    %v7608 = vpop.f32.mrf.mxu0
    %v7609 = vadd.f32 0.0, %v7608
    %7610 = vmatmul.f32.gmra.mxu0 %v7485
    %v7611 = vpop.f32.mrf.mxu0
    %v7612 = vadd.f32 0.0, %v7611
    %7613 = vmatmul.f32.gmra.mxu0 %v7486
    %v7614 = vpop.f32.mrf.mxu0
    %v7615 = vadd.f32 0.0, %v7614
    %7616 = vmatmul.f32.gmra.mxu0 %v7487
    %v7617 = vpop.f32.mrf.mxu0
    %v7618 = vadd.f32 0.0, %v7617
    %7619 = vmatmul.f32.gmra.mxu0 %v7488
    %v7620 = vpop.f32.mrf.mxu0
    %v7621 = vadd.f32 0.0, %v7620
    %7622 = vmatmul.f32.gmra.mxu0 %v7489
    %v7623 = vpop.f32.mrf.mxu0
    %v7624 = vadd.f32 0.0, %v7623
    %7625 = vmatmul.f32.gmra.mxu0 %v7490
    %v7626 = vpop.f32.mrf.mxu0
    %v7627 = vadd.f32 0.0, %v7626
    %7628 = vmatmul.f32.gmra.mxu0 %v7491
    %v7629 = vpop.f32.mrf.mxu0
    %v7630 = vadd.f32 0.0, %v7629
    %7631 = vmatmul.f32.gmra.mxu0 %v7492
    %v7632 = vpop.f32.mrf.mxu0
    %v7633 = vadd.f32 0.0, %v7632
    %7634 = vmatmul.f32.gmra.mxu0 %v7493
    %v7635 = vpop.f32.mrf.mxu0
    %v7636 = vadd.f32 0.0, %v7635
    %7637 = vmatmul.f32.gmra.mxu0 %v7494
    %v7638 = vpop.f32.mrf.mxu0
    %v7639 = vadd.f32 0.0, %v7638
    %7640 = vmatmul.f32.gmra.mxu0 %v7495
    %v7641 = vpop.f32.mrf.mxu0
    %v7642 = vadd.f32 0.0, %v7641
    %7643 = vmatmul.f32.gmra.mxu0 %v7496
    %v7644 = vpop.f32.mrf.mxu0
    %v7645 = vadd.f32 0.0, %v7644
    %7646 = vmatmul.f32.gmra.mxu0 %v7497
    %v7647 = vpop.f32.mrf.mxu0
    %v7648 = vadd.f32 0.0, %v7647
    %7649 = vmatmul.f32.gmra.mxu0 %v7498
    %v7650 = vpop.f32.mrf.mxu0
    %v7651 = vadd.f32 0.0, %v7650
    %7652 = vmatmul.f32.gmra.mxu0 %v7499
    %v7653 = vpop.f32.mrf.mxu0
    %v7654 = vadd.f32 0.0, %v7653
    %7655 = vmatmul.f32.gmra.mxu0 %v7500
    %v7656 = vpop.f32.mrf.mxu0
    %v7657 = vadd.f32 0.0, %v7656
    %7658 = vmatmul.f32.gmra.mxu0 %v7501
    %v7659 = vpop.f32.mrf.mxu0
    %v7660 = vadd.f32 0.0, %v7659
    %7661 = vmatmul.f32.gmra.mxu0 %v7502
    %v7662 = vpop.f32.mrf.mxu0
    %v7663 = vadd.f32 0.0, %v7662
    %7664 = vmatmul.f32.gmra.mxu0 %v7503
    %v7665 = vpop.f32.mrf.mxu0
    %v7666 = vadd.f32 0.0, %v7665
    %7667 = vmatmul.f32.gmra.mxu0 %v7504
    %v7668 = vpop.f32.mrf.mxu0
    %v7669 = vadd.f32 0.0, %v7668
    %7670 = vmatmul.f32.gmra.mxu0 %v7505
    %v7671 = vpop.f32.mrf.mxu0
    %v7672 = vadd.f32 0.0, %v7671
    %7673 = vmatmul.f32.gmra.mxu0 %v7506
    %v7674 = vpop.f32.mrf.mxu0
    %v7675 = vadd.f32 0.0, %v7674
    %7676 = vmatmul.f32.gmra.mxu0 %v7507
    %v7677 = vpop.f32.mrf.mxu0
    %v7678 = vadd.f32 0.0, %v7677
    %7679 = vmatmul.f32.gmra.mxu0 %v7508
    %v7680 = vpop.f32.mrf.mxu0
    %v7681 = vadd.f32 0.0, %v7680
    %7682 = vmatmul.f32.gmra.mxu0 %v7509
    %v7683 = vpop.f32.mrf.mxu0
    %v7684 = vadd.f32 0.0, %v7683
    %7685 = vmatmul.f32.gmra.mxu0 %v7510
    %v7686 = vpop.f32.mrf.mxu0
    %v7687 = vadd.f32 0.0, %v7686
    %7688 = vmatmul.f32.gmra.mxu0 %v7511
    %v7689 = vpop.f32.mrf.mxu0
    %v7690 = vadd.f32 0.0, %v7689
    %7691 = vmatmul.f32.gmra.mxu0 %v7512
    %v7692 = vpop.f32.mrf.mxu0
    %v7693 = vadd.f32 0.0, %v7692
    %7694 = vmatmul.f32.gmra.mxu0 %v7513
    %v7695 = vpop.f32.mrf.mxu0
    %v7696 = vadd.f32 0.0, %v7695
    %7697 = vmatmul.f32.gmra.mxu0 %v7514
    %v7698 = vpop.f32.mrf.mxu0
    %v7699 = vadd.f32 0.0, %v7698
    %7700 = vmatmul.f32.gmra.mxu0 %v7515
    %v7701 = vpop.f32.mrf.mxu0
    %v7702 = vadd.f32 0.0, %v7701
    %7703 = vmatmul.f32.gmra.mxu0 %v7516
    %v7704 = vpop.f32.mrf.mxu0
    %v7705 = vadd.f32 0.0, %v7704
    %7706 = vmatmul.f32.gmra.mxu0 %v7517
    %v7707 = vpop.f32.mrf.mxu0
    %v7708 = vadd.f32 0.0, %v7707
    %7709 = vmatmul.f32.gmra.mxu0 %v7518
    %v7710 = vpop.f32.mrf.mxu0
    %v7711 = vadd.f32 0.0, %v7710
    %7712 = vmatmul.f32.gmra.mxu0 %v7519
    %v7713 = vpop.f32.mrf.mxu0
    %v7714 = vadd.f32 0.0, %v7713
    %7715 = vmatmul.f32.gmra.mxu0 %v7520
    %v7716 = vpop.f32.mrf.mxu0
    %v7717 = vadd.f32 0.0, %v7716
    %7718 = vmatmul.f32.gmra.mxu0 %v7521
    %v7719 = vpop.f32.mrf.mxu0
    %v7720 = vadd.f32 0.0, %v7719
    %7721 = vmatmul.f32.gmra.mxu0 %v7522
    %v7722 = vpop.f32.mrf.mxu0
    %v7723 = vadd.f32 0.0, %v7722
    %7724 = vmatmul.f32.gmra.mxu0 %v7523
    %v7725 = vpop.f32.mrf.mxu0
    %v7726 = vadd.f32 0.0, %v7725
    %7727 = vmatmul.f32.gmra.mxu0 %v7524
    %v7728 = vpop.f32.mrf.mxu0
    %v7729 = vadd.f32 0.0, %v7728
    %7730 = vmatmul.f32.gmra.mxu0 %v7525
    %v7731 = vpop.f32.mrf.mxu0
    %v7732 = vadd.f32 0.0, %v7731
    %7733 = vmatmul.f32.gmra.mxu0 %v7526
    %v7734 = vpop.f32.mrf.mxu0
    %v7735 = vadd.f32 0.0, %v7734
    %7736 = vmatmul.f32.gmra.mxu0 %v7527
    %v7737 = vpop.f32.mrf.mxu0
    %v7738 = vadd.f32 0.0, %v7737
    %7739 = vmatmul.f32.gmra.mxu0 %v7528
    %v7740 = vpop.f32.mrf.mxu0
    %v7741 = vadd.f32 0.0, %v7740
    %7742 = vmatmul.f32.gmra.mxu0 %v7529
    %v7743 = vpop.f32.mrf.mxu0
    %v7744 = vadd.f32 0.0, %v7743
    %7745 = vmatmul.f32.gmra.mxu0 %v7530
    %v7746 = vpop.f32.mrf.mxu0
    %v7747 = vadd.f32 0.0, %v7746
    %7748 = vmatmul.f32.gmra.mxu0 %v7531
    %v7749 = vpop.f32.mrf.mxu0
    %v7750 = vadd.f32 0.0, %v7749
    %7751 = vmatmul.f32.gmra.mxu0 %v7532
    %v7752 = vpop.f32.mrf.mxu0
    %v7753 = vadd.f32 0.0, %v7752
    %7754 = vmatmul.f32.gmra.mxu0 %v7533
    %v7755 = vpop.f32.mrf.mxu0
    %v7756 = vadd.f32 0.0, %v7755
    %7757 = vmatmul.f32.gmra.mxu0 %v7534
    %v7758 = vpop.f32.mrf.mxu0
    %v7759 = vadd.f32 0.0, %v7758
    %7760 = vdwg.mxu0
    %7761 = vmatpush.msra.mxu0 %v7470
    %7762 = vmatpush.msra.mxu0 %v7469
    %7763 = vmatpush.msra.mxu0 %v7468
    %7764 = vmatpush.msra.mxu0 %v7467
    %7765 = vmatpush.msra.mxu0 %v7466
    %7766 = vmatpush.msra.mxu0 %v7465
    %7767 = vmatpush.msra.mxu0 %v7464
    %7768 = vmatpush.msra.mxu0 %v7463
    %7769 = vmatpush.msra.mxu0 %v7462
    %7770 = vmatpush.msra.mxu0 %v7461
    %7771 = vmatpush.msra.mxu0 %v7460
    %7772 = vmatpush.msra.mxu0 %v7459
    %7773 = vmatpush.msra.mxu0 %v7458
    %7774 = vmatpush.msra.mxu0 %v7457
    %7775 = vmatpush.msra.mxu0 %v7456
    %7776 = vmatpush.msra.mxu0 %v7455
    %7777 = vmatmul.f32.gmra.mxu0 %v7390
    %v7778 = vpop.f32.mrf.mxu0
    %v7779 = vadd.f32 %v7570, %v7778
    %7780 = vmatmul.f32.gmra.mxu0 %v7391
    %v7781 = vpop.f32.mrf.mxu0
    %v7782 = vadd.f32 %v7573, %v7781
    %7783 = vmatmul.f32.gmra.mxu0 %v7392
    %v7784 = vpop.f32.mrf.mxu0
    %v7785 = vadd.f32 %v7576, %v7784
    %7786 = vmatmul.f32.gmra.mxu0 %v7393
    %v7787 = vpop.f32.mrf.mxu0
    %v7788 = vadd.f32 %v7579, %v7787
    %7789 = vmatmul.f32.gmra.mxu0 %v7394
    %v7790 = vpop.f32.mrf.mxu0
    %v7791 = vadd.f32 %v7582, %v7790
    %7792 = vmatmul.f32.gmra.mxu0 %v7395
    %v7793 = vpop.f32.mrf.mxu0
    %v7794 = vadd.f32 %v7585, %v7793
    %7795 = vmatmul.f32.gmra.mxu0 %v7396
    %v7796 = vpop.f32.mrf.mxu0
    %v7797 = vadd.f32 %v7588, %v7796
    %7798 = vmatmul.f32.gmra.mxu0 %v7397
    %v7799 = vpop.f32.mrf.mxu0
    %v7800 = vadd.f32 %v7591, %v7799
    %7801 = vmatmul.f32.gmra.mxu0 %v7398
    %v7802 = vpop.f32.mrf.mxu0
    %v7803 = vadd.f32 %v7594, %v7802
    %7804 = vmatmul.f32.gmra.mxu0 %v7399
    %v7805 = vpop.f32.mrf.mxu0
    %v7806 = vadd.f32 %v7597, %v7805
    %7807 = vmatmul.f32.gmra.mxu0 %v7400
    %v7808 = vpop.f32.mrf.mxu0
    %v7809 = vadd.f32 %v7600, %v7808
    %7810 = vmatmul.f32.gmra.mxu0 %v7401
    %v7811 = vpop.f32.mrf.mxu0
    %v7812 = vadd.f32 %v7603, %v7811
    %7813 = vmatmul.f32.gmra.mxu0 %v7402
    %v7814 = vpop.f32.mrf.mxu0
    %v7815 = vadd.f32 %v7606, %v7814
    %7816 = vmatmul.f32.gmra.mxu0 %v7403
    %v7817 = vpop.f32.mrf.mxu0
    %v7818 = vadd.f32 %v7609, %v7817
    %7819 = vmatmul.f32.gmra.mxu0 %v7404
    %v7820 = vpop.f32.mrf.mxu0
    %v7821 = vadd.f32 %v7612, %v7820
    %7822 = vmatmul.f32.gmra.mxu0 %v7405
    %v7823 = vpop.f32.mrf.mxu0
    %v7824 = vadd.f32 %v7615, %v7823
    %7825 = vmatmul.f32.gmra.mxu0 %v7406
    %v7826 = vpop.f32.mrf.mxu0
    %v7827 = vadd.f32 %v7618, %v7826
    %7828 = vmatmul.f32.gmra.mxu0 %v7407
    %v7829 = vpop.f32.mrf.mxu0
    %v7830 = vadd.f32 %v7621, %v7829
    %7831 = vmatmul.f32.gmra.mxu0 %v7408
    %v7832 = vpop.f32.mrf.mxu0
    %v7833 = vadd.f32 %v7624, %v7832
    %7834 = vmatmul.f32.gmra.mxu0 %v7409
    %v7835 = vpop.f32.mrf.mxu0
    %v7836 = vadd.f32 %v7627, %v7835
    %7837 = vmatmul.f32.gmra.mxu0 %v7410
    %v7838 = vpop.f32.mrf.mxu0
    %v7839 = vadd.f32 %v7630, %v7838
    %7840 = vmatmul.f32.gmra.mxu0 %v7411
    %v7841 = vpop.f32.mrf.mxu0
    %v7842 = vadd.f32 %v7633, %v7841
    %7843 = vmatmul.f32.gmra.mxu0 %v7412
    %v7844 = vpop.f32.mrf.mxu0
    %v7845 = vadd.f32 %v7636, %v7844
    %7846 = vmatmul.f32.gmra.mxu0 %v7413
    %v7847 = vpop.f32.mrf.mxu0
    %v7848 = vadd.f32 %v7639, %v7847
    %7849 = vmatmul.f32.gmra.mxu0 %v7414
    %v7850 = vpop.f32.mrf.mxu0
    %v7851 = vadd.f32 %v7642, %v7850
    %7852 = vmatmul.f32.gmra.mxu0 %v7415
    %v7853 = vpop.f32.mrf.mxu0
    %v7854 = vadd.f32 %v7645, %v7853
    %7855 = vmatmul.f32.gmra.mxu0 %v7416
    %v7856 = vpop.f32.mrf.mxu0
    %v7857 = vadd.f32 %v7648, %v7856
    %7858 = vmatmul.f32.gmra.mxu0 %v7417
    %v7859 = vpop.f32.mrf.mxu0
    %v7860 = vadd.f32 %v7651, %v7859
    %7861 = vmatmul.f32.gmra.mxu0 %v7418
    %v7862 = vpop.f32.mrf.mxu0
    %v7863 = vadd.f32 %v7654, %v7862
    %7864 = vmatmul.f32.gmra.mxu0 %v7419
    %v7865 = vpop.f32.mrf.mxu0
    %v7866 = vadd.f32 %v7657, %v7865
    %7867 = vmatmul.f32.gmra.mxu0 %v7420
    %v7868 = vpop.f32.mrf.mxu0
    %v7869 = vadd.f32 %v7660, %v7868
    %7870 = vmatmul.f32.gmra.mxu0 %v7421
    %v7871 = vpop.f32.mrf.mxu0
    %v7872 = vadd.f32 %v7663, %v7871
    %7873 = vmatmul.f32.gmra.mxu0 %v7422
    %v7874 = vpop.f32.mrf.mxu0
    %v7875 = vadd.f32 %v7666, %v7874
    %7876 = vmatmul.f32.gmra.mxu0 %v7423
    %v7877 = vpop.f32.mrf.mxu0
    %v7878 = vadd.f32 %v7669, %v7877
    %7879 = vmatmul.f32.gmra.mxu0 %v7424
    %v7880 = vpop.f32.mrf.mxu0
    %v7881 = vadd.f32 %v7672, %v7880
    %7882 = vmatmul.f32.gmra.mxu0 %v7425
    %v7883 = vpop.f32.mrf.mxu0
    %v7884 = vadd.f32 %v7675, %v7883
    %7885 = vmatmul.f32.gmra.mxu0 %v7426
    %v7886 = vpop.f32.mrf.mxu0
    %v7887 = vadd.f32 %v7678, %v7886
    %7888 = vmatmul.f32.gmra.mxu0 %v7427
    %v7889 = vpop.f32.mrf.mxu0
    %v7890 = vadd.f32 %v7681, %v7889
    %7891 = vmatmul.f32.gmra.mxu0 %v7428
    %v7892 = vpop.f32.mrf.mxu0
    %v7893 = vadd.f32 %v7684, %v7892
    %7894 = vmatmul.f32.gmra.mxu0 %v7429
    %v7895 = vpop.f32.mrf.mxu0
    %v7896 = vadd.f32 %v7687, %v7895
    %7897 = vmatmul.f32.gmra.mxu0 %v7430
    %v7898 = vpop.f32.mrf.mxu0
    %v7899 = vadd.f32 %v7690, %v7898
    %7900 = vmatmul.f32.gmra.mxu0 %v7431
    %v7901 = vpop.f32.mrf.mxu0
    %v7902 = vadd.f32 %v7693, %v7901
    %7903 = vmatmul.f32.gmra.mxu0 %v7432
    %v7904 = vpop.f32.mrf.mxu0
    %v7905 = vadd.f32 %v7696, %v7904
    %7906 = vmatmul.f32.gmra.mxu0 %v7433
    %v7907 = vpop.f32.mrf.mxu0
    %v7908 = vadd.f32 %v7699, %v7907
    %7909 = vmatmul.f32.gmra.mxu0 %v7434
    %v7910 = vpop.f32.mrf.mxu0
    %v7911 = vadd.f32 %v7702, %v7910
    %7912 = vmatmul.f32.gmra.mxu0 %v7435
    %v7913 = vpop.f32.mrf.mxu0
    %v7914 = vadd.f32 %v7705, %v7913
    %7915 = vmatmul.f32.gmra.mxu0 %v7436
    %v7916 = vpop.f32.mrf.mxu0
    %v7917 = vadd.f32 %v7708, %v7916
    %7918 = vmatmul.f32.gmra.mxu0 %v7437
    %v7919 = vpop.f32.mrf.mxu0
    %v7920 = vadd.f32 %v7711, %v7919
    %7921 = vmatmul.f32.gmra.mxu0 %v7438
    %v7922 = vpop.f32.mrf.mxu0
    %v7923 = vadd.f32 %v7714, %v7922
    %7924 = vmatmul.f32.gmra.mxu0 %v7439
    %v7925 = vpop.f32.mrf.mxu0
    %v7926 = vadd.f32 %v7717, %v7925
    %7927 = vmatmul.f32.gmra.mxu0 %v7440
    %v7928 = vpop.f32.mrf.mxu0
    %v7929 = vadd.f32 %v7720, %v7928
    %7930 = vmatmul.f32.gmra.mxu0 %v7441
    %v7931 = vpop.f32.mrf.mxu0
    %v7932 = vadd.f32 %v7723, %v7931
    %7933 = vmatmul.f32.gmra.mxu0 %v7442
    %v7934 = vpop.f32.mrf.mxu0
    %v7935 = vadd.f32 %v7726, %v7934
    %7936 = vmatmul.f32.gmra.mxu0 %v7443
    %v7937 = vpop.f32.mrf.mxu0
    %v7938 = vadd.f32 %v7729, %v7937
    %7939 = vmatmul.f32.gmra.mxu0 %v7444
    %v7940 = vpop.f32.mrf.mxu0
    %v7941 = vadd.f32 %v7732, %v7940
    %7942 = vmatmul.f32.gmra.mxu0 %v7445
    %v7943 = vpop.f32.mrf.mxu0
    %v7944 = vadd.f32 %v7735, %v7943
    %7945 = vmatmul.f32.gmra.mxu0 %v7446
    %v7946 = vpop.f32.mrf.mxu0
    %v7947 = vadd.f32 %v7738, %v7946
    %7948 = vmatmul.f32.gmra.mxu0 %v7447
    %v7949 = vpop.f32.mrf.mxu0
    %v7950 = vadd.f32 %v7741, %v7949
    %7951 = vmatmul.f32.gmra.mxu0 %v7448
    %v7952 = vpop.f32.mrf.mxu0
    %v7953 = vadd.f32 %v7744, %v7952
    %7954 = vmatmul.f32.gmra.mxu0 %v7449
    %v7955 = vpop.f32.mrf.mxu0
    %v7956 = vadd.f32 %v7747, %v7955
    %7957 = vmatmul.f32.gmra.mxu0 %v7450
    %v7958 = vpop.f32.mrf.mxu0
    %v7959 = vadd.f32 %v7750, %v7958
    %7960 = vmatmul.f32.gmra.mxu0 %v7451
    %v7961 = vpop.f32.mrf.mxu0
    %v7962 = vadd.f32 %v7753, %v7961
    %7963 = vmatmul.f32.gmra.mxu0 %v7452
    %v7964 = vpop.f32.mrf.mxu0
    %v7965 = vadd.f32 %v7756, %v7964
    %7966 = vmatmul.f32.gmra.mxu0 %v7453
    %v7967 = vpop.f32.mrf.mxu0
    %v7968 = vadd.f32 %v7759, %v7967
    %7969 = vdwg.mxu0
    %v7970 = vld [vmem:[#allocation2 + $0x2] sm:$0xff]
    %v7971 = vld [vmem:[#allocation2 + $0xa] sm:$0xff]
    %v7972 = vld [vmem:[#allocation2 + $0x1a] sm:$0xff]
    %v7973 = vld [vmem:[#allocation2 + $0x22] sm:$0xff]
    %v7974 = vld [vmem:[#allocation2 + $0x32] sm:$0xff]
    %v7975 = vld [vmem:[#allocation2 + $0x3a] sm:$0xff]
    %v7976 = vld [vmem:[#allocation2 + $0x4a] sm:$0xff]
    %v7977 = vld [vmem:[#allocation2 + $0x52] sm:$0xff]
    %v7978 = vld [vmem:[#allocation2 + $0x62] sm:$0xff]
    %v7979 = vld [vmem:[#allocation2 + $0x6a] sm:$0xff]
    %v7980 = vld [vmem:[#allocation2 + $0x7a] sm:$0xff]
    %v7981 = vld [vmem:[#allocation2 + $0x82] sm:$0xff]
    %v7982 = vld [vmem:[#allocation2 + $0x92] sm:$0xff]
    %v7983 = vld [vmem:[#allocation2 + $0x9a] sm:$0xff]
    %v7984 = vld [vmem:[#allocation2 + $0xaa] sm:$0xff]
    %v7985 = vld [vmem:[#allocation2 + $0xb2] sm:$0xff]
    %v7986 = vld [vmem:[#allocation2 + $0xc2] sm:$0xff]
    %v7987 = vld [vmem:[#allocation2 + $0xca] sm:$0xff]
    %v7988 = vld [vmem:[#allocation2 + $0xda] sm:$0xff]
    %v7989 = vld [vmem:[#allocation2 + $0xe2] sm:$0xff]
    %v7990 = vld [vmem:[#allocation2 + $0xf2] sm:$0xff]
    %v7991 = vld [vmem:[#allocation2 + $0xfa] sm:$0xff]
    %v7992 = vld [vmem:[#allocation2 + $0x10a] sm:$0xff]
    %v7993 = vld [vmem:[#allocation2 + $0x112] sm:$0xff]
    %v7994 = vld [vmem:[#allocation2 + $0x122] sm:$0xff]
    %v7995 = vld [vmem:[#allocation2 + $0x12a] sm:$0xff]
    %v7996 = vld [vmem:[#allocation2 + $0x13a] sm:$0xff]
    %v7997 = vld [vmem:[#allocation2 + $0x142] sm:$0xff]
    %v7998 = vld [vmem:[#allocation2 + $0x152] sm:$0xff]
    %v7999 = vld [vmem:[#allocation2 + $0x15a] sm:$0xff]
    %v8000 = vld [vmem:[#allocation2 + $0x16a] sm:$0xff]
    %v8001 = vld [vmem:[#allocation2 + $0x172] sm:$0xff]
    %v8002 = vld [vmem:[#allocation2 + $0x1b2] sm:$0xff]
    %v8003 = vld [vmem:[#allocation2 + $0x1ba] sm:$0xff]
    %v8004 = vld [vmem:[#allocation2 + $0x1ca] sm:$0xff]
    %v8005 = vld [vmem:[#allocation2 + $0x1d2] sm:$0xff]
    %v8006 = vld [vmem:[#allocation2 + $0x1e2] sm:$0xff]
    %v8007 = vld [vmem:[#allocation2 + $0x1ea] sm:$0xff]
    %v8008 = vld [vmem:[#allocation2 + $0x1fa] sm:$0xff]
    %v8009 = vld [vmem:[#allocation2 + $0x202] sm:$0xff]
    %v8010 = vld [vmem:[#allocation2 + $0x212] sm:$0xff]
    %v8011 = vld [vmem:[#allocation2 + $0x21a] sm:$0xff]
    %v8012 = vld [vmem:[#allocation2 + $0x22a] sm:$0xff]
    %v8013 = vld [vmem:[#allocation2 + $0x232] sm:$0xff]
    %v8014 = vld [vmem:[#allocation2 + $0x242] sm:$0xff]
    %v8015 = vld [vmem:[#allocation2 + $0x24a] sm:$0xff]
    %v8016 = vld [vmem:[#allocation2 + $0x25a] sm:$0xff]
    %v8017 = vld [vmem:[#allocation2 + $0x262] sm:$0xff]
    %v8018 = vld [vmem:[#allocation2 + $0x272] sm:$0xff]
    %v8019 = vld [vmem:[#allocation2 + $0x27a] sm:$0xff]
    %v8020 = vld [vmem:[#allocation2 + $0x28a] sm:$0xff]
    %v8021 = vld [vmem:[#allocation2 + $0x292] sm:$0xff]
    %v8022 = vld [vmem:[#allocation2 + $0x2a2] sm:$0xff]
    %v8023 = vld [vmem:[#allocation2 + $0x2aa] sm:$0xff]
    %v8024 = vld [vmem:[#allocation2 + $0x2ba] sm:$0xff]
    %v8025 = vld [vmem:[#allocation2 + $0x2c2] sm:$0xff]
    %v8026 = vld [vmem:[#allocation2 + $0x2d2] sm:$0xff]
    %v8027 = vld [vmem:[#allocation2 + $0x2da] sm:$0xff]
    %v8028 = vld [vmem:[#allocation2 + $0x2ea] sm:$0xff]
    %v8029 = vld [vmem:[#allocation2 + $0x2f2] sm:$0xff]
    %v8030 = vld [vmem:[#allocation2 + $0x302] sm:$0xff]
    %v8031 = vld [vmem:[#allocation2 + $0x30a] sm:$0xff]
    %v8032 = vld [vmem:[#allocation2 + $0x31a] sm:$0xff]
    %v8033 = vld [vmem:[#allocation2 + $0x322] sm:$0xff]
    %s8034 = scalar_lea.vmem [#allocation6], 2560
    %v8035 = vld [vmem:[%s8034] sm:$0xff]
    %v8036 = vld [vmem:[%s8034 + $0x8] sm:$0xff]
    %v8037 = vld [vmem:[%s8034 + $0x10] sm:$0xff]
    %v8038 = vld [vmem:[%s8034 + $0x18] sm:$0xff]
    %v8039 = vld [vmem:[%s8034 + $0x20] sm:$0xff]
    %v8040 = vld [vmem:[%s8034 + $0x28] sm:$0xff]
    %v8041 = vld [vmem:[%s8034 + $0x30] sm:$0xff]
    %v8042 = vld [vmem:[%s8034 + $0x38] sm:$0xff]
    %v8043 = vld [vmem:[%s8034 + $0x40] sm:$0xff]
    %v8044 = vld [vmem:[%s8034 + $0x48] sm:$0xff]
    %v8045 = vld [vmem:[%s8034 + $0x50] sm:$0xff]
    %v8046 = vld [vmem:[%s8034 + $0x58] sm:$0xff]
    %v8047 = vld [vmem:[%s8034 + $0x60] sm:$0xff]
    %v8048 = vld [vmem:[%s8034 + $0x68] sm:$0xff]
    %v8049 = vld [vmem:[%s8034 + $0x70] sm:$0xff]
    %v8050 = vld [vmem:[%s8034 + $0x78] sm:$0xff]
    %8051 = vmatpush.msra.mxu0 %v8050
    %8052 = vmatpush.msra.mxu0 %v8049
    %8053 = vmatpush.msra.mxu0 %v8048
    %8054 = vmatpush.msra.mxu0 %v8047
    %8055 = vmatpush.msra.mxu0 %v8046
    %8056 = vmatpush.msra.mxu0 %v8045
    %8057 = vmatpush.msra.mxu0 %v8044
    %8058 = vmatpush.msra.mxu0 %v8043
    %8059 = vmatpush.msra.mxu0 %v8042
    %8060 = vmatpush.msra.mxu0 %v8041
    %8061 = vmatpush.msra.mxu0 %v8040
    %8062 = vmatpush.msra.mxu0 %v8039
    %8063 = vmatpush.msra.mxu0 %v8038
    %8064 = vmatpush.msra.mxu0 %v8037
    %8065 = vmatpush.msra.mxu0 %v8036
    %8066 = vmatpush.msra.mxu0 %v8035
    %8067 = vmatmul.f32.gmra.mxu0 %v7970
    %v8068 = vpop.f32.mrf.mxu0
    %v8069 = vadd.f32 0.0, %v8068
    %8070 = vmatmul.f32.gmra.mxu0 %v7971
    %v8071 = vpop.f32.mrf.mxu0
    %v8072 = vadd.f32 0.0, %v8071
    %8073 = vmatmul.f32.gmra.mxu0 %v7972
    %v8074 = vpop.f32.mrf.mxu0
    %v8075 = vadd.f32 0.0, %v8074
    %8076 = vmatmul.f32.gmra.mxu0 %v7973
    %v8077 = vpop.f32.mrf.mxu0
    %v8078 = vadd.f32 0.0, %v8077
    %8079 = vmatmul.f32.gmra.mxu0 %v7974
    %v8080 = vpop.f32.mrf.mxu0
    %v8081 = vadd.f32 0.0, %v8080
    %8082 = vmatmul.f32.gmra.mxu0 %v7975
    %v8083 = vpop.f32.mrf.mxu0
    %v8084 = vadd.f32 0.0, %v8083
    %8085 = vmatmul.f32.gmra.mxu0 %v7976
    %v8086 = vpop.f32.mrf.mxu0
    %v8087 = vadd.f32 0.0, %v8086
    %8088 = vmatmul.f32.gmra.mxu0 %v7977
    %v8089 = vpop.f32.mrf.mxu0
    %v8090 = vadd.f32 0.0, %v8089
    %8091 = vmatmul.f32.gmra.mxu0 %v7978
    %v8092 = vpop.f32.mrf.mxu0
    %v8093 = vadd.f32 0.0, %v8092
    %8094 = vmatmul.f32.gmra.mxu0 %v7979
    %v8095 = vpop.f32.mrf.mxu0
    %v8096 = vadd.f32 0.0, %v8095
    %8097 = vmatmul.f32.gmra.mxu0 %v7980
    %v8098 = vpop.f32.mrf.mxu0
    %v8099 = vadd.f32 0.0, %v8098
    %8100 = vmatmul.f32.gmra.mxu0 %v7981
    %v8101 = vpop.f32.mrf.mxu0
    %v8102 = vadd.f32 0.0, %v8101
    %8103 = vmatmul.f32.gmra.mxu0 %v7982
    %v8104 = vpop.f32.mrf.mxu0
    %v8105 = vadd.f32 0.0, %v8104
    %8106 = vmatmul.f32.gmra.mxu0 %v7983
    %v8107 = vpop.f32.mrf.mxu0
    %v8108 = vadd.f32 0.0, %v8107
    %8109 = vmatmul.f32.gmra.mxu0 %v7984
    %v8110 = vpop.f32.mrf.mxu0
    %v8111 = vadd.f32 0.0, %v8110
    %8112 = vmatmul.f32.gmra.mxu0 %v7985
    %v8113 = vpop.f32.mrf.mxu0
    %v8114 = vadd.f32 0.0, %v8113
    %8115 = vmatmul.f32.gmra.mxu0 %v7986
    %v8116 = vpop.f32.mrf.mxu0
    %v8117 = vadd.f32 0.0, %v8116
    %8118 = vmatmul.f32.gmra.mxu0 %v7987
    %v8119 = vpop.f32.mrf.mxu0
    %v8120 = vadd.f32 0.0, %v8119
    %8121 = vmatmul.f32.gmra.mxu0 %v7988
    %v8122 = vpop.f32.mrf.mxu0
    %v8123 = vadd.f32 0.0, %v8122
    %8124 = vmatmul.f32.gmra.mxu0 %v7989
    %v8125 = vpop.f32.mrf.mxu0
    %v8126 = vadd.f32 0.0, %v8125
    %8127 = vmatmul.f32.gmra.mxu0 %v7990
    %v8128 = vpop.f32.mrf.mxu0
    %v8129 = vadd.f32 0.0, %v8128
    %8130 = vmatmul.f32.gmra.mxu0 %v7991
    %v8131 = vpop.f32.mrf.mxu0
    %v8132 = vadd.f32 0.0, %v8131
    %8133 = vmatmul.f32.gmra.mxu0 %v7992
    %v8134 = vpop.f32.mrf.mxu0
    %v8135 = vadd.f32 0.0, %v8134
    %8136 = vmatmul.f32.gmra.mxu0 %v7993
    %v8137 = vpop.f32.mrf.mxu0
    %v8138 = vadd.f32 0.0, %v8137
    %8139 = vmatmul.f32.gmra.mxu0 %v7994
    %v8140 = vpop.f32.mrf.mxu0
    %v8141 = vadd.f32 0.0, %v8140
    %8142 = vmatmul.f32.gmra.mxu0 %v7995
    %v8143 = vpop.f32.mrf.mxu0
    %v8144 = vadd.f32 0.0, %v8143
    %8145 = vmatmul.f32.gmra.mxu0 %v7996
    %v8146 = vpop.f32.mrf.mxu0
    %v8147 = vadd.f32 0.0, %v8146
    %8148 = vmatmul.f32.gmra.mxu0 %v7997
    %v8149 = vpop.f32.mrf.mxu0
    %v8150 = vadd.f32 0.0, %v8149
    %8151 = vmatmul.f32.gmra.mxu0 %v7998
    %v8152 = vpop.f32.mrf.mxu0
    %v8153 = vadd.f32 0.0, %v8152
    %8154 = vmatmul.f32.gmra.mxu0 %v7999
    %v8155 = vpop.f32.mrf.mxu0
    %v8156 = vadd.f32 0.0, %v8155
    %8157 = vmatmul.f32.gmra.mxu0 %v8000
    %v8158 = vpop.f32.mrf.mxu0
    %v8159 = vadd.f32 0.0, %v8158
    %8160 = vmatmul.f32.gmra.mxu0 %v8001
    %v8161 = vpop.f32.mrf.mxu0
    %v8162 = vadd.f32 0.0, %v8161
    %8163 = vmatmul.f32.gmra.mxu0 %v8002
    %v8164 = vpop.f32.mrf.mxu0
    %v8165 = vadd.f32 0.0, %v8164
    %8166 = vmatmul.f32.gmra.mxu0 %v8003
    %v8167 = vpop.f32.mrf.mxu0
    %v8168 = vadd.f32 0.0, %v8167
    %8169 = vmatmul.f32.gmra.mxu0 %v8004
    %v8170 = vpop.f32.mrf.mxu0
    %v8171 = vadd.f32 0.0, %v8170
    %8172 = vmatmul.f32.gmra.mxu0 %v8005
    %v8173 = vpop.f32.mrf.mxu0
    %v8174 = vadd.f32 0.0, %v8173
    %8175 = vmatmul.f32.gmra.mxu0 %v8006
    %v8176 = vpop.f32.mrf.mxu0
    %v8177 = vadd.f32 0.0, %v8176
    %8178 = vmatmul.f32.gmra.mxu0 %v8007
    %v8179 = vpop.f32.mrf.mxu0
    %v8180 = vadd.f32 0.0, %v8179
    %8181 = vmatmul.f32.gmra.mxu0 %v8008
    %v8182 = vpop.f32.mrf.mxu0
    %v8183 = vadd.f32 0.0, %v8182
    %8184 = vmatmul.f32.gmra.mxu0 %v8009
    %v8185 = vpop.f32.mrf.mxu0
    %v8186 = vadd.f32 0.0, %v8185
    %8187 = vmatmul.f32.gmra.mxu0 %v8010
    %v8188 = vpop.f32.mrf.mxu0
    %v8189 = vadd.f32 0.0, %v8188
    %8190 = vmatmul.f32.gmra.mxu0 %v8011
    %v8191 = vpop.f32.mrf.mxu0
    %v8192 = vadd.f32 0.0, %v8191
    %8193 = vmatmul.f32.gmra.mxu0 %v8012
    %v8194 = vpop.f32.mrf.mxu0
    %v8195 = vadd.f32 0.0, %v8194
    %8196 = vmatmul.f32.gmra.mxu0 %v8013
    %v8197 = vpop.f32.mrf.mxu0
    %v8198 = vadd.f32 0.0, %v8197
    %8199 = vmatmul.f32.gmra.mxu0 %v8014
    %v8200 = vpop.f32.mrf.mxu0
    %v8201 = vadd.f32 0.0, %v8200
    %8202 = vmatmul.f32.gmra.mxu0 %v8015
    %v8203 = vpop.f32.mrf.mxu0
    %v8204 = vadd.f32 0.0, %v8203
    %8205 = vmatmul.f32.gmra.mxu0 %v8016
    %v8206 = vpop.f32.mrf.mxu0
    %v8207 = vadd.f32 0.0, %v8206
    %8208 = vmatmul.f32.gmra.mxu0 %v8017
    %v8209 = vpop.f32.mrf.mxu0
    %v8210 = vadd.f32 0.0, %v8209
    %8211 = vmatmul.f32.gmra.mxu0 %v8018
    %v8212 = vpop.f32.mrf.mxu0
    %v8213 = vadd.f32 0.0, %v8212
    %8214 = vmatmul.f32.gmra.mxu0 %v8019
    %v8215 = vpop.f32.mrf.mxu0
    %v8216 = vadd.f32 0.0, %v8215
    %8217 = vmatmul.f32.gmra.mxu0 %v8020
    %v8218 = vpop.f32.mrf.mxu0
    %v8219 = vadd.f32 0.0, %v8218
    %8220 = vmatmul.f32.gmra.mxu0 %v8021
    %v8221 = vpop.f32.mrf.mxu0
    %v8222 = vadd.f32 0.0, %v8221
    %8223 = vmatmul.f32.gmra.mxu0 %v8022
    %v8224 = vpop.f32.mrf.mxu0
    %v8225 = vadd.f32 0.0, %v8224
    %8226 = vmatmul.f32.gmra.mxu0 %v8023
    %v8227 = vpop.f32.mrf.mxu0
    %v8228 = vadd.f32 0.0, %v8227
    %8229 = vmatmul.f32.gmra.mxu0 %v8024
    %v8230 = vpop.f32.mrf.mxu0
    %v8231 = vadd.f32 0.0, %v8230
    %8232 = vmatmul.f32.gmra.mxu0 %v8025
    %v8233 = vpop.f32.mrf.mxu0
    %v8234 = vadd.f32 0.0, %v8233
    %8235 = vmatmul.f32.gmra.mxu0 %v8026
    %v8236 = vpop.f32.mrf.mxu0
    %v8237 = vadd.f32 0.0, %v8236
    %8238 = vmatmul.f32.gmra.mxu0 %v8027
    %v8239 = vpop.f32.mrf.mxu0
    %v8240 = vadd.f32 0.0, %v8239
    %8241 = vmatmul.f32.gmra.mxu0 %v8028
    %v8242 = vpop.f32.mrf.mxu0
    %v8243 = vadd.f32 0.0, %v8242
    %8244 = vmatmul.f32.gmra.mxu0 %v8029
    %v8245 = vpop.f32.mrf.mxu0
    %v8246 = vadd.f32 0.0, %v8245
    %8247 = vmatmul.f32.gmra.mxu0 %v8030
    %v8248 = vpop.f32.mrf.mxu0
    %v8249 = vadd.f32 0.0, %v8248
    %8250 = vmatmul.f32.gmra.mxu0 %v8031
    %v8251 = vpop.f32.mrf.mxu0
    %v8252 = vadd.f32 0.0, %v8251
    %8253 = vmatmul.f32.gmra.mxu0 %v8032
    %v8254 = vpop.f32.mrf.mxu0
    %v8255 = vadd.f32 0.0, %v8254
    %8256 = vmatmul.f32.gmra.mxu0 %v8033
    %v8257 = vpop.f32.mrf.mxu0
    %v8258 = vadd.f32 0.0, %v8257
    %8259 = vdwg.mxu0
    %v8260 = vadd.f32 %v7779, %v8069
    %v8261 = vadd.f32 %v7782, %v8072
    %v8262 = vadd.f32 %v7785, %v8075
    %v8263 = vadd.f32 %v7788, %v8078
    %v8264 = vadd.f32 %v7791, %v8081
    %v8265 = vadd.f32 %v7794, %v8084
    %v8266 = vadd.f32 %v7797, %v8087
    %v8267 = vadd.f32 %v7800, %v8090
    %v8268 = vadd.f32 %v7803, %v8093
    %v8269 = vadd.f32 %v7806, %v8096
    %v8270 = vadd.f32 %v7809, %v8099
    %v8271 = vadd.f32 %v7812, %v8102
    %v8272 = vadd.f32 %v7815, %v8105
    %v8273 = vadd.f32 %v7818, %v8108
    %v8274 = vadd.f32 %v7821, %v8111
    %v8275 = vadd.f32 %v7824, %v8114
    %v8276 = vadd.f32 %v7827, %v8117
    %v8277 = vadd.f32 %v7830, %v8120
    %v8278 = vadd.f32 %v7833, %v8123
    %v8279 = vadd.f32 %v7836, %v8126
    %v8280 = vadd.f32 %v7839, %v8129
    %v8281 = vadd.f32 %v7842, %v8132
    %v8282 = vadd.f32 %v7845, %v8135
    %v8283 = vadd.f32 %v7848, %v8138
    %v8284 = vadd.f32 %v7851, %v8141
    %v8285 = vadd.f32 %v7854, %v8144
    %v8286 = vadd.f32 %v7857, %v8147
    %v8287 = vadd.f32 %v7860, %v8150
    %v8288 = vadd.f32 %v7863, %v8153
    %v8289 = vadd.f32 %v7866, %v8156
    %v8290 = vadd.f32 %v7869, %v8159
    %v8291 = vadd.f32 %v7872, %v8162
    %v8292 = vadd.f32 %v7875, %v8165
    %v8293 = vadd.f32 %v7878, %v8168
    %v8294 = vadd.f32 %v7881, %v8171
    %v8295 = vadd.f32 %v7884, %v8174
    %v8296 = vadd.f32 %v7887, %v8177
    %v8297 = vadd.f32 %v7890, %v8180
    %v8298 = vadd.f32 %v7893, %v8183
    %v8299 = vadd.f32 %v7896, %v8186
    %v8300 = vadd.f32 %v7899, %v8189
    %v8301 = vadd.f32 %v7902, %v8192
    %v8302 = vadd.f32 %v7905, %v8195
    %v8303 = vadd.f32 %v7908, %v8198
    %v8304 = vadd.f32 %v7911, %v8201
    %v8305 = vadd.f32 %v7914, %v8204
    %v8306 = vadd.f32 %v7917, %v8207
    %v8307 = vadd.f32 %v7920, %v8210
    %v8308 = vadd.f32 %v7923, %v8213
    %v8309 = vadd.f32 %v7926, %v8216
    %v8310 = vadd.f32 %v7929, %v8219
    %v8311 = vadd.f32 %v7932, %v8222
    %v8312 = vadd.f32 %v7935, %v8225
    %v8313 = vadd.f32 %v7938, %v8228
    %v8314 = vadd.f32 %v7941, %v8231
    %v8315 = vadd.f32 %v7944, %v8234
    %v8316 = vadd.f32 %v7947, %v8237
    %v8317 = vadd.f32 %v7950, %v8240
    %v8318 = vadd.f32 %v7953, %v8243
    %v8319 = vadd.f32 %v7956, %v8246
    %v8320 = vadd.f32 %v7959, %v8249
    %v8321 = vadd.f32 %v7962, %v8252
    %v8322 = vadd.f32 %v7965, %v8255
    %v8323 = vadd.f32 %v7968, %v8258
    %v8324 = vld [vmem:[%s230] sm:$0xff]
    %v8325 = vld [vmem:[%s230 + $0x8] sm:$0xff]
    %v8326 = vld [vmem:[%s230 + $0x18] sm:$0xff]
    %v8327 = vld [vmem:[%s230 + $0x20] sm:$0xff]
    %v8328 = vld [vmem:[%s230 + $0x30] sm:$0xff]
    %v8329 = vld [vmem:[%s230 + $0x38] sm:$0xff]
    %v8330 = vld [vmem:[%s230 + $0x48] sm:$0xff]
    %v8331 = vld [vmem:[%s230 + $0x50] sm:$0xff]
    %v8332 = vld [vmem:[%s230 + $0x60] sm:$0xff]
    %v8333 = vld [vmem:[%s230 + $0x68] sm:$0xff]
    %v8334 = vld [vmem:[%s230 + $0x78] sm:$0xff]
    %v8335 = vld [vmem:[%s230 + $0x80] sm:$0xff]
    %v8336 = vld [vmem:[%s230 + $0x90] sm:$0xff]
    %v8337 = vld [vmem:[%s230 + $0x98] sm:$0xff]
    %v8338 = vld [vmem:[%s230 + $0xa8] sm:$0xff]
    %v8339 = vld [vmem:[%s230 + $0xb0] sm:$0xff]
    %v8340 = vld [vmem:[%s230 + $0xc0] sm:$0xff]
    %v8341 = vld [vmem:[%s230 + $0xc8] sm:$0xff]
    %v8342 = vld [vmem:[%s230 + $0xd8] sm:$0xff]
    %v8343 = vld [vmem:[%s230 + $0xe0] sm:$0xff]
    %v8344 = vld [vmem:[%s230 + $0xf0] sm:$0xff]
    %v8345 = vld [vmem:[%s230 + $0xf8] sm:$0xff]
    %v8346 = vld [vmem:[%s230 + $0x108] sm:$0xff]
    %v8347 = vld [vmem:[%s230 + $0x110] sm:$0xff]
    %v8348 = vld [vmem:[%s230 + $0x120] sm:$0xff]
    %v8349 = vld [vmem:[%s230 + $0x128] sm:$0xff]
    %v8350 = vld [vmem:[%s230 + $0x138] sm:$0xff]
    %v8351 = vld [vmem:[%s230 + $0x140] sm:$0xff]
    %v8352 = vld [vmem:[%s230 + $0x150] sm:$0xff]
    %v8353 = vld [vmem:[%s230 + $0x158] sm:$0xff]
    %v8354 = vld [vmem:[%s230 + $0x168] sm:$0xff]
    %v8355 = vld [vmem:[%s230 + $0x170] sm:$0xff]
    %v8356 = vld [vmem:[%s230 + $0x1b0] sm:$0xff]
    %v8357 = vld [vmem:[%s230 + $0x1b8] sm:$0xff]
    %v8358 = vld [vmem:[%s230 + $0x1c8] sm:$0xff]
    %v8359 = vld [vmem:[%s230 + $0x1d0] sm:$0xff]
    %v8360 = vld [vmem:[%s230 + $0x1e0] sm:$0xff]
    %v8361 = vld [vmem:[%s230 + $0x1e8] sm:$0xff]
    %v8362 = vld [vmem:[%s230 + $0x1f8] sm:$0xff]
    %v8363 = vld [vmem:[%s230 + $0x200] sm:$0xff]
    %v8364 = vld [vmem:[%s230 + $0x210] sm:$0xff]
    %v8365 = vld [vmem:[%s230 + $0x218] sm:$0xff]
    %v8366 = vld [vmem:[%s230 + $0x228] sm:$0xff]
    %v8367 = vld [vmem:[%s230 + $0x230] sm:$0xff]
    %v8368 = vld [vmem:[%s230 + $0x240] sm:$0xff]
    %v8369 = vld [vmem:[%s230 + $0x248] sm:$0xff]
    %v8370 = vld [vmem:[%s230 + $0x258] sm:$0xff]
    %v8371 = vld [vmem:[%s230 + $0x260] sm:$0xff]
    %v8372 = vld [vmem:[%s230 + $0x270] sm:$0xff]
    %v8373 = vld [vmem:[%s230 + $0x278] sm:$0xff]
    %v8374 = vld [vmem:[%s230 + $0x288] sm:$0xff]
    %v8375 = vld [vmem:[%s230 + $0x290] sm:$0xff]
    %v8376 = vld [vmem:[%s230 + $0x2a0] sm:$0xff]
    %v8377 = vld [vmem:[%s230 + $0x2a8] sm:$0xff]
    %v8378 = vld [vmem:[%s230 + $0x2b8] sm:$0xff]
    %v8379 = vld [vmem:[%s230 + $0x2c0] sm:$0xff]
    %v8380 = vld [vmem:[%s230 + $0x2d0] sm:$0xff]
    %v8381 = vld [vmem:[%s230 + $0x2d8] sm:$0xff]
    %v8382 = vld [vmem:[%s230 + $0x2e8] sm:$0xff]
    %v8383 = vld [vmem:[%s230 + $0x2f0] sm:$0xff]
    %v8384 = vld [vmem:[%s230 + $0x300] sm:$0xff]
    %v8385 = vld [vmem:[%s230 + $0x308] sm:$0xff]
    %v8386 = vld [vmem:[%s230 + $0x318] sm:$0xff]
    %v8387 = vld [vmem:[%s230 + $0x320] sm:$0xff]
    %s8388 = scalar_lea.vmem [#allocation6], 2688
    %v8389 = vld [vmem:[%s8388] sm:$0xff]
    %v8390 = vld [vmem:[%s8388 + $0x8] sm:$0xff]
    %v8391 = vld [vmem:[%s8388 + $0x10] sm:$0xff]
    %v8392 = vld [vmem:[%s8388 + $0x18] sm:$0xff]
    %v8393 = vld [vmem:[%s8388 + $0x20] sm:$0xff]
    %v8394 = vld [vmem:[%s8388 + $0x28] sm:$0xff]
    %v8395 = vld [vmem:[%s8388 + $0x30] sm:$0xff]
    %v8396 = vld [vmem:[%s8388 + $0x38] sm:$0xff]
    %v8397 = vld [vmem:[%s8388 + $0x40] sm:$0xff]
    %v8398 = vld [vmem:[%s8388 + $0x48] sm:$0xff]
    %v8399 = vld [vmem:[%s8388 + $0x50] sm:$0xff]
    %v8400 = vld [vmem:[%s8388 + $0x58] sm:$0xff]
    %v8401 = vld [vmem:[%s8388 + $0x60] sm:$0xff]
    %v8402 = vld [vmem:[%s8388 + $0x68] sm:$0xff]
    %v8403 = vld [vmem:[%s8388 + $0x70] sm:$0xff]
    %v8404 = vld [vmem:[%s8388 + $0x78] sm:$0xff]
    %8405 = vmatpush.msra.mxu0 %v8404
    %8406 = vmatpush.msra.mxu0 %v8403
    %8407 = vmatpush.msra.mxu0 %v8402
    %8408 = vmatpush.msra.mxu0 %v8401
    %8409 = vmatpush.msra.mxu0 %v8400
    %8410 = vmatpush.msra.mxu0 %v8399
    %8411 = vmatpush.msra.mxu0 %v8398
    %8412 = vmatpush.msra.mxu0 %v8397
    %8413 = vmatpush.msra.mxu0 %v8396
    %8414 = vmatpush.msra.mxu0 %v8395
    %8415 = vmatpush.msra.mxu0 %v8394
    %8416 = vmatpush.msra.mxu0 %v8393
    %8417 = vmatpush.msra.mxu0 %v8392
    %8418 = vmatpush.msra.mxu0 %v8391
    %8419 = vmatpush.msra.mxu0 %v8390
    %8420 = vmatpush.msra.mxu0 %v8389
    %8421 = vmatmul.f32.gmra.mxu0 %v8324
    %v8422 = vpop.f32.mrf.mxu0
    %v8423 = vadd.f32 0.0, %v8422
    %8424 = vmatmul.f32.gmra.mxu0 %v8325
    %v8425 = vpop.f32.mrf.mxu0
    %v8426 = vadd.f32 0.0, %v8425
    %8427 = vmatmul.f32.gmra.mxu0 %v8326
    %v8428 = vpop.f32.mrf.mxu0
    %v8429 = vadd.f32 0.0, %v8428
    %8430 = vmatmul.f32.gmra.mxu0 %v8327
    %v8431 = vpop.f32.mrf.mxu0
    %v8432 = vadd.f32 0.0, %v8431
    %8433 = vmatmul.f32.gmra.mxu0 %v8328
    %v8434 = vpop.f32.mrf.mxu0
    %v8435 = vadd.f32 0.0, %v8434
    %8436 = vmatmul.f32.gmra.mxu0 %v8329
    %v8437 = vpop.f32.mrf.mxu0
    %v8438 = vadd.f32 0.0, %v8437
    %8439 = vmatmul.f32.gmra.mxu0 %v8330
    %v8440 = vpop.f32.mrf.mxu0
    %v8441 = vadd.f32 0.0, %v8440
    %8442 = vmatmul.f32.gmra.mxu0 %v8331
    %v8443 = vpop.f32.mrf.mxu0
    %v8444 = vadd.f32 0.0, %v8443
    %8445 = vmatmul.f32.gmra.mxu0 %v8332
    %v8446 = vpop.f32.mrf.mxu0
    %v8447 = vadd.f32 0.0, %v8446
    %8448 = vmatmul.f32.gmra.mxu0 %v8333
    %v8449 = vpop.f32.mrf.mxu0
    %v8450 = vadd.f32 0.0, %v8449
    %8451 = vmatmul.f32.gmra.mxu0 %v8334
    %v8452 = vpop.f32.mrf.mxu0
    %v8453 = vadd.f32 0.0, %v8452
    %8454 = vmatmul.f32.gmra.mxu0 %v8335
    %v8455 = vpop.f32.mrf.mxu0
    %v8456 = vadd.f32 0.0, %v8455
    %8457 = vmatmul.f32.gmra.mxu0 %v8336
    %v8458 = vpop.f32.mrf.mxu0
    %v8459 = vadd.f32 0.0, %v8458
    %8460 = vmatmul.f32.gmra.mxu0 %v8337
    %v8461 = vpop.f32.mrf.mxu0
    %v8462 = vadd.f32 0.0, %v8461
    %8463 = vmatmul.f32.gmra.mxu0 %v8338
    %v8464 = vpop.f32.mrf.mxu0
    %v8465 = vadd.f32 0.0, %v8464
    %8466 = vmatmul.f32.gmra.mxu0 %v8339
    %v8467 = vpop.f32.mrf.mxu0
    %v8468 = vadd.f32 0.0, %v8467
    %8469 = vmatmul.f32.gmra.mxu0 %v8340
    %v8470 = vpop.f32.mrf.mxu0
    %v8471 = vadd.f32 0.0, %v8470
    %8472 = vmatmul.f32.gmra.mxu0 %v8341
    %v8473 = vpop.f32.mrf.mxu0
    %v8474 = vadd.f32 0.0, %v8473
    %8475 = vmatmul.f32.gmra.mxu0 %v8342
    %v8476 = vpop.f32.mrf.mxu0
    %v8477 = vadd.f32 0.0, %v8476
    %8478 = vmatmul.f32.gmra.mxu0 %v8343
    %v8479 = vpop.f32.mrf.mxu0
    %v8480 = vadd.f32 0.0, %v8479
    %8481 = vmatmul.f32.gmra.mxu0 %v8344
    %v8482 = vpop.f32.mrf.mxu0
    %v8483 = vadd.f32 0.0, %v8482
    %8484 = vmatmul.f32.gmra.mxu0 %v8345
    %v8485 = vpop.f32.mrf.mxu0
    %v8486 = vadd.f32 0.0, %v8485
    %8487 = vmatmul.f32.gmra.mxu0 %v8346
    %v8488 = vpop.f32.mrf.mxu0
    %v8489 = vadd.f32 0.0, %v8488
    %8490 = vmatmul.f32.gmra.mxu0 %v8347
    %v8491 = vpop.f32.mrf.mxu0
    %v8492 = vadd.f32 0.0, %v8491
    %8493 = vmatmul.f32.gmra.mxu0 %v8348
    %v8494 = vpop.f32.mrf.mxu0
    %v8495 = vadd.f32 0.0, %v8494
    %8496 = vmatmul.f32.gmra.mxu0 %v8349
    %v8497 = vpop.f32.mrf.mxu0
    %v8498 = vadd.f32 0.0, %v8497
    %8499 = vmatmul.f32.gmra.mxu0 %v8350
    %v8500 = vpop.f32.mrf.mxu0
    %v8501 = vadd.f32 0.0, %v8500
    %8502 = vmatmul.f32.gmra.mxu0 %v8351
    %v8503 = vpop.f32.mrf.mxu0
    %v8504 = vadd.f32 0.0, %v8503
    %8505 = vmatmul.f32.gmra.mxu0 %v8352
    %v8506 = vpop.f32.mrf.mxu0
    %v8507 = vadd.f32 0.0, %v8506
    %8508 = vmatmul.f32.gmra.mxu0 %v8353
    %v8509 = vpop.f32.mrf.mxu0
    %v8510 = vadd.f32 0.0, %v8509
    %8511 = vmatmul.f32.gmra.mxu0 %v8354
    %v8512 = vpop.f32.mrf.mxu0
    %v8513 = vadd.f32 0.0, %v8512
    %8514 = vmatmul.f32.gmra.mxu0 %v8355
    %v8515 = vpop.f32.mrf.mxu0
    %v8516 = vadd.f32 0.0, %v8515
    %8517 = vmatmul.f32.gmra.mxu0 %v8356
    %v8518 = vpop.f32.mrf.mxu0
    %v8519 = vadd.f32 0.0, %v8518
    %8520 = vmatmul.f32.gmra.mxu0 %v8357
    %v8521 = vpop.f32.mrf.mxu0
    %v8522 = vadd.f32 0.0, %v8521
    %8523 = vmatmul.f32.gmra.mxu0 %v8358
    %v8524 = vpop.f32.mrf.mxu0
    %v8525 = vadd.f32 0.0, %v8524
    %8526 = vmatmul.f32.gmra.mxu0 %v8359
    %v8527 = vpop.f32.mrf.mxu0
    %v8528 = vadd.f32 0.0, %v8527
    %8529 = vmatmul.f32.gmra.mxu0 %v8360
    %v8530 = vpop.f32.mrf.mxu0
    %v8531 = vadd.f32 0.0, %v8530
    %8532 = vmatmul.f32.gmra.mxu0 %v8361
    %v8533 = vpop.f32.mrf.mxu0
    %v8534 = vadd.f32 0.0, %v8533
    %8535 = vmatmul.f32.gmra.mxu0 %v8362
    %v8536 = vpop.f32.mrf.mxu0
    %v8537 = vadd.f32 0.0, %v8536
    %8538 = vmatmul.f32.gmra.mxu0 %v8363
    %v8539 = vpop.f32.mrf.mxu0
    %v8540 = vadd.f32 0.0, %v8539
    %8541 = vmatmul.f32.gmra.mxu0 %v8364
    %v8542 = vpop.f32.mrf.mxu0
    %v8543 = vadd.f32 0.0, %v8542
    %8544 = vmatmul.f32.gmra.mxu0 %v8365
    %v8545 = vpop.f32.mrf.mxu0
    %v8546 = vadd.f32 0.0, %v8545
    %8547 = vmatmul.f32.gmra.mxu0 %v8366
    %v8548 = vpop.f32.mrf.mxu0
    %v8549 = vadd.f32 0.0, %v8548
    %8550 = vmatmul.f32.gmra.mxu0 %v8367
    %v8551 = vpop.f32.mrf.mxu0
    %v8552 = vadd.f32 0.0, %v8551
    %8553 = vmatmul.f32.gmra.mxu0 %v8368
    %v8554 = vpop.f32.mrf.mxu0
    %v8555 = vadd.f32 0.0, %v8554
    %8556 = vmatmul.f32.gmra.mxu0 %v8369
    %v8557 = vpop.f32.mrf.mxu0
    %v8558 = vadd.f32 0.0, %v8557
    %8559 = vmatmul.f32.gmra.mxu0 %v8370
    %v8560 = vpop.f32.mrf.mxu0
    %v8561 = vadd.f32 0.0, %v8560
    %8562 = vmatmul.f32.gmra.mxu0 %v8371
    %v8563 = vpop.f32.mrf.mxu0
    %v8564 = vadd.f32 0.0, %v8563
    %8565 = vmatmul.f32.gmra.mxu0 %v8372
    %v8566 = vpop.f32.mrf.mxu0
    %v8567 = vadd.f32 0.0, %v8566
    %8568 = vmatmul.f32.gmra.mxu0 %v8373
    %v8569 = vpop.f32.mrf.mxu0
    %v8570 = vadd.f32 0.0, %v8569
    %8571 = vmatmul.f32.gmra.mxu0 %v8374
    %v8572 = vpop.f32.mrf.mxu0
    %v8573 = vadd.f32 0.0, %v8572
    %8574 = vmatmul.f32.gmra.mxu0 %v8375
    %v8575 = vpop.f32.mrf.mxu0
    %v8576 = vadd.f32 0.0, %v8575
    %8577 = vmatmul.f32.gmra.mxu0 %v8376
    %v8578 = vpop.f32.mrf.mxu0
    %v8579 = vadd.f32 0.0, %v8578
    %8580 = vmatmul.f32.gmra.mxu0 %v8377
    %v8581 = vpop.f32.mrf.mxu0
    %v8582 = vadd.f32 0.0, %v8581
    %8583 = vmatmul.f32.gmra.mxu0 %v8378
    %v8584 = vpop.f32.mrf.mxu0
    %v8585 = vadd.f32 0.0, %v8584
    %8586 = vmatmul.f32.gmra.mxu0 %v8379
    %v8587 = vpop.f32.mrf.mxu0
    %v8588 = vadd.f32 0.0, %v8587
    %8589 = vmatmul.f32.gmra.mxu0 %v8380
    %v8590 = vpop.f32.mrf.mxu0
    %v8591 = vadd.f32 0.0, %v8590
    %8592 = vmatmul.f32.gmra.mxu0 %v8381
    %v8593 = vpop.f32.mrf.mxu0
    %v8594 = vadd.f32 0.0, %v8593
    %8595 = vmatmul.f32.gmra.mxu0 %v8382
    %v8596 = vpop.f32.mrf.mxu0
    %v8597 = vadd.f32 0.0, %v8596
    %8598 = vmatmul.f32.gmra.mxu0 %v8383
    %v8599 = vpop.f32.mrf.mxu0
    %v8600 = vadd.f32 0.0, %v8599
    %8601 = vmatmul.f32.gmra.mxu0 %v8384
    %v8602 = vpop.f32.mrf.mxu0
    %v8603 = vadd.f32 0.0, %v8602
    %8604 = vmatmul.f32.gmra.mxu0 %v8385
    %v8605 = vpop.f32.mrf.mxu0
    %v8606 = vadd.f32 0.0, %v8605
    %8607 = vmatmul.f32.gmra.mxu0 %v8386
    %v8608 = vpop.f32.mrf.mxu0
    %v8609 = vadd.f32 0.0, %v8608
    %8610 = vmatmul.f32.gmra.mxu0 %v8387
    %v8611 = vpop.f32.mrf.mxu0
    %v8612 = vadd.f32 0.0, %v8611
    %8613 = vdwg.mxu0
    %v8614 = vadd.f32 %v8260, %v8423
    %v8615 = vadd.f32 %v8261, %v8426
    %v8616 = vadd.f32 %v8262, %v8429
    %v8617 = vadd.f32 %v8263, %v8432
    %v8618 = vadd.f32 %v8264, %v8435
    %v8619 = vadd.f32 %v8265, %v8438
    %v8620 = vadd.f32 %v8266, %v8441
    %v8621 = vadd.f32 %v8267, %v8444
    %v8622 = vadd.f32 %v8268, %v8447
    %v8623 = vadd.f32 %v8269, %v8450
    %v8624 = vadd.f32 %v8270, %v8453
    %v8625 = vadd.f32 %v8271, %v8456
    %v8626 = vadd.f32 %v8272, %v8459
    %v8627 = vadd.f32 %v8273, %v8462
    %v8628 = vadd.f32 %v8274, %v8465
    %v8629 = vadd.f32 %v8275, %v8468
    %v8630 = vadd.f32 %v8276, %v8471
    %v8631 = vadd.f32 %v8277, %v8474
    %v8632 = vadd.f32 %v8278, %v8477
    %v8633 = vadd.f32 %v8279, %v8480
    %v8634 = vadd.f32 %v8280, %v8483
    %v8635 = vadd.f32 %v8281, %v8486
    %v8636 = vadd.f32 %v8282, %v8489
    %v8637 = vadd.f32 %v8283, %v8492
    %v8638 = vadd.f32 %v8284, %v8495
    %v8639 = vadd.f32 %v8285, %v8498
    %v8640 = vadd.f32 %v8286, %v8501
    %v8641 = vadd.f32 %v8287, %v8504
    %v8642 = vadd.f32 %v8288, %v8507
    %v8643 = vadd.f32 %v8289, %v8510
    %v8644 = vadd.f32 %v8290, %v8513
    %v8645 = vadd.f32 %v8291, %v8516
    %v8646 = vadd.f32 %v8292, %v8519
    %v8647 = vadd.f32 %v8293, %v8522
    %v8648 = vadd.f32 %v8294, %v8525
    %v8649 = vadd.f32 %v8295, %v8528
    %v8650 = vadd.f32 %v8296, %v8531
    %v8651 = vadd.f32 %v8297, %v8534
    %v8652 = vadd.f32 %v8298, %v8537
    %v8653 = vadd.f32 %v8299, %v8540
    %v8654 = vadd.f32 %v8300, %v8543
    %v8655 = vadd.f32 %v8301, %v8546
    %v8656 = vadd.f32 %v8302, %v8549
    %v8657 = vadd.f32 %v8303, %v8552
    %v8658 = vadd.f32 %v8304, %v8555
    %v8659 = vadd.f32 %v8305, %v8558
    %v8660 = vadd.f32 %v8306, %v8561
    %v8661 = vadd.f32 %v8307, %v8564
    %v8662 = vadd.f32 %v8308, %v8567
    %v8663 = vadd.f32 %v8309, %v8570
    %v8664 = vadd.f32 %v8310, %v8573
    %v8665 = vadd.f32 %v8311, %v8576
    %v8666 = vadd.f32 %v8312, %v8579
    %v8667 = vadd.f32 %v8313, %v8582
    %v8668 = vadd.f32 %v8314, %v8585
    %v8669 = vadd.f32 %v8315, %v8588
    %v8670 = vadd.f32 %v8316, %v8591
    %v8671 = vadd.f32 %v8317, %v8594
    %v8672 = vadd.f32 %v8318, %v8597
    %v8673 = vadd.f32 %v8319, %v8600
    %v8674 = vadd.f32 %v8320, %v8603
    %v8675 = vadd.f32 %v8321, %v8606
    %v8676 = vadd.f32 %v8322, %v8609
    %v8677 = vadd.f32 %v8323, %v8612
    %v8678 = vld [vmem:[%s230 + $0x1] sm:$0xff]
    %v8679 = vld [vmem:[%s230 + $0x9] sm:$0xff]
    %v8680 = vld [vmem:[%s230 + $0x19] sm:$0xff]
    %v8681 = vld [vmem:[%s230 + $0x21] sm:$0xff]
    %v8682 = vld [vmem:[%s230 + $0x31] sm:$0xff]
    %v8683 = vld [vmem:[%s230 + $0x39] sm:$0xff]
    %v8684 = vld [vmem:[%s230 + $0x49] sm:$0xff]
    %v8685 = vld [vmem:[%s230 + $0x51] sm:$0xff]
    %v8686 = vld [vmem:[%s230 + $0x61] sm:$0xff]
    %v8687 = vld [vmem:[%s230 + $0x69] sm:$0xff]
    %v8688 = vld [vmem:[%s230 + $0x79] sm:$0xff]
    %v8689 = vld [vmem:[%s230 + $0x81] sm:$0xff]
    %v8690 = vld [vmem:[%s230 + $0x91] sm:$0xff]
    %v8691 = vld [vmem:[%s230 + $0x99] sm:$0xff]
    %v8692 = vld [vmem:[%s230 + $0xa9] sm:$0xff]
    %v8693 = vld [vmem:[%s230 + $0xb1] sm:$0xff]
    %v8694 = vld [vmem:[%s230 + $0xc1] sm:$0xff]
    %v8695 = vld [vmem:[%s230 + $0xc9] sm:$0xff]
    %v8696 = vld [vmem:[%s230 + $0xd9] sm:$0xff]
    %v8697 = vld [vmem:[%s230 + $0xe1] sm:$0xff]
    %v8698 = vld [vmem:[%s230 + $0xf1] sm:$0xff]
    %v8699 = vld [vmem:[%s230 + $0xf9] sm:$0xff]
    %v8700 = vld [vmem:[%s230 + $0x109] sm:$0xff]
    %v8701 = vld [vmem:[%s230 + $0x111] sm:$0xff]
    %v8702 = vld [vmem:[%s230 + $0x121] sm:$0xff]
    %v8703 = vld [vmem:[%s230 + $0x129] sm:$0xff]
    %v8704 = vld [vmem:[%s230 + $0x139] sm:$0xff]
    %v8705 = vld [vmem:[%s230 + $0x141] sm:$0xff]
    %v8706 = vld [vmem:[%s230 + $0x151] sm:$0xff]
    %v8707 = vld [vmem:[%s230 + $0x159] sm:$0xff]
    %v8708 = vld [vmem:[%s230 + $0x169] sm:$0xff]
    %v8709 = vld [vmem:[%s230 + $0x171] sm:$0xff]
    %v8710 = vld [vmem:[%s230 + $0x1b1] sm:$0xff]
    %v8711 = vld [vmem:[%s230 + $0x1b9] sm:$0xff]
    %v8712 = vld [vmem:[%s230 + $0x1c9] sm:$0xff]
    %v8713 = vld [vmem:[%s230 + $0x1d1] sm:$0xff]
    %v8714 = vld [vmem:[%s230 + $0x1e1] sm:$0xff]
    %v8715 = vld [vmem:[%s230 + $0x1e9] sm:$0xff]
    %v8716 = vld [vmem:[%s230 + $0x1f9] sm:$0xff]
    %v8717 = vld [vmem:[%s230 + $0x201] sm:$0xff]
    %v8718 = vld [vmem:[%s230 + $0x211] sm:$0xff]
    %v8719 = vld [vmem:[%s230 + $0x219] sm:$0xff]
    %v8720 = vld [vmem:[%s230 + $0x229] sm:$0xff]
    %v8721 = vld [vmem:[%s230 + $0x231] sm:$0xff]
    %v8722 = vld [vmem:[%s230 + $0x241] sm:$0xff]
    %v8723 = vld [vmem:[%s230 + $0x249] sm:$0xff]
    %v8724 = vld [vmem:[%s230 + $0x259] sm:$0xff]
    %v8725 = vld [vmem:[%s230 + $0x261] sm:$0xff]
    %v8726 = vld [vmem:[%s230 + $0x271] sm:$0xff]
    %v8727 = vld [vmem:[%s230 + $0x279] sm:$0xff]
    %v8728 = vld [vmem:[%s230 + $0x289] sm:$0xff]
    %v8729 = vld [vmem:[%s230 + $0x291] sm:$0xff]
    %v8730 = vld [vmem:[%s230 + $0x2a1] sm:$0xff]
    %v8731 = vld [vmem:[%s230 + $0x2a9] sm:$0xff]
    %v8732 = vld [vmem:[%s230 + $0x2b9] sm:$0xff]
    %v8733 = vld [vmem:[%s230 + $0x2c1] sm:$0xff]
    %v8734 = vld [vmem:[%s230 + $0x2d1] sm:$0xff]
    %v8735 = vld [vmem:[%s230 + $0x2d9] sm:$0xff]
    %v8736 = vld [vmem:[%s230 + $0x2e9] sm:$0xff]
    %v8737 = vld [vmem:[%s230 + $0x2f1] sm:$0xff]
    %v8738 = vld [vmem:[%s230 + $0x301] sm:$0xff]
    %v8739 = vld [vmem:[%s230 + $0x309] sm:$0xff]
    %v8740 = vld [vmem:[%s230 + $0x319] sm:$0xff]
    %v8741 = vld [vmem:[%s230 + $0x321] sm:$0xff]
    %s8742 = scalar_lea.vmem [#allocation6], 2816
    %v8743 = vld [vmem:[%s8742] sm:$0xff]
    %v8744 = vld [vmem:[%s8742 + $0x8] sm:$0xff]
    %v8745 = vld [vmem:[%s8742 + $0x10] sm:$0xff]
    %v8746 = vld [vmem:[%s8742 + $0x18] sm:$0xff]
    %v8747 = vld [vmem:[%s8742 + $0x20] sm:$0xff]
    %v8748 = vld [vmem:[%s8742 + $0x28] sm:$0xff]
    %v8749 = vld [vmem:[%s8742 + $0x30] sm:$0xff]
    %v8750 = vld [vmem:[%s8742 + $0x38] sm:$0xff]
    %v8751 = vld [vmem:[%s8742 + $0x40] sm:$0xff]
    %v8752 = vld [vmem:[%s8742 + $0x48] sm:$0xff]
    %v8753 = vld [vmem:[%s8742 + $0x50] sm:$0xff]
    %v8754 = vld [vmem:[%s8742 + $0x58] sm:$0xff]
    %v8755 = vld [vmem:[%s8742 + $0x60] sm:$0xff]
    %v8756 = vld [vmem:[%s8742 + $0x68] sm:$0xff]
    %v8757 = vld [vmem:[%s8742 + $0x70] sm:$0xff]
    %v8758 = vld [vmem:[%s8742 + $0x78] sm:$0xff]
    %8759 = vmatpush.msra.mxu0 %v8758
    %8760 = vmatpush.msra.mxu0 %v8757
    %8761 = vmatpush.msra.mxu0 %v8756
    %8762 = vmatpush.msra.mxu0 %v8755
    %8763 = vmatpush.msra.mxu0 %v8754
    %8764 = vmatpush.msra.mxu0 %v8753
    %8765 = vmatpush.msra.mxu0 %v8752
    %8766 = vmatpush.msra.mxu0 %v8751
    %8767 = vmatpush.msra.mxu0 %v8750
    %8768 = vmatpush.msra.mxu0 %v8749
    %8769 = vmatpush.msra.mxu0 %v8748
    %8770 = vmatpush.msra.mxu0 %v8747
    %8771 = vmatpush.msra.mxu0 %v8746
    %8772 = vmatpush.msra.mxu0 %v8745
    %8773 = vmatpush.msra.mxu0 %v8744
    %8774 = vmatpush.msra.mxu0 %v8743
    %8775 = vmatmul.f32.gmra.mxu0 %v8678
    %v8776 = vpop.f32.mrf.mxu0
    %v8777 = vadd.f32 0.0, %v8776
    %8778 = vmatmul.f32.gmra.mxu0 %v8679
    %v8779 = vpop.f32.mrf.mxu0
    %v8780 = vadd.f32 0.0, %v8779
    %8781 = vmatmul.f32.gmra.mxu0 %v8680
    %v8782 = vpop.f32.mrf.mxu0
    %v8783 = vadd.f32 0.0, %v8782
    %8784 = vmatmul.f32.gmra.mxu0 %v8681
    %v8785 = vpop.f32.mrf.mxu0
    %v8786 = vadd.f32 0.0, %v8785
    %8787 = vmatmul.f32.gmra.mxu0 %v8682
    %v8788 = vpop.f32.mrf.mxu0
    %v8789 = vadd.f32 0.0, %v8788
    %8790 = vmatmul.f32.gmra.mxu0 %v8683
    %v8791 = vpop.f32.mrf.mxu0
    %v8792 = vadd.f32 0.0, %v8791
    %8793 = vmatmul.f32.gmra.mxu0 %v8684
    %v8794 = vpop.f32.mrf.mxu0
    %v8795 = vadd.f32 0.0, %v8794
    %8796 = vmatmul.f32.gmra.mxu0 %v8685
    %v8797 = vpop.f32.mrf.mxu0
    %v8798 = vadd.f32 0.0, %v8797
    %8799 = vmatmul.f32.gmra.mxu0 %v8686
    %v8800 = vpop.f32.mrf.mxu0
    %v8801 = vadd.f32 0.0, %v8800
    %8802 = vmatmul.f32.gmra.mxu0 %v8687
    %v8803 = vpop.f32.mrf.mxu0
    %v8804 = vadd.f32 0.0, %v8803
    %8805 = vmatmul.f32.gmra.mxu0 %v8688
    %v8806 = vpop.f32.mrf.mxu0
    %v8807 = vadd.f32 0.0, %v8806
    %8808 = vmatmul.f32.gmra.mxu0 %v8689
    %v8809 = vpop.f32.mrf.mxu0
    %v8810 = vadd.f32 0.0, %v8809
    %8811 = vmatmul.f32.gmra.mxu0 %v8690
    %v8812 = vpop.f32.mrf.mxu0
    %v8813 = vadd.f32 0.0, %v8812
    %8814 = vmatmul.f32.gmra.mxu0 %v8691
    %v8815 = vpop.f32.mrf.mxu0
    %v8816 = vadd.f32 0.0, %v8815
    %8817 = vmatmul.f32.gmra.mxu0 %v8692
    %v8818 = vpop.f32.mrf.mxu0
    %v8819 = vadd.f32 0.0, %v8818
    %8820 = vmatmul.f32.gmra.mxu0 %v8693
    %v8821 = vpop.f32.mrf.mxu0
    %v8822 = vadd.f32 0.0, %v8821
    %8823 = vmatmul.f32.gmra.mxu0 %v8694
    %v8824 = vpop.f32.mrf.mxu0
    %v8825 = vadd.f32 0.0, %v8824
    %8826 = vmatmul.f32.gmra.mxu0 %v8695
    %v8827 = vpop.f32.mrf.mxu0
    %v8828 = vadd.f32 0.0, %v8827
    %8829 = vmatmul.f32.gmra.mxu0 %v8696
    %v8830 = vpop.f32.mrf.mxu0
    %v8831 = vadd.f32 0.0, %v8830
    %8832 = vmatmul.f32.gmra.mxu0 %v8697
    %v8833 = vpop.f32.mrf.mxu0
    %v8834 = vadd.f32 0.0, %v8833
    %8835 = vmatmul.f32.gmra.mxu0 %v8698
    %v8836 = vpop.f32.mrf.mxu0
    %v8837 = vadd.f32 0.0, %v8836
    %8838 = vmatmul.f32.gmra.mxu0 %v8699
    %v8839 = vpop.f32.mrf.mxu0
    %v8840 = vadd.f32 0.0, %v8839
    %8841 = vmatmul.f32.gmra.mxu0 %v8700
    %v8842 = vpop.f32.mrf.mxu0
    %v8843 = vadd.f32 0.0, %v8842
    %8844 = vmatmul.f32.gmra.mxu0 %v8701
    %v8845 = vpop.f32.mrf.mxu0
    %v8846 = vadd.f32 0.0, %v8845
    %8847 = vmatmul.f32.gmra.mxu0 %v8702
    %v8848 = vpop.f32.mrf.mxu0
    %v8849 = vadd.f32 0.0, %v8848
    %8850 = vmatmul.f32.gmra.mxu0 %v8703
    %v8851 = vpop.f32.mrf.mxu0
    %v8852 = vadd.f32 0.0, %v8851
    %8853 = vmatmul.f32.gmra.mxu0 %v8704
    %v8854 = vpop.f32.mrf.mxu0
    %v8855 = vadd.f32 0.0, %v8854
    %8856 = vmatmul.f32.gmra.mxu0 %v8705
    %v8857 = vpop.f32.mrf.mxu0
    %v8858 = vadd.f32 0.0, %v8857
    %8859 = vmatmul.f32.gmra.mxu0 %v8706
    %v8860 = vpop.f32.mrf.mxu0
    %v8861 = vadd.f32 0.0, %v8860
    %8862 = vmatmul.f32.gmra.mxu0 %v8707
    %v8863 = vpop.f32.mrf.mxu0
    %v8864 = vadd.f32 0.0, %v8863
    %8865 = vmatmul.f32.gmra.mxu0 %v8708
    %v8866 = vpop.f32.mrf.mxu0
    %v8867 = vadd.f32 0.0, %v8866
    %8868 = vmatmul.f32.gmra.mxu0 %v8709
    %v8869 = vpop.f32.mrf.mxu0
    %v8870 = vadd.f32 0.0, %v8869
    %8871 = vmatmul.f32.gmra.mxu0 %v8710
    %v8872 = vpop.f32.mrf.mxu0
    %v8873 = vadd.f32 0.0, %v8872
    %8874 = vmatmul.f32.gmra.mxu0 %v8711
    %v8875 = vpop.f32.mrf.mxu0
    %v8876 = vadd.f32 0.0, %v8875
    %8877 = vmatmul.f32.gmra.mxu0 %v8712
    %v8878 = vpop.f32.mrf.mxu0
    %v8879 = vadd.f32 0.0, %v8878
    %8880 = vmatmul.f32.gmra.mxu0 %v8713
    %v8881 = vpop.f32.mrf.mxu0
    %v8882 = vadd.f32 0.0, %v8881
    %8883 = vmatmul.f32.gmra.mxu0 %v8714
    %v8884 = vpop.f32.mrf.mxu0
    %v8885 = vadd.f32 0.0, %v8884
    %8886 = vmatmul.f32.gmra.mxu0 %v8715
    %v8887 = vpop.f32.mrf.mxu0
    %v8888 = vadd.f32 0.0, %v8887
    %8889 = vmatmul.f32.gmra.mxu0 %v8716
    %v8890 = vpop.f32.mrf.mxu0
    %v8891 = vadd.f32 0.0, %v8890
    %8892 = vmatmul.f32.gmra.mxu0 %v8717
    %v8893 = vpop.f32.mrf.mxu0
    %v8894 = vadd.f32 0.0, %v8893
    %8895 = vmatmul.f32.gmra.mxu0 %v8718
    %v8896 = vpop.f32.mrf.mxu0
    %v8897 = vadd.f32 0.0, %v8896
    %8898 = vmatmul.f32.gmra.mxu0 %v8719
    %v8899 = vpop.f32.mrf.mxu0
    %v8900 = vadd.f32 0.0, %v8899
    %8901 = vmatmul.f32.gmra.mxu0 %v8720
    %v8902 = vpop.f32.mrf.mxu0
    %v8903 = vadd.f32 0.0, %v8902
    %8904 = vmatmul.f32.gmra.mxu0 %v8721
    %v8905 = vpop.f32.mrf.mxu0
    %v8906 = vadd.f32 0.0, %v8905
    %8907 = vmatmul.f32.gmra.mxu0 %v8722
    %v8908 = vpop.f32.mrf.mxu0
    %v8909 = vadd.f32 0.0, %v8908
    %8910 = vmatmul.f32.gmra.mxu0 %v8723
    %v8911 = vpop.f32.mrf.mxu0
    %v8912 = vadd.f32 0.0, %v8911
    %8913 = vmatmul.f32.gmra.mxu0 %v8724
    %v8914 = vpop.f32.mrf.mxu0
    %v8915 = vadd.f32 0.0, %v8914
    %8916 = vmatmul.f32.gmra.mxu0 %v8725
    %v8917 = vpop.f32.mrf.mxu0
    %v8918 = vadd.f32 0.0, %v8917
    %8919 = vmatmul.f32.gmra.mxu0 %v8726
    %v8920 = vpop.f32.mrf.mxu0
    %v8921 = vadd.f32 0.0, %v8920
    %8922 = vmatmul.f32.gmra.mxu0 %v8727
    %v8923 = vpop.f32.mrf.mxu0
    %v8924 = vadd.f32 0.0, %v8923
    %8925 = vmatmul.f32.gmra.mxu0 %v8728
    %v8926 = vpop.f32.mrf.mxu0
    %v8927 = vadd.f32 0.0, %v8926
    %8928 = vmatmul.f32.gmra.mxu0 %v8729
    %v8929 = vpop.f32.mrf.mxu0
    %v8930 = vadd.f32 0.0, %v8929
    %8931 = vmatmul.f32.gmra.mxu0 %v8730
    %v8932 = vpop.f32.mrf.mxu0
    %v8933 = vadd.f32 0.0, %v8932
    %8934 = vmatmul.f32.gmra.mxu0 %v8731
    %v8935 = vpop.f32.mrf.mxu0
    %v8936 = vadd.f32 0.0, %v8935
    %8937 = vmatmul.f32.gmra.mxu0 %v8732
    %v8938 = vpop.f32.mrf.mxu0
    %v8939 = vadd.f32 0.0, %v8938
    %8940 = vmatmul.f32.gmra.mxu0 %v8733
    %v8941 = vpop.f32.mrf.mxu0
    %v8942 = vadd.f32 0.0, %v8941
    %8943 = vmatmul.f32.gmra.mxu0 %v8734
    %v8944 = vpop.f32.mrf.mxu0
    %v8945 = vadd.f32 0.0, %v8944
    %8946 = vmatmul.f32.gmra.mxu0 %v8735
    %v8947 = vpop.f32.mrf.mxu0
    %v8948 = vadd.f32 0.0, %v8947
    %8949 = vmatmul.f32.gmra.mxu0 %v8736
    %v8950 = vpop.f32.mrf.mxu0
    %v8951 = vadd.f32 0.0, %v8950
    %8952 = vmatmul.f32.gmra.mxu0 %v8737
    %v8953 = vpop.f32.mrf.mxu0
    %v8954 = vadd.f32 0.0, %v8953
    %8955 = vmatmul.f32.gmra.mxu0 %v8738
    %v8956 = vpop.f32.mrf.mxu0
    %v8957 = vadd.f32 0.0, %v8956
    %8958 = vmatmul.f32.gmra.mxu0 %v8739
    %v8959 = vpop.f32.mrf.mxu0
    %v8960 = vadd.f32 0.0, %v8959
    %8961 = vmatmul.f32.gmra.mxu0 %v8740
    %v8962 = vpop.f32.mrf.mxu0
    %v8963 = vadd.f32 0.0, %v8962
    %8964 = vmatmul.f32.gmra.mxu0 %v8741
    %v8965 = vpop.f32.mrf.mxu0
    %v8966 = vadd.f32 0.0, %v8965
    %8967 = vdwg.mxu0
    %v8968 = vadd.f32 %v8614, %v8777
    %v8969 = vadd.f32 %v8615, %v8780
    %v8970 = vadd.f32 %v8616, %v8783
    %v8971 = vadd.f32 %v8617, %v8786
    %v8972 = vadd.f32 %v8618, %v8789
    %v8973 = vadd.f32 %v8619, %v8792
    %v8974 = vadd.f32 %v8620, %v8795
    %v8975 = vadd.f32 %v8621, %v8798
    %v8976 = vadd.f32 %v8622, %v8801
    %v8977 = vadd.f32 %v8623, %v8804
    %v8978 = vadd.f32 %v8624, %v8807
    %v8979 = vadd.f32 %v8625, %v8810
    %v8980 = vadd.f32 %v8626, %v8813
    %v8981 = vadd.f32 %v8627, %v8816
    %v8982 = vadd.f32 %v8628, %v8819
    %v8983 = vadd.f32 %v8629, %v8822
    %v8984 = vadd.f32 %v8630, %v8825
    %v8985 = vadd.f32 %v8631, %v8828
    %v8986 = vadd.f32 %v8632, %v8831
    %v8987 = vadd.f32 %v8633, %v8834
    %v8988 = vadd.f32 %v8634, %v8837
    %v8989 = vadd.f32 %v8635, %v8840
    %v8990 = vadd.f32 %v8636, %v8843
    %v8991 = vadd.f32 %v8637, %v8846
    %v8992 = vadd.f32 %v8638, %v8849
    %v8993 = vadd.f32 %v8639, %v8852
    %v8994 = vadd.f32 %v8640, %v8855
    %v8995 = vadd.f32 %v8641, %v8858
    %v8996 = vadd.f32 %v8642, %v8861
    %v8997 = vadd.f32 %v8643, %v8864
    %v8998 = vadd.f32 %v8644, %v8867
    %v8999 = vadd.f32 %v8645, %v8870
    %v9000 = vadd.f32 %v8646, %v8873
    %v9001 = vadd.f32 %v8647, %v8876
    %v9002 = vadd.f32 %v8648, %v8879
    %v9003 = vadd.f32 %v8649, %v8882
    %v9004 = vadd.f32 %v8650, %v8885
    %v9005 = vadd.f32 %v8651, %v8888
    %v9006 = vadd.f32 %v8652, %v8891
    %v9007 = vadd.f32 %v8653, %v8894
    %v9008 = vadd.f32 %v8654, %v8897
    %v9009 = vadd.f32 %v8655, %v8900
    %v9010 = vadd.f32 %v8656, %v8903
    %v9011 = vadd.f32 %v8657, %v8906
    %v9012 = vadd.f32 %v8658, %v8909
    %v9013 = vadd.f32 %v8659, %v8912
    %v9014 = vadd.f32 %v8660, %v8915
    %v9015 = vadd.f32 %v8661, %v8918
    %v9016 = vadd.f32 %v8662, %v8921
    %v9017 = vadd.f32 %v8663, %v8924
    %v9018 = vadd.f32 %v8664, %v8927
    %v9019 = vadd.f32 %v8665, %v8930
    %v9020 = vadd.f32 %v8666, %v8933
    %v9021 = vadd.f32 %v8667, %v8936
    %v9022 = vadd.f32 %v8668, %v8939
    %v9023 = vadd.f32 %v8669, %v8942
    %v9024 = vadd.f32 %v8670, %v8945
    %v9025 = vadd.f32 %v8671, %v8948
    %v9026 = vadd.f32 %v8672, %v8951
    %v9027 = vadd.f32 %v8673, %v8954
    %v9028 = vadd.f32 %v8674, %v8957
    %v9029 = vadd.f32 %v8675, %v8960
    %v9030 = vadd.f32 %v8676, %v8963
    %v9031 = vadd.f32 %v8677, %v8966
    %v9032 = vld [vmem:[%s230 + $0x2] sm:$0xff]
    %v9033 = vld [vmem:[%s230 + $0xa] sm:$0xff]
    %v9034 = vld [vmem:[%s230 + $0x1a] sm:$0xff]
    %v9035 = vld [vmem:[%s230 + $0x22] sm:$0xff]
    %v9036 = vld [vmem:[%s230 + $0x32] sm:$0xff]
    %v9037 = vld [vmem:[%s230 + $0x3a] sm:$0xff]
    %v9038 = vld [vmem:[%s230 + $0x4a] sm:$0xff]
    %v9039 = vld [vmem:[%s230 + $0x52] sm:$0xff]
    %v9040 = vld [vmem:[%s230 + $0x62] sm:$0xff]
    %v9041 = vld [vmem:[%s230 + $0x6a] sm:$0xff]
    %v9042 = vld [vmem:[%s230 + $0x7a] sm:$0xff]
    %v9043 = vld [vmem:[%s230 + $0x82] sm:$0xff]
    %v9044 = vld [vmem:[%s230 + $0x92] sm:$0xff]
    %v9045 = vld [vmem:[%s230 + $0x9a] sm:$0xff]
    %v9046 = vld [vmem:[%s230 + $0xaa] sm:$0xff]
    %v9047 = vld [vmem:[%s230 + $0xb2] sm:$0xff]
    %v9048 = vld [vmem:[%s230 + $0xc2] sm:$0xff]
    %v9049 = vld [vmem:[%s230 + $0xca] sm:$0xff]
    %v9050 = vld [vmem:[%s230 + $0xda] sm:$0xff]
    %v9051 = vld [vmem:[%s230 + $0xe2] sm:$0xff]
    %v9052 = vld [vmem:[%s230 + $0xf2] sm:$0xff]
    %v9053 = vld [vmem:[%s230 + $0xfa] sm:$0xff]
    %v9054 = vld [vmem:[%s230 + $0x10a] sm:$0xff]
    %v9055 = vld [vmem:[%s230 + $0x112] sm:$0xff]
    %v9056 = vld [vmem:[%s230 + $0x122] sm:$0xff]
    %v9057 = vld [vmem:[%s230 + $0x12a] sm:$0xff]
    %v9058 = vld [vmem:[%s230 + $0x13a] sm:$0xff]
    %v9059 = vld [vmem:[%s230 + $0x142] sm:$0xff]
    %v9060 = vld [vmem:[%s230 + $0x152] sm:$0xff]
    %v9061 = vld [vmem:[%s230 + $0x15a] sm:$0xff]
    %v9062 = vld [vmem:[%s230 + $0x16a] sm:$0xff]
    %v9063 = vld [vmem:[%s230 + $0x172] sm:$0xff]
    %v9064 = vld [vmem:[%s230 + $0x1b2] sm:$0xff]
    %v9065 = vld [vmem:[%s230 + $0x1ba] sm:$0xff]
    %v9066 = vld [vmem:[%s230 + $0x1ca] sm:$0xff]
    %v9067 = vld [vmem:[%s230 + $0x1d2] sm:$0xff]
    %v9068 = vld [vmem:[%s230 + $0x1e2] sm:$0xff]
    %v9069 = vld [vmem:[%s230 + $0x1ea] sm:$0xff]
    %v9070 = vld [vmem:[%s230 + $0x1fa] sm:$0xff]
    %v9071 = vld [vmem:[%s230 + $0x202] sm:$0xff]
    %v9072 = vld [vmem:[%s230 + $0x212] sm:$0xff]
    %v9073 = vld [vmem:[%s230 + $0x21a] sm:$0xff]
    %v9074 = vld [vmem:[%s230 + $0x22a] sm:$0xff]
    %v9075 = vld [vmem:[%s230 + $0x232] sm:$0xff]
    %v9076 = vld [vmem:[%s230 + $0x242] sm:$0xff]
    %v9077 = vld [vmem:[%s230 + $0x24a] sm:$0xff]
    %v9078 = vld [vmem:[%s230 + $0x25a] sm:$0xff]
    %v9079 = vld [vmem:[%s230 + $0x262] sm:$0xff]
    %v9080 = vld [vmem:[%s230 + $0x272] sm:$0xff]
    %v9081 = vld [vmem:[%s230 + $0x27a] sm:$0xff]
    %v9082 = vld [vmem:[%s230 + $0x28a] sm:$0xff]
    %v9083 = vld [vmem:[%s230 + $0x292] sm:$0xff]
    %v9084 = vld [vmem:[%s230 + $0x2a2] sm:$0xff]
    %v9085 = vld [vmem:[%s230 + $0x2aa] sm:$0xff]
    %v9086 = vld [vmem:[%s230 + $0x2ba] sm:$0xff]
    %v9087 = vld [vmem:[%s230 + $0x2c2] sm:$0xff]
    %v9088 = vld [vmem:[%s230 + $0x2d2] sm:$0xff]
    %v9089 = vld [vmem:[%s230 + $0x2da] sm:$0xff]
    %v9090 = vld [vmem:[%s230 + $0x2ea] sm:$0xff]
    %v9091 = vld [vmem:[%s230 + $0x2f2] sm:$0xff]
    %v9092 = vld [vmem:[%s230 + $0x302] sm:$0xff]
    %v9093 = vld [vmem:[%s230 + $0x30a] sm:$0xff]
    %v9094 = vld [vmem:[%s230 + $0x31a] sm:$0xff]
    %v9095 = vld [vmem:[%s230 + $0x322] sm:$0xff]
    %s9096 = scalar_lea.vmem [#allocation6], 2944
    %v9097 = vld [vmem:[%s9096] sm:$0xff]
    %v9098 = vld [vmem:[%s9096 + $0x8] sm:$0xff]
    %v9099 = vld [vmem:[%s9096 + $0x10] sm:$0xff]
    %v9100 = vld [vmem:[%s9096 + $0x18] sm:$0xff]
    %v9101 = vld [vmem:[%s9096 + $0x20] sm:$0xff]
    %v9102 = vld [vmem:[%s9096 + $0x28] sm:$0xff]
    %v9103 = vld [vmem:[%s9096 + $0x30] sm:$0xff]
    %v9104 = vld [vmem:[%s9096 + $0x38] sm:$0xff]
    %v9105 = vld [vmem:[%s9096 + $0x40] sm:$0xff]
    %v9106 = vld [vmem:[%s9096 + $0x48] sm:$0xff]
    %v9107 = vld [vmem:[%s9096 + $0x50] sm:$0xff]
    %v9108 = vld [vmem:[%s9096 + $0x58] sm:$0xff]
    %v9109 = vld [vmem:[%s9096 + $0x60] sm:$0xff]
    %v9110 = vld [vmem:[%s9096 + $0x68] sm:$0xff]
    %v9111 = vld [vmem:[%s9096 + $0x70] sm:$0xff]
    %v9112 = vld [vmem:[%s9096 + $0x78] sm:$0xff]
    %9113 = vmatpush.msra.mxu0 %v9112
    %9114 = vmatpush.msra.mxu0 %v9111
    %9115 = vmatpush.msra.mxu0 %v9110
    %9116 = vmatpush.msra.mxu0 %v9109
    %9117 = vmatpush.msra.mxu0 %v9108
    %9118 = vmatpush.msra.mxu0 %v9107
    %9119 = vmatpush.msra.mxu0 %v9106
    %9120 = vmatpush.msra.mxu0 %v9105
    %9121 = vmatpush.msra.mxu0 %v9104
    %9122 = vmatpush.msra.mxu0 %v9103
    %9123 = vmatpush.msra.mxu0 %v9102
    %9124 = vmatpush.msra.mxu0 %v9101
    %9125 = vmatpush.msra.mxu0 %v9100
    %9126 = vmatpush.msra.mxu0 %v9099
    %9127 = vmatpush.msra.mxu0 %v9098
    %9128 = vmatpush.msra.mxu0 %v9097
    %9129 = vmatmul.f32.gmra.mxu0 %v9032
    %v9130 = vpop.f32.mrf.mxu0
    %v9131 = vadd.f32 0.0, %v9130
    %9132 = vmatmul.f32.gmra.mxu0 %v9033
    %v9133 = vpop.f32.mrf.mxu0
    %v9134 = vadd.f32 0.0, %v9133
    %9135 = vmatmul.f32.gmra.mxu0 %v9034
    %v9136 = vpop.f32.mrf.mxu0
    %v9137 = vadd.f32 0.0, %v9136
    %9138 = vmatmul.f32.gmra.mxu0 %v9035
    %v9139 = vpop.f32.mrf.mxu0
    %v9140 = vadd.f32 0.0, %v9139
    %9141 = vmatmul.f32.gmra.mxu0 %v9036
    %v9142 = vpop.f32.mrf.mxu0
    %v9143 = vadd.f32 0.0, %v9142
    %9144 = vmatmul.f32.gmra.mxu0 %v9037
    %v9145 = vpop.f32.mrf.mxu0
    %v9146 = vadd.f32 0.0, %v9145
    %9147 = vmatmul.f32.gmra.mxu0 %v9038
    %v9148 = vpop.f32.mrf.mxu0
    %v9149 = vadd.f32 0.0, %v9148
    %9150 = vmatmul.f32.gmra.mxu0 %v9039
    %v9151 = vpop.f32.mrf.mxu0
    %v9152 = vadd.f32 0.0, %v9151
    %9153 = vmatmul.f32.gmra.mxu0 %v9040
    %v9154 = vpop.f32.mrf.mxu0
    %v9155 = vadd.f32 0.0, %v9154
    %9156 = vmatmul.f32.gmra.mxu0 %v9041
    %v9157 = vpop.f32.mrf.mxu0
    %v9158 = vadd.f32 0.0, %v9157
    %9159 = vmatmul.f32.gmra.mxu0 %v9042
    %v9160 = vpop.f32.mrf.mxu0
    %v9161 = vadd.f32 0.0, %v9160
    %9162 = vmatmul.f32.gmra.mxu0 %v9043
    %v9163 = vpop.f32.mrf.mxu0
    %v9164 = vadd.f32 0.0, %v9163
    %9165 = vmatmul.f32.gmra.mxu0 %v9044
    %v9166 = vpop.f32.mrf.mxu0
    %v9167 = vadd.f32 0.0, %v9166
    %9168 = vmatmul.f32.gmra.mxu0 %v9045
    %v9169 = vpop.f32.mrf.mxu0
    %v9170 = vadd.f32 0.0, %v9169
    %9171 = vmatmul.f32.gmra.mxu0 %v9046
    %v9172 = vpop.f32.mrf.mxu0
    %v9173 = vadd.f32 0.0, %v9172
    %9174 = vmatmul.f32.gmra.mxu0 %v9047
    %v9175 = vpop.f32.mrf.mxu0
    %v9176 = vadd.f32 0.0, %v9175
    %9177 = vmatmul.f32.gmra.mxu0 %v9048
    %v9178 = vpop.f32.mrf.mxu0
    %v9179 = vadd.f32 0.0, %v9178
    %9180 = vmatmul.f32.gmra.mxu0 %v9049
    %v9181 = vpop.f32.mrf.mxu0
    %v9182 = vadd.f32 0.0, %v9181
    %9183 = vmatmul.f32.gmra.mxu0 %v9050
    %v9184 = vpop.f32.mrf.mxu0
    %v9185 = vadd.f32 0.0, %v9184
    %9186 = vmatmul.f32.gmra.mxu0 %v9051
    %v9187 = vpop.f32.mrf.mxu0
    %v9188 = vadd.f32 0.0, %v9187
    %9189 = vmatmul.f32.gmra.mxu0 %v9052
    %v9190 = vpop.f32.mrf.mxu0
    %v9191 = vadd.f32 0.0, %v9190
    %9192 = vmatmul.f32.gmra.mxu0 %v9053
    %v9193 = vpop.f32.mrf.mxu0
    %v9194 = vadd.f32 0.0, %v9193
    %9195 = vmatmul.f32.gmra.mxu0 %v9054
    %v9196 = vpop.f32.mrf.mxu0
    %v9197 = vadd.f32 0.0, %v9196
    %9198 = vmatmul.f32.gmra.mxu0 %v9055
    %v9199 = vpop.f32.mrf.mxu0
    %v9200 = vadd.f32 0.0, %v9199
    %9201 = vmatmul.f32.gmra.mxu0 %v9056
    %v9202 = vpop.f32.mrf.mxu0
    %v9203 = vadd.f32 0.0, %v9202
    %9204 = vmatmul.f32.gmra.mxu0 %v9057
    %v9205 = vpop.f32.mrf.mxu0
    %v9206 = vadd.f32 0.0, %v9205
    %9207 = vmatmul.f32.gmra.mxu0 %v9058
    %v9208 = vpop.f32.mrf.mxu0
    %v9209 = vadd.f32 0.0, %v9208
    %9210 = vmatmul.f32.gmra.mxu0 %v9059
    %v9211 = vpop.f32.mrf.mxu0
    %v9212 = vadd.f32 0.0, %v9211
    %9213 = vmatmul.f32.gmra.mxu0 %v9060
    %v9214 = vpop.f32.mrf.mxu0
    %v9215 = vadd.f32 0.0, %v9214
    %9216 = vmatmul.f32.gmra.mxu0 %v9061
    %v9217 = vpop.f32.mrf.mxu0
    %v9218 = vadd.f32 0.0, %v9217
    %9219 = vmatmul.f32.gmra.mxu0 %v9062
    %v9220 = vpop.f32.mrf.mxu0
    %v9221 = vadd.f32 0.0, %v9220
    %9222 = vmatmul.f32.gmra.mxu0 %v9063
    %v9223 = vpop.f32.mrf.mxu0
    %v9224 = vadd.f32 0.0, %v9223
    %9225 = vmatmul.f32.gmra.mxu0 %v9064
    %v9226 = vpop.f32.mrf.mxu0
    %v9227 = vadd.f32 0.0, %v9226
    %9228 = vmatmul.f32.gmra.mxu0 %v9065
    %v9229 = vpop.f32.mrf.mxu0
    %v9230 = vadd.f32 0.0, %v9229
    %9231 = vmatmul.f32.gmra.mxu0 %v9066
    %v9232 = vpop.f32.mrf.mxu0
    %v9233 = vadd.f32 0.0, %v9232
    %9234 = vmatmul.f32.gmra.mxu0 %v9067
    %v9235 = vpop.f32.mrf.mxu0
    %v9236 = vadd.f32 0.0, %v9235
    %9237 = vmatmul.f32.gmra.mxu0 %v9068
    %v9238 = vpop.f32.mrf.mxu0
    %v9239 = vadd.f32 0.0, %v9238
    %9240 = vmatmul.f32.gmra.mxu0 %v9069
    %v9241 = vpop.f32.mrf.mxu0
    %v9242 = vadd.f32 0.0, %v9241
    %9243 = vmatmul.f32.gmra.mxu0 %v9070
    %v9244 = vpop.f32.mrf.mxu0
    %v9245 = vadd.f32 0.0, %v9244
    %9246 = vmatmul.f32.gmra.mxu0 %v9071
    %v9247 = vpop.f32.mrf.mxu0
    %v9248 = vadd.f32 0.0, %v9247
    %9249 = vmatmul.f32.gmra.mxu0 %v9072
    %v9250 = vpop.f32.mrf.mxu0
    %v9251 = vadd.f32 0.0, %v9250
    %9252 = vmatmul.f32.gmra.mxu0 %v9073
    %v9253 = vpop.f32.mrf.mxu0
    %v9254 = vadd.f32 0.0, %v9253
    %9255 = vmatmul.f32.gmra.mxu0 %v9074
    %v9256 = vpop.f32.mrf.mxu0
    %v9257 = vadd.f32 0.0, %v9256
    %9258 = vmatmul.f32.gmra.mxu0 %v9075
    %v9259 = vpop.f32.mrf.mxu0
    %v9260 = vadd.f32 0.0, %v9259
    %9261 = vmatmul.f32.gmra.mxu0 %v9076
    %v9262 = vpop.f32.mrf.mxu0
    %v9263 = vadd.f32 0.0, %v9262
    %9264 = vmatmul.f32.gmra.mxu0 %v9077
    %v9265 = vpop.f32.mrf.mxu0
    %v9266 = vadd.f32 0.0, %v9265
    %9267 = vmatmul.f32.gmra.mxu0 %v9078
    %v9268 = vpop.f32.mrf.mxu0
    %v9269 = vadd.f32 0.0, %v9268
    %9270 = vmatmul.f32.gmra.mxu0 %v9079
    %v9271 = vpop.f32.mrf.mxu0
    %v9272 = vadd.f32 0.0, %v9271
    %9273 = vmatmul.f32.gmra.mxu0 %v9080
    %v9274 = vpop.f32.mrf.mxu0
    %v9275 = vadd.f32 0.0, %v9274
    %9276 = vmatmul.f32.gmra.mxu0 %v9081
    %v9277 = vpop.f32.mrf.mxu0
    %v9278 = vadd.f32 0.0, %v9277
    %9279 = vmatmul.f32.gmra.mxu0 %v9082
    %v9280 = vpop.f32.mrf.mxu0
    %v9281 = vadd.f32 0.0, %v9280
    %9282 = vmatmul.f32.gmra.mxu0 %v9083
    %v9283 = vpop.f32.mrf.mxu0
    %v9284 = vadd.f32 0.0, %v9283
    %9285 = vmatmul.f32.gmra.mxu0 %v9084
    %v9286 = vpop.f32.mrf.mxu0
    %v9287 = vadd.f32 0.0, %v9286
    %9288 = vmatmul.f32.gmra.mxu0 %v9085
    %v9289 = vpop.f32.mrf.mxu0
    %v9290 = vadd.f32 0.0, %v9289
    %9291 = vmatmul.f32.gmra.mxu0 %v9086
    %v9292 = vpop.f32.mrf.mxu0
    %v9293 = vadd.f32 0.0, %v9292
    %9294 = vmatmul.f32.gmra.mxu0 %v9087
    %v9295 = vpop.f32.mrf.mxu0
    %v9296 = vadd.f32 0.0, %v9295
    %9297 = vmatmul.f32.gmra.mxu0 %v9088
    %v9298 = vpop.f32.mrf.mxu0
    %v9299 = vadd.f32 0.0, %v9298
    %9300 = vmatmul.f32.gmra.mxu0 %v9089
    %v9301 = vpop.f32.mrf.mxu0
    %v9302 = vadd.f32 0.0, %v9301
    %9303 = vmatmul.f32.gmra.mxu0 %v9090
    %v9304 = vpop.f32.mrf.mxu0
    %v9305 = vadd.f32 0.0, %v9304
    %9306 = vmatmul.f32.gmra.mxu0 %v9091
    %v9307 = vpop.f32.mrf.mxu0
    %v9308 = vadd.f32 0.0, %v9307
    %9309 = vmatmul.f32.gmra.mxu0 %v9092
    %v9310 = vpop.f32.mrf.mxu0
    %v9311 = vadd.f32 0.0, %v9310
    %9312 = vmatmul.f32.gmra.mxu0 %v9093
    %v9313 = vpop.f32.mrf.mxu0
    %v9314 = vadd.f32 0.0, %v9313
    %9315 = vmatmul.f32.gmra.mxu0 %v9094
    %v9316 = vpop.f32.mrf.mxu0
    %v9317 = vadd.f32 0.0, %v9316
    %9318 = vmatmul.f32.gmra.mxu0 %v9095
    %v9319 = vpop.f32.mrf.mxu0
    %v9320 = vadd.f32 0.0, %v9319
    %9321 = vdwg.mxu0
    %v9322 = vadd.f32 %v8968, %v9131
    %v9323 = vadd.f32 %v8969, %v9134
    %v9324 = vadd.f32 %v8970, %v9137
    %v9325 = vadd.f32 %v8971, %v9140
    %v9326 = vadd.f32 %v8972, %v9143
    %v9327 = vadd.f32 %v8973, %v9146
    %v9328 = vadd.f32 %v8974, %v9149
    %v9329 = vadd.f32 %v8975, %v9152
    %v9330 = vadd.f32 %v8976, %v9155
    %v9331 = vadd.f32 %v8977, %v9158
    %v9332 = vadd.f32 %v8978, %v9161
    %v9333 = vadd.f32 %v8979, %v9164
    %v9334 = vadd.f32 %v8980, %v9167
    %v9335 = vadd.f32 %v8981, %v9170
    %v9336 = vadd.f32 %v8982, %v9173
    %v9337 = vadd.f32 %v8983, %v9176
    %v9338 = vadd.f32 %v8984, %v9179
    %v9339 = vadd.f32 %v8985, %v9182
    %v9340 = vadd.f32 %v8986, %v9185
    %v9341 = vadd.f32 %v8987, %v9188
    %v9342 = vadd.f32 %v8988, %v9191
    %v9343 = vadd.f32 %v8989, %v9194
    %v9344 = vadd.f32 %v8990, %v9197
    %v9345 = vadd.f32 %v8991, %v9200
    %v9346 = vadd.f32 %v8992, %v9203
    %v9347 = vadd.f32 %v8993, %v9206
    %v9348 = vadd.f32 %v8994, %v9209
    %v9349 = vadd.f32 %v8995, %v9212
    %v9350 = vadd.f32 %v8996, %v9215
    %v9351 = vadd.f32 %v8997, %v9218
    %v9352 = vadd.f32 %v8998, %v9221
    %v9353 = vadd.f32 %v8999, %v9224
    %v9354 = vadd.f32 %v9000, %v9227
    %v9355 = vadd.f32 %v9001, %v9230
    %v9356 = vadd.f32 %v9002, %v9233
    %v9357 = vadd.f32 %v9003, %v9236
    %v9358 = vadd.f32 %v9004, %v9239
    %v9359 = vadd.f32 %v9005, %v9242
    %v9360 = vadd.f32 %v9006, %v9245
    %v9361 = vadd.f32 %v9007, %v9248
    %v9362 = vadd.f32 %v9008, %v9251
    %v9363 = vadd.f32 %v9009, %v9254
    %v9364 = vadd.f32 %v9010, %v9257
    %v9365 = vadd.f32 %v9011, %v9260
    %v9366 = vadd.f32 %v9012, %v9263
    %v9367 = vadd.f32 %v9013, %v9266
    %v9368 = vadd.f32 %v9014, %v9269
    %v9369 = vadd.f32 %v9015, %v9272
    %v9370 = vadd.f32 %v9016, %v9275
    %v9371 = vadd.f32 %v9017, %v9278
    %v9372 = vadd.f32 %v9018, %v9281
    %v9373 = vadd.f32 %v9019, %v9284
    %v9374 = vadd.f32 %v9020, %v9287
    %v9375 = vadd.f32 %v9021, %v9290
    %v9376 = vadd.f32 %v9022, %v9293
    %v9377 = vadd.f32 %v9023, %v9296
    %v9378 = vadd.f32 %v9024, %v9299
    %v9379 = vadd.f32 %v9025, %v9302
    %v9380 = vadd.f32 %v9026, %v9305
    %v9381 = vadd.f32 %v9027, %v9308
    %v9382 = vadd.f32 %v9028, %v9311
    %v9383 = vadd.f32 %v9029, %v9314
    %v9384 = vadd.f32 %v9030, %v9317
    %v9385 = vadd.f32 %v9031, %v9320
    %v9386 = vld [vmem:[%s2290] sm:$0xff]
    %v9387 = vld [vmem:[%s2290 + $0x8] sm:$0xff]
    %v9388 = vld [vmem:[%s2290 + $0x18] sm:$0xff]
    %v9389 = vld [vmem:[%s2290 + $0x20] sm:$0xff]
    %v9390 = vld [vmem:[%s2290 + $0x30] sm:$0xff]
    %v9391 = vld [vmem:[%s2290 + $0x38] sm:$0xff]
    %v9392 = vld [vmem:[%s2290 + $0x48] sm:$0xff]
    %v9393 = vld [vmem:[%s2290 + $0x50] sm:$0xff]
    %v9394 = vld [vmem:[%s2290 + $0x60] sm:$0xff]
    %v9395 = vld [vmem:[%s2290 + $0x68] sm:$0xff]
    %v9396 = vld [vmem:[%s2290 + $0x78] sm:$0xff]
    %v9397 = vld [vmem:[%s2290 + $0x80] sm:$0xff]
    %v9398 = vld [vmem:[%s2290 + $0x90] sm:$0xff]
    %v9399 = vld [vmem:[%s2290 + $0x98] sm:$0xff]
    %v9400 = vld [vmem:[%s2290 + $0xa8] sm:$0xff]
    %v9401 = vld [vmem:[%s2290 + $0xb0] sm:$0xff]
    %v9402 = vld [vmem:[%s2290 + $0xc0] sm:$0xff]
    %v9403 = vld [vmem:[%s2290 + $0xc8] sm:$0xff]
    %v9404 = vld [vmem:[%s2290 + $0xd8] sm:$0xff]
    %v9405 = vld [vmem:[%s2290 + $0xe0] sm:$0xff]
    %v9406 = vld [vmem:[%s2290 + $0xf0] sm:$0xff]
    %v9407 = vld [vmem:[%s2290 + $0xf8] sm:$0xff]
    %v9408 = vld [vmem:[%s2290 + $0x108] sm:$0xff]
    %v9409 = vld [vmem:[%s2290 + $0x110] sm:$0xff]
    %v9410 = vld [vmem:[%s2290 + $0x120] sm:$0xff]
    %v9411 = vld [vmem:[%s2290 + $0x128] sm:$0xff]
    %v9412 = vld [vmem:[%s2290 + $0x138] sm:$0xff]
    %v9413 = vld [vmem:[%s2290 + $0x140] sm:$0xff]
    %v9414 = vld [vmem:[%s2290 + $0x150] sm:$0xff]
    %v9415 = vld [vmem:[%s2290 + $0x158] sm:$0xff]
    %v9416 = vld [vmem:[%s2290 + $0x168] sm:$0xff]
    %v9417 = vld [vmem:[%s2290 + $0x170] sm:$0xff]
    %v9418 = vld [vmem:[%s2290 + $0x1b0] sm:$0xff]
    %v9419 = vld [vmem:[%s2290 + $0x1b8] sm:$0xff]
    %v9420 = vld [vmem:[%s2290 + $0x1c8] sm:$0xff]
    %v9421 = vld [vmem:[%s2290 + $0x1d0] sm:$0xff]
    %v9422 = vld [vmem:[%s2290 + $0x1e0] sm:$0xff]
    %v9423 = vld [vmem:[%s2290 + $0x1e8] sm:$0xff]
    %v9424 = vld [vmem:[%s2290 + $0x1f8] sm:$0xff]
    %v9425 = vld [vmem:[%s2290 + $0x200] sm:$0xff]
    %v9426 = vld [vmem:[%s2290 + $0x210] sm:$0xff]
    %v9427 = vld [vmem:[%s2290 + $0x218] sm:$0xff]
    %v9428 = vld [vmem:[%s2290 + $0x228] sm:$0xff]
    %v9429 = vld [vmem:[%s2290 + $0x230] sm:$0xff]
    %v9430 = vld [vmem:[%s2290 + $0x240] sm:$0xff]
    %v9431 = vld [vmem:[%s2290 + $0x248] sm:$0xff]
    %v9432 = vld [vmem:[%s2290 + $0x258] sm:$0xff]
    %v9433 = vld [vmem:[%s2290 + $0x260] sm:$0xff]
    %v9434 = vld [vmem:[%s2290 + $0x270] sm:$0xff]
    %v9435 = vld [vmem:[%s2290 + $0x278] sm:$0xff]
    %v9436 = vld [vmem:[%s2290 + $0x288] sm:$0xff]
    %v9437 = vld [vmem:[%s2290 + $0x290] sm:$0xff]
    %v9438 = vld [vmem:[%s2290 + $0x2a0] sm:$0xff]
    %v9439 = vld [vmem:[%s2290 + $0x2a8] sm:$0xff]
    %v9440 = vld [vmem:[%s2290 + $0x2b8] sm:$0xff]
    %v9441 = vld [vmem:[%s2290 + $0x2c0] sm:$0xff]
    %v9442 = vld [vmem:[%s2290 + $0x2d0] sm:$0xff]
    %v9443 = vld [vmem:[%s2290 + $0x2d8] sm:$0xff]
    %v9444 = vld [vmem:[%s2290 + $0x2e8] sm:$0xff]
    %v9445 = vld [vmem:[%s2290 + $0x2f0] sm:$0xff]
    %v9446 = vld [vmem:[%s2290 + $0x300] sm:$0xff]
    %v9447 = vld [vmem:[%s2290 + $0x308] sm:$0xff]
    %v9448 = vld [vmem:[%s2290 + $0x318] sm:$0xff]
    %v9449 = vld [vmem:[%s2290 + $0x320] sm:$0xff]
    %s9450 = scalar_lea.vmem [#allocation6], 3072
    %v9451 = vld [vmem:[%s9450] sm:$0xff]
    %v9452 = vld [vmem:[%s9450 + $0x8] sm:$0xff]
    %v9453 = vld [vmem:[%s9450 + $0x10] sm:$0xff]
    %v9454 = vld [vmem:[%s9450 + $0x18] sm:$0xff]
    %v9455 = vld [vmem:[%s9450 + $0x20] sm:$0xff]
    %v9456 = vld [vmem:[%s9450 + $0x28] sm:$0xff]
    %v9457 = vld [vmem:[%s9450 + $0x30] sm:$0xff]
    %v9458 = vld [vmem:[%s9450 + $0x38] sm:$0xff]
    %v9459 = vld [vmem:[%s9450 + $0x40] sm:$0xff]
    %v9460 = vld [vmem:[%s9450 + $0x48] sm:$0xff]
    %v9461 = vld [vmem:[%s9450 + $0x50] sm:$0xff]
    %v9462 = vld [vmem:[%s9450 + $0x58] sm:$0xff]
    %v9463 = vld [vmem:[%s9450 + $0x60] sm:$0xff]
    %v9464 = vld [vmem:[%s9450 + $0x68] sm:$0xff]
    %v9465 = vld [vmem:[%s9450 + $0x70] sm:$0xff]
    %v9466 = vld [vmem:[%s9450 + $0x78] sm:$0xff]
    %9467 = vmatpush.msra.mxu0 %v9466
    %9468 = vmatpush.msra.mxu0 %v9465
    %9469 = vmatpush.msra.mxu0 %v9464
    %9470 = vmatpush.msra.mxu0 %v9463
    %9471 = vmatpush.msra.mxu0 %v9462
    %9472 = vmatpush.msra.mxu0 %v9461
    %9473 = vmatpush.msra.mxu0 %v9460
    %9474 = vmatpush.msra.mxu0 %v9459
    %9475 = vmatpush.msra.mxu0 %v9458
    %9476 = vmatpush.msra.mxu0 %v9457
    %9477 = vmatpush.msra.mxu0 %v9456
    %9478 = vmatpush.msra.mxu0 %v9455
    %9479 = vmatpush.msra.mxu0 %v9454
    %9480 = vmatpush.msra.mxu0 %v9453
    %9481 = vmatpush.msra.mxu0 %v9452
    %9482 = vmatpush.msra.mxu0 %v9451
    %9483 = vmatmul.f32.gmra.mxu0 %v9386
    %v9484 = vpop.f32.mrf.mxu0
    %v9485 = vadd.f32 0.0, %v9484
    %9486 = vmatmul.f32.gmra.mxu0 %v9387
    %v9487 = vpop.f32.mrf.mxu0
    %v9488 = vadd.f32 0.0, %v9487
    %9489 = vmatmul.f32.gmra.mxu0 %v9388
    %v9490 = vpop.f32.mrf.mxu0
    %v9491 = vadd.f32 0.0, %v9490
    %9492 = vmatmul.f32.gmra.mxu0 %v9389
    %v9493 = vpop.f32.mrf.mxu0
    %v9494 = vadd.f32 0.0, %v9493
    %9495 = vmatmul.f32.gmra.mxu0 %v9390
    %v9496 = vpop.f32.mrf.mxu0
    %v9497 = vadd.f32 0.0, %v9496
    %9498 = vmatmul.f32.gmra.mxu0 %v9391
    %v9499 = vpop.f32.mrf.mxu0
    %v9500 = vadd.f32 0.0, %v9499
    %9501 = vmatmul.f32.gmra.mxu0 %v9392
    %v9502 = vpop.f32.mrf.mxu0
    %v9503 = vadd.f32 0.0, %v9502
    %9504 = vmatmul.f32.gmra.mxu0 %v9393
    %v9505 = vpop.f32.mrf.mxu0
    %v9506 = vadd.f32 0.0, %v9505
    %9507 = vmatmul.f32.gmra.mxu0 %v9394
    %v9508 = vpop.f32.mrf.mxu0
    %v9509 = vadd.f32 0.0, %v9508
    %9510 = vmatmul.f32.gmra.mxu0 %v9395
    %v9511 = vpop.f32.mrf.mxu0
    %v9512 = vadd.f32 0.0, %v9511
    %9513 = vmatmul.f32.gmra.mxu0 %v9396
    %v9514 = vpop.f32.mrf.mxu0
    %v9515 = vadd.f32 0.0, %v9514
    %9516 = vmatmul.f32.gmra.mxu0 %v9397
    %v9517 = vpop.f32.mrf.mxu0
    %v9518 = vadd.f32 0.0, %v9517
    %9519 = vmatmul.f32.gmra.mxu0 %v9398
    %v9520 = vpop.f32.mrf.mxu0
    %v9521 = vadd.f32 0.0, %v9520
    %9522 = vmatmul.f32.gmra.mxu0 %v9399
    %v9523 = vpop.f32.mrf.mxu0
    %v9524 = vadd.f32 0.0, %v9523
    %9525 = vmatmul.f32.gmra.mxu0 %v9400
    %v9526 = vpop.f32.mrf.mxu0
    %v9527 = vadd.f32 0.0, %v9526
    %9528 = vmatmul.f32.gmra.mxu0 %v9401
    %v9529 = vpop.f32.mrf.mxu0
    %v9530 = vadd.f32 0.0, %v9529
    %9531 = vmatmul.f32.gmra.mxu0 %v9402
    %v9532 = vpop.f32.mrf.mxu0
    %v9533 = vadd.f32 0.0, %v9532
    %9534 = vmatmul.f32.gmra.mxu0 %v9403
    %v9535 = vpop.f32.mrf.mxu0
    %v9536 = vadd.f32 0.0, %v9535
    %9537 = vmatmul.f32.gmra.mxu0 %v9404
    %v9538 = vpop.f32.mrf.mxu0
    %v9539 = vadd.f32 0.0, %v9538
    %9540 = vmatmul.f32.gmra.mxu0 %v9405
    %v9541 = vpop.f32.mrf.mxu0
    %v9542 = vadd.f32 0.0, %v9541
    %9543 = vmatmul.f32.gmra.mxu0 %v9406
    %v9544 = vpop.f32.mrf.mxu0
    %v9545 = vadd.f32 0.0, %v9544
    %9546 = vmatmul.f32.gmra.mxu0 %v9407
    %v9547 = vpop.f32.mrf.mxu0
    %v9548 = vadd.f32 0.0, %v9547
    %9549 = vmatmul.f32.gmra.mxu0 %v9408
    %v9550 = vpop.f32.mrf.mxu0
    %v9551 = vadd.f32 0.0, %v9550
    %9552 = vmatmul.f32.gmra.mxu0 %v9409
    %v9553 = vpop.f32.mrf.mxu0
    %v9554 = vadd.f32 0.0, %v9553
    %9555 = vmatmul.f32.gmra.mxu0 %v9410
    %v9556 = vpop.f32.mrf.mxu0
    %v9557 = vadd.f32 0.0, %v9556
    %9558 = vmatmul.f32.gmra.mxu0 %v9411
    %v9559 = vpop.f32.mrf.mxu0
    %v9560 = vadd.f32 0.0, %v9559
    %9561 = vmatmul.f32.gmra.mxu0 %v9412
    %v9562 = vpop.f32.mrf.mxu0
    %v9563 = vadd.f32 0.0, %v9562
    %9564 = vmatmul.f32.gmra.mxu0 %v9413
    %v9565 = vpop.f32.mrf.mxu0
    %v9566 = vadd.f32 0.0, %v9565
    %9567 = vmatmul.f32.gmra.mxu0 %v9414
    %v9568 = vpop.f32.mrf.mxu0
    %v9569 = vadd.f32 0.0, %v9568
    %9570 = vmatmul.f32.gmra.mxu0 %v9415
    %v9571 = vpop.f32.mrf.mxu0
    %v9572 = vadd.f32 0.0, %v9571
    %9573 = vmatmul.f32.gmra.mxu0 %v9416
    %v9574 = vpop.f32.mrf.mxu0
    %v9575 = vadd.f32 0.0, %v9574
    %9576 = vmatmul.f32.gmra.mxu0 %v9417
    %v9577 = vpop.f32.mrf.mxu0
    %v9578 = vadd.f32 0.0, %v9577
    %9579 = vmatmul.f32.gmra.mxu0 %v9418
    %v9580 = vpop.f32.mrf.mxu0
    %v9581 = vadd.f32 0.0, %v9580
    %9582 = vmatmul.f32.gmra.mxu0 %v9419
    %v9583 = vpop.f32.mrf.mxu0
    %v9584 = vadd.f32 0.0, %v9583
    %9585 = vmatmul.f32.gmra.mxu0 %v9420
    %v9586 = vpop.f32.mrf.mxu0
    %v9587 = vadd.f32 0.0, %v9586
    %9588 = vmatmul.f32.gmra.mxu0 %v9421
    %v9589 = vpop.f32.mrf.mxu0
    %v9590 = vadd.f32 0.0, %v9589
    %9591 = vmatmul.f32.gmra.mxu0 %v9422
    %v9592 = vpop.f32.mrf.mxu0
    %v9593 = vadd.f32 0.0, %v9592
    %9594 = vmatmul.f32.gmra.mxu0 %v9423
    %v9595 = vpop.f32.mrf.mxu0
    %v9596 = vadd.f32 0.0, %v9595
    %9597 = vmatmul.f32.gmra.mxu0 %v9424
    %v9598 = vpop.f32.mrf.mxu0
    %v9599 = vadd.f32 0.0, %v9598
    %9600 = vmatmul.f32.gmra.mxu0 %v9425
    %v9601 = vpop.f32.mrf.mxu0
    %v9602 = vadd.f32 0.0, %v9601
    %9603 = vmatmul.f32.gmra.mxu0 %v9426
    %v9604 = vpop.f32.mrf.mxu0
    %v9605 = vadd.f32 0.0, %v9604
    %9606 = vmatmul.f32.gmra.mxu0 %v9427
    %v9607 = vpop.f32.mrf.mxu0
    %v9608 = vadd.f32 0.0, %v9607
    %9609 = vmatmul.f32.gmra.mxu0 %v9428
    %v9610 = vpop.f32.mrf.mxu0
    %v9611 = vadd.f32 0.0, %v9610
    %9612 = vmatmul.f32.gmra.mxu0 %v9429
    %v9613 = vpop.f32.mrf.mxu0
    %v9614 = vadd.f32 0.0, %v9613
    %9615 = vmatmul.f32.gmra.mxu0 %v9430
    %v9616 = vpop.f32.mrf.mxu0
    %v9617 = vadd.f32 0.0, %v9616
    %9618 = vmatmul.f32.gmra.mxu0 %v9431
    %v9619 = vpop.f32.mrf.mxu0
    %v9620 = vadd.f32 0.0, %v9619
    %9621 = vmatmul.f32.gmra.mxu0 %v9432
    %v9622 = vpop.f32.mrf.mxu0
    %v9623 = vadd.f32 0.0, %v9622
    %9624 = vmatmul.f32.gmra.mxu0 %v9433
    %v9625 = vpop.f32.mrf.mxu0
    %v9626 = vadd.f32 0.0, %v9625
    %9627 = vmatmul.f32.gmra.mxu0 %v9434
    %v9628 = vpop.f32.mrf.mxu0
    %v9629 = vadd.f32 0.0, %v9628
    %9630 = vmatmul.f32.gmra.mxu0 %v9435
    %v9631 = vpop.f32.mrf.mxu0
    %v9632 = vadd.f32 0.0, %v9631
    %9633 = vmatmul.f32.gmra.mxu0 %v9436
    %v9634 = vpop.f32.mrf.mxu0
    %v9635 = vadd.f32 0.0, %v9634
    %9636 = vmatmul.f32.gmra.mxu0 %v9437
    %v9637 = vpop.f32.mrf.mxu0
    %v9638 = vadd.f32 0.0, %v9637
    %9639 = vmatmul.f32.gmra.mxu0 %v9438
    %v9640 = vpop.f32.mrf.mxu0
    %v9641 = vadd.f32 0.0, %v9640
    %9642 = vmatmul.f32.gmra.mxu0 %v9439
    %v9643 = vpop.f32.mrf.mxu0
    %v9644 = vadd.f32 0.0, %v9643
    %9645 = vmatmul.f32.gmra.mxu0 %v9440
    %v9646 = vpop.f32.mrf.mxu0
    %v9647 = vadd.f32 0.0, %v9646
    %9648 = vmatmul.f32.gmra.mxu0 %v9441
    %v9649 = vpop.f32.mrf.mxu0
    %v9650 = vadd.f32 0.0, %v9649
    %9651 = vmatmul.f32.gmra.mxu0 %v9442
    %v9652 = vpop.f32.mrf.mxu0
    %v9653 = vadd.f32 0.0, %v9652
    %9654 = vmatmul.f32.gmra.mxu0 %v9443
    %v9655 = vpop.f32.mrf.mxu0
    %v9656 = vadd.f32 0.0, %v9655
    %9657 = vmatmul.f32.gmra.mxu0 %v9444
    %v9658 = vpop.f32.mrf.mxu0
    %v9659 = vadd.f32 0.0, %v9658
    %9660 = vmatmul.f32.gmra.mxu0 %v9445
    %v9661 = vpop.f32.mrf.mxu0
    %v9662 = vadd.f32 0.0, %v9661
    %9663 = vmatmul.f32.gmra.mxu0 %v9446
    %v9664 = vpop.f32.mrf.mxu0
    %v9665 = vadd.f32 0.0, %v9664
    %9666 = vmatmul.f32.gmra.mxu0 %v9447
    %v9667 = vpop.f32.mrf.mxu0
    %v9668 = vadd.f32 0.0, %v9667
    %9669 = vmatmul.f32.gmra.mxu0 %v9448
    %v9670 = vpop.f32.mrf.mxu0
    %v9671 = vadd.f32 0.0, %v9670
    %9672 = vmatmul.f32.gmra.mxu0 %v9449
    %v9673 = vpop.f32.mrf.mxu0
    %v9674 = vadd.f32 0.0, %v9673
    %9675 = vdwg.mxu0
    %v9676 = vadd.f32 %v9322, %v9485
    %v9677 = vadd.f32 %v9323, %v9488
    %v9678 = vadd.f32 %v9324, %v9491
    %v9679 = vadd.f32 %v9325, %v9494
    %v9680 = vadd.f32 %v9326, %v9497
    %v9681 = vadd.f32 %v9327, %v9500
    %v9682 = vadd.f32 %v9328, %v9503
    %v9683 = vadd.f32 %v9329, %v9506
    %v9684 = vadd.f32 %v9330, %v9509
    %v9685 = vadd.f32 %v9331, %v9512
    %v9686 = vadd.f32 %v9332, %v9515
    %v9687 = vadd.f32 %v9333, %v9518
    %v9688 = vadd.f32 %v9334, %v9521
    %v9689 = vadd.f32 %v9335, %v9524
    %v9690 = vadd.f32 %v9336, %v9527
    %v9691 = vadd.f32 %v9337, %v9530
    %v9692 = vadd.f32 %v9338, %v9533
    %v9693 = vadd.f32 %v9339, %v9536
    %v9694 = vadd.f32 %v9340, %v9539
    %v9695 = vadd.f32 %v9341, %v9542
    %v9696 = vadd.f32 %v9342, %v9545
    %v9697 = vadd.f32 %v9343, %v9548
    %v9698 = vadd.f32 %v9344, %v9551
    %v9699 = vadd.f32 %v9345, %v9554
    %v9700 = vadd.f32 %v9346, %v9557
    %v9701 = vadd.f32 %v9347, %v9560
    %v9702 = vadd.f32 %v9348, %v9563
    %v9703 = vadd.f32 %v9349, %v9566
    %v9704 = vadd.f32 %v9350, %v9569
    %v9705 = vadd.f32 %v9351, %v9572
    %v9706 = vadd.f32 %v9352, %v9575
    %v9707 = vadd.f32 %v9353, %v9578
    %v9708 = vadd.f32 %v9354, %v9581
    %v9709 = vadd.f32 %v9355, %v9584
    %v9710 = vadd.f32 %v9356, %v9587
    %v9711 = vadd.f32 %v9357, %v9590
    %v9712 = vadd.f32 %v9358, %v9593
    %v9713 = vadd.f32 %v9359, %v9596
    %v9714 = vadd.f32 %v9360, %v9599
    %v9715 = vadd.f32 %v9361, %v9602
    %v9716 = vadd.f32 %v9362, %v9605
    %v9717 = vadd.f32 %v9363, %v9608
    %v9718 = vadd.f32 %v9364, %v9611
    %v9719 = vadd.f32 %v9365, %v9614
    %v9720 = vadd.f32 %v9366, %v9617
    %v9721 = vadd.f32 %v9367, %v9620
    %v9722 = vadd.f32 %v9368, %v9623
    %v9723 = vadd.f32 %v9369, %v9626
    %v9724 = vadd.f32 %v9370, %v9629
    %v9725 = vadd.f32 %v9371, %v9632
    %v9726 = vadd.f32 %v9372, %v9635
    %v9727 = vadd.f32 %v9373, %v9638
    %v9728 = vadd.f32 %v9374, %v9641
    %v9729 = vadd.f32 %v9375, %v9644
    %v9730 = vadd.f32 %v9376, %v9647
    %v9731 = vadd.f32 %v9377, %v9650
    %v9732 = vadd.f32 %v9378, %v9653
    %v9733 = vadd.f32 %v9379, %v9656
    %v9734 = vadd.f32 %v9380, %v9659
    %v9735 = vadd.f32 %v9381, %v9662
    %v9736 = vadd.f32 %v9382, %v9665
    %v9737 = vadd.f32 %v9383, %v9668
    %v9738 = vadd.f32 %v9384, %v9671
    %v9739 = vadd.f32 %v9385, %v9674
    %v9740 = vld [vmem:[%s2290 + $0x1] sm:$0xff]
    %v9741 = vld [vmem:[%s2290 + $0x9] sm:$0xff]
    %v9742 = vld [vmem:[%s2290 + $0x19] sm:$0xff]
    %v9743 = vld [vmem:[%s2290 + $0x21] sm:$0xff]
    %v9744 = vld [vmem:[%s2290 + $0x31] sm:$0xff]
    %v9745 = vld [vmem:[%s2290 + $0x39] sm:$0xff]
    %v9746 = vld [vmem:[%s2290 + $0x49] sm:$0xff]
    %v9747 = vld [vmem:[%s2290 + $0x51] sm:$0xff]
    %v9748 = vld [vmem:[%s2290 + $0x61] sm:$0xff]
    %v9749 = vld [vmem:[%s2290 + $0x69] sm:$0xff]
    %v9750 = vld [vmem:[%s2290 + $0x79] sm:$0xff]
    %v9751 = vld [vmem:[%s2290 + $0x81] sm:$0xff]
    %v9752 = vld [vmem:[%s2290 + $0x91] sm:$0xff]
    %v9753 = vld [vmem:[%s2290 + $0x99] sm:$0xff]
    %v9754 = vld [vmem:[%s2290 + $0xa9] sm:$0xff]
    %v9755 = vld [vmem:[%s2290 + $0xb1] sm:$0xff]
    %v9756 = vld [vmem:[%s2290 + $0xc1] sm:$0xff]
    %v9757 = vld [vmem:[%s2290 + $0xc9] sm:$0xff]
    %v9758 = vld [vmem:[%s2290 + $0xd9] sm:$0xff]
    %v9759 = vld [vmem:[%s2290 + $0xe1] sm:$0xff]
    %v9760 = vld [vmem:[%s2290 + $0xf1] sm:$0xff]
    %v9761 = vld [vmem:[%s2290 + $0xf9] sm:$0xff]
    %v9762 = vld [vmem:[%s2290 + $0x109] sm:$0xff]
    %v9763 = vld [vmem:[%s2290 + $0x111] sm:$0xff]
    %v9764 = vld [vmem:[%s2290 + $0x121] sm:$0xff]
    %v9765 = vld [vmem:[%s2290 + $0x129] sm:$0xff]
    %v9766 = vld [vmem:[%s2290 + $0x139] sm:$0xff]
    %v9767 = vld [vmem:[%s2290 + $0x141] sm:$0xff]
    %v9768 = vld [vmem:[%s2290 + $0x151] sm:$0xff]
    %v9769 = vld [vmem:[%s2290 + $0x159] sm:$0xff]
    %v9770 = vld [vmem:[%s2290 + $0x169] sm:$0xff]
    %v9771 = vld [vmem:[%s2290 + $0x171] sm:$0xff]
    %v9772 = vld [vmem:[%s2290 + $0x1b1] sm:$0xff]
    %v9773 = vld [vmem:[%s2290 + $0x1b9] sm:$0xff]
    %v9774 = vld [vmem:[%s2290 + $0x1c9] sm:$0xff]
    %v9775 = vld [vmem:[%s2290 + $0x1d1] sm:$0xff]
    %v9776 = vld [vmem:[%s2290 + $0x1e1] sm:$0xff]
    %v9777 = vld [vmem:[%s2290 + $0x1e9] sm:$0xff]
    %v9778 = vld [vmem:[%s2290 + $0x1f9] sm:$0xff]
    %v9779 = vld [vmem:[%s2290 + $0x201] sm:$0xff]
    %v9780 = vld [vmem:[%s2290 + $0x211] sm:$0xff]
    %v9781 = vld [vmem:[%s2290 + $0x219] sm:$0xff]
    %v9782 = vld [vmem:[%s2290 + $0x229] sm:$0xff]
    %v9783 = vld [vmem:[%s2290 + $0x231] sm:$0xff]
    %v9784 = vld [vmem:[%s2290 + $0x241] sm:$0xff]
    %v9785 = vld [vmem:[%s2290 + $0x249] sm:$0xff]
    %v9786 = vld [vmem:[%s2290 + $0x259] sm:$0xff]
    %v9787 = vld [vmem:[%s2290 + $0x261] sm:$0xff]
    %v9788 = vld [vmem:[%s2290 + $0x271] sm:$0xff]
    %v9789 = vld [vmem:[%s2290 + $0x279] sm:$0xff]
    %v9790 = vld [vmem:[%s2290 + $0x289] sm:$0xff]
    %v9791 = vld [vmem:[%s2290 + $0x291] sm:$0xff]
    %v9792 = vld [vmem:[%s2290 + $0x2a1] sm:$0xff]
    %v9793 = vld [vmem:[%s2290 + $0x2a9] sm:$0xff]
    %v9794 = vld [vmem:[%s2290 + $0x2b9] sm:$0xff]
    %v9795 = vld [vmem:[%s2290 + $0x2c1] sm:$0xff]
    %v9796 = vld [vmem:[%s2290 + $0x2d1] sm:$0xff]
    %v9797 = vld [vmem:[%s2290 + $0x2d9] sm:$0xff]
    %v9798 = vld [vmem:[%s2290 + $0x2e9] sm:$0xff]
    %v9799 = vld [vmem:[%s2290 + $0x2f1] sm:$0xff]
    %v9800 = vld [vmem:[%s2290 + $0x301] sm:$0xff]
    %v9801 = vld [vmem:[%s2290 + $0x309] sm:$0xff]
    %v9802 = vld [vmem:[%s2290 + $0x319] sm:$0xff]
    %v9803 = vld [vmem:[%s2290 + $0x321] sm:$0xff]
    %s9804 = scalar_lea.vmem [#allocation6], 3200
    %v9805 = vld [vmem:[%s9804] sm:$0xff]
    %v9806 = vld [vmem:[%s9804 + $0x8] sm:$0xff]
    %v9807 = vld [vmem:[%s9804 + $0x10] sm:$0xff]
    %v9808 = vld [vmem:[%s9804 + $0x18] sm:$0xff]
    %v9809 = vld [vmem:[%s9804 + $0x20] sm:$0xff]
    %v9810 = vld [vmem:[%s9804 + $0x28] sm:$0xff]
    %v9811 = vld [vmem:[%s9804 + $0x30] sm:$0xff]
    %v9812 = vld [vmem:[%s9804 + $0x38] sm:$0xff]
    %v9813 = vld [vmem:[%s9804 + $0x40] sm:$0xff]
    %v9814 = vld [vmem:[%s9804 + $0x48] sm:$0xff]
    %v9815 = vld [vmem:[%s9804 + $0x50] sm:$0xff]
    %v9816 = vld [vmem:[%s9804 + $0x58] sm:$0xff]
    %v9817 = vld [vmem:[%s9804 + $0x60] sm:$0xff]
    %v9818 = vld [vmem:[%s9804 + $0x68] sm:$0xff]
    %v9819 = vld [vmem:[%s9804 + $0x70] sm:$0xff]
    %v9820 = vld [vmem:[%s9804 + $0x78] sm:$0xff]
    %9821 = vmatpush.msra.mxu0 %v9820
    %9822 = vmatpush.msra.mxu0 %v9819
    %9823 = vmatpush.msra.mxu0 %v9818
    %9824 = vmatpush.msra.mxu0 %v9817
    %9825 = vmatpush.msra.mxu0 %v9816
    %9826 = vmatpush.msra.mxu0 %v9815
    %9827 = vmatpush.msra.mxu0 %v9814
    %9828 = vmatpush.msra.mxu0 %v9813
    %9829 = vmatpush.msra.mxu0 %v9812
    %9830 = vmatpush.msra.mxu0 %v9811
    %9831 = vmatpush.msra.mxu0 %v9810
    %9832 = vmatpush.msra.mxu0 %v9809
    %9833 = vmatpush.msra.mxu0 %v9808
    %9834 = vmatpush.msra.mxu0 %v9807
    %9835 = vmatpush.msra.mxu0 %v9806
    %9836 = vmatpush.msra.mxu0 %v9805
    %9837 = vmatmul.f32.gmra.mxu0 %v9740
    %v9838 = vpop.f32.mrf.mxu0
    %v9839 = vadd.f32 0.0, %v9838
    %9840 = vmatmul.f32.gmra.mxu0 %v9741
    %v9841 = vpop.f32.mrf.mxu0
    %v9842 = vadd.f32 0.0, %v9841
    %9843 = vmatmul.f32.gmra.mxu0 %v9742
    %v9844 = vpop.f32.mrf.mxu0
    %v9845 = vadd.f32 0.0, %v9844
    %9846 = vmatmul.f32.gmra.mxu0 %v9743
    %v9847 = vpop.f32.mrf.mxu0
    %v9848 = vadd.f32 0.0, %v9847
    %9849 = vmatmul.f32.gmra.mxu0 %v9744
    %v9850 = vpop.f32.mrf.mxu0
    %v9851 = vadd.f32 0.0, %v9850
    %9852 = vmatmul.f32.gmra.mxu0 %v9745
    %v9853 = vpop.f32.mrf.mxu0
    %v9854 = vadd.f32 0.0, %v9853
    %9855 = vmatmul.f32.gmra.mxu0 %v9746
    %v9856 = vpop.f32.mrf.mxu0
    %v9857 = vadd.f32 0.0, %v9856
    %9858 = vmatmul.f32.gmra.mxu0 %v9747
    %v9859 = vpop.f32.mrf.mxu0
    %v9860 = vadd.f32 0.0, %v9859
    %9861 = vmatmul.f32.gmra.mxu0 %v9748
    %v9862 = vpop.f32.mrf.mxu0
    %v9863 = vadd.f32 0.0, %v9862
    %9864 = vmatmul.f32.gmra.mxu0 %v9749
    %v9865 = vpop.f32.mrf.mxu0
    %v9866 = vadd.f32 0.0, %v9865
    %9867 = vmatmul.f32.gmra.mxu0 %v9750
    %v9868 = vpop.f32.mrf.mxu0
    %v9869 = vadd.f32 0.0, %v9868
    %9870 = vmatmul.f32.gmra.mxu0 %v9751
    %v9871 = vpop.f32.mrf.mxu0
    %v9872 = vadd.f32 0.0, %v9871
    %9873 = vmatmul.f32.gmra.mxu0 %v9752
    %v9874 = vpop.f32.mrf.mxu0
    %v9875 = vadd.f32 0.0, %v9874
    %9876 = vmatmul.f32.gmra.mxu0 %v9753
    %v9877 = vpop.f32.mrf.mxu0
    %v9878 = vadd.f32 0.0, %v9877
    %9879 = vmatmul.f32.gmra.mxu0 %v9754
    %v9880 = vpop.f32.mrf.mxu0
    %v9881 = vadd.f32 0.0, %v9880
    %9882 = vmatmul.f32.gmra.mxu0 %v9755
    %v9883 = vpop.f32.mrf.mxu0
    %v9884 = vadd.f32 0.0, %v9883
    %9885 = vmatmul.f32.gmra.mxu0 %v9756
    %v9886 = vpop.f32.mrf.mxu0
    %v9887 = vadd.f32 0.0, %v9886
    %9888 = vmatmul.f32.gmra.mxu0 %v9757
    %v9889 = vpop.f32.mrf.mxu0
    %v9890 = vadd.f32 0.0, %v9889
    %9891 = vmatmul.f32.gmra.mxu0 %v9758
    %v9892 = vpop.f32.mrf.mxu0
    %v9893 = vadd.f32 0.0, %v9892
    %9894 = vmatmul.f32.gmra.mxu0 %v9759
    %v9895 = vpop.f32.mrf.mxu0
    %v9896 = vadd.f32 0.0, %v9895
    %9897 = vmatmul.f32.gmra.mxu0 %v9760
    %v9898 = vpop.f32.mrf.mxu0
    %v9899 = vadd.f32 0.0, %v9898
    %9900 = vmatmul.f32.gmra.mxu0 %v9761
    %v9901 = vpop.f32.mrf.mxu0
    %v9902 = vadd.f32 0.0, %v9901
    %9903 = vmatmul.f32.gmra.mxu0 %v9762
    %v9904 = vpop.f32.mrf.mxu0
    %v9905 = vadd.f32 0.0, %v9904
    %9906 = vmatmul.f32.gmra.mxu0 %v9763
    %v9907 = vpop.f32.mrf.mxu0
    %v9908 = vadd.f32 0.0, %v9907
    %9909 = vmatmul.f32.gmra.mxu0 %v9764
    %v9910 = vpop.f32.mrf.mxu0
    %v9911 = vadd.f32 0.0, %v9910
    %9912 = vmatmul.f32.gmra.mxu0 %v9765
    %v9913 = vpop.f32.mrf.mxu0
    %v9914 = vadd.f32 0.0, %v9913
    %9915 = vmatmul.f32.gmra.mxu0 %v9766
    %v9916 = vpop.f32.mrf.mxu0
    %v9917 = vadd.f32 0.0, %v9916
    %9918 = vmatmul.f32.gmra.mxu0 %v9767
    %v9919 = vpop.f32.mrf.mxu0
    %v9920 = vadd.f32 0.0, %v9919
    %9921 = vmatmul.f32.gmra.mxu0 %v9768
    %v9922 = vpop.f32.mrf.mxu0
    %v9923 = vadd.f32 0.0, %v9922
    %9924 = vmatmul.f32.gmra.mxu0 %v9769
    %v9925 = vpop.f32.mrf.mxu0
    %v9926 = vadd.f32 0.0, %v9925
    %9927 = vmatmul.f32.gmra.mxu0 %v9770
    %v9928 = vpop.f32.mrf.mxu0
    %v9929 = vadd.f32 0.0, %v9928
    %9930 = vmatmul.f32.gmra.mxu0 %v9771
    %v9931 = vpop.f32.mrf.mxu0
    %v9932 = vadd.f32 0.0, %v9931
    %9933 = vmatmul.f32.gmra.mxu0 %v9772
    %v9934 = vpop.f32.mrf.mxu0
    %v9935 = vadd.f32 0.0, %v9934
    %9936 = vmatmul.f32.gmra.mxu0 %v9773
    %v9937 = vpop.f32.mrf.mxu0
    %v9938 = vadd.f32 0.0, %v9937
    %9939 = vmatmul.f32.gmra.mxu0 %v9774
    %v9940 = vpop.f32.mrf.mxu0
    %v9941 = vadd.f32 0.0, %v9940
    %9942 = vmatmul.f32.gmra.mxu0 %v9775
    %v9943 = vpop.f32.mrf.mxu0
    %v9944 = vadd.f32 0.0, %v9943
    %9945 = vmatmul.f32.gmra.mxu0 %v9776
    %v9946 = vpop.f32.mrf.mxu0
    %v9947 = vadd.f32 0.0, %v9946
    %9948 = vmatmul.f32.gmra.mxu0 %v9777
    %v9949 = vpop.f32.mrf.mxu0
    %v9950 = vadd.f32 0.0, %v9949
    %9951 = vmatmul.f32.gmra.mxu0 %v9778
    %v9952 = vpop.f32.mrf.mxu0
    %v9953 = vadd.f32 0.0, %v9952
    %9954 = vmatmul.f32.gmra.mxu0 %v9779
    %v9955 = vpop.f32.mrf.mxu0
    %v9956 = vadd.f32 0.0, %v9955
    %9957 = vmatmul.f32.gmra.mxu0 %v9780
    %v9958 = vpop.f32.mrf.mxu0
    %v9959 = vadd.f32 0.0, %v9958
    %9960 = vmatmul.f32.gmra.mxu0 %v9781
    %v9961 = vpop.f32.mrf.mxu0
    %v9962 = vadd.f32 0.0, %v9961
    %9963 = vmatmul.f32.gmra.mxu0 %v9782
    %v9964 = vpop.f32.mrf.mxu0
    %v9965 = vadd.f32 0.0, %v9964
    %9966 = vmatmul.f32.gmra.mxu0 %v9783
    %v9967 = vpop.f32.mrf.mxu0
    %v9968 = vadd.f32 0.0, %v9967
    %9969 = vmatmul.f32.gmra.mxu0 %v9784
    %v9970 = vpop.f32.mrf.mxu0
    %v9971 = vadd.f32 0.0, %v9970
    %9972 = vmatmul.f32.gmra.mxu0 %v9785
    %v9973 = vpop.f32.mrf.mxu0
    %v9974 = vadd.f32 0.0, %v9973
    %9975 = vmatmul.f32.gmra.mxu0 %v9786
    %v9976 = vpop.f32.mrf.mxu0
    %v9977 = vadd.f32 0.0, %v9976
    %9978 = vmatmul.f32.gmra.mxu0 %v9787
    %v9979 = vpop.f32.mrf.mxu0
    %v9980 = vadd.f32 0.0, %v9979
    %9981 = vmatmul.f32.gmra.mxu0 %v9788
    %v9982 = vpop.f32.mrf.mxu0
    %v9983 = vadd.f32 0.0, %v9982
    %9984 = vmatmul.f32.gmra.mxu0 %v9789
    %v9985 = vpop.f32.mrf.mxu0
    %v9986 = vadd.f32 0.0, %v9985
    %9987 = vmatmul.f32.gmra.mxu0 %v9790
    %v9988 = vpop.f32.mrf.mxu0
    %v9989 = vadd.f32 0.0, %v9988
    %9990 = vmatmul.f32.gmra.mxu0 %v9791
    %v9991 = vpop.f32.mrf.mxu0
    %v9992 = vadd.f32 0.0, %v9991
    %9993 = vmatmul.f32.gmra.mxu0 %v9792
    %v9994 = vpop.f32.mrf.mxu0
    %v9995 = vadd.f32 0.0, %v9994
    %9996 = vmatmul.f32.gmra.mxu0 %v9793
    %v9997 = vpop.f32.mrf.mxu0
    %v9998 = vadd.f32 0.0, %v9997
    %9999 = vmatmul.f32.gmra.mxu0 %v9794
    %v10000 = vpop.f32.mrf.mxu0
    %v10001 = vadd.f32 0.0, %v10000
    %10002 = vmatmul.f32.gmra.mxu0 %v9795
    %v10003 = vpop.f32.mrf.mxu0
    %v10004 = vadd.f32 0.0, %v10003
    %10005 = vmatmul.f32.gmra.mxu0 %v9796
    %v10006 = vpop.f32.mrf.mxu0
    %v10007 = vadd.f32 0.0, %v10006
    %10008 = vmatmul.f32.gmra.mxu0 %v9797
    %v10009 = vpop.f32.mrf.mxu0
    %v10010 = vadd.f32 0.0, %v10009
    %10011 = vmatmul.f32.gmra.mxu0 %v9798
    %v10012 = vpop.f32.mrf.mxu0
    %v10013 = vadd.f32 0.0, %v10012
    %10014 = vmatmul.f32.gmra.mxu0 %v9799
    %v10015 = vpop.f32.mrf.mxu0
    %v10016 = vadd.f32 0.0, %v10015
    %10017 = vmatmul.f32.gmra.mxu0 %v9800
    %v10018 = vpop.f32.mrf.mxu0
    %v10019 = vadd.f32 0.0, %v10018
    %10020 = vmatmul.f32.gmra.mxu0 %v9801
    %v10021 = vpop.f32.mrf.mxu0
    %v10022 = vadd.f32 0.0, %v10021
    %10023 = vmatmul.f32.gmra.mxu0 %v9802
    %v10024 = vpop.f32.mrf.mxu0
    %v10025 = vadd.f32 0.0, %v10024
    %10026 = vmatmul.f32.gmra.mxu0 %v9803
    %v10027 = vpop.f32.mrf.mxu0
    %v10028 = vadd.f32 0.0, %v10027
    %10029 = vdwg.mxu0
    %v10030 = vadd.f32 %v9676, %v9839
    %v10031 = vadd.f32 %v9677, %v9842
    %v10032 = vadd.f32 %v9678, %v9845
    %v10033 = vadd.f32 %v9679, %v9848
    %v10034 = vadd.f32 %v9680, %v9851
    %v10035 = vadd.f32 %v9681, %v9854
    %v10036 = vadd.f32 %v9682, %v9857
    %v10037 = vadd.f32 %v9683, %v9860
    %v10038 = vadd.f32 %v9684, %v9863
    %v10039 = vadd.f32 %v9685, %v9866
    %v10040 = vadd.f32 %v9686, %v9869
    %v10041 = vadd.f32 %v9687, %v9872
    %v10042 = vadd.f32 %v9688, %v9875
    %v10043 = vadd.f32 %v9689, %v9878
    %v10044 = vadd.f32 %v9690, %v9881
    %v10045 = vadd.f32 %v9691, %v9884
    %v10046 = vadd.f32 %v9692, %v9887
    %v10047 = vadd.f32 %v9693, %v9890
    %v10048 = vadd.f32 %v9694, %v9893
    %v10049 = vadd.f32 %v9695, %v9896
    %v10050 = vadd.f32 %v9696, %v9899
    %v10051 = vadd.f32 %v9697, %v9902
    %v10052 = vadd.f32 %v9698, %v9905
    %v10053 = vadd.f32 %v9699, %v9908
    %v10054 = vadd.f32 %v9700, %v9911
    %v10055 = vadd.f32 %v9701, %v9914
    %v10056 = vadd.f32 %v9702, %v9917
    %v10057 = vadd.f32 %v9703, %v9920
    %v10058 = vadd.f32 %v9704, %v9923
    %v10059 = vadd.f32 %v9705, %v9926
    %v10060 = vadd.f32 %v9706, %v9929
    %v10061 = vadd.f32 %v9707, %v9932
    %v10062 = vadd.f32 %v9708, %v9935
    %v10063 = vadd.f32 %v9709, %v9938
    %v10064 = vadd.f32 %v9710, %v9941
    %v10065 = vadd.f32 %v9711, %v9944
    %v10066 = vadd.f32 %v9712, %v9947
    %v10067 = vadd.f32 %v9713, %v9950
    %v10068 = vadd.f32 %v9714, %v9953
    %v10069 = vadd.f32 %v9715, %v9956
    %v10070 = vadd.f32 %v9716, %v9959
    %v10071 = vadd.f32 %v9717, %v9962
    %v10072 = vadd.f32 %v9718, %v9965
    %v10073 = vadd.f32 %v9719, %v9968
    %v10074 = vadd.f32 %v9720, %v9971
    %v10075 = vadd.f32 %v9721, %v9974
    %v10076 = vadd.f32 %v9722, %v9977
    %v10077 = vadd.f32 %v9723, %v9980
    %v10078 = vadd.f32 %v9724, %v9983
    %v10079 = vadd.f32 %v9725, %v9986
    %v10080 = vadd.f32 %v9726, %v9989
    %v10081 = vadd.f32 %v9727, %v9992
    %v10082 = vadd.f32 %v9728, %v9995
    %v10083 = vadd.f32 %v9729, %v9998
    %v10084 = vadd.f32 %v9730, %v10001
    %v10085 = vadd.f32 %v9731, %v10004
    %v10086 = vadd.f32 %v9732, %v10007
    %v10087 = vadd.f32 %v9733, %v10010
    %v10088 = vadd.f32 %v9734, %v10013
    %v10089 = vadd.f32 %v9735, %v10016
    %v10090 = vadd.f32 %v9736, %v10019
    %v10091 = vadd.f32 %v9737, %v10022
    %v10092 = vadd.f32 %v9738, %v10025
    %v10093 = vadd.f32 %v9739, %v10028
    %v10094 = vld [vmem:[%s2290 + $0x2] sm:$0xff]
    %v10095 = vld [vmem:[%s2290 + $0xa] sm:$0xff]
    %v10096 = vld [vmem:[%s2290 + $0x1a] sm:$0xff]
    %v10097 = vld [vmem:[%s2290 + $0x22] sm:$0xff]
    %v10098 = vld [vmem:[%s2290 + $0x32] sm:$0xff]
    %v10099 = vld [vmem:[%s2290 + $0x3a] sm:$0xff]
    %v10100 = vld [vmem:[%s2290 + $0x4a] sm:$0xff]
    %v10101 = vld [vmem:[%s2290 + $0x52] sm:$0xff]
    %v10102 = vld [vmem:[%s2290 + $0x62] sm:$0xff]
    %v10103 = vld [vmem:[%s2290 + $0x6a] sm:$0xff]
    %v10104 = vld [vmem:[%s2290 + $0x7a] sm:$0xff]
    %v10105 = vld [vmem:[%s2290 + $0x82] sm:$0xff]
    %v10106 = vld [vmem:[%s2290 + $0x92] sm:$0xff]
    %v10107 = vld [vmem:[%s2290 + $0x9a] sm:$0xff]
    %v10108 = vld [vmem:[%s2290 + $0xaa] sm:$0xff]
    %v10109 = vld [vmem:[%s2290 + $0xb2] sm:$0xff]
    %v10110 = vld [vmem:[%s2290 + $0xc2] sm:$0xff]
    %v10111 = vld [vmem:[%s2290 + $0xca] sm:$0xff]
    %v10112 = vld [vmem:[%s2290 + $0xda] sm:$0xff]
    %v10113 = vld [vmem:[%s2290 + $0xe2] sm:$0xff]
    %v10114 = vld [vmem:[%s2290 + $0xf2] sm:$0xff]
    %v10115 = vld [vmem:[%s2290 + $0xfa] sm:$0xff]
    %v10116 = vld [vmem:[%s2290 + $0x10a] sm:$0xff]
    %v10117 = vld [vmem:[%s2290 + $0x112] sm:$0xff]
    %v10118 = vld [vmem:[%s2290 + $0x122] sm:$0xff]
    %v10119 = vld [vmem:[%s2290 + $0x12a] sm:$0xff]
    %v10120 = vld [vmem:[%s2290 + $0x13a] sm:$0xff]
    %v10121 = vld [vmem:[%s2290 + $0x142] sm:$0xff]
    %v10122 = vld [vmem:[%s2290 + $0x152] sm:$0xff]
    %v10123 = vld [vmem:[%s2290 + $0x15a] sm:$0xff]
    %v10124 = vld [vmem:[%s2290 + $0x16a] sm:$0xff]
    %v10125 = vld [vmem:[%s2290 + $0x172] sm:$0xff]
    %v10126 = vld [vmem:[%s2290 + $0x1b2] sm:$0xff]
    %v10127 = vld [vmem:[%s2290 + $0x1ba] sm:$0xff]
    %v10128 = vld [vmem:[%s2290 + $0x1ca] sm:$0xff]
    %v10129 = vld [vmem:[%s2290 + $0x1d2] sm:$0xff]
    %v10130 = vld [vmem:[%s2290 + $0x1e2] sm:$0xff]
    %v10131 = vld [vmem:[%s2290 + $0x1ea] sm:$0xff]
    %v10132 = vld [vmem:[%s2290 + $0x1fa] sm:$0xff]
    %v10133 = vld [vmem:[%s2290 + $0x202] sm:$0xff]
    %v10134 = vld [vmem:[%s2290 + $0x212] sm:$0xff]
    %v10135 = vld [vmem:[%s2290 + $0x21a] sm:$0xff]
    %v10136 = vld [vmem:[%s2290 + $0x22a] sm:$0xff]
    %v10137 = vld [vmem:[%s2290 + $0x232] sm:$0xff]
    %v10138 = vld [vmem:[%s2290 + $0x242] sm:$0xff]
    %v10139 = vld [vmem:[%s2290 + $0x24a] sm:$0xff]
    %v10140 = vld [vmem:[%s2290 + $0x25a] sm:$0xff]
    %v10141 = vld [vmem:[%s2290 + $0x262] sm:$0xff]
    %v10142 = vld [vmem:[%s2290 + $0x272] sm:$0xff]
    %v10143 = vld [vmem:[%s2290 + $0x27a] sm:$0xff]
    %v10144 = vld [vmem:[%s2290 + $0x28a] sm:$0xff]
    %v10145 = vld [vmem:[%s2290 + $0x292] sm:$0xff]
    %v10146 = vld [vmem:[%s2290 + $0x2a2] sm:$0xff]
    %v10147 = vld [vmem:[%s2290 + $0x2aa] sm:$0xff]
    %v10148 = vld [vmem:[%s2290 + $0x2ba] sm:$0xff]
    %v10149 = vld [vmem:[%s2290 + $0x2c2] sm:$0xff]
    %v10150 = vld [vmem:[%s2290 + $0x2d2] sm:$0xff]
    %v10151 = vld [vmem:[%s2290 + $0x2da] sm:$0xff]
    %v10152 = vld [vmem:[%s2290 + $0x2ea] sm:$0xff]
    %v10153 = vld [vmem:[%s2290 + $0x2f2] sm:$0xff]
    %v10154 = vld [vmem:[%s2290 + $0x302] sm:$0xff]
    %v10155 = vld [vmem:[%s2290 + $0x30a] sm:$0xff]
    %v10156 = vld [vmem:[%s2290 + $0x31a] sm:$0xff]
    %v10157 = vld [vmem:[%s2290 + $0x322] sm:$0xff]
    %s10158 = scalar_lea.vmem [#allocation6], 3328
    %v10159 = vld [vmem:[%s10158] sm:$0xff]
    %v10160 = vld [vmem:[%s10158 + $0x8] sm:$0xff]
    %v10161 = vld [vmem:[%s10158 + $0x10] sm:$0xff]
    %v10162 = vld [vmem:[%s10158 + $0x18] sm:$0xff]
    %v10163 = vld [vmem:[%s10158 + $0x20] sm:$0xff]
    %v10164 = vld [vmem:[%s10158 + $0x28] sm:$0xff]
    %v10165 = vld [vmem:[%s10158 + $0x30] sm:$0xff]
    %v10166 = vld [vmem:[%s10158 + $0x38] sm:$0xff]
    %v10167 = vld [vmem:[%s10158 + $0x40] sm:$0xff]
    %v10168 = vld [vmem:[%s10158 + $0x48] sm:$0xff]
    %v10169 = vld [vmem:[%s10158 + $0x50] sm:$0xff]
    %v10170 = vld [vmem:[%s10158 + $0x58] sm:$0xff]
    %v10171 = vld [vmem:[%s10158 + $0x60] sm:$0xff]
    %v10172 = vld [vmem:[%s10158 + $0x68] sm:$0xff]
    %v10173 = vld [vmem:[%s10158 + $0x70] sm:$0xff]
    %v10174 = vld [vmem:[%s10158 + $0x78] sm:$0xff]
    %10175 = vmatpush.msra.mxu0 %v10174
    %10176 = vmatpush.msra.mxu0 %v10173
    %10177 = vmatpush.msra.mxu0 %v10172
    %10178 = vmatpush.msra.mxu0 %v10171
    %10179 = vmatpush.msra.mxu0 %v10170
    %10180 = vmatpush.msra.mxu0 %v10169
    %10181 = vmatpush.msra.mxu0 %v10168
    %10182 = vmatpush.msra.mxu0 %v10167
    %10183 = vmatpush.msra.mxu0 %v10166
    %10184 = vmatpush.msra.mxu0 %v10165
    %10185 = vmatpush.msra.mxu0 %v10164
    %10186 = vmatpush.msra.mxu0 %v10163
    %10187 = vmatpush.msra.mxu0 %v10162
    %10188 = vmatpush.msra.mxu0 %v10161
    %10189 = vmatpush.msra.mxu0 %v10160
    %10190 = vmatpush.msra.mxu0 %v10159
    %10191 = vmatmul.f32.gmra.mxu0 %v10094
    %v10192 = vpop.f32.mrf.mxu0
    %v10193 = vadd.f32 0.0, %v10192
    %10194 = vmatmul.f32.gmra.mxu0 %v10095
    %v10195 = vpop.f32.mrf.mxu0
    %v10196 = vadd.f32 0.0, %v10195
    %10197 = vmatmul.f32.gmra.mxu0 %v10096
    %v10198 = vpop.f32.mrf.mxu0
    %v10199 = vadd.f32 0.0, %v10198
    %10200 = vmatmul.f32.gmra.mxu0 %v10097
    %v10201 = vpop.f32.mrf.mxu0
    %v10202 = vadd.f32 0.0, %v10201
    %10203 = vmatmul.f32.gmra.mxu0 %v10098
    %v10204 = vpop.f32.mrf.mxu0
    %v10205 = vadd.f32 0.0, %v10204
    %10206 = vmatmul.f32.gmra.mxu0 %v10099
    %v10207 = vpop.f32.mrf.mxu0
    %v10208 = vadd.f32 0.0, %v10207
    %10209 = vmatmul.f32.gmra.mxu0 %v10100
    %v10210 = vpop.f32.mrf.mxu0
    %v10211 = vadd.f32 0.0, %v10210
    %10212 = vmatmul.f32.gmra.mxu0 %v10101
    %v10213 = vpop.f32.mrf.mxu0
    %v10214 = vadd.f32 0.0, %v10213
    %10215 = vmatmul.f32.gmra.mxu0 %v10102
    %v10216 = vpop.f32.mrf.mxu0
    %v10217 = vadd.f32 0.0, %v10216
    %10218 = vmatmul.f32.gmra.mxu0 %v10103
    %v10219 = vpop.f32.mrf.mxu0
    %v10220 = vadd.f32 0.0, %v10219
    %10221 = vmatmul.f32.gmra.mxu0 %v10104
    %v10222 = vpop.f32.mrf.mxu0
    %v10223 = vadd.f32 0.0, %v10222
    %10224 = vmatmul.f32.gmra.mxu0 %v10105
    %v10225 = vpop.f32.mrf.mxu0
    %v10226 = vadd.f32 0.0, %v10225
    %10227 = vmatmul.f32.gmra.mxu0 %v10106
    %v10228 = vpop.f32.mrf.mxu0
    %v10229 = vadd.f32 0.0, %v10228
    %10230 = vmatmul.f32.gmra.mxu0 %v10107
    %v10231 = vpop.f32.mrf.mxu0
    %v10232 = vadd.f32 0.0, %v10231
    %10233 = vmatmul.f32.gmra.mxu0 %v10108
    %v10234 = vpop.f32.mrf.mxu0
    %v10235 = vadd.f32 0.0, %v10234
    %10236 = vmatmul.f32.gmra.mxu0 %v10109
    %v10237 = vpop.f32.mrf.mxu0
    %v10238 = vadd.f32 0.0, %v10237
    %10239 = vmatmul.f32.gmra.mxu0 %v10110
    %v10240 = vpop.f32.mrf.mxu0
    %v10241 = vadd.f32 0.0, %v10240
    %10242 = vmatmul.f32.gmra.mxu0 %v10111
    %v10243 = vpop.f32.mrf.mxu0
    %v10244 = vadd.f32 0.0, %v10243
    %10245 = vmatmul.f32.gmra.mxu0 %v10112
    %v10246 = vpop.f32.mrf.mxu0
    %v10247 = vadd.f32 0.0, %v10246
    %10248 = vmatmul.f32.gmra.mxu0 %v10113
    %v10249 = vpop.f32.mrf.mxu0
    %v10250 = vadd.f32 0.0, %v10249
    %10251 = vmatmul.f32.gmra.mxu0 %v10114
    %v10252 = vpop.f32.mrf.mxu0
    %v10253 = vadd.f32 0.0, %v10252
    %10254 = vmatmul.f32.gmra.mxu0 %v10115
    %v10255 = vpop.f32.mrf.mxu0
    %v10256 = vadd.f32 0.0, %v10255
    %10257 = vmatmul.f32.gmra.mxu0 %v10116
    %v10258 = vpop.f32.mrf.mxu0
    %v10259 = vadd.f32 0.0, %v10258
    %10260 = vmatmul.f32.gmra.mxu0 %v10117
    %v10261 = vpop.f32.mrf.mxu0
    %v10262 = vadd.f32 0.0, %v10261
    %10263 = vmatmul.f32.gmra.mxu0 %v10118
    %v10264 = vpop.f32.mrf.mxu0
    %v10265 = vadd.f32 0.0, %v10264
    %10266 = vmatmul.f32.gmra.mxu0 %v10119
    %v10267 = vpop.f32.mrf.mxu0
    %v10268 = vadd.f32 0.0, %v10267
    %10269 = vmatmul.f32.gmra.mxu0 %v10120
    %v10270 = vpop.f32.mrf.mxu0
    %v10271 = vadd.f32 0.0, %v10270
    %10272 = vmatmul.f32.gmra.mxu0 %v10121
    %v10273 = vpop.f32.mrf.mxu0
    %v10274 = vadd.f32 0.0, %v10273
    %10275 = vmatmul.f32.gmra.mxu0 %v10122
    %v10276 = vpop.f32.mrf.mxu0
    %v10277 = vadd.f32 0.0, %v10276
    %10278 = vmatmul.f32.gmra.mxu0 %v10123
    %v10279 = vpop.f32.mrf.mxu0
    %v10280 = vadd.f32 0.0, %v10279
    %10281 = vmatmul.f32.gmra.mxu0 %v10124
    %v10282 = vpop.f32.mrf.mxu0
    %v10283 = vadd.f32 0.0, %v10282
    %10284 = vmatmul.f32.gmra.mxu0 %v10125
    %v10285 = vpop.f32.mrf.mxu0
    %v10286 = vadd.f32 0.0, %v10285
    %10287 = vmatmul.f32.gmra.mxu0 %v10126
    %v10288 = vpop.f32.mrf.mxu0
    %v10289 = vadd.f32 0.0, %v10288
    %10290 = vmatmul.f32.gmra.mxu0 %v10127
    %v10291 = vpop.f32.mrf.mxu0
    %v10292 = vadd.f32 0.0, %v10291
    %10293 = vmatmul.f32.gmra.mxu0 %v10128
    %v10294 = vpop.f32.mrf.mxu0
    %v10295 = vadd.f32 0.0, %v10294
    %10296 = vmatmul.f32.gmra.mxu0 %v10129
    %v10297 = vpop.f32.mrf.mxu0
    %v10298 = vadd.f32 0.0, %v10297
    %10299 = vmatmul.f32.gmra.mxu0 %v10130
    %v10300 = vpop.f32.mrf.mxu0
    %v10301 = vadd.f32 0.0, %v10300
    %10302 = vmatmul.f32.gmra.mxu0 %v10131
    %v10303 = vpop.f32.mrf.mxu0
    %v10304 = vadd.f32 0.0, %v10303
    %10305 = vmatmul.f32.gmra.mxu0 %v10132
    %v10306 = vpop.f32.mrf.mxu0
    %v10307 = vadd.f32 0.0, %v10306
    %10308 = vmatmul.f32.gmra.mxu0 %v10133
    %v10309 = vpop.f32.mrf.mxu0
    %v10310 = vadd.f32 0.0, %v10309
    %10311 = vmatmul.f32.gmra.mxu0 %v10134
    %v10312 = vpop.f32.mrf.mxu0
    %v10313 = vadd.f32 0.0, %v10312
    %10314 = vmatmul.f32.gmra.mxu0 %v10135
    %v10315 = vpop.f32.mrf.mxu0
    %v10316 = vadd.f32 0.0, %v10315
    %10317 = vmatmul.f32.gmra.mxu0 %v10136
    %v10318 = vpop.f32.mrf.mxu0
    %v10319 = vadd.f32 0.0, %v10318
    %10320 = vmatmul.f32.gmra.mxu0 %v10137
    %v10321 = vpop.f32.mrf.mxu0
    %v10322 = vadd.f32 0.0, %v10321
    %10323 = vmatmul.f32.gmra.mxu0 %v10138
    %v10324 = vpop.f32.mrf.mxu0
    %v10325 = vadd.f32 0.0, %v10324
    %10326 = vmatmul.f32.gmra.mxu0 %v10139
    %v10327 = vpop.f32.mrf.mxu0
    %v10328 = vadd.f32 0.0, %v10327
    %10329 = vmatmul.f32.gmra.mxu0 %v10140
    %v10330 = vpop.f32.mrf.mxu0
    %v10331 = vadd.f32 0.0, %v10330
    %10332 = vmatmul.f32.gmra.mxu0 %v10141
    %v10333 = vpop.f32.mrf.mxu0
    %v10334 = vadd.f32 0.0, %v10333
    %10335 = vmatmul.f32.gmra.mxu0 %v10142
    %v10336 = vpop.f32.mrf.mxu0
    %v10337 = vadd.f32 0.0, %v10336
    %10338 = vmatmul.f32.gmra.mxu0 %v10143
    %v10339 = vpop.f32.mrf.mxu0
    %v10340 = vadd.f32 0.0, %v10339
    %10341 = vmatmul.f32.gmra.mxu0 %v10144
    %v10342 = vpop.f32.mrf.mxu0
    %v10343 = vadd.f32 0.0, %v10342
    %10344 = vmatmul.f32.gmra.mxu0 %v10145
    %v10345 = vpop.f32.mrf.mxu0
    %v10346 = vadd.f32 0.0, %v10345
    %10347 = vmatmul.f32.gmra.mxu0 %v10146
    %v10348 = vpop.f32.mrf.mxu0
    %v10349 = vadd.f32 0.0, %v10348
    %10350 = vmatmul.f32.gmra.mxu0 %v10147
    %v10351 = vpop.f32.mrf.mxu0
    %v10352 = vadd.f32 0.0, %v10351
    %10353 = vmatmul.f32.gmra.mxu0 %v10148
    %v10354 = vpop.f32.mrf.mxu0
    %v10355 = vadd.f32 0.0, %v10354
    %10356 = vmatmul.f32.gmra.mxu0 %v10149
    %v10357 = vpop.f32.mrf.mxu0
    %v10358 = vadd.f32 0.0, %v10357
    %10359 = vmatmul.f32.gmra.mxu0 %v10150
    %v10360 = vpop.f32.mrf.mxu0
    %v10361 = vadd.f32 0.0, %v10360
    %10362 = vmatmul.f32.gmra.mxu0 %v10151
    %v10363 = vpop.f32.mrf.mxu0
    %v10364 = vadd.f32 0.0, %v10363
    %10365 = vmatmul.f32.gmra.mxu0 %v10152
    %v10366 = vpop.f32.mrf.mxu0
    %v10367 = vadd.f32 0.0, %v10366
    %10368 = vmatmul.f32.gmra.mxu0 %v10153
    %v10369 = vpop.f32.mrf.mxu0
    %v10370 = vadd.f32 0.0, %v10369
    %10371 = vmatmul.f32.gmra.mxu0 %v10154
    %v10372 = vpop.f32.mrf.mxu0
    %v10373 = vadd.f32 0.0, %v10372
    %10374 = vmatmul.f32.gmra.mxu0 %v10155
    %v10375 = vpop.f32.mrf.mxu0
    %v10376 = vadd.f32 0.0, %v10375
    %10377 = vmatmul.f32.gmra.mxu0 %v10156
    %v10378 = vpop.f32.mrf.mxu0
    %v10379 = vadd.f32 0.0, %v10378
    %10380 = vmatmul.f32.gmra.mxu0 %v10157
    %v10381 = vpop.f32.mrf.mxu0
    %v10382 = vadd.f32 0.0, %v10381
    %10383 = vdwg.mxu0
    %v10384 = vadd.f32 %v10030, %v10193
    %v10385 = vadd.f32 %v10031, %v10196
    %v10386 = vadd.f32 %v10032, %v10199
    %v10387 = vadd.f32 %v10033, %v10202
    %v10388 = vadd.f32 %v10034, %v10205
    %v10389 = vadd.f32 %v10035, %v10208
    %v10390 = vadd.f32 %v10036, %v10211
    %v10391 = vadd.f32 %v10037, %v10214
    %v10392 = vadd.f32 %v10038, %v10217
    %v10393 = vadd.f32 %v10039, %v10220
    %v10394 = vadd.f32 %v10040, %v10223
    %v10395 = vadd.f32 %v10041, %v10226
    %v10396 = vadd.f32 %v10042, %v10229
    %v10397 = vadd.f32 %v10043, %v10232
    %v10398 = vadd.f32 %v10044, %v10235
    %v10399 = vadd.f32 %v10045, %v10238
    %v10400 = vadd.f32 %v10046, %v10241
    %v10401 = vadd.f32 %v10047, %v10244
    %v10402 = vadd.f32 %v10048, %v10247
    %v10403 = vadd.f32 %v10049, %v10250
    %v10404 = vadd.f32 %v10050, %v10253
    %v10405 = vadd.f32 %v10051, %v10256
    %v10406 = vadd.f32 %v10052, %v10259
    %v10407 = vadd.f32 %v10053, %v10262
    %v10408 = vadd.f32 %v10054, %v10265
    %v10409 = vadd.f32 %v10055, %v10268
    %v10410 = vadd.f32 %v10056, %v10271
    %v10411 = vadd.f32 %v10057, %v10274
    %v10412 = vadd.f32 %v10058, %v10277
    %v10413 = vadd.f32 %v10059, %v10280
    %v10414 = vadd.f32 %v10060, %v10283
    %v10415 = vadd.f32 %v10061, %v10286
    %v10416 = vadd.f32 %v10062, %v10289
    %v10417 = vadd.f32 %v10063, %v10292
    %v10418 = vadd.f32 %v10064, %v10295
    %v10419 = vadd.f32 %v10065, %v10298
    %v10420 = vadd.f32 %v10066, %v10301
    %v10421 = vadd.f32 %v10067, %v10304
    %v10422 = vadd.f32 %v10068, %v10307
    %v10423 = vadd.f32 %v10069, %v10310
    %v10424 = vadd.f32 %v10070, %v10313
    %v10425 = vadd.f32 %v10071, %v10316
    %v10426 = vadd.f32 %v10072, %v10319
    %v10427 = vadd.f32 %v10073, %v10322
    %v10428 = vadd.f32 %v10074, %v10325
    %v10429 = vadd.f32 %v10075, %v10328
    %v10430 = vadd.f32 %v10076, %v10331
    %v10431 = vadd.f32 %v10077, %v10334
    %v10432 = vadd.f32 %v10078, %v10337
    %v10433 = vadd.f32 %v10079, %v10340
    %v10434 = vadd.f32 %v10080, %v10343
    %v10435 = vadd.f32 %v10081, %v10346
    %v10436 = vadd.f32 %v10082, %v10349
    %v10437 = vadd.f32 %v10083, %v10352
    %v10438 = vadd.f32 %v10084, %v10355
    %v10439 = vadd.f32 %v10085, %v10358
    %v10440 = vadd.f32 %v10086, %v10361
    %v10441 = vadd.f32 %v10087, %v10364
    %v10442 = vadd.f32 %v10088, %v10367
    %v10443 = vadd.f32 %v10089, %v10370
    %v10444 = vadd.f32 %v10090, %v10373
    %v10445 = vadd.f32 %v10091, %v10376
    %v10446 = vadd.f32 %v10092, %v10379
    %v10447 = vadd.f32 %v10093, %v10382
    %v10448 = vadd.f32 %v10384, %v10385
    %v10449 = vadd.f32 %v10448, %v10386
    %v10450 = vadd.f32 %v10449, %v10387
    %v10451 = vadd.f32 %v10450, %v10388
    %v10452 = vadd.f32 %v10451, %v10389
    %v10453 = vadd.f32 %v10452, %v10390
    %v10454 = vadd.f32 %v10453, %v10391
    %v10455 = vadd.f32 %v10454, %v10392
    %v10456 = vadd.f32 %v10455, %v10393
    %v10457 = vadd.f32 %v10456, %v10394
    %v10458 = vadd.f32 %v10457, %v10395
    %v10459 = vadd.f32 %v10458, %v10396
    %v10460 = vadd.f32 %v10459, %v10397
    %v10461 = vadd.f32 %v10460, %v10398
    %v10462 = vadd.f32 %v10461, %v10399
    %v10463 = vadd.f32 %v10462, %v10400
    %v10464 = vadd.f32 %v10463, %v10401
    %v10465 = vadd.f32 %v10464, %v10402
    %v10466 = vadd.f32 %v10465, %v10403
    %v10467 = vadd.f32 %v10466, %v10404
    %v10468 = vadd.f32 %v10467, %v10405
    %v10469 = vadd.f32 %v10468, %v10406
    %v10470 = vadd.f32 %v10469, %v10407
    %v10471 = vadd.f32 %v10470, %v10408
    %v10472 = vadd.f32 %v10471, %v10409
    %v10473 = vadd.f32 %v10472, %v10410
    %v10474 = vadd.f32 %v10473, %v10411
    %v10475 = vadd.f32 %v10474, %v10412
    %v10476 = vadd.f32 %v10475, %v10413
    %v10477 = vadd.f32 %v10476, %v10414
    %v10478 = vadd.f32 %v10477, %v10415
    %v10479 = vadd.f32 %v10478, %v10416
    %v10480 = vadd.f32 %v10479, %v10417
    %v10481 = vadd.f32 %v10480, %v10418
    %v10482 = vadd.f32 %v10481, %v10419
    %v10483 = vadd.f32 %v10482, %v10420
    %v10484 = vadd.f32 %v10483, %v10421
    %v10485 = vadd.f32 %v10484, %v10422
    %v10486 = vadd.f32 %v10485, %v10423
    %v10487 = vadd.f32 %v10486, %v10424
    %v10488 = vadd.f32 %v10487, %v10425
    %v10489 = vadd.f32 %v10488, %v10426
    %v10490 = vadd.f32 %v10489, %v10427
    %v10491 = vadd.f32 %v10490, %v10428
    %v10492 = vadd.f32 %v10491, %v10429
    %v10493 = vadd.f32 %v10492, %v10430
    %v10494 = vadd.f32 %v10493, %v10431
    %v10495 = vadd.f32 %v10494, %v10432
    %v10496 = vadd.f32 %v10495, %v10433
    %v10497 = vadd.f32 %v10496, %v10434
    %v10498 = vadd.f32 %v10497, %v10435
    %v10499 = vadd.f32 %v10498, %v10436
    %v10500 = vadd.f32 %v10499, %v10437
    %v10501 = vadd.f32 %v10500, %v10438
    %v10502 = vadd.f32 %v10501, %v10439
    %v10503 = vadd.f32 %v10502, %v10440
    %v10504 = vadd.f32 %v10503, %v10441
    %v10505 = vadd.f32 %v10504, %v10442
    %v10506 = vadd.f32 %v10505, %v10443
    %v10507 = vadd.f32 %v10506, %v10444
    %v10508 = vadd.f32 %v10507, %v10445
    %v10509 = vadd.f32 %v10508, %v10446
    %v10510 = vadd.f32 %v10509, %v10447
    %v10511 = vrot.slane %v10510, 4
    %v10512 = vadd.f32 %v10510, %v10511
    %v10513 = vrot.slane %v10512, 2
    %v10514 = vadd.f32 %v10512, %v10513
    %v10515 = vrot.slane %v10514, 1
    %v10516 = vadd.f32 %v10514, %v10515
    %v10517 = vmul.f32 %v10516, %v3428
    %v10518 = vmul.f32 %v10384, %v10384
    %v10519 = vmul.f32 %v10385, %v10385
    %v10520 = vmul.f32 %v10386, %v10386
    %v10521 = vmul.f32 %v10387, %v10387
    %v10522 = vmul.f32 %v10388, %v10388
    %v10523 = vmul.f32 %v10389, %v10389
    %v10524 = vmul.f32 %v10390, %v10390
    %v10525 = vmul.f32 %v10391, %v10391
    %v10526 = vmul.f32 %v10392, %v10392
    %v10527 = vmul.f32 %v10393, %v10393
    %v10528 = vmul.f32 %v10394, %v10394
    %v10529 = vmul.f32 %v10395, %v10395
    %v10530 = vmul.f32 %v10396, %v10396
    %v10531 = vmul.f32 %v10397, %v10397
    %v10532 = vmul.f32 %v10398, %v10398
    %v10533 = vmul.f32 %v10399, %v10399
    %v10534 = vmul.f32 %v10400, %v10400
    %v10535 = vmul.f32 %v10401, %v10401
    %v10536 = vmul.f32 %v10402, %v10402
    %v10537 = vmul.f32 %v10403, %v10403
    %v10538 = vmul.f32 %v10404, %v10404
    %v10539 = vmul.f32 %v10405, %v10405
    %v10540 = vmul.f32 %v10406, %v10406
    %v10541 = vmul.f32 %v10407, %v10407
    %v10542 = vmul.f32 %v10408, %v10408
    %v10543 = vmul.f32 %v10409, %v10409
    %v10544 = vmul.f32 %v10410, %v10410
    %v10545 = vmul.f32 %v10411, %v10411
    %v10546 = vmul.f32 %v10412, %v10412
    %v10547 = vmul.f32 %v10413, %v10413
    %v10548 = vmul.f32 %v10414, %v10414
    %v10549 = vmul.f32 %v10415, %v10415
    %v10550 = vmul.f32 %v10416, %v10416
    %v10551 = vmul.f32 %v10417, %v10417
    %v10552 = vmul.f32 %v10418, %v10418
    %v10553 = vmul.f32 %v10419, %v10419
    %v10554 = vmul.f32 %v10420, %v10420
    %v10555 = vmul.f32 %v10421, %v10421
    %v10556 = vmul.f32 %v10422, %v10422
    %v10557 = vmul.f32 %v10423, %v10423
    %v10558 = vmul.f32 %v10424, %v10424
    %v10559 = vmul.f32 %v10425, %v10425
    %v10560 = vmul.f32 %v10426, %v10426
    %v10561 = vmul.f32 %v10427, %v10427
    %v10562 = vmul.f32 %v10428, %v10428
    %v10563 = vmul.f32 %v10429, %v10429
    %v10564 = vmul.f32 %v10430, %v10430
    %v10565 = vmul.f32 %v10431, %v10431
    %v10566 = vmul.f32 %v10432, %v10432
    %v10567 = vmul.f32 %v10433, %v10433
    %v10568 = vmul.f32 %v10434, %v10434
    %v10569 = vmul.f32 %v10435, %v10435
    %v10570 = vmul.f32 %v10436, %v10436
    %v10571 = vmul.f32 %v10437, %v10437
    %v10572 = vmul.f32 %v10438, %v10438
    %v10573 = vmul.f32 %v10439, %v10439
    %v10574 = vmul.f32 %v10440, %v10440
    %v10575 = vmul.f32 %v10441, %v10441
    %v10576 = vmul.f32 %v10442, %v10442
    %v10577 = vmul.f32 %v10443, %v10443
    %v10578 = vmul.f32 %v10444, %v10444
    %v10579 = vmul.f32 %v10445, %v10445
    %v10580 = vmul.f32 %v10446, %v10446
    %v10581 = vmul.f32 %v10447, %v10447
    %v10582 = vadd.f32 %v10518, %v10519
    %v10583 = vadd.f32 %v10582, %v10520
    %v10584 = vadd.f32 %v10583, %v10521
    %v10585 = vadd.f32 %v10584, %v10522
    %v10586 = vadd.f32 %v10585, %v10523
    %v10587 = vadd.f32 %v10586, %v10524
    %v10588 = vadd.f32 %v10587, %v10525
    %v10589 = vadd.f32 %v10588, %v10526
    %v10590 = vadd.f32 %v10589, %v10527
    %v10591 = vadd.f32 %v10590, %v10528
    %v10592 = vadd.f32 %v10591, %v10529
    %v10593 = vadd.f32 %v10592, %v10530
    %v10594 = vadd.f32 %v10593, %v10531
    %v10595 = vadd.f32 %v10594, %v10532
    %v10596 = vadd.f32 %v10595, %v10533
    %v10597 = vadd.f32 %v10596, %v10534
    %v10598 = vadd.f32 %v10597, %v10535
    %v10599 = vadd.f32 %v10598, %v10536
    %v10600 = vadd.f32 %v10599, %v10537
    %v10601 = vadd.f32 %v10600, %v10538
    %v10602 = vadd.f32 %v10601, %v10539
    %v10603 = vadd.f32 %v10602, %v10540
    %v10604 = vadd.f32 %v10603, %v10541
    %v10605 = vadd.f32 %v10604, %v10542
    %v10606 = vadd.f32 %v10605, %v10543
    %v10607 = vadd.f32 %v10606, %v10544
    %v10608 = vadd.f32 %v10607, %v10545
    %v10609 = vadd.f32 %v10608, %v10546
    %v10610 = vadd.f32 %v10609, %v10547
    %v10611 = vadd.f32 %v10610, %v10548
    %v10612 = vadd.f32 %v10611, %v10549
    %v10613 = vadd.f32 %v10612, %v10550
    %v10614 = vadd.f32 %v10613, %v10551
    %v10615 = vadd.f32 %v10614, %v10552
    %v10616 = vadd.f32 %v10615, %v10553
    %v10617 = vadd.f32 %v10616, %v10554
    %v10618 = vadd.f32 %v10617, %v10555
    %v10619 = vadd.f32 %v10618, %v10556
    %v10620 = vadd.f32 %v10619, %v10557
    %v10621 = vadd.f32 %v10620, %v10558
    %v10622 = vadd.f32 %v10621, %v10559
    %v10623 = vadd.f32 %v10622, %v10560
    %v10624 = vadd.f32 %v10623, %v10561
    %v10625 = vadd.f32 %v10624, %v10562
    %v10626 = vadd.f32 %v10625, %v10563
    %v10627 = vadd.f32 %v10626, %v10564
    %v10628 = vadd.f32 %v10627, %v10565
    %v10629 = vadd.f32 %v10628, %v10566
    %v10630 = vadd.f32 %v10629, %v10567
    %v10631 = vadd.f32 %v10630, %v10568
    %v10632 = vadd.f32 %v10631, %v10569
    %v10633 = vadd.f32 %v10632, %v10570
    %v10634 = vadd.f32 %v10633, %v10571
    %v10635 = vadd.f32 %v10634, %v10572
    %v10636 = vadd.f32 %v10635, %v10573
    %v10637 = vadd.f32 %v10636, %v10574
    %v10638 = vadd.f32 %v10637, %v10575
    %v10639 = vadd.f32 %v10638, %v10576
    %v10640 = vadd.f32 %v10639, %v10577
    %v10641 = vadd.f32 %v10640, %v10578
    %v10642 = vadd.f32 %v10641, %v10579
    %v10643 = vadd.f32 %v10642, %v10580
    %v10644 = vadd.f32 %v10643, %v10581
    %v10645 = vrot.slane %v10644, 4
    %v10646 = vadd.f32 %v10644, %v10645
    %v10647 = vrot.slane %v10646, 2
    %v10648 = vadd.f32 %v10646, %v10647
    %v10649 = vrot.slane %v10648, 1
    %v10650 = vadd.f32 %v10648, %v10649
    %v10651 = vmul.f32 %v10650, %v3428
    %v10652 = vmul.f32 %v10517, %v10517
    %v10653 = vsub.f32 %v10651, %v10652
    %v10654 = vmax.f32 %v10653, 0.0
    %s10655 = scalar_lea.vmem [#allocation8], 2
    %v10656 = vld [vmem:[%s10655] sm:$0x1]
    %v10657 = vadd.f32 %v10654, 1e-05
    %v10658 = vrsqrt.pop %v10657
    %v10659 = vmul.f32 %v10658, %v10657
    %v10660 = vmul.f32 %v10659, %v10658
    %v10661 = vmul.f32 0.5, %v10660
    %v10662 = vsub.f32 1.5, %v10661
    %v10663 = vmul.f32 %v10658, %v10662
    %vm10664 = vweird.f32 %v10657
    %vm10665 = vweird.f32 %v10658
    %vm10666 = vmor %vm10664, %vm10665
    %v10667 = vsel %vm10666, %v10658, %v10663
    %v10668 = vmul.f32 %v10656, %v10667
    %s10669 = scalar_lea.vmem [#allocation9], 2
    %v10670 = vld [vmem:[%s10669] sm:$0x1]
    %v10671 = vmul.f32 %v10517, %v10668
    %v10672 = vsub.f32 %v10670, %v10671
    %v10674 = vperm.slane %v10668, 0
    %v10676 = vmul.f32 %v10384, %v10674
    %v10677 = vmul.f32 %v10385, %v10674
    %v10678 = vmul.f32 %v10386, %v10674
    %v10679 = vmul.f32 %v10387, %v10674
    %v10680 = vmul.f32 %v10388, %v10674
    %v10681 = vmul.f32 %v10389, %v10674
    %v10682 = vmul.f32 %v10390, %v10674
    %v10683 = vmul.f32 %v10391, %v10674
    %v10684 = vmul.f32 %v10392, %v10674
    %v10685 = vmul.f32 %v10393, %v10674
    %v10686 = vmul.f32 %v10394, %v10674
    %v10687 = vmul.f32 %v10395, %v10674
    %v10688 = vmul.f32 %v10396, %v10674
    %v10689 = vmul.f32 %v10397, %v10674
    %v10690 = vmul.f32 %v10398, %v10674
    %v10691 = vmul.f32 %v10399, %v10674
    %v10692 = vmul.f32 %v10400, %v10674
    %v10693 = vmul.f32 %v10401, %v10674
    %v10694 = vmul.f32 %v10402, %v10674
    %v10695 = vmul.f32 %v10403, %v10674
    %v10696 = vmul.f32 %v10404, %v10674
    %v10697 = vmul.f32 %v10405, %v10674
    %v10698 = vmul.f32 %v10406, %v10674
    %v10699 = vmul.f32 %v10407, %v10674
    %v10700 = vmul.f32 %v10408, %v10674
    %v10701 = vmul.f32 %v10409, %v10674
    %v10702 = vmul.f32 %v10410, %v10674
    %v10703 = vmul.f32 %v10411, %v10674
    %v10704 = vmul.f32 %v10412, %v10674
    %v10705 = vmul.f32 %v10413, %v10674
    %v10706 = vmul.f32 %v10414, %v10674
    %v10707 = vmul.f32 %v10415, %v10674
    %v10708 = vmul.f32 %v10416, %v10674
    %v10709 = vmul.f32 %v10417, %v10674
    %v10710 = vmul.f32 %v10418, %v10674
    %v10711 = vmul.f32 %v10419, %v10674
    %v10712 = vmul.f32 %v10420, %v10674
    %v10713 = vmul.f32 %v10421, %v10674
    %v10714 = vmul.f32 %v10422, %v10674
    %v10715 = vmul.f32 %v10423, %v10674
    %v10716 = vmul.f32 %v10424, %v10674
    %v10717 = vmul.f32 %v10425, %v10674
    %v10718 = vmul.f32 %v10426, %v10674
    %v10719 = vmul.f32 %v10427, %v10674
    %v10720 = vmul.f32 %v10428, %v10674
    %v10721 = vmul.f32 %v10429, %v10674
    %v10722 = vmul.f32 %v10430, %v10674
    %v10723 = vmul.f32 %v10431, %v10674
    %v10724 = vmul.f32 %v10432, %v10674
    %v10725 = vmul.f32 %v10433, %v10674
    %v10726 = vmul.f32 %v10434, %v10674
    %v10727 = vmul.f32 %v10435, %v10674
    %v10728 = vmul.f32 %v10436, %v10674
    %v10729 = vmul.f32 %v10437, %v10674
    %v10730 = vmul.f32 %v10438, %v10674
    %v10731 = vmul.f32 %v10439, %v10674
    %v10732 = vmul.f32 %v10440, %v10674
    %v10733 = vmul.f32 %v10441, %v10674
    %v10734 = vmul.f32 %v10442, %v10674
    %v10735 = vmul.f32 %v10443, %v10674
    %v10736 = vmul.f32 %v10444, %v10674
    %v10737 = vmul.f32 %v10445, %v10674
    %v10738 = vmul.f32 %v10446, %v10674
    %v10739 = vmul.f32 %v10447, %v10674
    %v10741 = vperm.slane %v10672, 0
    %v10743 = vadd.f32 %v10676, %v10741
    %v10744 = vadd.f32 %v10677, %v10741
    %v10745 = vadd.f32 %v10678, %v10741
    %v10746 = vadd.f32 %v10679, %v10741
    %v10747 = vadd.f32 %v10680, %v10741
    %v10748 = vadd.f32 %v10681, %v10741
    %v10749 = vadd.f32 %v10682, %v10741
    %v10750 = vadd.f32 %v10683, %v10741
    %v10751 = vadd.f32 %v10684, %v10741
    %v10752 = vadd.f32 %v10685, %v10741
    %v10753 = vadd.f32 %v10686, %v10741
    %v10754 = vadd.f32 %v10687, %v10741
    %v10755 = vadd.f32 %v10688, %v10741
    %v10756 = vadd.f32 %v10689, %v10741
    %v10757 = vadd.f32 %v10690, %v10741
    %v10758 = vadd.f32 %v10691, %v10741
    %v10759 = vadd.f32 %v10692, %v10741
    %v10760 = vadd.f32 %v10693, %v10741
    %v10761 = vadd.f32 %v10694, %v10741
    %v10762 = vadd.f32 %v10695, %v10741
    %v10763 = vadd.f32 %v10696, %v10741
    %v10764 = vadd.f32 %v10697, %v10741
    %v10765 = vadd.f32 %v10698, %v10741
    %v10766 = vadd.f32 %v10699, %v10741
    %v10767 = vadd.f32 %v10700, %v10741
    %v10768 = vadd.f32 %v10701, %v10741
    %v10769 = vadd.f32 %v10702, %v10741
    %v10770 = vadd.f32 %v10703, %v10741
    %v10771 = vadd.f32 %v10704, %v10741
    %v10772 = vadd.f32 %v10705, %v10741
    %v10773 = vadd.f32 %v10706, %v10741
    %v10774 = vadd.f32 %v10707, %v10741
    %v10775 = vadd.f32 %v10708, %v10741
    %v10776 = vadd.f32 %v10709, %v10741
    %v10777 = vadd.f32 %v10710, %v10741
    %v10778 = vadd.f32 %v10711, %v10741
    %v10779 = vadd.f32 %v10712, %v10741
    %v10780 = vadd.f32 %v10713, %v10741
    %v10781 = vadd.f32 %v10714, %v10741
    %v10782 = vadd.f32 %v10715, %v10741
    %v10783 = vadd.f32 %v10716, %v10741
    %v10784 = vadd.f32 %v10717, %v10741
    %v10785 = vadd.f32 %v10718, %v10741
    %v10786 = vadd.f32 %v10719, %v10741
    %v10787 = vadd.f32 %v10720, %v10741
    %v10788 = vadd.f32 %v10721, %v10741
    %v10789 = vadd.f32 %v10722, %v10741
    %v10790 = vadd.f32 %v10723, %v10741
    %v10791 = vadd.f32 %v10724, %v10741
    %v10792 = vadd.f32 %v10725, %v10741
    %v10793 = vadd.f32 %v10726, %v10741
    %v10794 = vadd.f32 %v10727, %v10741
    %v10795 = vadd.f32 %v10728, %v10741
    %v10796 = vadd.f32 %v10729, %v10741
    %v10797 = vadd.f32 %v10730, %v10741
    %v10798 = vadd.f32 %v10731, %v10741
    %v10799 = vadd.f32 %v10732, %v10741
    %v10800 = vadd.f32 %v10733, %v10741
    %v10801 = vadd.f32 %v10734, %v10741
    %v10802 = vadd.f32 %v10735, %v10741
    %v10803 = vadd.f32 %v10736, %v10741
    %v10804 = vadd.f32 %v10737, %v10741
    %v10805 = vadd.f32 %v10738, %v10741
    %v10806 = vadd.f32 %v10739, %v10741
    %v10807 = vadd.f32 %v10743, %v8678
    %v10808 = vadd.f32 %v10744, %v8679
    %v10809 = vadd.f32 %v10745, %v8680
    %v10810 = vadd.f32 %v10746, %v8681
    %v10811 = vadd.f32 %v10747, %v8682
    %v10812 = vadd.f32 %v10748, %v8683
    %v10813 = vadd.f32 %v10749, %v8684
    %v10814 = vadd.f32 %v10750, %v8685
    %v10815 = vadd.f32 %v10751, %v8686
    %v10816 = vadd.f32 %v10752, %v8687
    %v10817 = vadd.f32 %v10753, %v8688
    %v10818 = vadd.f32 %v10754, %v8689
    %v10819 = vadd.f32 %v10755, %v8690
    %v10820 = vadd.f32 %v10756, %v8691
    %v10821 = vadd.f32 %v10757, %v8692
    %v10822 = vadd.f32 %v10758, %v8693
    %v10823 = vadd.f32 %v10759, %v8694
    %v10824 = vadd.f32 %v10760, %v8695
    %v10825 = vadd.f32 %v10761, %v8696
    %v10826 = vadd.f32 %v10762, %v8697
    %v10827 = vadd.f32 %v10763, %v8698
    %v10828 = vadd.f32 %v10764, %v8699
    %v10829 = vadd.f32 %v10765, %v8700
    %v10830 = vadd.f32 %v10766, %v8701
    %v10831 = vadd.f32 %v10767, %v8702
    %v10832 = vadd.f32 %v10768, %v8703
    %v10833 = vadd.f32 %v10769, %v8704
    %v10834 = vadd.f32 %v10770, %v8705
    %v10835 = vadd.f32 %v10771, %v8706
    %v10836 = vadd.f32 %v10772, %v8707
    %v10837 = vadd.f32 %v10773, %v8708
    %v10838 = vadd.f32 %v10774, %v8709
    %v10839 = vadd.f32 %v10775, %v8710
    %v10840 = vadd.f32 %v10776, %v8711
    %v10841 = vadd.f32 %v10777, %v8712
    %v10842 = vadd.f32 %v10778, %v8713
    %v10843 = vadd.f32 %v10779, %v8714
    %v10844 = vadd.f32 %v10780, %v8715
    %v10845 = vadd.f32 %v10781, %v8716
    %v10846 = vadd.f32 %v10782, %v8717
    %v10847 = vadd.f32 %v10783, %v8718
    %v10848 = vadd.f32 %v10784, %v8719
    %v10849 = vadd.f32 %v10785, %v8720
    %v10850 = vadd.f32 %v10786, %v8721
    %v10851 = vadd.f32 %v10787, %v8722
    %v10852 = vadd.f32 %v10788, %v8723
    %v10853 = vadd.f32 %v10789, %v8724
    %v10854 = vadd.f32 %v10790, %v8725
    %v10855 = vadd.f32 %v10791, %v8726
    %v10856 = vadd.f32 %v10792, %v8727
    %v10857 = vadd.f32 %v10793, %v8728
    %v10858 = vadd.f32 %v10794, %v8729
    %v10859 = vadd.f32 %v10795, %v8730
    %v10860 = vadd.f32 %v10796, %v8731
    %v10861 = vadd.f32 %v10797, %v8732
    %v10862 = vadd.f32 %v10798, %v8733
    %v10863 = vadd.f32 %v10799, %v8734
    %v10864 = vadd.f32 %v10800, %v8735
    %v10865 = vadd.f32 %v10801, %v8736
    %v10866 = vadd.f32 %v10802, %v8737
    %v10867 = vadd.f32 %v10803, %v8738
    %v10868 = vadd.f32 %v10804, %v8739
    %v10869 = vadd.f32 %v10805, %v8740
    %v10870 = vadd.f32 %v10806, %v8741
    %10871 = vst [vmem:[#allocation11] sm:$0xff] %v10807
    %10872 = vst [vmem:[#allocation11 + $0x8] sm:$0xff] %v10808
    %10873 = vst [vmem:[#allocation11 + $0x10] sm:$0xff] %v10809
    %10874 = vst [vmem:[#allocation11 + $0x18] sm:$0xff] %v10810
    %10875 = vst [vmem:[#allocation11 + $0x20] sm:$0xff] %v10811
    %10876 = vst [vmem:[#allocation11 + $0x28] sm:$0xff] %v10812
    %10877 = vst [vmem:[#allocation11 + $0x30] sm:$0xff] %v10813
    %10878 = vst [vmem:[#allocation11 + $0x38] sm:$0xff] %v10814
    %10879 = vst [vmem:[#allocation11 + $0x40] sm:$0xff] %v10815
    %10880 = vst [vmem:[#allocation11 + $0x48] sm:$0xff] %v10816
    %10881 = vst [vmem:[#allocation11 + $0x50] sm:$0xff] %v10817
    %10882 = vst [vmem:[#allocation11 + $0x58] sm:$0xff] %v10818
    %10883 = vst [vmem:[#allocation11 + $0x60] sm:$0xff] %v10819
    %10884 = vst [vmem:[#allocation11 + $0x68] sm:$0xff] %v10820
    %10885 = vst [vmem:[#allocation11 + $0x70] sm:$0xff] %v10821
    %10886 = vst [vmem:[#allocation11 + $0x78] sm:$0xff] %v10822
    %10887 = vst [vmem:[#allocation11 + $0x80] sm:$0xff] %v10823
    %10888 = vst [vmem:[#allocation11 + $0x88] sm:$0xff] %v10824
    %10889 = vst [vmem:[#allocation11 + $0x90] sm:$0xff] %v10825
    %10890 = vst [vmem:[#allocation11 + $0x98] sm:$0xff] %v10826
    %10891 = vst [vmem:[#allocation11 + $0xa0] sm:$0xff] %v10827
    %10892 = vst [vmem:[#allocation11 + $0xa8] sm:$0xff] %v10828
    %10893 = vst [vmem:[#allocation11 + $0xb0] sm:$0xff] %v10829
    %10894 = vst [vmem:[#allocation11 + $0xb8] sm:$0xff] %v10830
    %10895 = vst [vmem:[#allocation11 + $0xc0] sm:$0xff] %v10831
    %10896 = vst [vmem:[#allocation11 + $0xc8] sm:$0xff] %v10832
    %10897 = vst [vmem:[#allocation11 + $0xd0] sm:$0xff] %v10833
    %10898 = vst [vmem:[#allocation11 + $0xd8] sm:$0xff] %v10834
    %10899 = vst [vmem:[#allocation11 + $0xe0] sm:$0xff] %v10835
    %10900 = vst [vmem:[#allocation11 + $0xe8] sm:$0xff] %v10836
    %10901 = vst [vmem:[#allocation11 + $0xf0] sm:$0xff] %v10837
    %10902 = vst [vmem:[#allocation11 + $0xf8] sm:$0xff] %v10838
    %10903 = vst [vmem:[#allocation11 + $0x100] sm:$0xff] %v10839
    %10904 = vst [vmem:[#allocation11 + $0x108] sm:$0xff] %v10840
    %10905 = vst [vmem:[#allocation11 + $0x110] sm:$0xff] %v10841
    %10906 = vst [vmem:[#allocation11 + $0x118] sm:$0xff] %v10842
    %10907 = vst [vmem:[#allocation11 + $0x120] sm:$0xff] %v10843
    %10908 = vst [vmem:[#allocation11 + $0x128] sm:$0xff] %v10844
    %10909 = vst [vmem:[#allocation11 + $0x130] sm:$0xff] %v10845
    %10910 = vst [vmem:[#allocation11 + $0x138] sm:$0xff] %v10846
    %10911 = vst [vmem:[#allocation11 + $0x140] sm:$0xff] %v10847
    %10912 = vst [vmem:[#allocation11 + $0x148] sm:$0xff] %v10848
    %10913 = vst [vmem:[#allocation11 + $0x150] sm:$0xff] %v10849
    %10914 = vst [vmem:[#allocation11 + $0x158] sm:$0xff] %v10850
    %10915 = vst [vmem:[#allocation11 + $0x160] sm:$0xff] %v10851
    %10916 = vst [vmem:[#allocation11 + $0x168] sm:$0xff] %v10852
    %10917 = vst [vmem:[#allocation11 + $0x170] sm:$0xff] %v10853
    %10918 = vst [vmem:[#allocation11 + $0x178] sm:$0xff] %v10854
    %10919 = vst [vmem:[#allocation11 + $0x180] sm:$0xff] %v10855
    %10920 = vst [vmem:[#allocation11 + $0x188] sm:$0xff] %v10856
    %10921 = vst [vmem:[#allocation11 + $0x190] sm:$0xff] %v10857
    %10922 = vst [vmem:[#allocation11 + $0x198] sm:$0xff] %v10858
    %10923 = vst [vmem:[#allocation11 + $0x1a0] sm:$0xff] %v10859
    %10924 = vst [vmem:[#allocation11 + $0x1a8] sm:$0xff] %v10860
    %10925 = vst [vmem:[#allocation11 + $0x1b0] sm:$0xff] %v10861
    %10926 = vst [vmem:[#allocation11 + $0x1b8] sm:$0xff] %v10862
    %10927 = vst [vmem:[#allocation11 + $0x1c0] sm:$0xff] %v10863
    %10928 = vst [vmem:[#allocation11 + $0x1c8] sm:$0xff] %v10864
    %10929 = vst [vmem:[#allocation11 + $0x1d0] sm:$0xff] %v10865
    %10930 = vst [vmem:[#allocation11 + $0x1d8] sm:$0xff] %v10866
    %10931 = vst [vmem:[#allocation11 + $0x1e0] sm:$0xff] %v10867
    %10932 = vst [vmem:[#allocation11 + $0x1e8] sm:$0xff] %v10868
    %10933 = vst [vmem:[#allocation11 + $0x1f0] sm:$0xff] %v10869
    %10934 = vst [vmem:[#allocation11 + $0x1f8] sm:$0xff] %v10870
    // Predicated region
    $region34: #{tpu_custom_call.1} parent=1 // pred_check
      _
    $region35: #{tpu_custom_call.1} parent=1 // pred_check_branch
      %10936 = sbr.rel (0) target = $region37
    $region36: #{tpu_custom_call.1} parent=1 // pred_region
      %10938 = vsyncadd [#allocation5], 0
      %s10939 = sshll.u32 [#allocation11], 4
      %s10940 = int_to_ptr.vmem [resolvable:$true] %s10939
      %s10941 = sshll.u32 %s4, 4
      %s10942 = int_to_ptr.hbm [resolvable:$true] %s10941
      %10947 = dma.vmem_to_hbm [thread:$0]  %s10940, 8192, %s10942, [#allocation5], 128, 128, 8
    $region37: #{tpu_custom_call.1} parent=1 // pred_fallthru
      _
    // Predicated region
    $region38: #{tpu_custom_call.1} parent=1 // pred_check
      _
    $region39: #{tpu_custom_call.1} parent=1 // pred_check_branch
      %10949 = sbr.rel (0) target = $region41
    $region40: #{tpu_custom_call.1} parent=1 // pred_region
      %10951 = dma.done [#allocation5], 8192
    $region41: #{tpu_custom_call.1} parent=1 // pred_fallthru
      _
    %10952 = vsyncpa [#allocation4], 1
    %10953 = vsyncpa [#allocation7], 1
    %10954 = vsyncpa [#allocation10], 1
    %10955 = vsyncpa [#allocation5], 1

</llo_original>
